<compile_context>
chip_gen: v5e
topology: v5e:2x2
jax: 0.10.0
libtpu: 0.0.40
codegen_flags: <defaults>
</compile_context>

<pallas_src>
import functools
import math

import numpy as np
import jax
import jax.numpy as jnp
from jax.experimental import pallas as pl
from jax.experimental.pallas import tpu as pltpu


def _round_up(v, m):
    return ((v + m - 1) // m) * m


# ----------------------------- fused decoder kernel -----------------------------

def _decoder_kernel(dec_len_ref, enc_len_ref,          # (Bb, 1, 1) int32
                    x_ref, enc_ref,                    # (Bb, T, D), (Bb, Tep, D) f32
                    ln1_g_ref, ln1_b_ref, wqkv_ref, bqkv_ref,
                    ln2_g_ref, ln2_b_ref, wqm_ref, bqm_ref, wkvm_ref, bkvm_ref,
                    ln3_g_ref, ln3_b_ref, ffw1_ref, ffb1_ref, ffw2_ref, ffb2_ref,
                    fcg_ref, fcb_ref, fcw_ref,
                    o_ref,                             # (Bb, T, Cpad)
                    attn_ref,                          # VMEM scratch (Bb, T, D) f32
                    *, num_layers, num_heads, num_classes, eps=1e-5):
    Bb, T, D = x_ref.shape
    Tep = enc_ref.shape[1]
    N = Bb * T
    Dh = D // num_heads
    scale = 1.0 / math.sqrt(Dh)

    x = x_ref[...].astype(jnp.float32).reshape(N, D)                 # row-major (Bb*T, D)
    enc_bf = enc_ref[...].astype(jnp.bfloat16).reshape(Bb * Tep, D)  # bf16 MXU operand

    # additive float masks, built once per batch block from lengths (no HBM mask tensors)
    dl = dec_len_ref[...]                                            # (Bb, 1, 1)
    el = enc_len_ref[...]
    rows2 = jax.lax.broadcasted_iota(jnp.int32, (T, T), 0)
    cols2 = jax.lax.broadcasted_iota(jnp.int32, (T, T), 1)
    self_bias = jnp.where(
        jnp.logical_or(cols2[None, :, :] >= dl, (cols2 > rows2)[None, :, :]),
        -1e30, 0.0)                                                  # (Bb, T, T) f32
    mcols2 = jax.lax.broadcasted_iota(jnp.int32, (T, Tep), 1)
    mem_bias = jnp.where(mcols2[None, :, :] >= el, -1e30, 0.0)       # (Bb, T, Tep) f32

    def layer_norm(v, g, beta):
        m = jnp.mean(v, axis=-1, keepdims=True)
        var = jnp.mean(jnp.square(v - m), axis=-1, keepdims=True)
        return (v - m) * jax.lax.rsqrt(var + eps) * g + beta

    def mha(q, k3, v3, bias):
        # kospeech-style MHA: per-head scaled dot product, concat heads, NO output proj.
        # q: (N, D) f32 already scaled by 1/sqrt(Dh); k3/v3: (Bb, S, D) bf16.
        q3 = q.reshape(Bb, T, D).astype(jnp.bfloat16)
        for h in range(num_heads):
            sl = slice(h * Dh, (h + 1) * Dh)
            s = jnp.einsum('btd,bsd->bts', q3[:, :, sl], k3[:, :, sl],
                           preferred_element_type=jnp.float32)
            s = s + bias
            s = s - jnp.max(s, axis=-1, keepdims=True)
            p = jnp.exp(s)
            p = p * pl.reciprocal(jnp.sum(p, axis=-1, keepdims=True), approx=True)
            attn_ref[:, :, sl] = jnp.einsum('bts,bsd->btd', p.astype(jnp.bfloat16),
                                            v3[:, :, sl],
                                            preferred_element_type=jnp.float32)
        return attn_ref[...].reshape(N, D)

    def layer_body(li, x):
        # --- masked self-attention (pre-norm), fused QKV projection ---
        h1 = layer_norm(x, ln1_g_ref[li], ln1_b_ref[li])
        qkv = jnp.dot(h1.astype(jnp.bfloat16), wqkv_ref[li],
                      preferred_element_type=jnp.float32) + bqkv_ref[li]
        q = qkv[:, :D] * scale
        k3 = qkv[:, D:2 * D].reshape(Bb, T, D).astype(jnp.bfloat16)
        v3 = qkv[:, 2 * D:].reshape(Bb, T, D).astype(jnp.bfloat16)
        x = x + mha(q, k3, v3, self_bias)

        # --- memory (encoder-decoder) attention (pre-norm), fused KV projection ---
        h2 = layer_norm(x, ln2_g_ref[li], ln2_b_ref[li])
        qm = jnp.dot(h2.astype(jnp.bfloat16), wqm_ref[li],
                     preferred_element_type=jnp.float32) + bqm_ref[li]
        kvm = jnp.dot(enc_bf, wkvm_ref[li],
                      preferred_element_type=jnp.float32) + bkvm_ref[li]
        km3 = kvm[:, :D].reshape(Bb, Tep, D).astype(jnp.bfloat16)
        vm3 = kvm[:, D:].reshape(Bb, Tep, D).astype(jnp.bfloat16)
        x = x + mha(qm * scale, km3, vm3, mem_bias)

        # --- position-wise feed-forward (pre-norm): Linear -> ReLU -> Linear ---
        h3 = layer_norm(x, ln3_g_ref[li], ln3_b_ref[li])
        f = jnp.dot(h3.astype(jnp.bfloat16), ffw1_ref[li],
                    preferred_element_type=jnp.float32) + ffb1_ref[li]
        f = jnp.maximum(f, 0.0)
        x = x + jnp.dot(f.astype(jnp.bfloat16), ffw2_ref[li],
                        preferred_element_type=jnp.float32) + ffb2_ref[li]
        return x

    if num_layers <= 4:
        for li in range(num_layers):      # unrolled: small L, full LLO visibility
            x = layer_body(li, x)
    else:
        x = jax.lax.fori_loop(0, num_layers, layer_body, x)   # bounds live ranges / IMEM

    # --- final LayerNorm -> Linear(no bias, class axis padded to 128 lanes) -> log_softmax
    hf = layer_norm(x, fcg_ref[...], fcb_ref[...])
    logits = jnp.dot(hf.astype(jnp.bfloat16), fcw_ref[...],
                     preferred_element_type=jnp.float32)             # (N, Cpad)
    Cpad = logits.shape[-1]
    cls_cols = jax.lax.broadcasted_iota(jnp.int32, (N, Cpad), 1)
    logits = jnp.where(cls_cols >= num_classes, -1e30, logits)       # mask pad lanes
    z = logits - jnp.max(logits, axis=-1, keepdims=True)
    lse = jnp.log(jnp.sum(jnp.exp(z), axis=-1, keepdims=True))
    o_ref[...] = (z - lse).reshape(Bb, T, Cpad).astype(o_ref.dtype)


# ----------------------------- kernel wrapper -----------------------------

_WEIGHT_ORDER = ("ln1_g", "ln1_b", "wqkv_self", "bqkv_self",
                 "ln2_g", "ln2_b", "wq_mem", "bq_mem", "wkv_mem", "bkv_mem",
                 "ln3_g", "ln3_b", "ff_w1", "ff_b1", "ff_w2", "ff_b2",
                 "fc_ln_g", "fc_ln_b", "fc_w")


def decoder_stack(x, enc, dec_lens, enc_lens, params, cfg):
    """Single fused pallas_call over the whole decoder stack; grid = batch blocks."""
    B, T, D = x.shape
    Te = enc.shape[1]
    L = params["wqkv_self"].shape[0]
    H = cfg["num_heads"]
    C = cfg["num_classes"]
    Cpad = params["fc_w"].shape[1]

    # Several batch items per grid step; Bb either equals the (padded) batch or is a
    # multiple of 8 so the tiny length blocks satisfy the (8,128) tiling rule.
    Bb = B if B <= 8 else 8
    Bpad = _round_up(B, Bb)
    Tp = _round_up(T, 8)           # sublane-aligned decoder length
    Tep = _round_up(Te, 128)       # lane-dense encoder (key) axis; mem mask hides padding

    xf = jnp.zeros((Bpad, Tp, D), jnp.float32).at[:B, :T, :].set(x.astype(jnp.float32))
    ef = jnp.zeros((Bpad, Tep, D), jnp.float32).at[:B, :Te, :].set(enc.astype(jnp.float32))
    dl = jnp.zeros((Bpad, 1, 1), jnp.int32).at[:B, 0, 0].set(dec_lens.astype(jnp.int32))
    el = jnp.zeros((Bpad, 1, 1), jnp.int32).at[:B, 0, 0].set(enc_lens.astype(jnp.int32))

    weights = [params[k] for k in _WEIGHT_ORDER]
    grid = (Bpad // Bb,)

    # explicit scoped-VMEM budget sized from the actual resident footprint (+ headroom)
    weight_bytes = sum(int(np.prod(w.shape)) * w.dtype.itemsize for w in weights)
    block_act_bytes = 4 * (Bb * Tp * D + Bb * Tep * D + Bb * Tp * Cpad + Bb * Tp * D)
    vmem_limit = int(min(100 * 2 ** 20,
                         max(16 * 2 ** 20,
                             2 * weight_bytes + 2 * block_act_bytes + 4 * 2 ** 20)))

    kernel = functools.partial(_decoder_kernel, num_layers=L, num_heads=H, num_classes=C)

    def build(single_buffer_weights):
        def batch_spec(shape):
            nd = len(shape)
            return pl.BlockSpec((Bb,) + tuple(shape[1:]),
                                lambda g, _n=nd: (g,) + (0,) * (_n - 1))

        def pinned(arr):
            nd = arr.ndim
            kw = {}
            if single_buffer_weights:
                # grid-invariant weights: second pipeline buffer is pure VMEM waste
                kw["pipeline_mode"] = pl.Buffered(1)
            return pl.BlockSpec(arr.shape, lambda g, _n=nd: (0,) * _n, **kw)

        grid_spec = pltpu.PrefetchScalarGridSpec(
            num_scalar_prefetch=0,
            grid=grid,
            in_specs=[batch_spec(dl.shape), batch_spec(el.shape),
                      batch_spec(xf.shape), batch_spec(ef.shape)]
                     + [pinned(w) for w in weights],
            out_specs=pl.BlockSpec((Bb, Tp, Cpad), lambda g: (g, 0, 0)),
            scratch_shapes=[pltpu.VMEM((Bb, Tp, D), jnp.float32)],   # per-head PV scratch
        )
        return pl.pallas_call(
            kernel,
            out_shape=jax.ShapeDtypeStruct((Bpad, Tp, Cpad), jnp.float32),
            grid_spec=grid_spec,
            compiler_params=pltpu.CompilerParams(
                dimension_semantics=("parallel",),
                vmem_limit_bytes=vmem_limit),
        )

    args = (dl, el, xf, ef, *weights)
    try:
        out = build(True)(*args)        # single-buffered weight specs
    except Exception:                   # pipeline_mode unsupported -> default buffering
        out = build(False)(*args)
    return out[:B, :T, :C]


# ----------------------------- model glue (plain JAX) -----------------------------

def sinusoid_positional_encoding(length, d_model):
    pos = jnp.arange(length, dtype=jnp.float32)[:, None]
    div = jnp.exp(jnp.arange(0, d_model, 2, dtype=jnp.float32) * -(math.log(10000.0) / d_model))
    pe = jnp.zeros((length, d_model), dtype=jnp.float32)
    pe = pe.at[:, 0::2].set(jnp.sin(pos * div))
    pe = pe.at[:, 1::2].set(jnp.cos(pos * div))
    return pe


def speech_transformer_decoder_forward(params, encoder_outputs, targets,
                                       encoder_output_lengths, target_lengths, cfg):
    B = encoder_outputs.shape[0]
    D = cfg["d_model"]

    # TODO(synk): targets[targets != eos_id].view(B, -1) is a data-dependent shape ->
    # done host-side (numpy), matching the torch reference's training-mode assumption
    # of exactly one eos per row; this forces a host sync per call.
    t = np.asarray(targets)
    t = t[t != cfg["eos_id"]].reshape(B, -1)
    dec_inputs = jnp.asarray(t, dtype=jnp.int32)
    T = dec_inputs.shape[1]

    # scaled embedding (padding_idx row is zero) + absolute sinusoidal positional encoding
    emb = params["embedding"][dec_inputs] * math.sqrt(D)
    x = (emb + sinusoid_positional_encoding(T, D)[None, :, :]).astype(jnp.float32)
    # input dropout (p=0.3): identity (eval)

    return decoder_stack(x, encoder_outputs, target_lengths.astype(jnp.int32),
                         encoder_output_lengths.astype(jnp.int32), params, cfg)


# ----------------------------- deterministic parameter init -----------------------------

def init_params(key, cfg, num_layers):
    D, F, C = cfg["d_model"], cfg["d_ff"], cfg["num_classes"]
    L = num_layers
    Cpad = _round_up(C, 128)

    def nrm(k, shape, s=0.05):
        # projection / FFN / classifier weights live in bf16 (f32 accumulation in-kernel)
        return (s * jax.random.normal(k, shape)).astype(jnp.bfloat16)

    keys = jax.random.split(key, 8)
    emb = ((1.0 / math.sqrt(D)) * jax.random.normal(keys[0], (C, D))).astype(jnp.float32)
    emb = emb.at[cfg["pad_id"]].set(0.0)                      # padding_idx row = 0

    fc_w = jnp.zeros((D, Cpad), jnp.bfloat16).at[:, :C].set(nrm(keys[1], (D, C)))

    params = {
        "embedding": emb,
        # final classifier (class axis padded to a full 128-lane block)
        "fc_ln_g": jnp.ones((1, D), jnp.float32),
        "fc_ln_b": jnp.zeros((1, D), jnp.float32),
        "fc_w": fc_w,
        # stacked per-layer LayerNorm params (f32 — LN math stays f32)
        "ln1_g": jnp.ones((L, 1, D), jnp.float32), "ln1_b": jnp.zeros((L, 1, D), jnp.float32),
        "ln2_g": jnp.ones((L, 1, D), jnp.float32), "ln2_b": jnp.zeros((L, 1, D), jnp.float32),
        "ln3_g": jnp.ones((L, 1, D), jnp.float32), "ln3_b": jnp.zeros((L, 1, D), jnp.float32),
        # fused self-attention QKV projection
        "wqkv_self": nrm(keys[2], (L, D, 3 * D)),
        "bqkv_self": jnp.zeros((L, 1, 3 * D), jnp.float32),
        # memory attention: Q projection + fused KV projection
        "wq_mem": nrm(keys[3], (L, D, D)),
        "bq_mem": jnp.zeros((L, 1, D), jnp.float32),
        "wkv_mem": nrm(keys[4], (L, D, 2 * D)),
        "bkv_mem": jnp.zeros((L, 1, 2 * D), jnp.float32),
        # position-wise feed-forward
        "ff_w1": nrm(keys[5], (L, D, F)), "ff_b1": jnp.zeros((L, 1, F), jnp.float32),
        "ff_w2": nrm(keys[6], (L, F, D)), "ff_b2": jnp.zeros((L, 1, D), jnp.float32),
    }
    return params


# ----------------------------- main -----------------------------

if __name__ == "__main__":
    cfg = dict(num_classes=45, d_model=32, d_ff=64, num_heads=4,
               pad_id=40, sos_id=43, eos_id=44)
    num_layers = 2
    B, T_dec, T_enc = 2, 8, 10

    key = jax.random.PRNGKey(0)
    kp, ke, kt = jax.random.split(key, 3)

    params = init_params(kp, cfg, num_layers)

    encoder_outputs = jax.random.normal(ke, (B, T_enc, cfg["d_model"]), dtype=jnp.float32)
    encoder_output_lengths = jnp.array([T_enc, 7], dtype=jnp.int32)
    target_lengths = jnp.array([T_dec, 6], dtype=jnp.int32)

    # decoder targets: valid tokens, pad beyond length, plus a trailing eos per row
    body = jax.random.randint(kt, (B, T_dec), 0, cfg["pad_id"]).astype(jnp.int32)
    body = jnp.where(jnp.arange(T_dec)[None, :] < target_lengths[:, None], body, cfg["pad_id"])
    targets = jnp.concatenate(
        [body, jnp.full((B, 1), cfg["eos_id"], dtype=jnp.int32)], axis=1)     # (B, T_dec+1)

    out = speech_transformer_decoder_forward(
        params, encoder_outputs, targets, encoder_output_lengths, target_lengths, cfg)
    out = jax.block_until_ready(out)

    assert out.shape == (B, T_dec, cfg["num_classes"])
    assert bool(jnp.all(jnp.isfinite(out)))
    # log_softmax rows must (log-)sum to ~1
    assert bool(jnp.allclose(jnp.sum(jnp.exp(out), axis=-1), 1.0, atol=1e-4))
    print("KERNEL_OK")
</pallas_src>

<mosaic_0001>
module attributes {stable_mosaic.version = 11 : i64} {
  func.func @_decoder_kernel(%arg0: i32, %arg1: memref<2x1x1xi32, #tpu.memory_space<vmem>>, %arg2: memref<2x1x1xi32, #tpu.memory_space<vmem>>, %arg3: memref<2x8x32xf32, #tpu.memory_space<vmem>>, %arg4: memref<2x128x32xf32, #tpu.memory_space<vmem>>, %arg5: memref<2x1x32xf32, #tpu.memory_space<vmem>>, %arg6: memref<2x1x32xf32, #tpu.memory_space<vmem>>, %arg7: memref<2x32x96xbf16, #tpu.memory_space<vmem>>, %arg8: memref<2x1x96xf32, #tpu.memory_space<vmem>>, %arg9: memref<2x1x32xf32, #tpu.memory_space<vmem>>, %arg10: memref<2x1x32xf32, #tpu.memory_space<vmem>>, %arg11: memref<2x32x32xbf16, #tpu.memory_space<vmem>>, %arg12: memref<2x1x32xf32, #tpu.memory_space<vmem>>, %arg13: memref<2x32x64xbf16, #tpu.memory_space<vmem>>, %arg14: memref<2x1x64xf32, #tpu.memory_space<vmem>>, %arg15: memref<2x1x32xf32, #tpu.memory_space<vmem>>, %arg16: memref<2x1x32xf32, #tpu.memory_space<vmem>>, %arg17: memref<2x32x64xbf16, #tpu.memory_space<vmem>>, %arg18: memref<2x1x64xf32, #tpu.memory_space<vmem>>, %arg19: memref<2x64x32xbf16, #tpu.memory_space<vmem>>, %arg20: memref<2x1x32xf32, #tpu.memory_space<vmem>>, %arg21: memref<1x32xf32, #tpu.memory_space<vmem>>, %arg22: memref<1x32xf32, #tpu.memory_space<vmem>>, %arg23: memref<32x128xbf16, #tpu.memory_space<vmem>>, %arg24: memref<2x8x128xf32, #tpu.memory_space<vmem>>, %arg25: memref<2x8x32xf32, #tpu.memory_space<vmem>>) attributes {dimension_semantics = [#tpu.dimension_semantics<parallel>], iteration_bounds = array<i64: 1>, scalar_prefetch = 0 : i64, scratch_operands = 1 : i64, tpu.core_type = #tpu.core_type<tc>, window_params = [{transform_indices = @transform_0, window_bounds = array<i64: 2, 1, 1>}, {transform_indices = @transform_1, window_bounds = array<i64: 2, 1, 1>}, {transform_indices = @transform_2, window_bounds = array<i64: 2, 8, 32>}, {transform_indices = @transform_3, window_bounds = array<i64: 2, 128, 32>}, {pipeline_mode = #tpu.pipeline_mode<synchronous>, transform_indices = @transform_4, window_bounds = array<i64: 2, 1, 32>}, {pipeline_mode = #tpu.pipeline_mode<synchronous>, transform_indices = @transform_5, window_bounds = array<i64: 2, 1, 32>}, {pipeline_mode = #tpu.pipeline_mode<synchronous>, transform_indices = @transform_6, window_bounds = array<i64: 2, 32, 96>}, {pipeline_mode = #tpu.pipeline_mode<synchronous>, transform_indices = @transform_7, window_bounds = array<i64: 2, 1, 96>}, {pipeline_mode = #tpu.pipeline_mode<synchronous>, transform_indices = @transform_8, window_bounds = array<i64: 2, 1, 32>}, {pipeline_mode = #tpu.pipeline_mode<synchronous>, transform_indices = @transform_9, window_bounds = array<i64: 2, 1, 32>}, {pipeline_mode = #tpu.pipeline_mode<synchronous>, transform_indices = @transform_10, window_bounds = array<i64: 2, 32, 32>}, {pipeline_mode = #tpu.pipeline_mode<synchronous>, transform_indices = @transform_11, window_bounds = array<i64: 2, 1, 32>}, {pipeline_mode = #tpu.pipeline_mode<synchronous>, transform_indices = @transform_12, window_bounds = array<i64: 2, 32, 64>}, {pipeline_mode = #tpu.pipeline_mode<synchronous>, transform_indices = @transform_13, window_bounds = array<i64: 2, 1, 64>}, {pipeline_mode = #tpu.pipeline_mode<synchronous>, transform_indices = @transform_14, window_bounds = array<i64: 2, 1, 32>}, {pipeline_mode = #tpu.pipeline_mode<synchronous>, transform_indices = @transform_15, window_bounds = array<i64: 2, 1, 32>}, {pipeline_mode = #tpu.pipeline_mode<synchronous>, transform_indices = @transform_16, window_bounds = array<i64: 2, 32, 64>}, {pipeline_mode = #tpu.pipeline_mode<synchronous>, transform_indices = @transform_17, window_bounds = array<i64: 2, 1, 64>}, {pipeline_mode = #tpu.pipeline_mode<synchronous>, transform_indices = @transform_18, window_bounds = array<i64: 2, 64, 32>}, {pipeline_mode = #tpu.pipeline_mode<synchronous>, transform_indices = @transform_19, window_bounds = array<i64: 2, 1, 32>}, {pipeline_mode = #tpu.pipeline_mode<synchronous>, transform_indices = @transform_20, window_bounds = array<i64: 1, 32>}, {pipeline_mode = #tpu.pipeline_mode<synchronous>, transform_indices = @transform_21, window_bounds = array<i64: 1, 32>}, {pipeline_mode = #tpu.pipeline_mode<synchronous>, transform_indices = @transform_22, window_bounds = array<i64: 32, 128>}, {transform_indices = @transform_23, window_bounds = array<i64: 2, 8, 128>}]} {
    %c0 = arith.constant 0 : index
    %c0_0 = arith.constant 0 : index
    %c0_1 = arith.constant 0 : index
    %0 = vector.load %arg3[%c0, %c0_0, %c0_1] : memref<2x8x32xf32, #tpu.memory_space<vmem>>, vector<2x8x32xf32>
    %1 = vector.shape_cast %0 : vector<2x8x32xf32> to vector<16x32xf32>
    %c0_2 = arith.constant 0 : index
    %c0_3 = arith.constant 0 : index
    %c0_4 = arith.constant 0 : index
    %2 = vector.load %arg4[%c0_2, %c0_3, %c0_4] : memref<2x128x32xf32, #tpu.memory_space<vmem>>, vector<2x128x32xf32>
    %3 = arith.truncf %2 : vector<2x128x32xf32> to vector<2x128x32xbf16>
    %4 = vector.shape_cast %3 : vector<2x128x32xbf16> to vector<256x32xbf16>
    %c0_5 = arith.constant 0 : index
    %c0_6 = arith.constant 0 : index
    %c0_7 = arith.constant 0 : index
    %5 = vector.load %arg1[%c0_5, %c0_6, %c0_7] : memref<2x1x1xi32, #tpu.memory_space<vmem>>, vector<2x1x1xi32>
    %c0_8 = arith.constant 0 : index
    %c0_9 = arith.constant 0 : index
    %c0_10 = arith.constant 0 : index
    %6 = vector.load %arg2[%c0_8, %c0_9, %c0_10] : memref<2x1x1xi32, #tpu.memory_space<vmem>>, vector<2x1x1xi32>
    %7 = tpu.iota {dimensions = array<i32: 0>} : vector<8x8xi32>
    %8 = tpu.iota {dimensions = array<i32: 1>} : vector<8x8xi32>
    %9 = vector.shape_cast %8 : vector<8x8xi32> to vector<1x8x8xi32>
    %10 = vector.broadcast %9 : vector<1x8x8xi32> to vector<2x8x8xi32>
    %11 = vector.broadcast %5 : vector<2x1x1xi32> to vector<2x8x8xi32>
    %12 = arith.cmpi sge, %10, %11 : vector<2x8x8xi32>
    %13 = arith.cmpi sgt, %8, %7 : vector<8x8xi32>
    %14 = vector.shape_cast %13 : vector<8x8xi1> to vector<1x8x8xi1>
    %15 = vector.broadcast %14 : vector<1x8x8xi1> to vector<2x8x8xi1>
    %16 = arith.ori %12, %15 : vector<2x8x8xi1>
    %cst = arith.constant -1.000000e+30 : f32
    %cst_11 = arith.constant 0.000000e+00 : f32
    %17 = vector.broadcast %cst : f32 to vector<2x8x8xf32>
    %18 = vector.broadcast %cst_11 : f32 to vector<2x8x8xf32>
    %19 = arith.select %16, %17, %18 : vector<2x8x8xi1>, vector<2x8x8xf32>
    %20 = tpu.iota {dimensions = array<i32: 1>} : vector<8x128xi32>
    %21 = vector.shape_cast %20 : vector<8x128xi32> to vector<1x8x128xi32>
    %22 = vector.broadcast %21 : vector<1x8x128xi32> to vector<2x8x128xi32>
    %23 = vector.broadcast %6 : vector<2x1x1xi32> to vector<2x8x128xi32>
    %24 = arith.cmpi sge, %22, %23 : vector<2x8x128xi32>
    %cst_12 = arith.constant -1.000000e+30 : f32
    %cst_13 = arith.constant 0.000000e+00 : f32
    %25 = vector.broadcast %cst_12 : f32 to vector<2x8x128xf32>
    %26 = vector.broadcast %cst_13 : f32 to vector<2x8x128xf32>
    %27 = arith.select %24, %25, %26 : vector<2x8x128xi1>, vector<2x8x128xf32>
    %c0_14 = arith.constant 0 : index
    %c0_15 = arith.constant 0 : index
    %c0_16 = arith.constant 0 : index
    %28 = vector.load %arg5[%c0_14, %c0_15, %c0_16] : memref<2x1x32xf32, #tpu.memory_space<vmem>>, vector<1x1x32xf32>
    %29 = vector.shape_cast %28 : vector<1x1x32xf32> to vector<1x32xf32>
    %c0_17 = arith.constant 0 : index
    %c0_18 = arith.constant 0 : index
    %c0_19 = arith.constant 0 : index
    %30 = vector.load %arg6[%c0_17, %c0_18, %c0_19] : memref<2x1x32xf32, #tpu.memory_space<vmem>>, vector<1x1x32xf32>
    %31 = vector.shape_cast %30 : vector<1x1x32xf32> to vector<1x32xf32>
    %cst_20 = arith.constant dense<0.000000e+00> : vector<16xf32>
    %32 = vector.multi_reduction <add>, %1, %cst_20 [1] : vector<16x32xf32> to vector<16xf32>
    %33 = vector.shape_cast %32 : vector<16xf32> to vector<16x1xf32>
    %cst_21 = arith.constant 3.200000e+01 : f32
    %34 = vector.broadcast %cst_21 : f32 to vector<16x1xf32>
    %35 = arith.divf %33, %34 : vector<16x1xf32>
    %36 = vector.broadcast %35 : vector<16x1xf32> to vector<16x32xf32>
    %37 = arith.subf %1, %36 : vector<16x32xf32>
    %38 = arith.mulf %37, %37 : vector<16x32xf32>
    %cst_22 = arith.constant dense<0.000000e+00> : vector<16xf32>
    %39 = vector.multi_reduction <add>, %38, %cst_22 [1] : vector<16x32xf32> to vector<16xf32>
    %40 = vector.shape_cast %39 : vector<16xf32> to vector<16x1xf32>
    %cst_23 = arith.constant 3.200000e+01 : f32
    %41 = vector.broadcast %cst_23 : f32 to vector<16x1xf32>
    %42 = arith.divf %40, %41 : vector<16x1xf32>
    %43 = vector.broadcast %35 : vector<16x1xf32> to vector<16x32xf32>
    %44 = arith.subf %1, %43 : vector<16x32xf32>
    %cst_24 = arith.constant 9.99999974E-6 : f32
    %45 = vector.broadcast %cst_24 : f32 to vector<16x1xf32>
    %46 = arith.addf %42, %45 : vector<16x1xf32>
    %47 = math.rsqrt %46 : vector<16x1xf32>
    %48 = vector.broadcast %47 : vector<16x1xf32> to vector<16x32xf32>
    %49 = arith.mulf %44, %48 : vector<16x32xf32>
    %50 = vector.broadcast %29 : vector<1x32xf32> to vector<16x32xf32>
    %51 = arith.mulf %49, %50 : vector<16x32xf32>
    %52 = vector.broadcast %31 : vector<1x32xf32> to vector<16x32xf32>
    %53 = arith.addf %51, %52 : vector<16x32xf32>
    %54 = arith.truncf %53 : vector<16x32xf32> to vector<16x32xbf16>
    %c0_25 = arith.constant 0 : index
    %c0_26 = arith.constant 0 : index
    %c0_27 = arith.constant 0 : index
    %55 = vector.load %arg7[%c0_25, %c0_26, %c0_27] : memref<2x32x96xbf16, #tpu.memory_space<vmem>>, vector<1x32x96xbf16>
    %56 = vector.shape_cast %55 : vector<1x32x96xbf16> to vector<32x96xbf16>
    %cst_28 = arith.constant dense<0.000000e+00> : vector<16x96xf32>
    %57 = tpu.matmul %54, %56, %cst_28 {dimension_numbers = #tpu.dot_dimension_numbers<[1], [0], [0], [1], [0, 0, 1, 1], [], []>} : vector<16x32xbf16>, vector<32x96xbf16>, vector<16x96xf32> -> vector<16x96xf32>
    %c0_29 = arith.constant 0 : index
    %c0_30 = arith.constant 0 : index
    %c0_31 = arith.constant 0 : index
    %58 = vector.load %arg8[%c0_29, %c0_30, %c0_31] : memref<2x1x96xf32, #tpu.memory_space<vmem>>, vector<1x1x96xf32>
    %59 = vector.shape_cast %58 : vector<1x1x96xf32> to vector<1x96xf32>
    %60 = vector.broadcast %59 : vector<1x96xf32> to vector<16x96xf32>
    %61 = arith.addf %57, %60 : vector<16x96xf32>
    %62 = vector.extract_strided_slice %61 {offsets = [0, 0], sizes = [16, 32], strides = [1, 1]} : vector<16x96xf32> to vector<16x32xf32>
    %cst_32 = arith.constant 0.353553385 : f32
    %63 = vector.broadcast %cst_32 : f32 to vector<16x32xf32>
    %64 = arith.mulf %62, %63 : vector<16x32xf32>
    %65 = vector.extract_strided_slice %61 {offsets = [0, 32], sizes = [16, 32], strides = [1, 1]} : vector<16x96xf32> to vector<16x32xf32>
    %66 = vector.shape_cast %65 : vector<16x32xf32> to vector<2x8x32xf32>
    %67 = arith.truncf %66 : vector<2x8x32xf32> to vector<2x8x32xbf16>
    %68 = vector.extract_strided_slice %61 {offsets = [0, 64], sizes = [16, 32], strides = [1, 1]} : vector<16x96xf32> to vector<16x32xf32>
    %69 = vector.shape_cast %68 : vector<16x32xf32> to vector<2x8x32xf32>
    %70 = arith.truncf %69 : vector<2x8x32xf32> to vector<2x8x32xbf16>
    %71 = vector.shape_cast %64 : vector<16x32xf32> to vector<2x8x32xf32>
    %72 = arith.truncf %71 : vector<2x8x32xf32> to vector<2x8x32xbf16>
    %73 = vector.extract_strided_slice %72 {offsets = [0, 0, 0], sizes = [2, 8, 8], strides = [1, 1, 1]} : vector<2x8x32xbf16> to vector<2x8x8xbf16>
    %74 = vector.extract_strided_slice %67 {offsets = [0, 0, 0], sizes = [2, 8, 8], strides = [1, 1, 1]} : vector<2x8x32xbf16> to vector<2x8x8xbf16>
    "tpu.trace_start"() <{level = 10 : i32, message = "btd,bsd->bts"}> : () -> ()
    %cst_33 = arith.constant dense<0.000000e+00> : vector<2x8x8xf32>
    %75 = tpu.matmul %73, %74, %cst_33 {dimension_numbers = #tpu.dot_dimension_numbers<[2], [2], [1], [1], [0, 0, 0, 1, 1, 1], [0], [0]>} : vector<2x8x8xbf16>, vector<2x8x8xbf16>, vector<2x8x8xf32> -> vector<2x8x8xf32>
    "tpu.trace_stop"() : () -> ()
    %76 = arith.addf %75, %19 : vector<2x8x8xf32>
    %cst_34 = arith.constant dense<0xFF800000> : vector<2x8xf32>
    %77 = vector.multi_reduction <maximumf>, %76, %cst_34 [2] : vector<2x8x8xf32> to vector<2x8xf32>
    %78 = vector.shape_cast %77 : vector<2x8xf32> to vector<2x8x1xf32>
    %79 = vector.broadcast %78 : vector<2x8x1xf32> to vector<2x8x8xf32>
    %80 = arith.subf %76, %79 : vector<2x8x8xf32>
    %81 = math.exp %80 : vector<2x8x8xf32>
    %cst_35 = arith.constant dense<0.000000e+00> : vector<2x8xf32>
    %82 = vector.multi_reduction <add>, %81, %cst_35 [2] : vector<2x8x8xf32> to vector<2x8xf32>
    %83 = vector.shape_cast %82 : vector<2x8xf32> to vector<2x8x1xf32>
    %84 = tpu.reciprocal %83 {approx = true} : vector<2x8x1xf32> -> vector<2x8x1xf32>
    %85 = vector.broadcast %84 : vector<2x8x1xf32> to vector<2x8x8xf32>
    %86 = arith.mulf %81, %85 : vector<2x8x8xf32>
    %87 = arith.truncf %86 : vector<2x8x8xf32> to vector<2x8x8xbf16>
    %88 = vector.extract_strided_slice %70 {offsets = [0, 0, 0], sizes = [2, 8, 8], strides = [1, 1, 1]} : vector<2x8x32xbf16> to vector<2x8x8xbf16>
    "tpu.trace_start"() <{level = 10 : i32, message = "bts,bsd->btd"}> : () -> ()
    %cst_36 = arith.constant dense<0.000000e+00> : vector<2x8x8xf32>
    %89 = tpu.matmul %87, %88, %cst_36 {dimension_numbers = #tpu.dot_dimension_numbers<[2], [1], [1], [2], [0, 0, 0, 1, 1, 2], [0], [0]>} : vector<2x8x8xbf16>, vector<2x8x8xbf16>, vector<2x8x8xf32> -> vector<2x8x8xf32>
    "tpu.trace_stop"() : () -> ()
    %c0_37 = arith.constant 0 : index
    %c0_38 = arith.constant 0 : index
    %c0_39 = arith.constant 0 : index
    %90 = vector.load %arg25[%c0_37, %c0_38, %c0_39] : memref<2x8x32xf32, #tpu.memory_space<vmem>>, vector<2x8x8xf32>
    tpu.vector_store %arg25[%c0_37, %c0_38, %c0_39], %89 {strides = array<i32>} : memref<2x8x32xf32, #tpu.memory_space<vmem>>, vector<2x8x8xf32>,
    %91 = vector.extract_strided_slice %72 {offsets = [0, 0, 8], sizes = [2, 8, 8], strides = [1, 1, 1]} : vector<2x8x32xbf16> to vector<2x8x8xbf16>
    %92 = vector.extract_strided_slice %67 {offsets = [0, 0, 8], sizes = [2, 8, 8], strides = [1, 1, 1]} : vector<2x8x32xbf16> to vector<2x8x8xbf16>
    "tpu.trace_start"() <{level = 10 : i32, message = "btd,bsd->bts"}> : () -> ()
    %cst_40 = arith.constant dense<0.000000e+00> : vector<2x8x8xf32>
    %93 = tpu.matmul %91, %92, %cst_40 {dimension_numbers = #tpu.dot_dimension_numbers<[2], [2], [1], [1], [0, 0, 0, 1, 1, 1], [0], [0]>} : vector<2x8x8xbf16>, vector<2x8x8xbf16>, vector<2x8x8xf32> -> vector<2x8x8xf32>
    "tpu.trace_stop"() : () -> ()
    %94 = arith.addf %93, %19 : vector<2x8x8xf32>
    %cst_41 = arith.constant dense<0xFF800000> : vector<2x8xf32>
    %95 = vector.multi_reduction <maximumf>, %94, %cst_41 [2] : vector<2x8x8xf32> to vector<2x8xf32>
    %96 = vector.shape_cast %95 : vector<2x8xf32> to vector<2x8x1xf32>
    %97 = vector.broadcast %96 : vector<2x8x1xf32> to vector<2x8x8xf32>
    %98 = arith.subf %94, %97 : vector<2x8x8xf32>
    %99 = math.exp %98 : vector<2x8x8xf32>
    %cst_42 = arith.constant dense<0.000000e+00> : vector<2x8xf32>
    %100 = vector.multi_reduction <add>, %99, %cst_42 [2] : vector<2x8x8xf32> to vector<2x8xf32>
    %101 = vector.shape_cast %100 : vector<2x8xf32> to vector<2x8x1xf32>
    %102 = tpu.reciprocal %101 {approx = true} : vector<2x8x1xf32> -> vector<2x8x1xf32>
    %103 = vector.broadcast %102 : vector<2x8x1xf32> to vector<2x8x8xf32>
    %104 = arith.mulf %99, %103 : vector<2x8x8xf32>
    %105 = arith.truncf %104 : vector<2x8x8xf32> to vector<2x8x8xbf16>
    %106 = vector.extract_strided_slice %70 {offsets = [0, 0, 8], sizes = [2, 8, 8], strides = [1, 1, 1]} : vector<2x8x32xbf16> to vector<2x8x8xbf16>
    "tpu.trace_start"() <{level = 10 : i32, message = "bts,bsd->btd"}> : () -> ()
    %cst_43 = arith.constant dense<0.000000e+00> : vector<2x8x8xf32>
    %107 = tpu.matmul %105, %106, %cst_43 {dimension_numbers = #tpu.dot_dimension_numbers<[2], [1], [1], [2], [0, 0, 0, 1, 1, 2], [0], [0]>} : vector<2x8x8xbf16>, vector<2x8x8xbf16>, vector<2x8x8xf32> -> vector<2x8x8xf32>
    "tpu.trace_stop"() : () -> ()
    %c0_44 = arith.constant 0 : index
    %c0_45 = arith.constant 0 : index
    %c8 = arith.constant 8 : index
    %108 = vector.load %arg25[%c0_44, %c0_45, %c8] : memref<2x8x32xf32, #tpu.memory_space<vmem>>, vector<2x8x8xf32>
    tpu.vector_store %arg25[%c0_44, %c0_45, %c8], %107 {strides = array<i32>} : memref<2x8x32xf32, #tpu.memory_space<vmem>>, vector<2x8x8xf32>,
    %109 = vector.extract_strided_slice %72 {offsets = [0, 0, 16], sizes = [2, 8, 8], strides = [1, 1, 1]} : vector<2x8x32xbf16> to vector<2x8x8xbf16>
    %110 = vector.extract_strided_slice %67 {offsets = [0, 0, 16], sizes = [2, 8, 8], strides = [1, 1, 1]} : vector<2x8x32xbf16> to vector<2x8x8xbf16>
    "tpu.trace_start"() <{level = 10 : i32, message = "btd,bsd->bts"}> : () -> ()
    %cst_46 = arith.constant dense<0.000000e+00> : vector<2x8x8xf32>
    %111 = tpu.matmul %109, %110, %cst_46 {dimension_numbers = #tpu.dot_dimension_numbers<[2], [2], [1], [1], [0, 0, 0, 1, 1, 1], [0], [0]>} : vector<2x8x8xbf16>, vector<2x8x8xbf16>, vector<2x8x8xf32> -> vector<2x8x8xf32>
    "tpu.trace_stop"() : () -> ()
    %112 = arith.addf %111, %19 : vector<2x8x8xf32>
    %cst_47 = arith.constant dense<0xFF800000> : vector<2x8xf32>
    %113 = vector.multi_reduction <maximumf>, %112, %cst_47 [2] : vector<2x8x8xf32> to vector<2x8xf32>
    %114 = vector.shape_cast %113 : vector<2x8xf32> to vector<2x8x1xf32>
    %115 = vector.broadcast %114 : vector<2x8x1xf32> to vector<2x8x8xf32>
    %116 = arith.subf %112, %115 : vector<2x8x8xf32>
    %117 = math.exp %116 : vector<2x8x8xf32>
    %cst_48 = arith.constant dense<0.000000e+00> : vector<2x8xf32>
    %118 = vector.multi_reduction <add>, %117, %cst_48 [2] : vector<2x8x8xf32> to vector<2x8xf32>
    %119 = vector.shape_cast %118 : vector<2x8xf32> to vector<2x8x1xf32>
    %120 = tpu.reciprocal %119 {approx = true} : vector<2x8x1xf32> -> vector<2x8x1xf32>
    %121 = vector.broadcast %120 : vector<2x8x1xf32> to vector<2x8x8xf32>
    %122 = arith.mulf %117, %121 : vector<2x8x8xf32>
    %123 = arith.truncf %122 : vector<2x8x8xf32> to vector<2x8x8xbf16>
    %124 = vector.extract_strided_slice %70 {offsets = [0, 0, 16], sizes = [2, 8, 8], strides = [1, 1, 1]} : vector<2x8x32xbf16> to vector<2x8x8xbf16>
    "tpu.trace_start"() <{level = 10 : i32, message = "bts,bsd->btd"}> : () -> ()
    %cst_49 = arith.constant dense<0.000000e+00> : vector<2x8x8xf32>
    %125 = tpu.matmul %123, %124, %cst_49 {dimension_numbers = #tpu.dot_dimension_numbers<[2], [1], [1], [2], [0, 0, 0, 1, 1, 2], [0], [0]>} : vector<2x8x8xbf16>, vector<2x8x8xbf16>, vector<2x8x8xf32> -> vector<2x8x8xf32>
    "tpu.trace_stop"() : () -> ()
    %c0_50 = arith.constant 0 : index
    %c0_51 = arith.constant 0 : index
    %c16 = arith.constant 16 : index
    %126 = vector.load %arg25[%c0_50, %c0_51, %c16] : memref<2x8x32xf32, #tpu.memory_space<vmem>>, vector<2x8x8xf32>
    tpu.vector_store %arg25[%c0_50, %c0_51, %c16], %125 {strides = array<i32>} : memref<2x8x32xf32, #tpu.memory_space<vmem>>, vector<2x8x8xf32>,
    %127 = vector.extract_strided_slice %72 {offsets = [0, 0, 24], sizes = [2, 8, 8], strides = [1, 1, 1]} : vector<2x8x32xbf16> to vector<2x8x8xbf16>
    %128 = vector.extract_strided_slice %67 {offsets = [0, 0, 24], sizes = [2, 8, 8], strides = [1, 1, 1]} : vector<2x8x32xbf16> to vector<2x8x8xbf16>
    "tpu.trace_start"() <{level = 10 : i32, message = "btd,bsd->bts"}> : () -> ()
    %cst_52 = arith.constant dense<0.000000e+00> : vector<2x8x8xf32>
    %129 = tpu.matmul %127, %128, %cst_52 {dimension_numbers = #tpu.dot_dimension_numbers<[2], [2], [1], [1], [0, 0, 0, 1, 1, 1], [0], [0]>} : vector<2x8x8xbf16>, vector<2x8x8xbf16>, vector<2x8x8xf32> -> vector<2x8x8xf32>
    "tpu.trace_stop"() : () -> ()
    %130 = arith.addf %129, %19 : vector<2x8x8xf32>
    %cst_53 = arith.constant dense<0xFF800000> : vector<2x8xf32>
    %131 = vector.multi_reduction <maximumf>, %130, %cst_53 [2] : vector<2x8x8xf32> to vector<2x8xf32>
    %132 = vector.shape_cast %131 : vector<2x8xf32> to vector<2x8x1xf32>
    %133 = vector.broadcast %132 : vector<2x8x1xf32> to vector<2x8x8xf32>
    %134 = arith.subf %130, %133 : vector<2x8x8xf32>
    %135 = math.exp %134 : vector<2x8x8xf32>
    %cst_54 = arith.constant dense<0.000000e+00> : vector<2x8xf32>
    %136 = vector.multi_reduction <add>, %135, %cst_54 [2] : vector<2x8x8xf32> to vector<2x8xf32>
    %137 = vector.shape_cast %136 : vector<2x8xf32> to vector<2x8x1xf32>
    %138 = tpu.reciprocal %137 {approx = true} : vector<2x8x1xf32> -> vector<2x8x1xf32>
    %139 = vector.broadcast %138 : vector<2x8x1xf32> to vector<2x8x8xf32>
    %140 = arith.mulf %135, %139 : vector<2x8x8xf32>
    %141 = arith.truncf %140 : vector<2x8x8xf32> to vector<2x8x8xbf16>
    %142 = vector.extract_strided_slice %70 {offsets = [0, 0, 24], sizes = [2, 8, 8], strides = [1, 1, 1]} : vector<2x8x32xbf16> to vector<2x8x8xbf16>
    "tpu.trace_start"() <{level = 10 : i32, message = "bts,bsd->btd"}> : () -> ()
    %cst_55 = arith.constant dense<0.000000e+00> : vector<2x8x8xf32>
    %143 = tpu.matmul %141, %142, %cst_55 {dimension_numbers = #tpu.dot_dimension_numbers<[2], [1], [1], [2], [0, 0, 0, 1, 1, 2], [0], [0]>} : vector<2x8x8xbf16>, vector<2x8x8xbf16>, vector<2x8x8xf32> -> vector<2x8x8xf32>
    "tpu.trace_stop"() : () -> ()
    %c0_56 = arith.constant 0 : index
    %c0_57 = arith.constant 0 : index
    %c24 = arith.constant 24 : index
    %144 = vector.load %arg25[%c0_56, %c0_57, %c24] : memref<2x8x32xf32, #tpu.memory_space<vmem>>, vector<2x8x8xf32>
    tpu.vector_store %arg25[%c0_56, %c0_57, %c24], %143 {strides = array<i32>} : memref<2x8x32xf32, #tpu.memory_space<vmem>>, vector<2x8x8xf32>,
    %c0_58 = arith.constant 0 : index
    %c0_59 = arith.constant 0 : index
    %c0_60 = arith.constant 0 : index
    %145 = vector.load %arg25[%c0_58, %c0_59, %c0_60] : memref<2x8x32xf32, #tpu.memory_space<vmem>>, vector<2x8x32xf32>
    %146 = vector.shape_cast %145 : vector<2x8x32xf32> to vector<16x32xf32>
    %147 = arith.addf %1, %146 : vector<16x32xf32>
    %c0_61 = arith.constant 0 : index
    %c0_62 = arith.constant 0 : index
    %c0_63 = arith.constant 0 : index
    %148 = vector.load %arg9[%c0_61, %c0_62, %c0_63] : memref<2x1x32xf32, #tpu.memory_space<vmem>>, vector<1x1x32xf32>
    %149 = vector.shape_cast %148 : vector<1x1x32xf32> to vector<1x32xf32>
    %c0_64 = arith.constant 0 : index
    %c0_65 = arith.constant 0 : index
    %c0_66 = arith.constant 0 : index
    %150 = vector.load %arg10[%c0_64, %c0_65, %c0_66] : memref<2x1x32xf32, #tpu.memory_space<vmem>>, vector<1x1x32xf32>
    %151 = vector.shape_cast %150 : vector<1x1x32xf32> to vector<1x32xf32>
    %cst_67 = arith.constant dense<0.000000e+00> : vector<16xf32>
    %152 = vector.multi_reduction <add>, %147, %cst_67 [1] : vector<16x32xf32> to vector<16xf32>
    %153 = vector.shape_cast %152 : vector<16xf32> to vector<16x1xf32>
    %cst_68 = arith.constant 3.200000e+01 : f32
    %154 = vector.broadcast %cst_68 : f32 to vector<16x1xf32>
    %155 = arith.divf %153, %154 : vector<16x1xf32>
    %156 = vector.broadcast %155 : vector<16x1xf32> to vector<16x32xf32>
    %157 = arith.subf %147, %156 : vector<16x32xf32>
    %158 = arith.mulf %157, %157 : vector<16x32xf32>
    %cst_69 = arith.constant dense<0.000000e+00> : vector<16xf32>
    %159 = vector.multi_reduction <add>, %158, %cst_69 [1] : vector<16x32xf32> to vector<16xf32>
    %160 = vector.shape_cast %159 : vector<16xf32> to vector<16x1xf32>
    %cst_70 = arith.constant 3.200000e+01 : f32
    %161 = vector.broadcast %cst_70 : f32 to vector<16x1xf32>
    %162 = arith.divf %160, %161 : vector<16x1xf32>
    %163 = vector.broadcast %155 : vector<16x1xf32> to vector<16x32xf32>
    %164 = arith.subf %147, %163 : vector<16x32xf32>
    %cst_71 = arith.constant 9.99999974E-6 : f32
    %165 = vector.broadcast %cst_71 : f32 to vector<16x1xf32>
    %166 = arith.addf %162, %165 : vector<16x1xf32>
    %167 = math.rsqrt %166 : vector<16x1xf32>
    %168 = vector.broadcast %167 : vector<16x1xf32> to vector<16x32xf32>
    %169 = arith.mulf %164, %168 : vector<16x32xf32>
    %170 = vector.broadcast %149 : vector<1x32xf32> to vector<16x32xf32>
    %171 = arith.mulf %169, %170 : vector<16x32xf32>
    %172 = vector.broadcast %151 : vector<1x32xf32> to vector<16x32xf32>
    %173 = arith.addf %171, %172 : vector<16x32xf32>
    %174 = arith.truncf %173 : vector<16x32xf32> to vector<16x32xbf16>
    %c0_72 = arith.constant 0 : index
    %c0_73 = arith.constant 0 : index
    %c0_74 = arith.constant 0 : index
    %175 = vector.load %arg11[%c0_72, %c0_73, %c0_74] : memref<2x32x32xbf16, #tpu.memory_space<vmem>>, vector<1x32x32xbf16>
    %176 = vector.shape_cast %175 : vector<1x32x32xbf16> to vector<32x32xbf16>
    %cst_75 = arith.constant dense<0.000000e+00> : vector<16x32xf32>
    %177 = tpu.matmul %174, %176, %cst_75 {dimension_numbers = #tpu.dot_dimension_numbers<[1], [0], [0], [1], [0, 0, 1, 1], [], []>} : vector<16x32xbf16>, vector<32x32xbf16>, vector<16x32xf32> -> vector<16x32xf32>
    %c0_76 = arith.constant 0 : index
    %c0_77 = arith.constant 0 : index
    %c0_78 = arith.constant 0 : index
    %178 = vector.load %arg12[%c0_76, %c0_77, %c0_78] : memref<2x1x32xf32, #tpu.memory_space<vmem>>, vector<1x1x32xf32>
    %179 = vector.shape_cast %178 : vector<1x1x32xf32> to vector<1x32xf32>
    %180 = vector.broadcast %179 : vector<1x32xf32> to vector<16x32xf32>
    %181 = arith.addf %177, %180 : vector<16x32xf32>
    %c0_79 = arith.constant 0 : index
    %c0_80 = arith.constant 0 : index
    %c0_81 = arith.constant 0 : index
    %182 = vector.load %arg13[%c0_79, %c0_80, %c0_81] : memref<2x32x64xbf16, #tpu.memory_space<vmem>>, vector<1x32x64xbf16>
    %183 = vector.shape_cast %182 : vector<1x32x64xbf16> to vector<32x64xbf16>
    %cst_82 = arith.constant dense<0.000000e+00> : vector<256x64xf32>
    %184 = tpu.matmul %4, %183, %cst_82 {dimension_numbers = #tpu.dot_dimension_numbers<[1], [0], [0], [1], [0, 0, 1, 1], [], []>} : vector<256x32xbf16>, vector<32x64xbf16>, vector<256x64xf32> -> vector<256x64xf32>
    %c0_83 = arith.constant 0 : index
    %c0_84 = arith.constant 0 : index
    %c0_85 = arith.constant 0 : index
    %185 = vector.load %arg14[%c0_83, %c0_84, %c0_85] : memref<2x1x64xf32, #tpu.memory_space<vmem>>, vector<1x1x64xf32>
    %186 = vector.shape_cast %185 : vector<1x1x64xf32> to vector<1x64xf32>
    %187 = vector.broadcast %186 : vector<1x64xf32> to vector<256x64xf32>
    %188 = arith.addf %184, %187 : vector<256x64xf32>
    %189 = vector.extract_strided_slice %188 {offsets = [0, 0], sizes = [256, 32], strides = [1, 1]} : vector<256x64xf32> to vector<256x32xf32>
    %190 = vector.shape_cast %189 : vector<256x32xf32> to vector<2x128x32xf32>
    %191 = arith.truncf %190 : vector<2x128x32xf32> to vector<2x128x32xbf16>
    %192 = vector.extract_strided_slice %188 {offsets = [0, 32], sizes = [256, 32], strides = [1, 1]} : vector<256x64xf32> to vector<256x32xf32>
    %193 = vector.shape_cast %192 : vector<256x32xf32> to vector<2x128x32xf32>
    %194 = arith.truncf %193 : vector<2x128x32xf32> to vector<2x128x32xbf16>
    %cst_86 = arith.constant 0.353553385 : f32
    %195 = vector.broadcast %cst_86 : f32 to vector<16x32xf32>
    %196 = arith.mulf %181, %195 : vector<16x32xf32>
    %197 = vector.shape_cast %196 : vector<16x32xf32> to vector<2x8x32xf32>
    %198 = arith.truncf %197 : vector<2x8x32xf32> to vector<2x8x32xbf16>
    %199 = vector.extract_strided_slice %198 {offsets = [0, 0, 0], sizes = [2, 8, 8], strides = [1, 1, 1]} : vector<2x8x32xbf16> to vector<2x8x8xbf16>
    %200 = vector.extract_strided_slice %191 {offsets = [0, 0, 0], sizes = [2, 128, 8], strides = [1, 1, 1]} : vector<2x128x32xbf16> to vector<2x128x8xbf16>
    "tpu.trace_start"() <{level = 10 : i32, message = "btd,bsd->bts"}> : () -> ()
    %cst_87 = arith.constant dense<0.000000e+00> : vector<2x8x128xf32>
    %201 = tpu.matmul %199, %200, %cst_87 {dimension_numbers = #tpu.dot_dimension_numbers<[2], [2], [1], [1], [0, 0, 0, 1, 1, 1], [0], [0]>} : vector<2x8x8xbf16>, vector<2x128x8xbf16>, vector<2x8x128xf32> -> vector<2x8x128xf32>
    "tpu.trace_stop"() : () -> ()
    %202 = arith.addf %201, %27 : vector<2x8x128xf32>
    %cst_88 = arith.constant dense<0xFF800000> : vector<2x8xf32>
    %203 = vector.multi_reduction <maximumf>, %202, %cst_88 [2] : vector<2x8x128xf32> to vector<2x8xf32>
    %204 = vector.shape_cast %203 : vector<2x8xf32> to vector<2x8x1xf32>
    %205 = vector.broadcast %204 : vector<2x8x1xf32> to vector<2x8x128xf32>
    %206 = arith.subf %202, %205 : vector<2x8x128xf32>
    %207 = math.exp %206 : vector<2x8x128xf32>
    %cst_89 = arith.constant dense<0.000000e+00> : vector<2x8xf32>
    %208 = vector.multi_reduction <add>, %207, %cst_89 [2] : vector<2x8x128xf32> to vector<2x8xf32>
    %209 = vector.shape_cast %208 : vector<2x8xf32> to vector<2x8x1xf32>
    %210 = tpu.reciprocal %209 {approx = true} : vector<2x8x1xf32> -> vector<2x8x1xf32>
    %211 = vector.broadcast %210 : vector<2x8x1xf32> to vector<2x8x128xf32>
    %212 = arith.mulf %207, %211 : vector<2x8x128xf32>
    %213 = arith.truncf %212 : vector<2x8x128xf32> to vector<2x8x128xbf16>
    %214 = vector.extract_strided_slice %194 {offsets = [0, 0, 0], sizes = [2, 128, 8], strides = [1, 1, 1]} : vector<2x128x32xbf16> to vector<2x128x8xbf16>
    "tpu.trace_start"() <{level = 10 : i32, message = "bts,bsd->btd"}> : () -> ()
    %cst_90 = arith.constant dense<0.000000e+00> : vector<2x8x8xf32>
    %215 = tpu.matmul %213, %214, %cst_90 {dimension_numbers = #tpu.dot_dimension_numbers<[2], [1], [1], [2], [0, 0, 0, 1, 1, 2], [0], [0]>} : vector<2x8x128xbf16>, vector<2x128x8xbf16>, vector<2x8x8xf32> -> vector<2x8x8xf32>
    "tpu.trace_stop"() : () -> ()
    %c0_91 = arith.constant 0 : index
    %c0_92 = arith.constant 0 : index
    %c0_93 = arith.constant 0 : index
    %216 = vector.load %arg25[%c0_91, %c0_92, %c0_93] : memref<2x8x32xf32, #tpu.memory_space<vmem>>, vector<2x8x8xf32>
    tpu.vector_store %arg25[%c0_91, %c0_92, %c0_93], %215 {strides = array<i32>} : memref<2x8x32xf32, #tpu.memory_space<vmem>>, vector<2x8x8xf32>,
    %217 = vector.extract_strided_slice %198 {offsets = [0, 0, 8], sizes = [2, 8, 8], strides = [1, 1, 1]} : vector<2x8x32xbf16> to vector<2x8x8xbf16>
    %218 = vector.extract_strided_slice %191 {offsets = [0, 0, 8], sizes = [2, 128, 8], strides = [1, 1, 1]} : vector<2x128x32xbf16> to vector<2x128x8xbf16>
    "tpu.trace_start"() <{level = 10 : i32, message = "btd,bsd->bts"}> : () -> ()
    %cst_94 = arith.constant dense<0.000000e+00> : vector<2x8x128xf32>
    %219 = tpu.matmul %217, %218, %cst_94 {dimension_numbers = #tpu.dot_dimension_numbers<[2], [2], [1], [1], [0, 0, 0, 1, 1, 1], [0], [0]>} : vector<2x8x8xbf16>, vector<2x128x8xbf16>, vector<2x8x128xf32> -> vector<2x8x128xf32>
    "tpu.trace_stop"() : () -> ()
    %220 = arith.addf %219, %27 : vector<2x8x128xf32>
    %cst_95 = arith.constant dense<0xFF800000> : vector<2x8xf32>
    %221 = vector.multi_reduction <maximumf>, %220, %cst_95 [2] : vector<2x8x128xf32> to vector<2x8xf32>
    %222 = vector.shape_cast %221 : vector<2x8xf32> to vector<2x8x1xf32>
    %223 = vector.broadcast %222 : vector<2x8x1xf32> to vector<2x8x128xf32>
    %224 = arith.subf %220, %223 : vector<2x8x128xf32>
    %225 = math.exp %224 : vector<2x8x128xf32>
    %cst_96 = arith.constant dense<0.000000e+00> : vector<2x8xf32>
    %226 = vector.multi_reduction <add>, %225, %cst_96 [2] : vector<2x8x128xf32> to vector<2x8xf32>
    %227 = vector.shape_cast %226 : vector<2x8xf32> to vector<2x8x1xf32>
    %228 = tpu.reciprocal %227 {approx = true} : vector<2x8x1xf32> -> vector<2x8x1xf32>
    %229 = vector.broadcast %228 : vector<2x8x1xf32> to vector<2x8x128xf32>
    %230 = arith.mulf %225, %229 : vector<2x8x128xf32>
    %231 = arith.truncf %230 : vector<2x8x128xf32> to vector<2x8x128xbf16>
    %232 = vector.extract_strided_slice %194 {offsets = [0, 0, 8], sizes = [2, 128, 8], strides = [1, 1, 1]} : vector<2x128x32xbf16> to vector<2x128x8xbf16>
    "tpu.trace_start"() <{level = 10 : i32, message = "bts,bsd->btd"}> : () -> ()
    %cst_97 = arith.constant dense<0.000000e+00> : vector<2x8x8xf32>
    %233 = tpu.matmul %231, %232, %cst_97 {dimension_numbers = #tpu.dot_dimension_numbers<[2], [1], [1], [2], [0, 0, 0, 1, 1, 2], [0], [0]>} : vector<2x8x128xbf16>, vector<2x128x8xbf16>, vector<2x8x8xf32> -> vector<2x8x8xf32>
    "tpu.trace_stop"() : () -> ()
    %c0_98 = arith.constant 0 : index
    %c0_99 = arith.constant 0 : index
    %c8_100 = arith.constant 8 : index
    %234 = vector.load %arg25[%c0_98, %c0_99, %c8_100] : memref<2x8x32xf32, #tpu.memory_space<vmem>>, vector<2x8x8xf32>
    tpu.vector_store %arg25[%c0_98, %c0_99, %c8_100], %233 {strides = array<i32>} : memref<2x8x32xf32, #tpu.memory_space<vmem>>, vector<2x8x8xf32>,
    %235 = vector.extract_strided_slice %198 {offsets = [0, 0, 16], sizes = [2, 8, 8], strides = [1, 1, 1]} : vector<2x8x32xbf16> to vector<2x8x8xbf16>
    %236 = vector.extract_strided_slice %191 {offsets = [0, 0, 16], sizes = [2, 128, 8], strides = [1, 1, 1]} : vector<2x128x32xbf16> to vector<2x128x8xbf16>
    "tpu.trace_start"() <{level = 10 : i32, message = "btd,bsd->bts"}> : () -> ()
    %cst_101 = arith.constant dense<0.000000e+00> : vector<2x8x128xf32>
    %237 = tpu.matmul %235, %236, %cst_101 {dimension_numbers = #tpu.dot_dimension_numbers<[2], [2], [1], [1], [0, 0, 0, 1, 1, 1], [0], [0]>} : vector<2x8x8xbf16>, vector<2x128x8xbf16>, vector<2x8x128xf32> -> vector<2x8x128xf32>
    "tpu.trace_stop"() : () -> ()
    %238 = arith.addf %237, %27 : vector<2x8x128xf32>
    %cst_102 = arith.constant dense<0xFF800000> : vector<2x8xf32>
    %239 = vector.multi_reduction <maximumf>, %238, %cst_102 [2] : vector<2x8x128xf32> to vector<2x8xf32>
    %240 = vector.shape_cast %239 : vector<2x8xf32> to vector<2x8x1xf32>
    %241 = vector.broadcast %240 : vector<2x8x1xf32> to vector<2x8x128xf32>
    %242 = arith.subf %238, %241 : vector<2x8x128xf32>
    %243 = math.exp %242 : vector<2x8x128xf32>
    %cst_103 = arith.constant dense<0.000000e+00> : vector<2x8xf32>
    %244 = vector.multi_reduction <add>, %243, %cst_103 [2] : vector<2x8x128xf32> to vector<2x8xf32>
    %245 = vector.shape_cast %244 : vector<2x8xf32> to vector<2x8x1xf32>
    %246 = tpu.reciprocal %245 {approx = true} : vector<2x8x1xf32> -> vector<2x8x1xf32>
    %247 = vector.broadcast %246 : vector<2x8x1xf32> to vector<2x8x128xf32>
    %248 = arith.mulf %243, %247 : vector<2x8x128xf32>
    %249 = arith.truncf %248 : vector<2x8x128xf32> to vector<2x8x128xbf16>
    %250 = vector.extract_strided_slice %194 {offsets = [0, 0, 16], sizes = [2, 128, 8], strides = [1, 1, 1]} : vector<2x128x32xbf16> to vector<2x128x8xbf16>
    "tpu.trace_start"() <{level = 10 : i32, message = "bts,bsd->btd"}> : () -> ()
    %cst_104 = arith.constant dense<0.000000e+00> : vector<2x8x8xf32>
    %251 = tpu.matmul %249, %250, %cst_104 {dimension_numbers = #tpu.dot_dimension_numbers<[2], [1], [1], [2], [0, 0, 0, 1, 1, 2], [0], [0]>} : vector<2x8x128xbf16>, vector<2x128x8xbf16>, vector<2x8x8xf32> -> vector<2x8x8xf32>
    "tpu.trace_stop"() : () -> ()
    %c0_105 = arith.constant 0 : index
    %c0_106 = arith.constant 0 : index
    %c16_107 = arith.constant 16 : index
    %252 = vector.load %arg25[%c0_105, %c0_106, %c16_107] : memref<2x8x32xf32, #tpu.memory_space<vmem>>, vector<2x8x8xf32>
    tpu.vector_store %arg25[%c0_105, %c0_106, %c16_107], %251 {strides = array<i32>} : memref<2x8x32xf32, #tpu.memory_space<vmem>>, vector<2x8x8xf32>,
    %253 = vector.extract_strided_slice %198 {offsets = [0, 0, 24], sizes = [2, 8, 8], strides = [1, 1, 1]} : vector<2x8x32xbf16> to vector<2x8x8xbf16>
    %254 = vector.extract_strided_slice %191 {offsets = [0, 0, 24], sizes = [2, 128, 8], strides = [1, 1, 1]} : vector<2x128x32xbf16> to vector<2x128x8xbf16>
    "tpu.trace_start"() <{level = 10 : i32, message = "btd,bsd->bts"}> : () -> ()
    %cst_108 = arith.constant dense<0.000000e+00> : vector<2x8x128xf32>
    %255 = tpu.matmul %253, %254, %cst_108 {dimension_numbers = #tpu.dot_dimension_numbers<[2], [2], [1], [1], [0, 0, 0, 1, 1, 1], [0], [0]>} : vector<2x8x8xbf16>, vector<2x128x8xbf16>, vector<2x8x128xf32> -> vector<2x8x128xf32>
    "tpu.trace_stop"() : () -> ()
    %256 = arith.addf %255, %27 : vector<2x8x128xf32>
    %cst_109 = arith.constant dense<0xFF800000> : vector<2x8xf32>
    %257 = vector.multi_reduction <maximumf>, %256, %cst_109 [2] : vector<2x8x128xf32> to vector<2x8xf32>
    %258 = vector.shape_cast %257 : vector<2x8xf32> to vector<2x8x1xf32>
    %259 = vector.broadcast %258 : vector<2x8x1xf32> to vector<2x8x128xf32>
    %260 = arith.subf %256, %259 : vector<2x8x128xf32>
    %261 = math.exp %260 : vector<2x8x128xf32>
    %cst_110 = arith.constant dense<0.000000e+00> : vector<2x8xf32>
    %262 = vector.multi_reduction <add>, %261, %cst_110 [2] : vector<2x8x128xf32> to vector<2x8xf32>
    %263 = vector.shape_cast %262 : vector<2x8xf32> to vector<2x8x1xf32>
    %264 = tpu.reciprocal %263 {approx = true} : vector<2x8x1xf32> -> vector<2x8x1xf32>
    %265 = vector.broadcast %264 : vector<2x8x1xf32> to vector<2x8x128xf32>
    %266 = arith.mulf %261, %265 : vector<2x8x128xf32>
    %267 = arith.truncf %266 : vector<2x8x128xf32> to vector<2x8x128xbf16>
    %268 = vector.extract_strided_slice %194 {offsets = [0, 0, 24], sizes = [2, 128, 8], strides = [1, 1, 1]} : vector<2x128x32xbf16> to vector<2x128x8xbf16>
    "tpu.trace_start"() <{level = 10 : i32, message = "bts,bsd->btd"}> : () -> ()
    %cst_111 = arith.constant dense<0.000000e+00> : vector<2x8x8xf32>
    %269 = tpu.matmul %267, %268, %cst_111 {dimension_numbers = #tpu.dot_dimension_numbers<[2], [1], [1], [2], [0, 0, 0, 1, 1, 2], [0], [0]>} : vector<2x8x128xbf16>, vector<2x128x8xbf16>, vector<2x8x8xf32> -> vector<2x8x8xf32>
    "tpu.trace_stop"() : () -> ()
    %c0_112 = arith.constant 0 : index
    %c0_113 = arith.constant 0 : index
    %c24_114 = arith.constant 24 : index
    %270 = vector.load %arg25[%c0_112, %c0_113, %c24_114] : memref<2x8x32xf32, #tpu.memory_space<vmem>>, vector<2x8x8xf32>
    tpu.vector_store %arg25[%c0_112, %c0_113, %c24_114], %269 {strides = array<i32>} : memref<2x8x32xf32, #tpu.memory_space<vmem>>, vector<2x8x8xf32>,
    %c0_115 = arith.constant 0 : index
    %c0_116 = arith.constant 0 : index
    %c0_117 = arith.constant 0 : index
    %271 = vector.load %arg25[%c0_115, %c0_116, %c0_117] : memref<2x8x32xf32, #tpu.memory_space<vmem>>, vector<2x8x32xf32>
    %272 = vector.shape_cast %271 : vector<2x8x32xf32> to vector<16x32xf32>
    %273 = arith.addf %147, %272 : vector<16x32xf32>
    %c0_118 = arith.constant 0 : index
    %c0_119 = arith.constant 0 : index
    %c0_120 = arith.constant 0 : index
    %274 = vector.load %arg15[%c0_118, %c0_119, %c0_120] : memref<2x1x32xf32, #tpu.memory_space<vmem>>, vector<1x1x32xf32>
    %275 = vector.shape_cast %274 : vector<1x1x32xf32> to vector<1x32xf32>
    %c0_121 = arith.constant 0 : index
    %c0_122 = arith.constant 0 : index
    %c0_123 = arith.constant 0 : index
    %276 = vector.load %arg16[%c0_121, %c0_122, %c0_123] : memref<2x1x32xf32, #tpu.memory_space<vmem>>, vector<1x1x32xf32>
    %277 = vector.shape_cast %276 : vector<1x1x32xf32> to vector<1x32xf32>
    %cst_124 = arith.constant dense<0.000000e+00> : vector<16xf32>
    %278 = vector.multi_reduction <add>, %273, %cst_124 [1] : vector<16x32xf32> to vector<16xf32>
    %279 = vector.shape_cast %278 : vector<16xf32> to vector<16x1xf32>
    %cst_125 = arith.constant 3.200000e+01 : f32
    %280 = vector.broadcast %cst_125 : f32 to vector<16x1xf32>
    %281 = arith.divf %279, %280 : vector<16x1xf32>
    %282 = vector.broadcast %281 : vector<16x1xf32> to vector<16x32xf32>
    %283 = arith.subf %273, %282 : vector<16x32xf32>
    %284 = arith.mulf %283, %283 : vector<16x32xf32>
    %cst_126 = arith.constant dense<0.000000e+00> : vector<16xf32>
    %285 = vector.multi_reduction <add>, %284, %cst_126 [1] : vector<16x32xf32> to vector<16xf32>
    %286 = vector.shape_cast %285 : vector<16xf32> to vector<16x1xf32>
    %cst_127 = arith.constant 3.200000e+01 : f32
    %287 = vector.broadcast %cst_127 : f32 to vector<16x1xf32>
    %288 = arith.divf %286, %287 : vector<16x1xf32>
    %289 = vector.broadcast %281 : vector<16x1xf32> to vector<16x32xf32>
    %290 = arith.subf %273, %289 : vector<16x32xf32>
    %cst_128 = arith.constant 9.99999974E-6 : f32
    %291 = vector.broadcast %cst_128 : f32 to vector<16x1xf32>
    %292 = arith.addf %288, %291 : vector<16x1xf32>
    %293 = math.rsqrt %292 : vector<16x1xf32>
    %294 = vector.broadcast %293 : vector<16x1xf32> to vector<16x32xf32>
    %295 = arith.mulf %290, %294 : vector<16x32xf32>
    %296 = vector.broadcast %275 : vector<1x32xf32> to vector<16x32xf32>
    %297 = arith.mulf %295, %296 : vector<16x32xf32>
    %298 = vector.broadcast %277 : vector<1x32xf32> to vector<16x32xf32>
    %299 = arith.addf %297, %298 : vector<16x32xf32>
    %300 = arith.truncf %299 : vector<16x32xf32> to vector<16x32xbf16>
    %c0_129 = arith.constant 0 : index
    %c0_130 = arith.constant 0 : index
    %c0_131 = arith.constant 0 : index
    %301 = vector.load %arg17[%c0_129, %c0_130, %c0_131] : memref<2x32x64xbf16, #tpu.memory_space<vmem>>, vector<1x32x64xbf16>
    %302 = vector.shape_cast %301 : vector<1x32x64xbf16> to vector<32x64xbf16>
    %cst_132 = arith.constant dense<0.000000e+00> : vector<16x64xf32>
    %303 = tpu.matmul %300, %302, %cst_132 {dimension_numbers = #tpu.dot_dimension_numbers<[1], [0], [0], [1], [0, 0, 1, 1], [], []>} : vector<16x32xbf16>, vector<32x64xbf16>, vector<16x64xf32> -> vector<16x64xf32>
    %c0_133 = arith.constant 0 : index
    %c0_134 = arith.constant 0 : index
    %c0_135 = arith.constant 0 : index
    %304 = vector.load %arg18[%c0_133, %c0_134, %c0_135] : memref<2x1x64xf32, #tpu.memory_space<vmem>>, vector<1x1x64xf32>
    %305 = vector.shape_cast %304 : vector<1x1x64xf32> to vector<1x64xf32>
    %306 = vector.broadcast %305 : vector<1x64xf32> to vector<16x64xf32>
    %307 = arith.addf %303, %306 : vector<16x64xf32>
    %cst_136 = arith.constant 0.000000e+00 : f32
    %308 = vector.broadcast %cst_136 : f32 to vector<16x64xf32>
    %309 = arith.maximumf %307, %308 : vector<16x64xf32>
    %310 = arith.truncf %309 : vector<16x64xf32> to vector<16x64xbf16>
    %c0_137 = arith.constant 0 : index
    %c0_138 = arith.constant 0 : index
    %c0_139 = arith.constant 0 : index
    %311 = vector.load %arg19[%c0_137, %c0_138, %c0_139] : memref<2x64x32xbf16, #tpu.memory_space<vmem>>, vector<1x64x32xbf16>
    %312 = vector.shape_cast %311 : vector<1x64x32xbf16> to vector<64x32xbf16>
    %cst_140 = arith.constant dense<0.000000e+00> : vector<16x32xf32>
    %313 = tpu.matmul %310, %312, %cst_140 {dimension_numbers = #tpu.dot_dimension_numbers<[1], [0], [0], [1], [0, 0, 1, 1], [], []>} : vector<16x64xbf16>, vector<64x32xbf16>, vector<16x32xf32> -> vector<16x32xf32>
    %314 = arith.addf %273, %313 : vector<16x32xf32>
    %c0_141 = arith.constant 0 : index
    %c0_142 = arith.constant 0 : index
    %c0_143 = arith.constant 0 : index
    %315 = vector.load %arg20[%c0_141, %c0_142, %c0_143] : memref<2x1x32xf32, #tpu.memory_space<vmem>>, vector<1x1x32xf32>
    %316 = vector.shape_cast %315 : vector<1x1x32xf32> to vector<1x32xf32>
    %317 = vector.broadcast %316 : vector<1x32xf32> to vector<16x32xf32>
    %318 = arith.addf %314, %317 : vector<16x32xf32>
    %c1 = arith.constant 1 : index
    %c0_144 = arith.constant 0 : index
    %c0_145 = arith.constant 0 : index
    %319 = vector.load %arg5[%c1, %c0_144, %c0_145] : memref<2x1x32xf32, #tpu.memory_space<vmem>>, vector<1x1x32xf32>
    %320 = vector.shape_cast %319 : vector<1x1x32xf32> to vector<1x32xf32>
    %c1_146 = arith.constant 1 : index
    %c0_147 = arith.constant 0 : index
    %c0_148 = arith.constant 0 : index
    %321 = vector.load %arg6[%c1_146, %c0_147, %c0_148] : memref<2x1x32xf32, #tpu.memory_space<vmem>>, vector<1x1x32xf32>
    %322 = vector.shape_cast %321 : vector<1x1x32xf32> to vector<1x32xf32>
    %cst_149 = arith.constant dense<0.000000e+00> : vector<16xf32>
    %323 = vector.multi_reduction <add>, %318, %cst_149 [1] : vector<16x32xf32> to vector<16xf32>
    %324 = vector.shape_cast %323 : vector<16xf32> to vector<16x1xf32>
    %cst_150 = arith.constant 3.200000e+01 : f32
    %325 = vector.broadcast %cst_150 : f32 to vector<16x1xf32>
    %326 = arith.divf %324, %325 : vector<16x1xf32>
    %327 = vector.broadcast %326 : vector<16x1xf32> to vector<16x32xf32>
    %328 = arith.subf %318, %327 : vector<16x32xf32>
    %329 = arith.mulf %328, %328 : vector<16x32xf32>
    %cst_151 = arith.constant dense<0.000000e+00> : vector<16xf32>
    %330 = vector.multi_reduction <add>, %329, %cst_151 [1] : vector<16x32xf32> to vector<16xf32>
    %331 = vector.shape_cast %330 : vector<16xf32> to vector<16x1xf32>
    %cst_152 = arith.constant 3.200000e+01 : f32
    %332 = vector.broadcast %cst_152 : f32 to vector<16x1xf32>
    %333 = arith.divf %331, %332 : vector<16x1xf32>
    %334 = vector.broadcast %326 : vector<16x1xf32> to vector<16x32xf32>
    %335 = arith.subf %318, %334 : vector<16x32xf32>
    %cst_153 = arith.constant 9.99999974E-6 : f32
    %336 = vector.broadcast %cst_153 : f32 to vector<16x1xf32>
    %337 = arith.addf %333, %336 : vector<16x1xf32>
    %338 = math.rsqrt %337 : vector<16x1xf32>
    %339 = vector.broadcast %338 : vector<16x1xf32> to vector<16x32xf32>
    %340 = arith.mulf %335, %339 : vector<16x32xf32>
    %341 = vector.broadcast %320 : vector<1x32xf32> to vector<16x32xf32>
    %342 = arith.mulf %340, %341 : vector<16x32xf32>
    %343 = vector.broadcast %322 : vector<1x32xf32> to vector<16x32xf32>
    %344 = arith.addf %342, %343 : vector<16x32xf32>
    %345 = arith.truncf %344 : vector<16x32xf32> to vector<16x32xbf16>
    %c1_154 = arith.constant 1 : index
    %c0_155 = arith.constant 0 : index
    %c0_156 = arith.constant 0 : index
    %346 = vector.load %arg7[%c1_154, %c0_155, %c0_156] : memref<2x32x96xbf16, #tpu.memory_space<vmem>>, vector<1x32x96xbf16>
    %347 = vector.shape_cast %346 : vector<1x32x96xbf16> to vector<32x96xbf16>
    %cst_157 = arith.constant dense<0.000000e+00> : vector<16x96xf32>
    %348 = tpu.matmul %345, %347, %cst_157 {dimension_numbers = #tpu.dot_dimension_numbers<[1], [0], [0], [1], [0, 0, 1, 1], [], []>} : vector<16x32xbf16>, vector<32x96xbf16>, vector<16x96xf32> -> vector<16x96xf32>
    %c1_158 = arith.constant 1 : index
    %c0_159 = arith.constant 0 : index
    %c0_160 = arith.constant 0 : index
    %349 = vector.load %arg8[%c1_158, %c0_159, %c0_160] : memref<2x1x96xf32, #tpu.memory_space<vmem>>, vector<1x1x96xf32>
    %350 = vector.shape_cast %349 : vector<1x1x96xf32> to vector<1x96xf32>
    %351 = vector.broadcast %350 : vector<1x96xf32> to vector<16x96xf32>
    %352 = arith.addf %348, %351 : vector<16x96xf32>
    %353 = vector.extract_strided_slice %352 {offsets = [0, 0], sizes = [16, 32], strides = [1, 1]} : vector<16x96xf32> to vector<16x32xf32>
    %cst_161 = arith.constant 0.353553385 : f32
    %354 = vector.broadcast %cst_161 : f32 to vector<16x32xf32>
    %355 = arith.mulf %353, %354 : vector<16x32xf32>
    %356 = vector.extract_strided_slice %352 {offsets = [0, 32], sizes = [16, 32], strides = [1, 1]} : vector<16x96xf32> to vector<16x32xf32>
    %357 = vector.shape_cast %356 : vector<16x32xf32> to vector<2x8x32xf32>
    %358 = arith.truncf %357 : vector<2x8x32xf32> to vector<2x8x32xbf16>
    %359 = vector.extract_strided_slice %352 {offsets = [0, 64], sizes = [16, 32], strides = [1, 1]} : vector<16x96xf32> to vector<16x32xf32>
    %360 = vector.shape_cast %359 : vector<16x32xf32> to vector<2x8x32xf32>
    %361 = arith.truncf %360 : vector<2x8x32xf32> to vector<2x8x32xbf16>
    %362 = vector.shape_cast %355 : vector<16x32xf32> to vector<2x8x32xf32>
    %363 = arith.truncf %362 : vector<2x8x32xf32> to vector<2x8x32xbf16>
    %364 = vector.extract_strided_slice %363 {offsets = [0, 0, 0], sizes = [2, 8, 8], strides = [1, 1, 1]} : vector<2x8x32xbf16> to vector<2x8x8xbf16>
    %365 = vector.extract_strided_slice %358 {offsets = [0, 0, 0], sizes = [2, 8, 8], strides = [1, 1, 1]} : vector<2x8x32xbf16> to vector<2x8x8xbf16>
    "tpu.trace_start"() <{level = 10 : i32, message = "btd,bsd->bts"}> : () -> ()
    %cst_162 = arith.constant dense<0.000000e+00> : vector<2x8x8xf32>
    %366 = tpu.matmul %364, %365, %cst_162 {dimension_numbers = #tpu.dot_dimension_numbers<[2], [2], [1], [1], [0, 0, 0, 1, 1, 1], [0], [0]>} : vector<2x8x8xbf16>, vector<2x8x8xbf16>, vector<2x8x8xf32> -> vector<2x8x8xf32>
    "tpu.trace_stop"() : () -> ()
    %367 = arith.addf %366, %19 : vector<2x8x8xf32>
    %cst_163 = arith.constant dense<0xFF800000> : vector<2x8xf32>
    %368 = vector.multi_reduction <maximumf>, %367, %cst_163 [2] : vector<2x8x8xf32> to vector<2x8xf32>
    %369 = vector.shape_cast %368 : vector<2x8xf32> to vector<2x8x1xf32>
    %370 = vector.broadcast %369 : vector<2x8x1xf32> to vector<2x8x8xf32>
    %371 = arith.subf %367, %370 : vector<2x8x8xf32>
    %372 = math.exp %371 : vector<2x8x8xf32>
    %cst_164 = arith.constant dense<0.000000e+00> : vector<2x8xf32>
    %373 = vector.multi_reduction <add>, %372, %cst_164 [2] : vector<2x8x8xf32> to vector<2x8xf32>
    %374 = vector.shape_cast %373 : vector<2x8xf32> to vector<2x8x1xf32>
    %375 = tpu.reciprocal %374 {approx = true} : vector<2x8x1xf32> -> vector<2x8x1xf32>
    %376 = vector.broadcast %375 : vector<2x8x1xf32> to vector<2x8x8xf32>
    %377 = arith.mulf %372, %376 : vector<2x8x8xf32>
    %378 = arith.truncf %377 : vector<2x8x8xf32> to vector<2x8x8xbf16>
    %379 = vector.extract_strided_slice %361 {offsets = [0, 0, 0], sizes = [2, 8, 8], strides = [1, 1, 1]} : vector<2x8x32xbf16> to vector<2x8x8xbf16>
    "tpu.trace_start"() <{level = 10 : i32, message = "bts,bsd->btd"}> : () -> ()
    %cst_165 = arith.constant dense<0.000000e+00> : vector<2x8x8xf32>
    %380 = tpu.matmul %378, %379, %cst_165 {dimension_numbers = #tpu.dot_dimension_numbers<[2], [1], [1], [2], [0, 0, 0, 1, 1, 2], [0], [0]>} : vector<2x8x8xbf16>, vector<2x8x8xbf16>, vector<2x8x8xf32> -> vector<2x8x8xf32>
    "tpu.trace_stop"() : () -> ()
    %c0_166 = arith.constant 0 : index
    %c0_167 = arith.constant 0 : index
    %c0_168 = arith.constant 0 : index
    %381 = vector.load %arg25[%c0_166, %c0_167, %c0_168] : memref<2x8x32xf32, #tpu.memory_space<vmem>>, vector<2x8x8xf32>
    tpu.vector_store %arg25[%c0_166, %c0_167, %c0_168], %380 {strides = array<i32>} : memref<2x8x32xf32, #tpu.memory_space<vmem>>, vector<2x8x8xf32>,
    %382 = vector.extract_strided_slice %363 {offsets = [0, 0, 8], sizes = [2, 8, 8], strides = [1, 1, 1]} : vector<2x8x32xbf16> to vector<2x8x8xbf16>
    %383 = vector.extract_strided_slice %358 {offsets = [0, 0, 8], sizes = [2, 8, 8], strides = [1, 1, 1]} : vector<2x8x32xbf16> to vector<2x8x8xbf16>
    "tpu.trace_start"() <{level = 10 : i32, message = "btd,bsd->bts"}> : () -> ()
    %cst_169 = arith.constant dense<0.000000e+00> : vector<2x8x8xf32>
    %384 = tpu.matmul %382, %383, %cst_169 {dimension_numbers = #tpu.dot_dimension_numbers<[2], [2], [1], [1], [0, 0, 0, 1, 1, 1], [0], [0]>} : vector<2x8x8xbf16>, vector<2x8x8xbf16>, vector<2x8x8xf32> -> vector<2x8x8xf32>
    "tpu.trace_stop"() : () -> ()
    %385 = arith.addf %384, %19 : vector<2x8x8xf32>
    %cst_170 = arith.constant dense<0xFF800000> : vector<2x8xf32>
    %386 = vector.multi_reduction <maximumf>, %385, %cst_170 [2] : vector<2x8x8xf32> to vector<2x8xf32>
    %387 = vector.shape_cast %386 : vector<2x8xf32> to vector<2x8x1xf32>
    %388 = vector.broadcast %387 : vector<2x8x1xf32> to vector<2x8x8xf32>
    %389 = arith.subf %385, %388 : vector<2x8x8xf32>
    %390 = math.exp %389 : vector<2x8x8xf32>
    %cst_171 = arith.constant dense<0.000000e+00> : vector<2x8xf32>
    %391 = vector.multi_reduction <add>, %390, %cst_171 [2] : vector<2x8x8xf32> to vector<2x8xf32>
    %392 = vector.shape_cast %391 : vector<2x8xf32> to vector<2x8x1xf32>
    %393 = tpu.reciprocal %392 {approx = true} : vector<2x8x1xf32> -> vector<2x8x1xf32>
    %394 = vector.broadcast %393 : vector<2x8x1xf32> to vector<2x8x8xf32>
    %395 = arith.mulf %390, %394 : vector<2x8x8xf32>
    %396 = arith.truncf %395 : vector<2x8x8xf32> to vector<2x8x8xbf16>
    %397 = vector.extract_strided_slice %361 {offsets = [0, 0, 8], sizes = [2, 8, 8], strides = [1, 1, 1]} : vector<2x8x32xbf16> to vector<2x8x8xbf16>
    "tpu.trace_start"() <{level = 10 : i32, message = "bts,bsd->btd"}> : () -> ()
    %cst_172 = arith.constant dense<0.000000e+00> : vector<2x8x8xf32>
    %398 = tpu.matmul %396, %397, %cst_172 {dimension_numbers = #tpu.dot_dimension_numbers<[2], [1], [1], [2], [0, 0, 0, 1, 1, 2], [0], [0]>} : vector<2x8x8xbf16>, vector<2x8x8xbf16>, vector<2x8x8xf32> -> vector<2x8x8xf32>
    "tpu.trace_stop"() : () -> ()
    %c0_173 = arith.constant 0 : index
    %c0_174 = arith.constant 0 : index
    %c8_175 = arith.constant 8 : index
    %399 = vector.load %arg25[%c0_173, %c0_174, %c8_175] : memref<2x8x32xf32, #tpu.memory_space<vmem>>, vector<2x8x8xf32>
    tpu.vector_store %arg25[%c0_173, %c0_174, %c8_175], %398 {strides = array<i32>} : memref<2x8x32xf32, #tpu.memory_space<vmem>>, vector<2x8x8xf32>,
    %400 = vector.extract_strided_slice %363 {offsets = [0, 0, 16], sizes = [2, 8, 8], strides = [1, 1, 1]} : vector<2x8x32xbf16> to vector<2x8x8xbf16>
    %401 = vector.extract_strided_slice %358 {offsets = [0, 0, 16], sizes = [2, 8, 8], strides = [1, 1, 1]} : vector<2x8x32xbf16> to vector<2x8x8xbf16>
    "tpu.trace_start"() <{level = 10 : i32, message = "btd,bsd->bts"}> : () -> ()
    %cst_176 = arith.constant dense<0.000000e+00> : vector<2x8x8xf32>
    %402 = tpu.matmul %400, %401, %cst_176 {dimension_numbers = #tpu.dot_dimension_numbers<[2], [2], [1], [1], [0, 0, 0, 1, 1, 1], [0], [0]>} : vector<2x8x8xbf16>, vector<2x8x8xbf16>, vector<2x8x8xf32> -> vector<2x8x8xf32>
    "tpu.trace_stop"() : () -> ()
    %403 = arith.addf %402, %19 : vector<2x8x8xf32>
    %cst_177 = arith.constant dense<0xFF800000> : vector<2x8xf32>
    %404 = vector.multi_reduction <maximumf>, %403, %cst_177 [2] : vector<2x8x8xf32> to vector<2x8xf32>
    %405 = vector.shape_cast %404 : vector<2x8xf32> to vector<2x8x1xf32>
    %406 = vector.broadcast %405 : vector<2x8x1xf32> to vector<2x8x8xf32>
    %407 = arith.subf %403, %406 : vector<2x8x8xf32>
    %408 = math.exp %407 : vector<2x8x8xf32>
    %cst_178 = arith.constant dense<0.000000e+00> : vector<2x8xf32>
    %409 = vector.multi_reduction <add>, %408, %cst_178 [2] : vector<2x8x8xf32> to vector<2x8xf32>
    %410 = vector.shape_cast %409 : vector<2x8xf32> to vector<2x8x1xf32>
    %411 = tpu.reciprocal %410 {approx = true} : vector<2x8x1xf32> -> vector<2x8x1xf32>
    %412 = vector.broadcast %411 : vector<2x8x1xf32> to vector<2x8x8xf32>
    %413 = arith.mulf %408, %412 : vector<2x8x8xf32>
    %414 = arith.truncf %413 : vector<2x8x8xf32> to vector<2x8x8xbf16>
    %415 = vector.extract_strided_slice %361 {offsets = [0, 0, 16], sizes = [2, 8, 8], strides = [1, 1, 1]} : vector<2x8x32xbf16> to vector<2x8x8xbf16>
    "tpu.trace_start"() <{level = 10 : i32, message = "bts,bsd->btd"}> : () -> ()
    %cst_179 = arith.constant dense<0.000000e+00> : vector<2x8x8xf32>
    %416 = tpu.matmul %414, %415, %cst_179 {dimension_numbers = #tpu.dot_dimension_numbers<[2], [1], [1], [2], [0, 0, 0, 1, 1, 2], [0], [0]>} : vector<2x8x8xbf16>, vector<2x8x8xbf16>, vector<2x8x8xf32> -> vector<2x8x8xf32>
    "tpu.trace_stop"() : () -> ()
    %c0_180 = arith.constant 0 : index
    %c0_181 = arith.constant 0 : index
    %c16_182 = arith.constant 16 : index
    %417 = vector.load %arg25[%c0_180, %c0_181, %c16_182] : memref<2x8x32xf32, #tpu.memory_space<vmem>>, vector<2x8x8xf32>
    tpu.vector_store %arg25[%c0_180, %c0_181, %c16_182], %416 {strides = array<i32>} : memref<2x8x32xf32, #tpu.memory_space<vmem>>, vector<2x8x8xf32>,
    %418 = vector.extract_strided_slice %363 {offsets = [0, 0, 24], sizes = [2, 8, 8], strides = [1, 1, 1]} : vector<2x8x32xbf16> to vector<2x8x8xbf16>
    %419 = vector.extract_strided_slice %358 {offsets = [0, 0, 24], sizes = [2, 8, 8], strides = [1, 1, 1]} : vector<2x8x32xbf16> to vector<2x8x8xbf16>
    "tpu.trace_start"() <{level = 10 : i32, message = "btd,bsd->bts"}> : () -> ()
    %cst_183 = arith.constant dense<0.000000e+00> : vector<2x8x8xf32>
    %420 = tpu.matmul %418, %419, %cst_183 {dimension_numbers = #tpu.dot_dimension_numbers<[2], [2], [1], [1], [0, 0, 0, 1, 1, 1], [0], [0]>} : vector<2x8x8xbf16>, vector<2x8x8xbf16>, vector<2x8x8xf32> -> vector<2x8x8xf32>
    "tpu.trace_stop"() : () -> ()
    %421 = arith.addf %420, %19 : vector<2x8x8xf32>
    %cst_184 = arith.constant dense<0xFF800000> : vector<2x8xf32>
    %422 = vector.multi_reduction <maximumf>, %421, %cst_184 [2] : vector<2x8x8xf32> to vector<2x8xf32>
    %423 = vector.shape_cast %422 : vector<2x8xf32> to vector<2x8x1xf32>
    %424 = vector.broadcast %423 : vector<2x8x1xf32> to vector<2x8x8xf32>
    %425 = arith.subf %421, %424 : vector<2x8x8xf32>
    %426 = math.exp %425 : vector<2x8x8xf32>
    %cst_185 = arith.constant dense<0.000000e+00> : vector<2x8xf32>
    %427 = vector.multi_reduction <add>, %426, %cst_185 [2] : vector<2x8x8xf32> to vector<2x8xf32>
    %428 = vector.shape_cast %427 : vector<2x8xf32> to vector<2x8x1xf32>
    %429 = tpu.reciprocal %428 {approx = true} : vector<2x8x1xf32> -> vector<2x8x1xf32>
    %430 = vector.broadcast %429 : vector<2x8x1xf32> to vector<2x8x8xf32>
    %431 = arith.mulf %426, %430 : vector<2x8x8xf32>
    %432 = arith.truncf %431 : vector<2x8x8xf32> to vector<2x8x8xbf16>
    %433 = vector.extract_strided_slice %361 {offsets = [0, 0, 24], sizes = [2, 8, 8], strides = [1, 1, 1]} : vector<2x8x32xbf16> to vector<2x8x8xbf16>
    "tpu.trace_start"() <{level = 10 : i32, message = "bts,bsd->btd"}> : () -> ()
    %cst_186 = arith.constant dense<0.000000e+00> : vector<2x8x8xf32>
    %434 = tpu.matmul %432, %433, %cst_186 {dimension_numbers = #tpu.dot_dimension_numbers<[2], [1], [1], [2], [0, 0, 0, 1, 1, 2], [0], [0]>} : vector<2x8x8xbf16>, vector<2x8x8xbf16>, vector<2x8x8xf32> -> vector<2x8x8xf32>
    "tpu.trace_stop"() : () -> ()
    %c0_187 = arith.constant 0 : index
    %c0_188 = arith.constant 0 : index
    %c24_189 = arith.constant 24 : index
    %435 = vector.load %arg25[%c0_187, %c0_188, %c24_189] : memref<2x8x32xf32, #tpu.memory_space<vmem>>, vector<2x8x8xf32>
    tpu.vector_store %arg25[%c0_187, %c0_188, %c24_189], %434 {strides = array<i32>} : memref<2x8x32xf32, #tpu.memory_space<vmem>>, vector<2x8x8xf32>,
    %c0_190 = arith.constant 0 : index
    %c0_191 = arith.constant 0 : index
    %c0_192 = arith.constant 0 : index
    %436 = vector.load %arg25[%c0_190, %c0_191, %c0_192] : memref<2x8x32xf32, #tpu.memory_space<vmem>>, vector<2x8x32xf32>
    %437 = vector.shape_cast %436 : vector<2x8x32xf32> to vector<16x32xf32>
    %438 = arith.addf %318, %437 : vector<16x32xf32>
    %c1_193 = arith.constant 1 : index
    %c0_194 = arith.constant 0 : index
    %c0_195 = arith.constant 0 : index
    %439 = vector.load %arg9[%c1_193, %c0_194, %c0_195] : memref<2x1x32xf32, #tpu.memory_space<vmem>>, vector<1x1x32xf32>
    %440 = vector.shape_cast %439 : vector<1x1x32xf32> to vector<1x32xf32>
    %c1_196 = arith.constant 1 : index
    %c0_197 = arith.constant 0 : index
    %c0_198 = arith.constant 0 : index
    %441 = vector.load %arg10[%c1_196, %c0_197, %c0_198] : memref<2x1x32xf32, #tpu.memory_space<vmem>>, vector<1x1x32xf32>
    %442 = vector.shape_cast %441 : vector<1x1x32xf32> to vector<1x32xf32>
    %cst_199 = arith.constant dense<0.000000e+00> : vector<16xf32>
    %443 = vector.multi_reduction <add>, %438, %cst_199 [1] : vector<16x32xf32> to vector<16xf32>
    %444 = vector.shape_cast %443 : vector<16xf32> to vector<16x1xf32>
    %cst_200 = arith.constant 3.200000e+01 : f32
    %445 = vector.broadcast %cst_200 : f32 to vector<16x1xf32>
    %446 = arith.divf %444, %445 : vector<16x1xf32>
    %447 = vector.broadcast %446 : vector<16x1xf32> to vector<16x32xf32>
    %448 = arith.subf %438, %447 : vector<16x32xf32>
    %449 = arith.mulf %448, %448 : vector<16x32xf32>
    %cst_201 = arith.constant dense<0.000000e+00> : vector<16xf32>
    %450 = vector.multi_reduction <add>, %449, %cst_201 [1] : vector<16x32xf32> to vector<16xf32>
    %451 = vector.shape_cast %450 : vector<16xf32> to vector<16x1xf32>
    %cst_202 = arith.constant 3.200000e+01 : f32
    %452 = vector.broadcast %cst_202 : f32 to vector<16x1xf32>
    %453 = arith.divf %451, %452 : vector<16x1xf32>
    %454 = vector.broadcast %446 : vector<16x1xf32> to vector<16x32xf32>
    %455 = arith.subf %438, %454 : vector<16x32xf32>
    %cst_203 = arith.constant 9.99999974E-6 : f32
    %456 = vector.broadcast %cst_203 : f32 to vector<16x1xf32>
    %457 = arith.addf %453, %456 : vector<16x1xf32>
    %458 = math.rsqrt %457 : vector<16x1xf32>
    %459 = vector.broadcast %458 : vector<16x1xf32> to vector<16x32xf32>
    %460 = arith.mulf %455, %459 : vector<16x32xf32>
    %461 = vector.broadcast %440 : vector<1x32xf32> to vector<16x32xf32>
    %462 = arith.mulf %460, %461 : vector<16x32xf32>
    %463 = vector.broadcast %442 : vector<1x32xf32> to vector<16x32xf32>
    %464 = arith.addf %462, %463 : vector<16x32xf32>
    %465 = arith.truncf %464 : vector<16x32xf32> to vector<16x32xbf16>
    %c1_204 = arith.constant 1 : index
    %c0_205 = arith.constant 0 : index
    %c0_206 = arith.constant 0 : index
    %466 = vector.load %arg11[%c1_204, %c0_205, %c0_206] : memref<2x32x32xbf16, #tpu.memory_space<vmem>>, vector<1x32x32xbf16>
    %467 = vector.shape_cast %466 : vector<1x32x32xbf16> to vector<32x32xbf16>
    %cst_207 = arith.constant dense<0.000000e+00> : vector<16x32xf32>
    %468 = tpu.matmul %465, %467, %cst_207 {dimension_numbers = #tpu.dot_dimension_numbers<[1], [0], [0], [1], [0, 0, 1, 1], [], []>} : vector<16x32xbf16>, vector<32x32xbf16>, vector<16x32xf32> -> vector<16x32xf32>
    %c1_208 = arith.constant 1 : index
    %c0_209 = arith.constant 0 : index
    %c0_210 = arith.constant 0 : index
    %469 = vector.load %arg12[%c1_208, %c0_209, %c0_210] : memref<2x1x32xf32, #tpu.memory_space<vmem>>, vector<1x1x32xf32>
    %470 = vector.shape_cast %469 : vector<1x1x32xf32> to vector<1x32xf32>
    %471 = vector.broadcast %470 : vector<1x32xf32> to vector<16x32xf32>
    %472 = arith.addf %468, %471 : vector<16x32xf32>
    %c1_211 = arith.constant 1 : index
    %c0_212 = arith.constant 0 : index
    %c0_213 = arith.constant 0 : index
    %473 = vector.load %arg13[%c1_211, %c0_212, %c0_213] : memref<2x32x64xbf16, #tpu.memory_space<vmem>>, vector<1x32x64xbf16>
    %474 = vector.shape_cast %473 : vector<1x32x64xbf16> to vector<32x64xbf16>
    %cst_214 = arith.constant dense<0.000000e+00> : vector<256x64xf32>
    %475 = tpu.matmul %4, %474, %cst_214 {dimension_numbers = #tpu.dot_dimension_numbers<[1], [0], [0], [1], [0, 0, 1, 1], [], []>} : vector<256x32xbf16>, vector<32x64xbf16>, vector<256x64xf32> -> vector<256x64xf32>
    %c1_215 = arith.constant 1 : index
    %c0_216 = arith.constant 0 : index
    %c0_217 = arith.constant 0 : index
    %476 = vector.load %arg14[%c1_215, %c0_216, %c0_217] : memref<2x1x64xf32, #tpu.memory_space<vmem>>, vector<1x1x64xf32>
    %477 = vector.shape_cast %476 : vector<1x1x64xf32> to vector<1x64xf32>
    %478 = vector.broadcast %477 : vector<1x64xf32> to vector<256x64xf32>
    %479 = arith.addf %475, %478 : vector<256x64xf32>
    %480 = vector.extract_strided_slice %479 {offsets = [0, 0], sizes = [256, 32], strides = [1, 1]} : vector<256x64xf32> to vector<256x32xf32>
    %481 = vector.shape_cast %480 : vector<256x32xf32> to vector<2x128x32xf32>
    %482 = arith.truncf %481 : vector<2x128x32xf32> to vector<2x128x32xbf16>
    %483 = vector.extract_strided_slice %479 {offsets = [0, 32], sizes = [256, 32], strides = [1, 1]} : vector<256x64xf32> to vector<256x32xf32>
    %484 = vector.shape_cast %483 : vector<256x32xf32> to vector<2x128x32xf32>
    %485 = arith.truncf %484 : vector<2x128x32xf32> to vector<2x128x32xbf16>
    %cst_218 = arith.constant 0.353553385 : f32
    %486 = vector.broadcast %cst_218 : f32 to vector<16x32xf32>
    %487 = arith.mulf %472, %486 : vector<16x32xf32>
    %488 = vector.shape_cast %487 : vector<16x32xf32> to vector<2x8x32xf32>
    %489 = arith.truncf %488 : vector<2x8x32xf32> to vector<2x8x32xbf16>
    %490 = vector.extract_strided_slice %489 {offsets = [0, 0, 0], sizes = [2, 8, 8], strides = [1, 1, 1]} : vector<2x8x32xbf16> to vector<2x8x8xbf16>
    %491 = vector.extract_strided_slice %482 {offsets = [0, 0, 0], sizes = [2, 128, 8], strides = [1, 1, 1]} : vector<2x128x32xbf16> to vector<2x128x8xbf16>
    "tpu.trace_start"() <{level = 10 : i32, message = "btd,bsd->bts"}> : () -> ()
    %cst_219 = arith.constant dense<0.000000e+00> : vector<2x8x128xf32>
    %492 = tpu.matmul %490, %491, %cst_219 {dimension_numbers = #tpu.dot_dimension_numbers<[2], [2], [1], [1], [0, 0, 0, 1, 1, 1], [0], [0]>} : vector<2x8x8xbf16>, vector<2x128x8xbf16>, vector<2x8x128xf32> -> vector<2x8x128xf32>
    "tpu.trace_stop"() : () -> ()
    %493 = arith.addf %492, %27 : vector<2x8x128xf32>
    %cst_220 = arith.constant dense<0xFF800000> : vector<2x8xf32>
    %494 = vector.multi_reduction <maximumf>, %493, %cst_220 [2] : vector<2x8x128xf32> to vector<2x8xf32>
    %495 = vector.shape_cast %494 : vector<2x8xf32> to vector<2x8x1xf32>
    %496 = vector.broadcast %495 : vector<2x8x1xf32> to vector<2x8x128xf32>
    %497 = arith.subf %493, %496 : vector<2x8x128xf32>
    %498 = math.exp %497 : vector<2x8x128xf32>
    %cst_221 = arith.constant dense<0.000000e+00> : vector<2x8xf32>
    %499 = vector.multi_reduction <add>, %498, %cst_221 [2] : vector<2x8x128xf32> to vector<2x8xf32>
    %500 = vector.shape_cast %499 : vector<2x8xf32> to vector<2x8x1xf32>
    %501 = tpu.reciprocal %500 {approx = true} : vector<2x8x1xf32> -> vector<2x8x1xf32>
    %502 = vector.broadcast %501 : vector<2x8x1xf32> to vector<2x8x128xf32>
    %503 = arith.mulf %498, %502 : vector<2x8x128xf32>
    %504 = arith.truncf %503 : vector<2x8x128xf32> to vector<2x8x128xbf16>
    %505 = vector.extract_strided_slice %485 {offsets = [0, 0, 0], sizes = [2, 128, 8], strides = [1, 1, 1]} : vector<2x128x32xbf16> to vector<2x128x8xbf16>
    "tpu.trace_start"() <{level = 10 : i32, message = "bts,bsd->btd"}> : () -> ()
    %cst_222 = arith.constant dense<0.000000e+00> : vector<2x8x8xf32>
    %506 = tpu.matmul %504, %505, %cst_222 {dimension_numbers = #tpu.dot_dimension_numbers<[2], [1], [1], [2], [0, 0, 0, 1, 1, 2], [0], [0]>} : vector<2x8x128xbf16>, vector<2x128x8xbf16>, vector<2x8x8xf32> -> vector<2x8x8xf32>
    "tpu.trace_stop"() : () -> ()
    %c0_223 = arith.constant 0 : index
    %c0_224 = arith.constant 0 : index
    %c0_225 = arith.constant 0 : index
    %507 = vector.load %arg25[%c0_223, %c0_224, %c0_225] : memref<2x8x32xf32, #tpu.memory_space<vmem>>, vector<2x8x8xf32>
    tpu.vector_store %arg25[%c0_223, %c0_224, %c0_225], %506 {strides = array<i32>} : memref<2x8x32xf32, #tpu.memory_space<vmem>>, vector<2x8x8xf32>,
    %508 = vector.extract_strided_slice %489 {offsets = [0, 0, 8], sizes = [2, 8, 8], strides = [1, 1, 1]} : vector<2x8x32xbf16> to vector<2x8x8xbf16>
    %509 = vector.extract_strided_slice %482 {offsets = [0, 0, 8], sizes = [2, 128, 8], strides = [1, 1, 1]} : vector<2x128x32xbf16> to vector<2x128x8xbf16>
    "tpu.trace_start"() <{level = 10 : i32, message = "btd,bsd->bts"}> : () -> ()
    %cst_226 = arith.constant dense<0.000000e+00> : vector<2x8x128xf32>
    %510 = tpu.matmul %508, %509, %cst_226 {dimension_numbers = #tpu.dot_dimension_numbers<[2], [2], [1], [1], [0, 0, 0, 1, 1, 1], [0], [0]>} : vector<2x8x8xbf16>, vector<2x128x8xbf16>, vector<2x8x128xf32> -> vector<2x8x128xf32>
    "tpu.trace_stop"() : () -> ()
    %511 = arith.addf %510, %27 : vector<2x8x128xf32>
    %cst_227 = arith.constant dense<0xFF800000> : vector<2x8xf32>
    %512 = vector.multi_reduction <maximumf>, %511, %cst_227 [2] : vector<2x8x128xf32> to vector<2x8xf32>
    %513 = vector.shape_cast %512 : vector<2x8xf32> to vector<2x8x1xf32>
    %514 = vector.broadcast %513 : vector<2x8x1xf32> to vector<2x8x128xf32>
    %515 = arith.subf %511, %514 : vector<2x8x128xf32>
    %516 = math.exp %515 : vector<2x8x128xf32>
    %cst_228 = arith.constant dense<0.000000e+00> : vector<2x8xf32>
    %517 = vector.multi_reduction <add>, %516, %cst_228 [2] : vector<2x8x128xf32> to vector<2x8xf32>
    %518 = vector.shape_cast %517 : vector<2x8xf32> to vector<2x8x1xf32>
    %519 = tpu.reciprocal %518 {approx = true} : vector<2x8x1xf32> -> vector<2x8x1xf32>
    %520 = vector.broadcast %519 : vector<2x8x1xf32> to vector<2x8x128xf32>
    %521 = arith.mulf %516, %520 : vector<2x8x128xf32>
    %522 = arith.truncf %521 : vector<2x8x128xf32> to vector<2x8x128xbf16>
    %523 = vector.extract_strided_slice %485 {offsets = [0, 0, 8], sizes = [2, 128, 8], strides = [1, 1, 1]} : vector<2x128x32xbf16> to vector<2x128x8xbf16>
    "tpu.trace_start"() <{level = 10 : i32, message = "bts,bsd->btd"}> : () -> ()
    %cst_229 = arith.constant dense<0.000000e+00> : vector<2x8x8xf32>
    %524 = tpu.matmul %522, %523, %cst_229 {dimension_numbers = #tpu.dot_dimension_numbers<[2], [1], [1], [2], [0, 0, 0, 1, 1, 2], [0], [0]>} : vector<2x8x128xbf16>, vector<2x128x8xbf16>, vector<2x8x8xf32> -> vector<2x8x8xf32>
    "tpu.trace_stop"() : () -> ()
    %c0_230 = arith.constant 0 : index
    %c0_231 = arith.constant 0 : index
    %c8_232 = arith.constant 8 : index
    %525 = vector.load %arg25[%c0_230, %c0_231, %c8_232] : memref<2x8x32xf32, #tpu.memory_space<vmem>>, vector<2x8x8xf32>
    tpu.vector_store %arg25[%c0_230, %c0_231, %c8_232], %524 {strides = array<i32>} : memref<2x8x32xf32, #tpu.memory_space<vmem>>, vector<2x8x8xf32>,
    %526 = vector.extract_strided_slice %489 {offsets = [0, 0, 16], sizes = [2, 8, 8], strides = [1, 1, 1]} : vector<2x8x32xbf16> to vector<2x8x8xbf16>
    %527 = vector.extract_strided_slice %482 {offsets = [0, 0, 16], sizes = [2, 128, 8], strides = [1, 1, 1]} : vector<2x128x32xbf16> to vector<2x128x8xbf16>
    "tpu.trace_start"() <{level = 10 : i32, message = "btd,bsd->bts"}> : () -> ()
    %cst_233 = arith.constant dense<0.000000e+00> : vector<2x8x128xf32>
    %528 = tpu.matmul %526, %527, %cst_233 {dimension_numbers = #tpu.dot_dimension_numbers<[2], [2], [1], [1], [0, 0, 0, 1, 1, 1], [0], [0]>} : vector<2x8x8xbf16>, vector<2x128x8xbf16>, vector<2x8x128xf32> -> vector<2x8x128xf32>
    "tpu.trace_stop"() : () -> ()
    %529 = arith.addf %528, %27 : vector<2x8x128xf32>
    %cst_234 = arith.constant dense<0xFF800000> : vector<2x8xf32>
    %530 = vector.multi_reduction <maximumf>, %529, %cst_234 [2] : vector<2x8x128xf32> to vector<2x8xf32>
    %531 = vector.shape_cast %530 : vector<2x8xf32> to vector<2x8x1xf32>
    %532 = vector.broadcast %531 : vector<2x8x1xf32> to vector<2x8x128xf32>
    %533 = arith.subf %529, %532 : vector<2x8x128xf32>
    %534 = math.exp %533 : vector<2x8x128xf32>
    %cst_235 = arith.constant dense<0.000000e+00> : vector<2x8xf32>
    %535 = vector.multi_reduction <add>, %534, %cst_235 [2] : vector<2x8x128xf32> to vector<2x8xf32>
    %536 = vector.shape_cast %535 : vector<2x8xf32> to vector<2x8x1xf32>
    %537 = tpu.reciprocal %536 {approx = true} : vector<2x8x1xf32> -> vector<2x8x1xf32>
    %538 = vector.broadcast %537 : vector<2x8x1xf32> to vector<2x8x128xf32>
    %539 = arith.mulf %534, %538 : vector<2x8x128xf32>
    %540 = arith.truncf %539 : vector<2x8x128xf32> to vector<2x8x128xbf16>
    %541 = vector.extract_strided_slice %485 {offsets = [0, 0, 16], sizes = [2, 128, 8], strides = [1, 1, 1]} : vector<2x128x32xbf16> to vector<2x128x8xbf16>
    "tpu.trace_start"() <{level = 10 : i32, message = "bts,bsd->btd"}> : () -> ()
    %cst_236 = arith.constant dense<0.000000e+00> : vector<2x8x8xf32>
    %542 = tpu.matmul %540, %541, %cst_236 {dimension_numbers = #tpu.dot_dimension_numbers<[2], [1], [1], [2], [0, 0, 0, 1, 1, 2], [0], [0]>} : vector<2x8x128xbf16>, vector<2x128x8xbf16>, vector<2x8x8xf32> -> vector<2x8x8xf32>
    "tpu.trace_stop"() : () -> ()
    %c0_237 = arith.constant 0 : index
    %c0_238 = arith.constant 0 : index
    %c16_239 = arith.constant 16 : index
    %543 = vector.load %arg25[%c0_237, %c0_238, %c16_239] : memref<2x8x32xf32, #tpu.memory_space<vmem>>, vector<2x8x8xf32>
    tpu.vector_store %arg25[%c0_237, %c0_238, %c16_239], %542 {strides = array<i32>} : memref<2x8x32xf32, #tpu.memory_space<vmem>>, vector<2x8x8xf32>,
    %544 = vector.extract_strided_slice %489 {offsets = [0, 0, 24], sizes = [2, 8, 8], strides = [1, 1, 1]} : vector<2x8x32xbf16> to vector<2x8x8xbf16>
    %545 = vector.extract_strided_slice %482 {offsets = [0, 0, 24], sizes = [2, 128, 8], strides = [1, 1, 1]} : vector<2x128x32xbf16> to vector<2x128x8xbf16>
    "tpu.trace_start"() <{level = 10 : i32, message = "btd,bsd->bts"}> : () -> ()
    %cst_240 = arith.constant dense<0.000000e+00> : vector<2x8x128xf32>
    %546 = tpu.matmul %544, %545, %cst_240 {dimension_numbers = #tpu.dot_dimension_numbers<[2], [2], [1], [1], [0, 0, 0, 1, 1, 1], [0], [0]>} : vector<2x8x8xbf16>, vector<2x128x8xbf16>, vector<2x8x128xf32> -> vector<2x8x128xf32>
    "tpu.trace_stop"() : () -> ()
    %547 = arith.addf %546, %27 : vector<2x8x128xf32>
    %cst_241 = arith.constant dense<0xFF800000> : vector<2x8xf32>
    %548 = vector.multi_reduction <maximumf>, %547, %cst_241 [2] : vector<2x8x128xf32> to vector<2x8xf32>
    %549 = vector.shape_cast %548 : vector<2x8xf32> to vector<2x8x1xf32>
    %550 = vector.broadcast %549 : vector<2x8x1xf32> to vector<2x8x128xf32>
    %551 = arith.subf %547, %550 : vector<2x8x128xf32>
    %552 = math.exp %551 : vector<2x8x128xf32>
    %cst_242 = arith.constant dense<0.000000e+00> : vector<2x8xf32>
    %553 = vector.multi_reduction <add>, %552, %cst_242 [2] : vector<2x8x128xf32> to vector<2x8xf32>
    %554 = vector.shape_cast %553 : vector<2x8xf32> to vector<2x8x1xf32>
    %555 = tpu.reciprocal %554 {approx = true} : vector<2x8x1xf32> -> vector<2x8x1xf32>
    %556 = vector.broadcast %555 : vector<2x8x1xf32> to vector<2x8x128xf32>
    %557 = arith.mulf %552, %556 : vector<2x8x128xf32>
    %558 = arith.truncf %557 : vector<2x8x128xf32> to vector<2x8x128xbf16>
    %559 = vector.extract_strided_slice %485 {offsets = [0, 0, 24], sizes = [2, 128, 8], strides = [1, 1, 1]} : vector<2x128x32xbf16> to vector<2x128x8xbf16>
    "tpu.trace_start"() <{level = 10 : i32, message = "bts,bsd->btd"}> : () -> ()
    %cst_243 = arith.constant dense<0.000000e+00> : vector<2x8x8xf32>
    %560 = tpu.matmul %558, %559, %cst_243 {dimension_numbers = #tpu.dot_dimension_numbers<[2], [1], [1], [2], [0, 0, 0, 1, 1, 2], [0], [0]>} : vector<2x8x128xbf16>, vector<2x128x8xbf16>, vector<2x8x8xf32> -> vector<2x8x8xf32>
    "tpu.trace_stop"() : () -> ()
    %c0_244 = arith.constant 0 : index
    %c0_245 = arith.constant 0 : index
    %c24_246 = arith.constant 24 : index
    %561 = vector.load %arg25[%c0_244, %c0_245, %c24_246] : memref<2x8x32xf32, #tpu.memory_space<vmem>>, vector<2x8x8xf32>
    tpu.vector_store %arg25[%c0_244, %c0_245, %c24_246], %560 {strides = array<i32>} : memref<2x8x32xf32, #tpu.memory_space<vmem>>, vector<2x8x8xf32>,
    %c0_247 = arith.constant 0 : index
    %c0_248 = arith.constant 0 : index
    %c0_249 = arith.constant 0 : index
    %562 = vector.load %arg25[%c0_247, %c0_248, %c0_249] : memref<2x8x32xf32, #tpu.memory_space<vmem>>, vector<2x8x32xf32>
    %563 = vector.shape_cast %562 : vector<2x8x32xf32> to vector<16x32xf32>
    %564 = arith.addf %438, %563 : vector<16x32xf32>
    %c1_250 = arith.constant 1 : index
    %c0_251 = arith.constant 0 : index
    %c0_252 = arith.constant 0 : index
    %565 = vector.load %arg15[%c1_250, %c0_251, %c0_252] : memref<2x1x32xf32, #tpu.memory_space<vmem>>, vector<1x1x32xf32>
    %566 = vector.shape_cast %565 : vector<1x1x32xf32> to vector<1x32xf32>
    %c1_253 = arith.constant 1 : index
    %c0_254 = arith.constant 0 : index
    %c0_255 = arith.constant 0 : index
    %567 = vector.load %arg16[%c1_253, %c0_254, %c0_255] : memref<2x1x32xf32, #tpu.memory_space<vmem>>, vector<1x1x32xf32>
    %568 = vector.shape_cast %567 : vector<1x1x32xf32> to vector<1x32xf32>
    %cst_256 = arith.constant dense<0.000000e+00> : vector<16xf32>
    %569 = vector.multi_reduction <add>, %564, %cst_256 [1] : vector<16x32xf32> to vector<16xf32>
    %570 = vector.shape_cast %569 : vector<16xf32> to vector<16x1xf32>
    %cst_257 = arith.constant 3.200000e+01 : f32
    %571 = vector.broadcast %cst_257 : f32 to vector<16x1xf32>
    %572 = arith.divf %570, %571 : vector<16x1xf32>
    %573 = vector.broadcast %572 : vector<16x1xf32> to vector<16x32xf32>
    %574 = arith.subf %564, %573 : vector<16x32xf32>
    %575 = arith.mulf %574, %574 : vector<16x32xf32>
    %cst_258 = arith.constant dense<0.000000e+00> : vector<16xf32>
    %576 = vector.multi_reduction <add>, %575, %cst_258 [1] : vector<16x32xf32> to vector<16xf32>
    %577 = vector.shape_cast %576 : vector<16xf32> to vector<16x1xf32>
    %cst_259 = arith.constant 3.200000e+01 : f32
    %578 = vector.broadcast %cst_259 : f32 to vector<16x1xf32>
    %579 = arith.divf %577, %578 : vector<16x1xf32>
    %580 = vector.broadcast %572 : vector<16x1xf32> to vector<16x32xf32>
    %581 = arith.subf %564, %580 : vector<16x32xf32>
    %cst_260 = arith.constant 9.99999974E-6 : f32
    %582 = vector.broadcast %cst_260 : f32 to vector<16x1xf32>
    %583 = arith.addf %579, %582 : vector<16x1xf32>
    %584 = math.rsqrt %583 : vector<16x1xf32>
    %585 = vector.broadcast %584 : vector<16x1xf32> to vector<16x32xf32>
    %586 = arith.mulf %581, %585 : vector<16x32xf32>
    %587 = vector.broadcast %566 : vector<1x32xf32> to vector<16x32xf32>
    %588 = arith.mulf %586, %587 : vector<16x32xf32>
    %589 = vector.broadcast %568 : vector<1x32xf32> to vector<16x32xf32>
    %590 = arith.addf %588, %589 : vector<16x32xf32>
    %591 = arith.truncf %590 : vector<16x32xf32> to vector<16x32xbf16>
    %c1_261 = arith.constant 1 : index
    %c0_262 = arith.constant 0 : index
    %c0_263 = arith.constant 0 : index
    %592 = vector.load %arg17[%c1_261, %c0_262, %c0_263] : memref<2x32x64xbf16, #tpu.memory_space<vmem>>, vector<1x32x64xbf16>
    %593 = vector.shape_cast %592 : vector<1x32x64xbf16> to vector<32x64xbf16>
    %cst_264 = arith.constant dense<0.000000e+00> : vector<16x64xf32>
    %594 = tpu.matmul %591, %593, %cst_264 {dimension_numbers = #tpu.dot_dimension_numbers<[1], [0], [0], [1], [0, 0, 1, 1], [], []>} : vector<16x32xbf16>, vector<32x64xbf16>, vector<16x64xf32> -> vector<16x64xf32>
    %c1_265 = arith.constant 1 : index
    %c0_266 = arith.constant 0 : index
    %c0_267 = arith.constant 0 : index
    %595 = vector.load %arg18[%c1_265, %c0_266, %c0_267] : memref<2x1x64xf32, #tpu.memory_space<vmem>>, vector<1x1x64xf32>
    %596 = vector.shape_cast %595 : vector<1x1x64xf32> to vector<1x64xf32>
    %597 = vector.broadcast %596 : vector<1x64xf32> to vector<16x64xf32>
    %598 = arith.addf %594, %597 : vector<16x64xf32>
    %cst_268 = arith.constant 0.000000e+00 : f32
    %599 = vector.broadcast %cst_268 : f32 to vector<16x64xf32>
    %600 = arith.maximumf %598, %599 : vector<16x64xf32>
    %601 = arith.truncf %600 : vector<16x64xf32> to vector<16x64xbf16>
    %c1_269 = arith.constant 1 : index
    %c0_270 = arith.constant 0 : index
    %c0_271 = arith.constant 0 : index
    %602 = vector.load %arg19[%c1_269, %c0_270, %c0_271] : memref<2x64x32xbf16, #tpu.memory_space<vmem>>, vector<1x64x32xbf16>
    %603 = vector.shape_cast %602 : vector<1x64x32xbf16> to vector<64x32xbf16>
    %cst_272 = arith.constant dense<0.000000e+00> : vector<16x32xf32>
    %604 = tpu.matmul %601, %603, %cst_272 {dimension_numbers = #tpu.dot_dimension_numbers<[1], [0], [0], [1], [0, 0, 1, 1], [], []>} : vector<16x64xbf16>, vector<64x32xbf16>, vector<16x32xf32> -> vector<16x32xf32>
    %605 = arith.addf %564, %604 : vector<16x32xf32>
    %c1_273 = arith.constant 1 : index
    %c0_274 = arith.constant 0 : index
    %c0_275 = arith.constant 0 : index
    %606 = vector.load %arg20[%c1_273, %c0_274, %c0_275] : memref<2x1x32xf32, #tpu.memory_space<vmem>>, vector<1x1x32xf32>
    %607 = vector.shape_cast %606 : vector<1x1x32xf32> to vector<1x32xf32>
    %608 = vector.broadcast %607 : vector<1x32xf32> to vector<16x32xf32>
    %609 = arith.addf %605, %608 : vector<16x32xf32>
    %c0_276 = arith.constant 0 : index
    %c0_277 = arith.constant 0 : index
    %610 = vector.load %arg21[%c0_276, %c0_277] : memref<1x32xf32, #tpu.memory_space<vmem>>, vector<1x32xf32>
    %c0_278 = arith.constant 0 : index
    %c0_279 = arith.constant 0 : index
    %611 = vector.load %arg22[%c0_278, %c0_279] : memref<1x32xf32, #tpu.memory_space<vmem>>, vector<1x32xf32>
    %cst_280 = arith.constant dense<0.000000e+00> : vector<16xf32>
    %612 = vector.multi_reduction <add>, %609, %cst_280 [1] : vector<16x32xf32> to vector<16xf32>
    %613 = vector.shape_cast %612 : vector<16xf32> to vector<16x1xf32>
    %cst_281 = arith.constant 3.200000e+01 : f32
    %614 = vector.broadcast %cst_281 : f32 to vector<16x1xf32>
    %615 = arith.divf %613, %614 : vector<16x1xf32>
    %616 = vector.broadcast %615 : vector<16x1xf32> to vector<16x32xf32>
    %617 = arith.subf %609, %616 : vector<16x32xf32>
    %618 = arith.mulf %617, %617 : vector<16x32xf32>
    %cst_282 = arith.constant dense<0.000000e+00> : vector<16xf32>
    %619 = vector.multi_reduction <add>, %618, %cst_282 [1] : vector<16x32xf32> to vector<16xf32>
    %620 = vector.shape_cast %619 : vector<16xf32> to vector<16x1xf32>
    %cst_283 = arith.constant 3.200000e+01 : f32
    %621 = vector.broadcast %cst_283 : f32 to vector<16x1xf32>
    %622 = arith.divf %620, %621 : vector<16x1xf32>
    %623 = vector.broadcast %615 : vector<16x1xf32> to vector<16x32xf32>
    %624 = arith.subf %609, %623 : vector<16x32xf32>
    %cst_284 = arith.constant 9.99999974E-6 : f32
    %625 = vector.broadcast %cst_284 : f32 to vector<16x1xf32>
    %626 = arith.addf %622, %625 : vector<16x1xf32>
    %627 = math.rsqrt %626 : vector<16x1xf32>
    %628 = vector.broadcast %627 : vector<16x1xf32> to vector<16x32xf32>
    %629 = arith.mulf %624, %628 : vector<16x32xf32>
    %630 = vector.broadcast %610 : vector<1x32xf32> to vector<16x32xf32>
    %631 = arith.mulf %629, %630 : vector<16x32xf32>
    %632 = vector.broadcast %611 : vector<1x32xf32> to vector<16x32xf32>
    %633 = arith.addf %631, %632 : vector<16x32xf32>
    %634 = arith.truncf %633 : vector<16x32xf32> to vector<16x32xbf16>
    %c0_285 = arith.constant 0 : index
    %c0_286 = arith.constant 0 : index
    %635 = vector.load %arg23[%c0_285, %c0_286] : memref<32x128xbf16, #tpu.memory_space<vmem>>, vector<32x128xbf16>
    %cst_287 = arith.constant dense<0.000000e+00> : vector<16x128xf32>
    %636 = tpu.matmul %634, %635, %cst_287 {dimension_numbers = #tpu.dot_dimension_numbers<[1], [0], [0], [1], [0, 0, 1, 1], [], []>} : vector<16x32xbf16>, vector<32x128xbf16>, vector<16x128xf32> -> vector<16x128xf32>
    %637 = tpu.iota {dimensions = array<i32: 1>} : vector<16x128xi32>
    %c45_i32 = arith.constant 45 : i32
    %638 = vector.broadcast %c45_i32 : i32 to vector<16x128xi32>
    %639 = arith.cmpi sge, %637, %638 : vector<16x128xi32>
    %cst_288 = arith.constant -1.000000e+30 : f32
    %640 = vector.broadcast %cst_288 : f32 to vector<16x128xf32>
    %641 = arith.select %639, %640, %636 : vector<16x128xi1>, vector<16x128xf32>
    %cst_289 = arith.constant dense<0xFF800000> : vector<16xf32>
    %642 = vector.multi_reduction <maximumf>, %641, %cst_289 [1] : vector<16x128xf32> to vector<16xf32>
    %643 = vector.shape_cast %642 : vector<16xf32> to vector<16x1xf32>
    %644 = vector.broadcast %643 : vector<16x1xf32> to vector<16x128xf32>
    %645 = arith.subf %641, %644 : vector<16x128xf32>
    %646 = math.exp %645 : vector<16x128xf32>
    %cst_290 = arith.constant dense<0.000000e+00> : vector<16xf32>
    %647 = vector.multi_reduction <add>, %646, %cst_290 [1] : vector<16x128xf32> to vector<16xf32>
    %648 = vector.shape_cast %647 : vector<16xf32> to vector<16x1xf32>
    %649 = math.log %648 : vector<16x1xf32>
    %650 = vector.broadcast %649 : vector<16x1xf32> to vector<16x128xf32>
    %651 = arith.subf %645, %650 : vector<16x128xf32>
    %652 = vector.shape_cast %651 : vector<16x128xf32> to vector<2x8x128xf32>
    %c0_291 = arith.constant 0 : index
    %c0_292 = arith.constant 0 : index
    %c0_293 = arith.constant 0 : index
    %653 = vector.load %arg24[%c0_291, %c0_292, %c0_293] : memref<2x8x128xf32, #tpu.memory_space<vmem>>, vector<2x8x128xf32>
    tpu.vector_store %arg24[%c0_291, %c0_292, %c0_293], %652 {strides = array<i32>} : memref<2x8x128xf32, #tpu.memory_space<vmem>>, vector<2x8x128xf32>,
    return
  }
  func.func @transform_0(%arg0: i32) -> (i32, i32, i32) {
    %c0_i32 = arith.constant 0 : i32
    %c0_i32_0 = arith.constant 0 : i32
    %c0_i32_1 = arith.constant 0 : i32
    return %arg0, %c0_i32, %c0_i32_0 : i32, i32, i32
  }
  func.func @transform_1(%arg0: i32) -> (i32, i32, i32) {
    %c0_i32 = arith.constant 0 : i32
    %c0_i32_0 = arith.constant 0 : i32
    %c0_i32_1 = arith.constant 0 : i32
    return %arg0, %c0_i32, %c0_i32_0 : i32, i32, i32
  }
  func.func @transform_2(%arg0: i32) -> (i32, i32, i32) {
    %c0_i32 = arith.constant 0 : i32
    %c0_i32_0 = arith.constant 0 : i32
    %c0_i32_1 = arith.constant 0 : i32
    return %arg0, %c0_i32, %c0_i32_0 : i32, i32, i32
  }
  func.func @transform_3(%arg0: i32) -> (i32, i32, i32) {
    %c0_i32 = arith.constant 0 : i32
    %c0_i32_0 = arith.constant 0 : i32
    %c0_i32_1 = arith.constant 0 : i32
    return %arg0, %c0_i32, %c0_i32_0 : i32, i32, i32
  }
  func.func @transform_4(%arg0: i32) -> (i32, i32, i32) {
    %c0_i32 = arith.constant 0 : i32
    %c0_i32_0 = arith.constant 0 : i32
    %c0_i32_1 = arith.constant 0 : i32
    %c0_i32_2 = arith.constant 0 : i32
    return %c0_i32, %c0_i32_0, %c0_i32_1 : i32, i32, i32
  }
  func.func @transform_5(%arg0: i32) -> (i32, i32, i32) {
    %c0_i32 = arith.constant 0 : i32
    %c0_i32_0 = arith.constant 0 : i32
    %c0_i32_1 = arith.constant 0 : i32
    %c0_i32_2 = arith.constant 0 : i32
    return %c0_i32, %c0_i32_0, %c0_i32_1 : i32, i32, i32
  }
  func.func @transform_6(%arg0: i32) -> (i32, i32, i32) {
    %c0_i32 = arith.constant 0 : i32
    %c0_i32_0 = arith.constant 0 : i32
    %c0_i32_1 = arith.constant 0 : i32
    %c0_i32_2 = arith.constant 0 : i32
    return %c0_i32, %c0_i32_0, %c0_i32_1 : i32, i32, i32
  }
  func.func @transform_7(%arg0: i32) -> (i32, i32, i32) {
    %c0_i32 = arith.constant 0 : i32
    %c0_i32_0 = arith.constant 0 : i32
    %c0_i32_1 = arith.constant 0 : i32
    %c0_i32_2 = arith.constant 0 : i32
    return %c0_i32, %c0_i32_0, %c0_i32_1 : i32, i32, i32
  }
  func.func @transform_8(%arg0: i32) -> (i32, i32, i32) {
    %c0_i32 = arith.constant 0 : i32
    %c0_i32_0 = arith.constant 0 : i32
    %c0_i32_1 = arith.constant 0 : i32
    %c0_i32_2 = arith.constant 0 : i32
    return %c0_i32, %c0_i32_0, %c0_i32_1 : i32, i32, i32
  }
  func.func @transform_9(%arg0: i32) -> (i32, i32, i32) {
    %c0_i32 = arith.constant 0 : i32
    %c0_i32_0 = arith.constant 0 : i32
    %c0_i32_1 = arith.constant 0 : i32
    %c0_i32_2 = arith.constant 0 : i32
    return %c0_i32, %c0_i32_0, %c0_i32_1 : i32, i32, i32
  }
  func.func @transform_10(%arg0: i32) -> (i32, i32, i32) {
    %c0_i32 = arith.constant 0 : i32
    %c0_i32_0 = arith.constant 0 : i32
    %c0_i32_1 = arith.constant 0 : i32
    %c0_i32_2 = arith.constant 0 : i32
    return %c0_i32, %c0_i32_0, %c0_i32_1 : i32, i32, i32
  }
  func.func @transform_11(%arg0: i32) -> (i32, i32, i32) {
    %c0_i32 = arith.constant 0 : i32
    %c0_i32_0 = arith.constant 0 : i32
    %c0_i32_1 = arith.constant 0 : i32
    %c0_i32_2 = arith.constant 0 : i32
    return %c0_i32, %c0_i32_0, %c0_i32_1 : i32, i32, i32
  }
  func.func @transform_12(%arg0: i32) -> (i32, i32, i32) {
    %c0_i32 = arith.constant 0 : i32
    %c0_i32_0 = arith.constant 0 : i32
    %c0_i32_1 = arith.constant 0 : i32
    %c0_i32_2 = arith.constant 0 : i32
    return %c0_i32, %c0_i32_0, %c0_i32_1 : i32, i32, i32
  }
  func.func @transform_13(%arg0: i32) -> (i32, i32, i32) {
    %c0_i32 = arith.constant 0 : i32
    %c0_i32_0 = arith.constant 0 : i32
    %c0_i32_1 = arith.constant 0 : i32
    %c0_i32_2 = arith.constant 0 : i32
    return %c0_i32, %c0_i32_0, %c0_i32_1 : i32, i32, i32
  }
  func.func @transform_14(%arg0: i32) -> (i32, i32, i32) {
    %c0_i32 = arith.constant 0 : i32
    %c0_i32_0 = arith.constant 0 : i32
    %c0_i32_1 = arith.constant 0 : i32
    %c0_i32_2 = arith.constant 0 : i32
    return %c0_i32, %c0_i32_0, %c0_i32_1 : i32, i32, i32
  }
  func.func @transform_15(%arg0: i32) -> (i32, i32, i32) {
    %c0_i32 = arith.constant 0 : i32
    %c0_i32_0 = arith.constant 0 : i32
    %c0_i32_1 = arith.constant 0 : i32
    %c0_i32_2 = arith.constant 0 : i32
    return %c0_i32, %c0_i32_0, %c0_i32_1 : i32, i32, i32
  }
  func.func @transform_16(%arg0: i32) -> (i32, i32, i32) {
    %c0_i32 = arith.constant 0 : i32
    %c0_i32_0 = arith.constant 0 : i32
    %c0_i32_1 = arith.constant 0 : i32
    %c0_i32_2 = arith.constant 0 : i32
    return %c0_i32, %c0_i32_0, %c0_i32_1 : i32, i32, i32
  }
  func.func @transform_17(%arg0: i32) -> (i32, i32, i32) {
    %c0_i32 = arith.constant 0 : i32
    %c0_i32_0 = arith.constant 0 : i32
    %c0_i32_1 = arith.constant 0 : i32
    %c0_i32_2 = arith.constant 0 : i32
    return %c0_i32, %c0_i32_0, %c0_i32_1 : i32, i32, i32
  }
  func.func @transform_18(%arg0: i32) -> (i32, i32, i32) {
    %c0_i32 = arith.constant 0 : i32
    %c0_i32_0 = arith.constant 0 : i32
    %c0_i32_1 = arith.constant 0 : i32
    %c0_i32_2 = arith.constant 0 : i32
    return %c0_i32, %c0_i32_0, %c0_i32_1 : i32, i32, i32
  }
  func.func @transform_19(%arg0: i32) -> (i32, i32, i32) {
    %c0_i32 = arith.constant 0 : i32
    %c0_i32_0 = arith.constant 0 : i32
    %c0_i32_1 = arith.constant 0 : i32
    %c0_i32_2 = arith.constant 0 : i32
    return %c0_i32, %c0_i32_0, %c0_i32_1 : i32, i32, i32
  }
  func.func @transform_20(%arg0: i32) -> (i32, i32) {
    %c0_i32 = arith.constant 0 : i32
    %c0_i32_0 = arith.constant 0 : i32
    %c0_i32_1 = arith.constant 0 : i32
    return %c0_i32, %c0_i32_0 : i32, i32
  }
  func.func @transform_21(%arg0: i32) -> (i32, i32) {
    %c0_i32 = arith.constant 0 : i32
    %c0_i32_0 = arith.constant 0 : i32
    %c0_i32_1 = arith.constant 0 : i32
    return %c0_i32, %c0_i32_0 : i32, i32
  }
  func.func @transform_22(%arg0: i32) -> (i32, i32) {
    %c0_i32 = arith.constant 0 : i32
    %c0_i32_0 = arith.constant 0 : i32
    %c0_i32_1 = arith.constant 0 : i32
    return %c0_i32, %c0_i32_0 : i32, i32
  }
  func.func @transform_23(%arg0: i32) -> (i32, i32, i32) {
    %c0_i32 = arith.constant 0 : i32
    %c0_i32_0 = arith.constant 0 : i32
    %c0_i32_1 = arith.constant 0 : i32
    return %arg0, %c0_i32, %c0_i32_0 : i32, i32, i32
  }
}

module attributes {stable_mosaic.version = 11 : i64} {
  func.func @_decoder_kernel(%arg0: i32, %arg1: memref<2x1x1xi32, #tpu.memory_space<vmem>>, %arg2: memref<2x1x1xi32, #tpu.memory_space<vmem>>, %arg3: memref<2x8x32xf32, #tpu.memory_space<vmem>>, %arg4: memref<2x128x32xf32, #tpu.memory_space<vmem>>, %arg5: memref<2x1x32xf32, #tpu.memory_space<vmem>>, %arg6: memref<2x1x32xf32, #tpu.memory_space<vmem>>, %arg7: memref<2x32x96xbf16, #tpu.memory_space<vmem>>, %arg8: memref<2x1x96xf32, #tpu.memory_space<vmem>>, %arg9: memref<2x1x32xf32, #tpu.memory_space<vmem>>, %arg10: memref<2x1x32xf32, #tpu.memory_space<vmem>>, %arg11: memref<2x32x32xbf16, #tpu.memory_space<vmem>>, %arg12: memref<2x1x32xf32, #tpu.memory_space<vmem>>, %arg13: memref<2x32x64xbf16, #tpu.memory_space<vmem>>, %arg14: memref<2x1x64xf32, #tpu.memory_space<vmem>>, %arg15: memref<2x1x32xf32, #tpu.memory_space<vmem>>, %arg16: memref<2x1x32xf32, #tpu.memory_space<vmem>>, %arg17: memref<2x32x64xbf16, #tpu.memory_space<vmem>>, %arg18: memref<2x1x64xf32, #tpu.memory_space<vmem>>, %arg19: memref<2x64x32xbf16, #tpu.memory_space<vmem>>, %arg20: memref<2x1x32xf32, #tpu.memory_space<vmem>>, %arg21: memref<1x32xf32, #tpu.memory_space<vmem>>, %arg22: memref<1x32xf32, #tpu.memory_space<vmem>>, %arg23: memref<32x128xbf16, #tpu.memory_space<vmem>>, %arg24: memref<2x8x128xf32, #tpu.memory_space<vmem>>, %arg25: memref<2x8x32xf32, #tpu.memory_space<vmem>>) attributes {dimension_semantics = [#tpu.dimension_semantics<parallel>], iteration_bounds = array<i64: 1>, scalar_prefetch = 0 : i64, scratch_operands = 1 : i64, tpu.core_type = #tpu.core_type<tc>, window_params = [{transform_indices = @transform_0, window_bounds = array<i64: 2, 1, 1>}, {transform_indices = @transform_1, window_bounds = array<i64: 2, 1, 1>}, {transform_indices = @transform_2, window_bounds = array<i64: 2, 8, 32>}, {transform_indices = @transform_3, window_bounds = array<i64: 2, 128, 32>}, {pipeline_mode = #tpu.pipeline_mode<synchronous>, transform_indices = @transform_4, window_bounds = array<i64: 2, 1, 32>}, {pipeline_mode = #tpu.pipeline_mode<synchronous>, transform_indices = @transform_5, window_bounds = array<i64: 2, 1, 32>}, {pipeline_mode = #tpu.pipeline_mode<synchronous>, transform_indices = @transform_6, window_bounds = array<i64: 2, 32, 96>}, {pipeline_mode = #tpu.pipeline_mode<synchronous>, transform_indices = @transform_7, window_bounds = array<i64: 2, 1, 96>}, {pipeline_mode = #tpu.pipeline_mode<synchronous>, transform_indices = @transform_8, window_bounds = array<i64: 2, 1, 32>}, {pipeline_mode = #tpu.pipeline_mode<synchronous>, transform_indices = @transform_9, window_bounds = array<i64: 2, 1, 32>}, {pipeline_mode = #tpu.pipeline_mode<synchronous>, transform_indices = @transform_10, window_bounds = array<i64: 2, 32, 32>}, {pipeline_mode = #tpu.pipeline_mode<synchronous>, transform_indices = @transform_11, window_bounds = array<i64: 2, 1, 32>}, {pipeline_mode = #tpu.pipeline_mode<synchronous>, transform_indices = @transform_12, window_bounds = array<i64: 2, 32, 64>}, {pipeline_mode = #tpu.pipeline_mode<synchronous>, transform_indices = @transform_13, window_bounds = array<i64: 2, 1, 64>}, {pipeline_mode = #tpu.pipeline_mode<synchronous>, transform_indices = @transform_14, window_bounds = array<i64: 2, 1, 32>}, {pipeline_mode = #tpu.pipeline_mode<synchronous>, transform_indices = @transform_15, window_bounds = array<i64: 2, 1, 32>}, {pipeline_mode = #tpu.pipeline_mode<synchronous>, transform_indices = @transform_16, window_bounds = array<i64: 2, 32, 64>}, {pipeline_mode = #tpu.pipeline_mode<synchronous>, transform_indices = @transform_17, window_bounds = array<i64: 2, 1, 64>}, {pipeline_mode = #tpu.pipeline_mode<synchronous>, transform_indices = @transform_18, window_bounds = array<i64: 2, 64, 32>}, {pipeline_mode = #tpu.pipeline_mode<synchronous>, transform_indices = @transform_19, window_bounds = array<i64: 2, 1, 32>}, {pipeline_mode = #tpu.pipeline_mode<synchronous>, transform_indices = @transform_20, window_bounds = array<i64: 1, 32>}, {pipeline_mode = #tpu.pipeline_mode<synchronous>, transform_indices = @transform_21, window_bounds = array<i64: 1, 32>}, {pipeline_mode = #tpu.pipeline_mode<synchronous>, transform_indices = @transform_22, window_bounds = array<i64: 32, 128>}, {transform_indices = @transform_23, window_bounds = array<i64: 2, 8, 128>}]} {
    %c0 = arith.constant 0 : index
    %c0_0 = arith.constant 0 : index
    %c0_1 = arith.constant 0 : index
    %0 = vector.load %arg3[%c0, %c0_0, %c0_1] : memref<2x8x32xf32, #tpu.memory_space<vmem>>, vector<2x8x32xf32>
    %1 = vector.shape_cast %0 : vector<2x8x32xf32> to vector<16x32xf32>
    %c0_2 = arith.constant 0 : index
    %c0_3 = arith.constant 0 : index
    %c0_4 = arith.constant 0 : index
    %2 = vector.load %arg4[%c0_2, %c0_3, %c0_4] : memref<2x128x32xf32, #tpu.memory_space<vmem>>, vector<2x128x32xf32>
    %3 = arith.truncf %2 : vector<2x128x32xf32> to vector<2x128x32xbf16>
    %4 = vector.shape_cast %3 : vector<2x128x32xbf16> to vector<256x32xbf16>
    %c0_5 = arith.constant 0 : index
    %c0_6 = arith.constant 0 : index
    %c0_7 = arith.constant 0 : index
    %5 = vector.load %arg1[%c0_5, %c0_6, %c0_7] : memref<2x1x1xi32, #tpu.memory_space<vmem>>, vector<2x1x1xi32>
    %c0_8 = arith.constant 0 : index
    %c0_9 = arith.constant 0 : index
    %c0_10 = arith.constant 0 : index
    %6 = vector.load %arg2[%c0_8, %c0_9, %c0_10] : memref<2x1x1xi32, #tpu.memory_space<vmem>>, vector<2x1x1xi32>
    %7 = tpu.iota {dimensions = array<i32: 0>} : vector<8x8xi32>
    %8 = tpu.iota {dimensions = array<i32: 1>} : vector<8x8xi32>
    %9 = vector.shape_cast %8 : vector<8x8xi32> to vector<1x8x8xi32>
    %10 = vector.broadcast %9 : vector<1x8x8xi32> to vector<2x8x8xi32>
    %11 = vector.broadcast %5 : vector<2x1x1xi32> to vector<2x8x8xi32>
    %12 = arith.cmpi sge, %10, %11 : vector<2x8x8xi32>
    %13 = arith.cmpi sgt, %8, %7 : vector<8x8xi32>
    %14 = vector.shape_cast %13 : vector<8x8xi1> to vector<1x8x8xi1>
    %15 = vector.broadcast %14 : vector<1x8x8xi1> to vector<2x8x8xi1>
    %16 = arith.ori %12, %15 : vector<2x8x8xi1>
    %cst = arith.constant -1.000000e+30 : f32
    %cst_11 = arith.constant 0.000000e+00 : f32
    %17 = vector.broadcast %cst : f32 to vector<2x8x8xf32>
    %18 = vector.broadcast %cst_11 : f32 to vector<2x8x8xf32>
    %19 = arith.select %16, %17, %18 : vector<2x8x8xi1>, vector<2x8x8xf32>
    %20 = tpu.iota {dimensions = array<i32: 1>} : vector<8x128xi32>
    %21 = vector.shape_cast %20 : vector<8x128xi32> to vector<1x8x128xi32>
    %22 = vector.broadcast %21 : vector<1x8x128xi32> to vector<2x8x128xi32>
    %23 = vector.broadcast %6 : vector<2x1x1xi32> to vector<2x8x128xi32>
    %24 = arith.cmpi sge, %22, %23 : vector<2x8x128xi32>
    %cst_12 = arith.constant -1.000000e+30 : f32
    %cst_13 = arith.constant 0.000000e+00 : f32
    %25 = vector.broadcast %cst_12 : f32 to vector<2x8x128xf32>
    %26 = vector.broadcast %cst_13 : f32 to vector<2x8x128xf32>
    %27 = arith.select %24, %25, %26 : vector<2x8x128xi1>, vector<2x8x128xf32>
    %c0_14 = arith.constant 0 : index
    %c0_15 = arith.constant 0 : index
    %c0_16 = arith.constant 0 : index
    %28 = vector.load %arg5[%c0_14, %c0_15, %c0_16] : memref<2x1x32xf32, #tpu.memory_space<vmem>>, vector<1x1x32xf32>
    %29 = vector.shape_cast %28 : vector<1x1x32xf32> to vector<1x32xf32>
    %c0_17 = arith.constant 0 : index
    %c0_18 = arith.constant 0 : index
    %c0_19 = arith.constant 0 : index
    %30 = vector.load %arg6[%c0_17, %c0_18, %c0_19] : memref<2x1x32xf32, #tpu.memory_space<vmem>>, vector<1x1x32xf32>
    %31 = vector.shape_cast %30 : vector<1x1x32xf32> to vector<1x32xf32>
    %cst_20 = arith.constant dense<0.000000e+00> : vector<16xf32>
    %32 = vector.multi_reduction <add>, %1, %cst_20 [1] : vector<16x32xf32> to vector<16xf32>
    %33 = vector.shape_cast %32 : vector<16xf32> to vector<16x1xf32>
    %cst_21 = arith.constant 3.200000e+01 : f32
    %34 = vector.broadcast %cst_21 : f32 to vector<16x1xf32>
    %35 = arith.divf %33, %34 : vector<16x1xf32>
    %36 = vector.broadcast %35 : vector<16x1xf32> to vector<16x32xf32>
    %37 = arith.subf %1, %36 : vector<16x32xf32>
    %38 = arith.mulf %37, %37 : vector<16x32xf32>
    %cst_22 = arith.constant dense<0.000000e+00> : vector<16xf32>
    %39 = vector.multi_reduction <add>, %38, %cst_22 [1] : vector<16x32xf32> to vector<16xf32>
    %40 = vector.shape_cast %39 : vector<16xf32> to vector<16x1xf32>
    %cst_23 = arith.constant 3.200000e+01 : f32
    %41 = vector.broadcast %cst_23 : f32 to vector<16x1xf32>
    %42 = arith.divf %40, %41 : vector<16x1xf32>
    %43 = vector.broadcast %35 : vector<16x1xf32> to vector<16x32xf32>
    %44 = arith.subf %1, %43 : vector<16x32xf32>
    %cst_24 = arith.constant 9.99999974E-6 : f32
    %45 = vector.broadcast %cst_24 : f32 to vector<16x1xf32>
    %46 = arith.addf %42, %45 : vector<16x1xf32>
    %47 = math.rsqrt %46 : vector<16x1xf32>
    %48 = vector.broadcast %47 : vector<16x1xf32> to vector<16x32xf32>
    %49 = arith.mulf %44, %48 : vector<16x32xf32>
    %50 = vector.broadcast %29 : vector<1x32xf32> to vector<16x32xf32>
    %51 = arith.mulf %49, %50 : vector<16x32xf32>
    %52 = vector.broadcast %31 : vector<1x32xf32> to vector<16x32xf32>
    %53 = arith.addf %51, %52 : vector<16x32xf32>
    %54 = arith.truncf %53 : vector<16x32xf32> to vector<16x32xbf16>
    %c0_25 = arith.constant 0 : index
    %c0_26 = arith.constant 0 : index
    %c0_27 = arith.constant 0 : index
    %55 = vector.load %arg7[%c0_25, %c0_26, %c0_27] : memref<2x32x96xbf16, #tpu.memory_space<vmem>>, vector<1x32x96xbf16>
    %56 = vector.shape_cast %55 : vector<1x32x96xbf16> to vector<32x96xbf16>
    %cst_28 = arith.constant dense<0.000000e+00> : vector<16x96xf32>
    %57 = tpu.matmul %54, %56, %cst_28 {dimension_numbers = #tpu.dot_dimension_numbers<[1], [0], [0], [1], [0, 0, 1, 1], [], []>} : vector<16x32xbf16>, vector<32x96xbf16>, vector<16x96xf32> -> vector<16x96xf32>
    %c0_29 = arith.constant 0 : index
    %c0_30 = arith.constant 0 : index
    %c0_31 = arith.constant 0 : index
    %58 = vector.load %arg8[%c0_29, %c0_30, %c0_31] : memref<2x1x96xf32, #tpu.memory_space<vmem>>, vector<1x1x96xf32>
    %59 = vector.shape_cast %58 : vector<1x1x96xf32> to vector<1x96xf32>
    %60 = vector.broadcast %59 : vector<1x96xf32> to vector<16x96xf32>
    %61 = arith.addf %57, %60 : vector<16x96xf32>
    %62 = vector.extract_strided_slice %61 {offsets = [0, 0], sizes = [16, 32], strides = [1, 1]} : vector<16x96xf32> to vector<16x32xf32>
    %cst_32 = arith.constant 0.353553385 : f32
    %63 = vector.broadcast %cst_32 : f32 to vector<16x32xf32>
    %64 = arith.mulf %62, %63 : vector<16x32xf32>
    %65 = vector.extract_strided_slice %61 {offsets = [0, 32], sizes = [16, 32], strides = [1, 1]} : vector<16x96xf32> to vector<16x32xf32>
    %66 = vector.shape_cast %65 : vector<16x32xf32> to vector<2x8x32xf32>
    %67 = arith.truncf %66 : vector<2x8x32xf32> to vector<2x8x32xbf16>
    %68 = vector.extract_strided_slice %61 {offsets = [0, 64], sizes = [16, 32], strides = [1, 1]} : vector<16x96xf32> to vector<16x32xf32>
    %69 = vector.shape_cast %68 : vector<16x32xf32> to vector<2x8x32xf32>
    %70 = arith.truncf %69 : vector<2x8x32xf32> to vector<2x8x32xbf16>
    %71 = vector.shape_cast %64 : vector<16x32xf32> to vector<2x8x32xf32>
    %72 = arith.truncf %71 : vector<2x8x32xf32> to vector<2x8x32xbf16>
    %73 = vector.extract_strided_slice %72 {offsets = [0, 0, 0], sizes = [2, 8, 8], strides = [1, 1, 1]} : vector<2x8x32xbf16> to vector<2x8x8xbf16>
    %74 = vector.extract_strided_slice %67 {offsets = [0, 0, 0], sizes = [2, 8, 8], strides = [1, 1, 1]} : vector<2x8x32xbf16> to vector<2x8x8xbf16>
    "tpu.trace_start"() <{level = 10 : i32, message = "btd,bsd->bts"}> : () -> ()
    %cst_33 = arith.constant dense<0.000000e+00> : vector<2x8x8xf32>
    %75 = tpu.matmul %73, %74, %cst_33 {dimension_numbers = #tpu.dot_dimension_numbers<[2], [2], [1], [1], [0, 0, 0, 1, 1, 1], [0], [0]>} : vector<2x8x8xbf16>, vector<2x8x8xbf16>, vector<2x8x8xf32> -> vector<2x8x8xf32>
    "tpu.trace_stop"() : () -> ()
    %76 = arith.addf %75, %19 : vector<2x8x8xf32>
    %cst_34 = arith.constant dense<0xFF800000> : vector<2x8xf32>
    %77 = vector.multi_reduction <maximumf>, %76, %cst_34 [2] : vector<2x8x8xf32> to vector<2x8xf32>
    %78 = vector.shape_cast %77 : vector<2x8xf32> to vector<2x8x1xf32>
    %79 = vector.broadcast %78 : vector<2x8x1xf32> to vector<2x8x8xf32>
    %80 = arith.subf %76, %79 : vector<2x8x8xf32>
    %81 = math.exp %80 : vector<2x8x8xf32>
    %cst_35 = arith.constant dense<0.000000e+00> : vector<2x8xf32>
    %82 = vector.multi_reduction <add>, %81, %cst_35 [2] : vector<2x8x8xf32> to vector<2x8xf32>
    %83 = vector.shape_cast %82 : vector<2x8xf32> to vector<2x8x1xf32>
    %84 = tpu.reciprocal %83 {approx = true} : vector<2x8x1xf32> -> vector<2x8x1xf32>
    %85 = vector.broadcast %84 : vector<2x8x1xf32> to vector<2x8x8xf32>
    %86 = arith.mulf %81, %85 : vector<2x8x8xf32>
    %87 = arith.truncf %86 : vector<2x8x8xf32> to vector<2x8x8xbf16>
    %88 = vector.extract_strided_slice %70 {offsets = [0, 0, 0], sizes = [2, 8, 8], strides = [1, 1, 1]} : vector<2x8x32xbf16> to vector<2x8x8xbf16>
    "tpu.trace_start"() <{level = 10 : i32, message = "bts,bsd->btd"}> : () -> ()
    %cst_36 = arith.constant dense<0.000000e+00> : vector<2x8x8xf32>
    %89 = tpu.matmul %87, %88, %cst_36 {dimension_numbers = #tpu.dot_dimension_numbers<[2], [1], [1], [2], [0, 0, 0, 1, 1, 2], [0], [0]>} : vector<2x8x8xbf16>, vector<2x8x8xbf16>, vector<2x8x8xf32> -> vector<2x8x8xf32>
    "tpu.trace_stop"() : () -> ()
    %c0_37 = arith.constant 0 : index
    %c0_38 = arith.constant 0 : index
    %c0_39 = arith.constant 0 : index
    %90 = vector.load %arg25[%c0_37, %c0_38, %c0_39] : memref<2x8x32xf32, #tpu.memory_space<vmem>>, vector<2x8x8xf32>
    tpu.vector_store %arg25[%c0_37, %c0_38, %c0_39], %89 {strides = array<i32>} : memref<2x8x32xf32, #tpu.memory_space<vmem>>, vector<2x8x8xf32>,
    %91 = vector.extract_strided_slice %72 {offsets = [0, 0, 8], sizes = [2, 8, 8], strides = [1, 1, 1]} : vector<2x8x32xbf16> to vector<2x8x8xbf16>
    %92 = vector.extract_strided_slice %67 {offsets = [0, 0, 8], sizes = [2, 8, 8], strides = [1, 1, 1]} : vector<2x8x32xbf16> to vector<2x8x8xbf16>
    "tpu.trace_start"() <{level = 10 : i32, message = "btd,bsd->bts"}> : () -> ()
    %cst_40 = arith.constant dense<0.000000e+00> : vector<2x8x8xf32>
    %93 = tpu.matmul %91, %92, %cst_40 {dimension_numbers = #tpu.dot_dimension_numbers<[2], [2], [1], [1], [0, 0, 0, 1, 1, 1], [0], [0]>} : vector<2x8x8xbf16>, vector<2x8x8xbf16>, vector<2x8x8xf32> -> vector<2x8x8xf32>
    "tpu.trace_stop"() : () -> ()
    %94 = arith.addf %93, %19 : vector<2x8x8xf32>
    %cst_41 = arith.constant dense<0xFF800000> : vector<2x8xf32>
    %95 = vector.multi_reduction <maximumf>, %94, %cst_41 [2] : vector<2x8x8xf32> to vector<2x8xf32>
    %96 = vector.shape_cast %95 : vector<2x8xf32> to vector<2x8x1xf32>
    %97 = vector.broadcast %96 : vector<2x8x1xf32> to vector<2x8x8xf32>
    %98 = arith.subf %94, %97 : vector<2x8x8xf32>
    %99 = math.exp %98 : vector<2x8x8xf32>
    %cst_42 = arith.constant dense<0.000000e+00> : vector<2x8xf32>
    %100 = vector.multi_reduction <add>, %99, %cst_42 [2] : vector<2x8x8xf32> to vector<2x8xf32>
    %101 = vector.shape_cast %100 : vector<2x8xf32> to vector<2x8x1xf32>
    %102 = tpu.reciprocal %101 {approx = true} : vector<2x8x1xf32> -> vector<2x8x1xf32>
    %103 = vector.broadcast %102 : vector<2x8x1xf32> to vector<2x8x8xf32>
    %104 = arith.mulf %99, %103 : vector<2x8x8xf32>
    %105 = arith.truncf %104 : vector<2x8x8xf32> to vector<2x8x8xbf16>
    %106 = vector.extract_strided_slice %70 {offsets = [0, 0, 8], sizes = [2, 8, 8], strides = [1, 1, 1]} : vector<2x8x32xbf16> to vector<2x8x8xbf16>
    "tpu.trace_start"() <{level = 10 : i32, message = "bts,bsd->btd"}> : () -> ()
    %cst_43 = arith.constant dense<0.000000e+00> : vector<2x8x8xf32>
    %107 = tpu.matmul %105, %106, %cst_43 {dimension_numbers = #tpu.dot_dimension_numbers<[2], [1], [1], [2], [0, 0, 0, 1, 1, 2], [0], [0]>} : vector<2x8x8xbf16>, vector<2x8x8xbf16>, vector<2x8x8xf32> -> vector<2x8x8xf32>
    "tpu.trace_stop"() : () -> ()
    %c0_44 = arith.constant 0 : index
    %c0_45 = arith.constant 0 : index
    %c8 = arith.constant 8 : index
    %108 = vector.load %arg25[%c0_44, %c0_45, %c8] : memref<2x8x32xf32, #tpu.memory_space<vmem>>, vector<2x8x8xf32>
    tpu.vector_store %arg25[%c0_44, %c0_45, %c8], %107 {strides = array<i32>} : memref<2x8x32xf32, #tpu.memory_space<vmem>>, vector<2x8x8xf32>,
    %109 = vector.extract_strided_slice %72 {offsets = [0, 0, 16], sizes = [2, 8, 8], strides = [1, 1, 1]} : vector<2x8x32xbf16> to vector<2x8x8xbf16>
    %110 = vector.extract_strided_slice %67 {offsets = [0, 0, 16], sizes = [2, 8, 8], strides = [1, 1, 1]} : vector<2x8x32xbf16> to vector<2x8x8xbf16>
    "tpu.trace_start"() <{level = 10 : i32, message = "btd,bsd->bts"}> : () -> ()
    %cst_46 = arith.constant dense<0.000000e+00> : vector<2x8x8xf32>
    %111 = tpu.matmul %109, %110, %cst_46 {dimension_numbers = #tpu.dot_dimension_numbers<[2], [2], [1], [1], [0, 0, 0, 1, 1, 1], [0], [0]>} : vector<2x8x8xbf16>, vector<2x8x8xbf16>, vector<2x8x8xf32> -> vector<2x8x8xf32>
    "tpu.trace_stop"() : () -> ()
    %112 = arith.addf %111, %19 : vector<2x8x8xf32>
    %cst_47 = arith.constant dense<0xFF800000> : vector<2x8xf32>
    %113 = vector.multi_reduction <maximumf>, %112, %cst_47 [2] : vector<2x8x8xf32> to vector<2x8xf32>
    %114 = vector.shape_cast %113 : vector<2x8xf32> to vector<2x8x1xf32>
    %115 = vector.broadcast %114 : vector<2x8x1xf32> to vector<2x8x8xf32>
    %116 = arith.subf %112, %115 : vector<2x8x8xf32>
    %117 = math.exp %116 : vector<2x8x8xf32>
    %cst_48 = arith.constant dense<0.000000e+00> : vector<2x8xf32>
    %118 = vector.multi_reduction <add>, %117, %cst_48 [2] : vector<2x8x8xf32> to vector<2x8xf32>
    %119 = vector.shape_cast %118 : vector<2x8xf32> to vector<2x8x1xf32>
    %120 = tpu.reciprocal %119 {approx = true} : vector<2x8x1xf32> -> vector<2x8x1xf32>
    %121 = vector.broadcast %120 : vector<2x8x1xf32> to vector<2x8x8xf32>
    %122 = arith.mulf %117, %121 : vector<2x8x8xf32>
    %123 = arith.truncf %122 : vector<2x8x8xf32> to vector<2x8x8xbf16>
    %124 = vector.extract_strided_slice %70 {offsets = [0, 0, 16], sizes = [2, 8, 8], strides = [1, 1, 1]} : vector<2x8x32xbf16> to vector<2x8x8xbf16>
    "tpu.trace_start"() <{level = 10 : i32, message = "bts,bsd->btd"}> : () -> ()
    %cst_49 = arith.constant dense<0.000000e+00> : vector<2x8x8xf32>
    %125 = tpu.matmul %123, %124, %cst_49 {dimension_numbers = #tpu.dot_dimension_numbers<[2], [1], [1], [2], [0, 0, 0, 1, 1, 2], [0], [0]>} : vector<2x8x8xbf16>, vector<2x8x8xbf16>, vector<2x8x8xf32> -> vector<2x8x8xf32>
    "tpu.trace_stop"() : () -> ()
    %c0_50 = arith.constant 0 : index
    %c0_51 = arith.constant 0 : index
    %c16 = arith.constant 16 : index
    %126 = vector.load %arg25[%c0_50, %c0_51, %c16] : memref<2x8x32xf32, #tpu.memory_space<vmem>>, vector<2x8x8xf32>
    tpu.vector_store %arg25[%c0_50, %c0_51, %c16], %125 {strides = array<i32>} : memref<2x8x32xf32, #tpu.memory_space<vmem>>, vector<2x8x8xf32>,
    %127 = vector.extract_strided_slice %72 {offsets = [0, 0, 24], sizes = [2, 8, 8], strides = [1, 1, 1]} : vector<2x8x32xbf16> to vector<2x8x8xbf16>
    %128 = vector.extract_strided_slice %67 {offsets = [0, 0, 24], sizes = [2, 8, 8], strides = [1, 1, 1]} : vector<2x8x32xbf16> to vector<2x8x8xbf16>
    "tpu.trace_start"() <{level = 10 : i32, message = "btd,bsd->bts"}> : () -> ()
    %cst_52 = arith.constant dense<0.000000e+00> : vector<2x8x8xf32>
    %129 = tpu.matmul %127, %128, %cst_52 {dimension_numbers = #tpu.dot_dimension_numbers<[2], [2], [1], [1], [0, 0, 0, 1, 1, 1], [0], [0]>} : vector<2x8x8xbf16>, vector<2x8x8xbf16>, vector<2x8x8xf32> -> vector<2x8x8xf32>
    "tpu.trace_stop"() : () -> ()
    %130 = arith.addf %129, %19 : vector<2x8x8xf32>
    %cst_53 = arith.constant dense<0xFF800000> : vector<2x8xf32>
    %131 = vector.multi_reduction <maximumf>, %130, %cst_53 [2] : vector<2x8x8xf32> to vector<2x8xf32>
    %132 = vector.shape_cast %131 : vector<2x8xf32> to vector<2x8x1xf32>
    %133 = vector.broadcast %132 : vector<2x8x1xf32> to vector<2x8x8xf32>
    %134 = arith.subf %130, %133 : vector<2x8x8xf32>
    %135 = math.exp %134 : vector<2x8x8xf32>
    %cst_54 = arith.constant dense<0.000000e+00> : vector<2x8xf32>
    %136 = vector.multi_reduction <add>, %135, %cst_54 [2] : vector<2x8x8xf32> to vector<2x8xf32>
    %137 = vector.shape_cast %136 : vector<2x8xf32> to vector<2x8x1xf32>
    %138 = tpu.reciprocal %137 {approx = true} : vector<2x8x1xf32> -> vector<2x8x1xf32>
    %139 = vector.broadcast %138 : vector<2x8x1xf32> to vector<2x8x8xf32>
    %140 = arith.mulf %135, %139 : vector<2x8x8xf32>
    %141 = arith.truncf %140 : vector<2x8x8xf32> to vector<2x8x8xbf16>
    %142 = vector.extract_strided_slice %70 {offsets = [0, 0, 24], sizes = [2, 8, 8], strides = [1, 1, 1]} : vector<2x8x32xbf16> to vector<2x8x8xbf16>
    "tpu.trace_start"() <{level = 10 : i32, message = "bts,bsd->btd"}> : () -> ()
    %cst_55 = arith.constant dense<0.000000e+00> : vector<2x8x8xf32>
    %143 = tpu.matmul %141, %142, %cst_55 {dimension_numbers = #tpu.dot_dimension_numbers<[2], [1], [1], [2], [0, 0, 0, 1, 1, 2], [0], [0]>} : vector<2x8x8xbf16>, vector<2x8x8xbf16>, vector<2x8x8xf32> -> vector<2x8x8xf32>
    "tpu.trace_stop"() : () -> ()
    %c0_56 = arith.constant 0 : index
    %c0_57 = arith.constant 0 : index
    %c24 = arith.constant 24 : index
    %144 = vector.load %arg25[%c0_56, %c0_57, %c24] : memref<2x8x32xf32, #tpu.memory_space<vmem>>, vector<2x8x8xf32>
    tpu.vector_store %arg25[%c0_56, %c0_57, %c24], %143 {strides = array<i32>} : memref<2x8x32xf32, #tpu.memory_space<vmem>>, vector<2x8x8xf32>,
    %c0_58 = arith.constant 0 : index
    %c0_59 = arith.constant 0 : index
    %c0_60 = arith.constant 0 : index
    %145 = vector.load %arg25[%c0_58, %c0_59, %c0_60] : memref<2x8x32xf32, #tpu.memory_space<vmem>>, vector<2x8x32xf32>
    %146 = vector.shape_cast %145 : vector<2x8x32xf32> to vector<16x32xf32>
    %147 = arith.addf %1, %146 : vector<16x32xf32>
    %c0_61 = arith.constant 0 : index
    %c0_62 = arith.constant 0 : index
    %c0_63 = arith.constant 0 : index
    %148 = vector.load %arg9[%c0_61, %c0_62, %c0_63] : memref<2x1x32xf32, #tpu.memory_space<vmem>>, vector<1x1x32xf32>
    %149 = vector.shape_cast %148 : vector<1x1x32xf32> to vector<1x32xf32>
    %c0_64 = arith.constant 0 : index
    %c0_65 = arith.constant 0 : index
    %c0_66 = arith.constant 0 : index
    %150 = vector.load %arg10[%c0_64, %c0_65, %c0_66] : memref<2x1x32xf32, #tpu.memory_space<vmem>>, vector<1x1x32xf32>
    %151 = vector.shape_cast %150 : vector<1x1x32xf32> to vector<1x32xf32>
    %cst_67 = arith.constant dense<0.000000e+00> : vector<16xf32>
    %152 = vector.multi_reduction <add>, %147, %cst_67 [1] : vector<16x32xf32> to vector<16xf32>
    %153 = vector.shape_cast %152 : vector<16xf32> to vector<16x1xf32>
    %cst_68 = arith.constant 3.200000e+01 : f32
    %154 = vector.broadcast %cst_68 : f32 to vector<16x1xf32>
    %155 = arith.divf %153, %154 : vector<16x1xf32>
    %156 = vector.broadcast %155 : vector<16x1xf32> to vector<16x32xf32>
    %157 = arith.subf %147, %156 : vector<16x32xf32>
    %158 = arith.mulf %157, %157 : vector<16x32xf32>
    %cst_69 = arith.constant dense<0.000000e+00> : vector<16xf32>
    %159 = vector.multi_reduction <add>, %158, %cst_69 [1] : vector<16x32xf32> to vector<16xf32>
    %160 = vector.shape_cast %159 : vector<16xf32> to vector<16x1xf32>
    %cst_70 = arith.constant 3.200000e+01 : f32
    %161 = vector.broadcast %cst_70 : f32 to vector<16x1xf32>
    %162 = arith.divf %160, %161 : vector<16x1xf32>
    %163 = vector.broadcast %155 : vector<16x1xf32> to vector<16x32xf32>
    %164 = arith.subf %147, %163 : vector<16x32xf32>
    %cst_71 = arith.constant 9.99999974E-6 : f32
    %165 = vector.broadcast %cst_71 : f32 to vector<16x1xf32>
    %166 = arith.addf %162, %165 : vector<16x1xf32>
    %167 = math.rsqrt %166 : vector<16x1xf32>
    %168 = vector.broadcast %167 : vector<16x1xf32> to vector<16x32xf32>
    %169 = arith.mulf %164, %168 : vector<16x32xf32>
    %170 = vector.broadcast %149 : vector<1x32xf32> to vector<16x32xf32>
    %171 = arith.mulf %169, %170 : vector<16x32xf32>
    %172 = vector.broadcast %151 : vector<1x32xf32> to vector<16x32xf32>
    %173 = arith.addf %171, %172 : vector<16x32xf32>
    %174 = arith.truncf %173 : vector<16x32xf32> to vector<16x32xbf16>
    %c0_72 = arith.constant 0 : index
    %c0_73 = arith.constant 0 : index
    %c0_74 = arith.constant 0 : index
    %175 = vector.load %arg11[%c0_72, %c0_73, %c0_74] : memref<2x32x32xbf16, #tpu.memory_space<vmem>>, vector<1x32x32xbf16>
    %176 = vector.shape_cast %175 : vector<1x32x32xbf16> to vector<32x32xbf16>
    %cst_75 = arith.constant dense<0.000000e+00> : vector<16x32xf32>
    %177 = tpu.matmul %174, %176, %cst_75 {dimension_numbers = #tpu.dot_dimension_numbers<[1], [0], [0], [1], [0, 0, 1, 1], [], []>} : vector<16x32xbf16>, vector<32x32xbf16>, vector<16x32xf32> -> vector<16x32xf32>
    %c0_76 = arith.constant 0 : index
    %c0_77 = arith.constant 0 : index
    %c0_78 = arith.constant 0 : index
    %178 = vector.load %arg12[%c0_76, %c0_77, %c0_78] : memref<2x1x32xf32, #tpu.memory_space<vmem>>, vector<1x1x32xf32>
    %179 = vector.shape_cast %178 : vector<1x1x32xf32> to vector<1x32xf32>
    %180 = vector.broadcast %179 : vector<1x32xf32> to vector<16x32xf32>
    %181 = arith.addf %177, %180 : vector<16x32xf32>
    %c0_79 = arith.constant 0 : index
    %c0_80 = arith.constant 0 : index
    %c0_81 = arith.constant 0 : index
    %182 = vector.load %arg13[%c0_79, %c0_80, %c0_81] : memref<2x32x64xbf16, #tpu.memory_space<vmem>>, vector<1x32x64xbf16>
    %183 = vector.shape_cast %182 : vector<1x32x64xbf16> to vector<32x64xbf16>
    %cst_82 = arith.constant dense<0.000000e+00> : vector<256x64xf32>
    %184 = tpu.matmul %4, %183, %cst_82 {dimension_numbers = #tpu.dot_dimension_numbers<[1], [0], [0], [1], [0, 0, 1, 1], [], []>} : vector<256x32xbf16>, vector<32x64xbf16>, vector<256x64xf32> -> vector<256x64xf32>
    %c0_83 = arith.constant 0 : index
    %c0_84 = arith.constant 0 : index
    %c0_85 = arith.constant 0 : index
    %185 = vector.load %arg14[%c0_83, %c0_84, %c0_85] : memref<2x1x64xf32, #tpu.memory_space<vmem>>, vector<1x1x64xf32>
    %186 = vector.shape_cast %185 : vector<1x1x64xf32> to vector<1x64xf32>
    %187 = vector.broadcast %186 : vector<1x64xf32> to vector<256x64xf32>
    %188 = arith.addf %184, %187 : vector<256x64xf32>
    %189 = vector.extract_strided_slice %188 {offsets = [0, 0], sizes = [256, 32], strides = [1, 1]} : vector<256x64xf32> to vector<256x32xf32>
    %190 = vector.shape_cast %189 : vector<256x32xf32> to vector<2x128x32xf32>
    %191 = arith.truncf %190 : vector<2x128x32xf32> to vector<2x128x32xbf16>
    %192 = vector.extract_strided_slice %188 {offsets = [0, 32], sizes = [256, 32], strides = [1, 1]} : vector<256x64xf32> to vector<256x32xf32>
    %193 = vector.shape_cast %192 : vector<256x32xf32> to vector<2x128x32xf32>
    %194 = arith.truncf %193 : vector<2x128x32xf32> to vector<2x128x32xbf16>
    %cst_86 = arith.constant 0.353553385 : f32
    %195 = vector.broadcast %cst_86 : f32 to vector<16x32xf32>
    %196 = arith.mulf %181, %195 : vector<16x32xf32>
    %197 = vector.shape_cast %196 : vector<16x32xf32> to vector<2x8x32xf32>
    %198 = arith.truncf %197 : vector<2x8x32xf32> to vector<2x8x32xbf16>
    %199 = vector.extract_strided_slice %198 {offsets = [0, 0, 0], sizes = [2, 8, 8], strides = [1, 1, 1]} : vector<2x8x32xbf16> to vector<2x8x8xbf16>
    %200 = vector.extract_strided_slice %191 {offsets = [0, 0, 0], sizes = [2, 128, 8], strides = [1, 1, 1]} : vector<2x128x32xbf16> to vector<2x128x8xbf16>
    "tpu.trace_start"() <{level = 10 : i32, message = "btd,bsd->bts"}> : () -> ()
    %cst_87 = arith.constant dense<0.000000e+00> : vector<2x8x128xf32>
    %201 = tpu.matmul %199, %200, %cst_87 {dimension_numbers = #tpu.dot_dimension_numbers<[2], [2], [1], [1], [0, 0, 0, 1, 1, 1], [0], [0]>} : vector<2x8x8xbf16>, vector<2x128x8xbf16>, vector<2x8x128xf32> -> vector<2x8x128xf32>
    "tpu.trace_stop"() : () -> ()
    %202 = arith.addf %201, %27 : vector<2x8x128xf32>
    %cst_88 = arith.constant dense<0xFF800000> : vector<2x8xf32>
    %203 = vector.multi_reduction <maximumf>, %202, %cst_88 [2] : vector<2x8x128xf32> to vector<2x8xf32>
    %204 = vector.shape_cast %203 : vector<2x8xf32> to vector<2x8x1xf32>
    %205 = vector.broadcast %204 : vector<2x8x1xf32> to vector<2x8x128xf32>
    %206 = arith.subf %202, %205 : vector<2x8x128xf32>
    %207 = math.exp %206 : vector<2x8x128xf32>
    %cst_89 = arith.constant dense<0.000000e+00> : vector<2x8xf32>
    %208 = vector.multi_reduction <add>, %207, %cst_89 [2] : vector<2x8x128xf32> to vector<2x8xf32>
    %209 = vector.shape_cast %208 : vector<2x8xf32> to vector<2x8x1xf32>
    %210 = tpu.reciprocal %209 {approx = true} : vector<2x8x1xf32> -> vector<2x8x1xf32>
    %211 = vector.broadcast %210 : vector<2x8x1xf32> to vector<2x8x128xf32>
    %212 = arith.mulf %207, %211 : vector<2x8x128xf32>
    %213 = arith.truncf %212 : vector<2x8x128xf32> to vector<2x8x128xbf16>
    %214 = vector.extract_strided_slice %194 {offsets = [0, 0, 0], sizes = [2, 128, 8], strides = [1, 1, 1]} : vector<2x128x32xbf16> to vector<2x128x8xbf16>
    "tpu.trace_start"() <{level = 10 : i32, message = "bts,bsd->btd"}> : () -> ()
    %cst_90 = arith.constant dense<0.000000e+00> : vector<2x8x8xf32>
    %215 = tpu.matmul %213, %214, %cst_90 {dimension_numbers = #tpu.dot_dimension_numbers<[2], [1], [1], [2], [0, 0, 0, 1, 1, 2], [0], [0]>} : vector<2x8x128xbf16>, vector<2x128x8xbf16>, vector<2x8x8xf32> -> vector<2x8x8xf32>
    "tpu.trace_stop"() : () -> ()
    %c0_91 = arith.constant 0 : index
    %c0_92 = arith.constant 0 : index
    %c0_93 = arith.constant 0 : index
    %216 = vector.load %arg25[%c0_91, %c0_92, %c0_93] : memref<2x8x32xf32, #tpu.memory_space<vmem>>, vector<2x8x8xf32>
    tpu.vector_store %arg25[%c0_91, %c0_92, %c0_93], %215 {strides = array<i32>} : memref<2x8x32xf32, #tpu.memory_space<vmem>>, vector<2x8x8xf32>,
    %217 = vector.extract_strided_slice %198 {offsets = [0, 0, 8], sizes = [2, 8, 8], strides = [1, 1, 1]} : vector<2x8x32xbf16> to vector<2x8x8xbf16>
    %218 = vector.extract_strided_slice %191 {offsets = [0, 0, 8], sizes = [2, 128, 8], strides = [1, 1, 1]} : vector<2x128x32xbf16> to vector<2x128x8xbf16>
    "tpu.trace_start"() <{level = 10 : i32, message = "btd,bsd->bts"}> : () -> ()
    %cst_94 = arith.constant dense<0.000000e+00> : vector<2x8x128xf32>
    %219 = tpu.matmul %217, %218, %cst_94 {dimension_numbers = #tpu.dot_dimension_numbers<[2], [2], [1], [1], [0, 0, 0, 1, 1, 1], [0], [0]>} : vector<2x8x8xbf16>, vector<2x128x8xbf16>, vector<2x8x128xf32> -> vector<2x8x128xf32>
    "tpu.trace_stop"() : () -> ()
    %220 = arith.addf %219, %27 : vector<2x8x128xf32>
    %cst_95 = arith.constant dense<0xFF800000> : vector<2x8xf32>
    %221 = vector.multi_reduction <maximumf>, %220, %cst_95 [2] : vector<2x8x128xf32> to vector<2x8xf32>
    %222 = vector.shape_cast %221 : vector<2x8xf32> to vector<2x8x1xf32>
    %223 = vector.broadcast %222 : vector<2x8x1xf32> to vector<2x8x128xf32>
    %224 = arith.subf %220, %223 : vector<2x8x128xf32>
    %225 = math.exp %224 : vector<2x8x128xf32>
    %cst_96 = arith.constant dense<0.000000e+00> : vector<2x8xf32>
    %226 = vector.multi_reduction <add>, %225, %cst_96 [2] : vector<2x8x128xf32> to vector<2x8xf32>
    %227 = vector.shape_cast %226 : vector<2x8xf32> to vector<2x8x1xf32>
    %228 = tpu.reciprocal %227 {approx = true} : vector<2x8x1xf32> -> vector<2x8x1xf32>
    %229 = vector.broadcast %228 : vector<2x8x1xf32> to vector<2x8x128xf32>
    %230 = arith.mulf %225, %229 : vector<2x8x128xf32>
    %231 = arith.truncf %230 : vector<2x8x128xf32> to vector<2x8x128xbf16>
    %232 = vector.extract_strided_slice %194 {offsets = [0, 0, 8], sizes = [2, 128, 8], strides = [1, 1, 1]} : vector<2x128x32xbf16> to vector<2x128x8xbf16>
    "tpu.trace_start"() <{level = 10 : i32, message = "bts,bsd->btd"}> : () -> ()
    %cst_97 = arith.constant dense<0.000000e+00> : vector<2x8x8xf32>
    %233 = tpu.matmul %231, %232, %cst_97 {dimension_numbers = #tpu.dot_dimension_numbers<[2], [1], [1], [2], [0, 0, 0, 1, 1, 2], [0], [0]>} : vector<2x8x128xbf16>, vector<2x128x8xbf16>, vector<2x8x8xf32> -> vector<2x8x8xf32>
    "tpu.trace_stop"() : () -> ()
    %c0_98 = arith.constant 0 : index
    %c0_99 = arith.constant 0 : index
    %c8_100 = arith.constant 8 : index
    %234 = vector.load %arg25[%c0_98, %c0_99, %c8_100] : memref<2x8x32xf32, #tpu.memory_space<vmem>>, vector<2x8x8xf32>
    tpu.vector_store %arg25[%c0_98, %c0_99, %c8_100], %233 {strides = array<i32>} : memref<2x8x32xf32, #tpu.memory_space<vmem>>, vector<2x8x8xf32>,
    %235 = vector.extract_strided_slice %198 {offsets = [0, 0, 16], sizes = [2, 8, 8], strides = [1, 1, 1]} : vector<2x8x32xbf16> to vector<2x8x8xbf16>
    %236 = vector.extract_strided_slice %191 {offsets = [0, 0, 16], sizes = [2, 128, 8], strides = [1, 1, 1]} : vector<2x128x32xbf16> to vector<2x128x8xbf16>
    "tpu.trace_start"() <{level = 10 : i32, message = "btd,bsd->bts"}> : () -> ()
    %cst_101 = arith.constant dense<0.000000e+00> : vector<2x8x128xf32>
    %237 = tpu.matmul %235, %236, %cst_101 {dimension_numbers = #tpu.dot_dimension_numbers<[2], [2], [1], [1], [0, 0, 0, 1, 1, 1], [0], [0]>} : vector<2x8x8xbf16>, vector<2x128x8xbf16>, vector<2x8x128xf32> -> vector<2x8x128xf32>
    "tpu.trace_stop"() : () -> ()
    %238 = arith.addf %237, %27 : vector<2x8x128xf32>
    %cst_102 = arith.constant dense<0xFF800000> : vector<2x8xf32>
    %239 = vector.multi_reduction <maximumf>, %238, %cst_102 [2] : vector<2x8x128xf32> to vector<2x8xf32>
    %240 = vector.shape_cast %239 : vector<2x8xf32> to vector<2x8x1xf32>
    %241 = vector.broadcast %240 : vector<2x8x1xf32> to vector<2x8x128xf32>
    %242 = arith.subf %238, %241 : vector<2x8x128xf32>
    %243 = math.exp %242 : vector<2x8x128xf32>
    %cst_103 = arith.constant dense<0.000000e+00> : vector<2x8xf32>
    %244 = vector.multi_reduction <add>, %243, %cst_103 [2] : vector<2x8x128xf32> to vector<2x8xf32>
    %245 = vector.shape_cast %244 : vector<2x8xf32> to vector<2x8x1xf32>
    %246 = tpu.reciprocal %245 {approx = true} : vector<2x8x1xf32> -> vector<2x8x1xf32>
    %247 = vector.broadcast %246 : vector<2x8x1xf32> to vector<2x8x128xf32>
    %248 = arith.mulf %243, %247 : vector<2x8x128xf32>
    %249 = arith.truncf %248 : vector<2x8x128xf32> to vector<2x8x128xbf16>
    %250 = vector.extract_strided_slice %194 {offsets = [0, 0, 16], sizes = [2, 128, 8], strides = [1, 1, 1]} : vector<2x128x32xbf16> to vector<2x128x8xbf16>
    "tpu.trace_start"() <{level = 10 : i32, message = "bts,bsd->btd"}> : () -> ()
    %cst_104 = arith.constant dense<0.000000e+00> : vector<2x8x8xf32>
    %251 = tpu.matmul %249, %250, %cst_104 {dimension_numbers = #tpu.dot_dimension_numbers<[2], [1], [1], [2], [0, 0, 0, 1, 1, 2], [0], [0]>} : vector<2x8x128xbf16>, vector<2x128x8xbf16>, vector<2x8x8xf32> -> vector<2x8x8xf32>
    "tpu.trace_stop"() : () -> ()
    %c0_105 = arith.constant 0 : index
    %c0_106 = arith.constant 0 : index
    %c16_107 = arith.constant 16 : index
    %252 = vector.load %arg25[%c0_105, %c0_106, %c16_107] : memref<2x8x32xf32, #tpu.memory_space<vmem>>, vector<2x8x8xf32>
    tpu.vector_store %arg25[%c0_105, %c0_106, %c16_107], %251 {strides = array<i32>} : memref<2x8x32xf32, #tpu.memory_space<vmem>>, vector<2x8x8xf32>,
    %253 = vector.extract_strided_slice %198 {offsets = [0, 0, 24], sizes = [2, 8, 8], strides = [1, 1, 1]} : vector<2x8x32xbf16> to vector<2x8x8xbf16>
    %254 = vector.extract_strided_slice %191 {offsets = [0, 0, 24], sizes = [2, 128, 8], strides = [1, 1, 1]} : vector<2x128x32xbf16> to vector<2x128x8xbf16>
    "tpu.trace_start"() <{level = 10 : i32, message = "btd,bsd->bts"}> : () -> ()
    %cst_108 = arith.constant dense<0.000000e+00> : vector<2x8x128xf32>
    %255 = tpu.matmul %253, %254, %cst_108 {dimension_numbers = #tpu.dot_dimension_numbers<[2], [2], [1], [1], [0, 0, 0, 1, 1, 1], [0], [0]>} : vector<2x8x8xbf16>, vector<2x128x8xbf16>, vector<2x8x128xf32> -> vector<2x8x128xf32>
    "tpu.trace_stop"() : () -> ()
    %256 = arith.addf %255, %27 : vector<2x8x128xf32>
    %cst_109 = arith.constant dense<0xFF800000> : vector<2x8xf32>
    %257 = vector.multi_reduction <maximumf>, %256, %cst_109 [2] : vector<2x8x128xf32> to vector<2x8xf32>
    %258 = vector.shape_cast %257 : vector<2x8xf32> to vector<2x8x1xf32>
    %259 = vector.broadcast %258 : vector<2x8x1xf32> to vector<2x8x128xf32>
    %260 = arith.subf %256, %259 : vector<2x8x128xf32>
    %261 = math.exp %260 : vector<2x8x128xf32>
    %cst_110 = arith.constant dense<0.000000e+00> : vector<2x8xf32>
    %262 = vector.multi_reduction <add>, %261, %cst_110 [2] : vector<2x8x128xf32> to vector<2x8xf32>
    %263 = vector.shape_cast %262 : vector<2x8xf32> to vector<2x8x1xf32>
    %264 = tpu.reciprocal %263 {approx = true} : vector<2x8x1xf32> -> vector<2x8x1xf32>
    %265 = vector.broadcast %264 : vector<2x8x1xf32> to vector<2x8x128xf32>
    %266 = arith.mulf %261, %265 : vector<2x8x128xf32>
    %267 = arith.truncf %266 : vector<2x8x128xf32> to vector<2x8x128xbf16>
    %268 = vector.extract_strided_slice %194 {offsets = [0, 0, 24], sizes = [2, 128, 8], strides = [1, 1, 1]} : vector<2x128x32xbf16> to vector<2x128x8xbf16>
    "tpu.trace_start"() <{level = 10 : i32, message = "bts,bsd->btd"}> : () -> ()
    %cst_111 = arith.constant dense<0.000000e+00> : vector<2x8x8xf32>
    %269 = tpu.matmul %267, %268, %cst_111 {dimension_numbers = #tpu.dot_dimension_numbers<[2], [1], [1], [2], [0, 0, 0, 1, 1, 2], [0], [0]>} : vector<2x8x128xbf16>, vector<2x128x8xbf16>, vector<2x8x8xf32> -> vector<2x8x8xf32>
    "tpu.trace_stop"() : () -> ()
    %c0_112 = arith.constant 0 : index
    %c0_113 = arith.constant 0 : index
    %c24_114 = arith.constant 24 : index
    %270 = vector.load %arg25[%c0_112, %c0_113, %c24_114] : memref<2x8x32xf32, #tpu.memory_space<vmem>>, vector<2x8x8xf32>
    tpu.vector_store %arg25[%c0_112, %c0_113, %c24_114], %269 {strides = array<i32>} : memref<2x8x32xf32, #tpu.memory_space<vmem>>, vector<2x8x8xf32>,
    %c0_115 = arith.constant 0 : index
    %c0_116 = arith.constant 0 : index
    %c0_117 = arith.constant 0 : index
    %271 = vector.load %arg25[%c0_115, %c0_116, %c0_117] : memref<2x8x32xf32, #tpu.memory_space<vmem>>, vector<2x8x32xf32>
    %272 = vector.shape_cast %271 : vector<2x8x32xf32> to vector<16x32xf32>
    %273 = arith.addf %147, %272 : vector<16x32xf32>
    %c0_118 = arith.constant 0 : index
    %c0_119 = arith.constant 0 : index
    %c0_120 = arith.constant 0 : index
    %274 = vector.load %arg15[%c0_118, %c0_119, %c0_120] : memref<2x1x32xf32, #tpu.memory_space<vmem>>, vector<1x1x32xf32>
    %275 = vector.shape_cast %274 : vector<1x1x32xf32> to vector<1x32xf32>
    %c0_121 = arith.constant 0 : index
    %c0_122 = arith.constant 0 : index
    %c0_123 = arith.constant 0 : index
    %276 = vector.load %arg16[%c0_121, %c0_122, %c0_123] : memref<2x1x32xf32, #tpu.memory_space<vmem>>, vector<1x1x32xf32>
    %277 = vector.shape_cast %276 : vector<1x1x32xf32> to vector<1x32xf32>
    %cst_124 = arith.constant dense<0.000000e+00> : vector<16xf32>
    %278 = vector.multi_reduction <add>, %273, %cst_124 [1] : vector<16x32xf32> to vector<16xf32>
    %279 = vector.shape_cast %278 : vector<16xf32> to vector<16x1xf32>
    %cst_125 = arith.constant 3.200000e+01 : f32
    %280 = vector.broadcast %cst_125 : f32 to vector<16x1xf32>
    %281 = arith.divf %279, %280 : vector<16x1xf32>
    %282 = vector.broadcast %281 : vector<16x1xf32> to vector<16x32xf32>
    %283 = arith.subf %273, %282 : vector<16x32xf32>
    %284 = arith.mulf %283, %283 : vector<16x32xf32>
    %cst_126 = arith.constant dense<0.000000e+00> : vector<16xf32>
    %285 = vector.multi_reduction <add>, %284, %cst_126 [1] : vector<16x32xf32> to vector<16xf32>
    %286 = vector.shape_cast %285 : vector<16xf32> to vector<16x1xf32>
    %cst_127 = arith.constant 3.200000e+01 : f32
    %287 = vector.broadcast %cst_127 : f32 to vector<16x1xf32>
    %288 = arith.divf %286, %287 : vector<16x1xf32>
    %289 = vector.broadcast %281 : vector<16x1xf32> to vector<16x32xf32>
    %290 = arith.subf %273, %289 : vector<16x32xf32>
    %cst_128 = arith.constant 9.99999974E-6 : f32
    %291 = vector.broadcast %cst_128 : f32 to vector<16x1xf32>
    %292 = arith.addf %288, %291 : vector<16x1xf32>
    %293 = math.rsqrt %292 : vector<16x1xf32>
    %294 = vector.broadcast %293 : vector<16x1xf32> to vector<16x32xf32>
    %295 = arith.mulf %290, %294 : vector<16x32xf32>
    %296 = vector.broadcast %275 : vector<1x32xf32> to vector<16x32xf32>
    %297 = arith.mulf %295, %296 : vector<16x32xf32>
    %298 = vector.broadcast %277 : vector<1x32xf32> to vector<16x32xf32>
    %299 = arith.addf %297, %298 : vector<16x32xf32>
    %300 = arith.truncf %299 : vector<16x32xf32> to vector<16x32xbf16>
    %c0_129 = arith.constant 0 : index
    %c0_130 = arith.constant 0 : index
    %c0_131 = arith.constant 0 : index
    %301 = vector.load %arg17[%c0_129, %c0_130, %c0_131] : memref<2x32x64xbf16, #tpu.memory_space<vmem>>, vector<1x32x64xbf16>
    %302 = vector.shape_cast %301 : vector<1x32x64xbf16> to vector<32x64xbf16>
    %cst_132 = arith.constant dense<0.000000e+00> : vector<16x64xf32>
    %303 = tpu.matmul %300, %302, %cst_132 {dimension_numbers = #tpu.dot_dimension_numbers<[1], [0], [0], [1], [0, 0, 1, 1], [], []>} : vector<16x32xbf16>, vector<32x64xbf16>, vector<16x64xf32> -> vector<16x64xf32>
    %c0_133 = arith.constant 0 : index
    %c0_134 = arith.constant 0 : index
    %c0_135 = arith.constant 0 : index
    %304 = vector.load %arg18[%c0_133, %c0_134, %c0_135] : memref<2x1x64xf32, #tpu.memory_space<vmem>>, vector<1x1x64xf32>
    %305 = vector.shape_cast %304 : vector<1x1x64xf32> to vector<1x64xf32>
    %306 = vector.broadcast %305 : vector<1x64xf32> to vector<16x64xf32>
    %307 = arith.addf %303, %306 : vector<16x64xf32>
    %cst_136 = arith.constant 0.000000e+00 : f32
    %308 = vector.broadcast %cst_136 : f32 to vector<16x64xf32>
    %309 = arith.maximumf %307, %308 : vector<16x64xf32>
    %310 = arith.truncf %309 : vector<16x64xf32> to vector<16x64xbf16>
    %c0_137 = arith.constant 0 : index
    %c0_138 = arith.constant 0 : index
    %c0_139 = arith.constant 0 : index
    %311 = vector.load %arg19[%c0_137, %c0_138, %c0_139] : memref<2x64x32xbf16, #tpu.memory_space<vmem>>, vector<1x64x32xbf16>
    %312 = vector.shape_cast %311 : vector<1x64x32xbf16> to vector<64x32xbf16>
    %cst_140 = arith.constant dense<0.000000e+00> : vector<16x32xf32>
    %313 = tpu.matmul %310, %312, %cst_140 {dimension_numbers = #tpu.dot_dimension_numbers<[1], [0], [0], [1], [0, 0, 1, 1], [], []>} : vector<16x64xbf16>, vector<64x32xbf16>, vector<16x32xf32> -> vector<16x32xf32>
    %314 = arith.addf %273, %313 : vector<16x32xf32>
    %c0_141 = arith.constant 0 : index
    %c0_142 = arith.constant 0 : index
    %c0_143 = arith.constant 0 : index
    %315 = vector.load %arg20[%c0_141, %c0_142, %c0_143] : memref<2x1x32xf32, #tpu.memory_space<vmem>>, vector<1x1x32xf32>
    %316 = vector.shape_cast %315 : vector<1x1x32xf32> to vector<1x32xf32>
    %317 = vector.broadcast %316 : vector<1x32xf32> to vector<16x32xf32>
    %318 = arith.addf %314, %317 : vector<16x32xf32>
    %c1 = arith.constant 1 : index
    %c0_144 = arith.constant 0 : index
    %c0_145 = arith.constant 0 : index
    %319 = vector.load %arg5[%c1, %c0_144, %c0_145] : memref<2x1x32xf32, #tpu.memory_space<vmem>>, vector<1x1x32xf32>
    %320 = vector.shape_cast %319 : vector<1x1x32xf32> to vector<1x32xf32>
    %c1_146 = arith.constant 1 : index
    %c0_147 = arith.constant 0 : index
    %c0_148 = arith.constant 0 : index
    %321 = vector.load %arg6[%c1_146, %c0_147, %c0_148] : memref<2x1x32xf32, #tpu.memory_space<vmem>>, vector<1x1x32xf32>
    %322 = vector.shape_cast %321 : vector<1x1x32xf32> to vector<1x32xf32>
    %cst_149 = arith.constant dense<0.000000e+00> : vector<16xf32>
    %323 = vector.multi_reduction <add>, %318, %cst_149 [1] : vector<16x32xf32> to vector<16xf32>
    %324 = vector.shape_cast %323 : vector<16xf32> to vector<16x1xf32>
    %cst_150 = arith.constant 3.200000e+01 : f32
    %325 = vector.broadcast %cst_150 : f32 to vector<16x1xf32>
    %326 = arith.divf %324, %325 : vector<16x1xf32>
    %327 = vector.broadcast %326 : vector<16x1xf32> to vector<16x32xf32>
    %328 = arith.subf %318, %327 : vector<16x32xf32>
    %329 = arith.mulf %328, %328 : vector<16x32xf32>
    %cst_151 = arith.constant dense<0.000000e+00> : vector<16xf32>
    %330 = vector.multi_reduction <add>, %329, %cst_151 [1] : vector<16x32xf32> to vector<16xf32>
    %331 = vector.shape_cast %330 : vector<16xf32> to vector<16x1xf32>
    %cst_152 = arith.constant 3.200000e+01 : f32
    %332 = vector.broadcast %cst_152 : f32 to vector<16x1xf32>
    %333 = arith.divf %331, %332 : vector<16x1xf32>
    %334 = vector.broadcast %326 : vector<16x1xf32> to vector<16x32xf32>
    %335 = arith.subf %318, %334 : vector<16x32xf32>
    %cst_153 = arith.constant 9.99999974E-6 : f32
    %336 = vector.broadcast %cst_153 : f32 to vector<16x1xf32>
    %337 = arith.addf %333, %336 : vector<16x1xf32>
    %338 = math.rsqrt %337 : vector<16x1xf32>
    %339 = vector.broadcast %338 : vector<16x1xf32> to vector<16x32xf32>
    %340 = arith.mulf %335, %339 : vector<16x32xf32>
    %341 = vector.broadcast %320 : vector<1x32xf32> to vector<16x32xf32>
    %342 = arith.mulf %340, %341 : vector<16x32xf32>
    %343 = vector.broadcast %322 : vector<1x32xf32> to vector<16x32xf32>
    %344 = arith.addf %342, %343 : vector<16x32xf32>
    %345 = arith.truncf %344 : vector<16x32xf32> to vector<16x32xbf16>
    %c1_154 = arith.constant 1 : index
    %c0_155 = arith.constant 0 : index
    %c0_156 = arith.constant 0 : index
    %346 = vector.load %arg7[%c1_154, %c0_155, %c0_156] : memref<2x32x96xbf16, #tpu.memory_space<vmem>>, vector<1x32x96xbf16>
    %347 = vector.shape_cast %346 : vector<1x32x96xbf16> to vector<32x96xbf16>
    %cst_157 = arith.constant dense<0.000000e+00> : vector<16x96xf32>
    %348 = tpu.matmul %345, %347, %cst_157 {dimension_numbers = #tpu.dot_dimension_numbers<[1], [0], [0], [1], [0, 0, 1, 1], [], []>} : vector<16x32xbf16>, vector<32x96xbf16>, vector<16x96xf32> -> vector<16x96xf32>
    %c1_158 = arith.constant 1 : index
    %c0_159 = arith.constant 0 : index
    %c0_160 = arith.constant 0 : index
    %349 = vector.load %arg8[%c1_158, %c0_159, %c0_160] : memref<2x1x96xf32, #tpu.memory_space<vmem>>, vector<1x1x96xf32>
    %350 = vector.shape_cast %349 : vector<1x1x96xf32> to vector<1x96xf32>
    %351 = vector.broadcast %350 : vector<1x96xf32> to vector<16x96xf32>
    %352 = arith.addf %348, %351 : vector<16x96xf32>
    %353 = vector.extract_strided_slice %352 {offsets = [0, 0], sizes = [16, 32], strides = [1, 1]} : vector<16x96xf32> to vector<16x32xf32>
    %cst_161 = arith.constant 0.353553385 : f32
    %354 = vector.broadcast %cst_161 : f32 to vector<16x32xf32>
    %355 = arith.mulf %353, %354 : vector<16x32xf32>
    %356 = vector.extract_strided_slice %352 {offsets = [0, 32], sizes = [16, 32], strides = [1, 1]} : vector<16x96xf32> to vector<16x32xf32>
    %357 = vector.shape_cast %356 : vector<16x32xf32> to vector<2x8x32xf32>
    %358 = arith.truncf %357 : vector<2x8x32xf32> to vector<2x8x32xbf16>
    %359 = vector.extract_strided_slice %352 {offsets = [0, 64], sizes = [16, 32], strides = [1, 1]} : vector<16x96xf32> to vector<16x32xf32>
    %360 = vector.shape_cast %359 : vector<16x32xf32> to vector<2x8x32xf32>
    %361 = arith.truncf %360 : vector<2x8x32xf32> to vector<2x8x32xbf16>
    %362 = vector.shape_cast %355 : vector<16x32xf32> to vector<2x8x32xf32>
    %363 = arith.truncf %362 : vector<2x8x32xf32> to vector<2x8x32xbf16>
    %364 = vector.extract_strided_slice %363 {offsets = [0, 0, 0], sizes = [2, 8, 8], strides = [1, 1, 1]} : vector<2x8x32xbf16> to vector<2x8x8xbf16>
    %365 = vector.extract_strided_slice %358 {offsets = [0, 0, 0], sizes = [2, 8, 8], strides = [1, 1, 1]} : vector<2x8x32xbf16> to vector<2x8x8xbf16>
    "tpu.trace_start"() <{level = 10 : i32, message = "btd,bsd->bts"}> : () -> ()
    %cst_162 = arith.constant dense<0.000000e+00> : vector<2x8x8xf32>
    %366 = tpu.matmul %364, %365, %cst_162 {dimension_numbers = #tpu.dot_dimension_numbers<[2], [2], [1], [1], [0, 0, 0, 1, 1, 1], [0], [0]>} : vector<2x8x8xbf16>, vector<2x8x8xbf16>, vector<2x8x8xf32> -> vector<2x8x8xf32>
    "tpu.trace_stop"() : () -> ()
    %367 = arith.addf %366, %19 : vector<2x8x8xf32>
    %cst_163 = arith.constant dense<0xFF800000> : vector<2x8xf32>
    %368 = vector.multi_reduction <maximumf>, %367, %cst_163 [2] : vector<2x8x8xf32> to vector<2x8xf32>
    %369 = vector.shape_cast %368 : vector<2x8xf32> to vector<2x8x1xf32>
    %370 = vector.broadcast %369 : vector<2x8x1xf32> to vector<2x8x8xf32>
    %371 = arith.subf %367, %370 : vector<2x8x8xf32>
    %372 = math.exp %371 : vector<2x8x8xf32>
    %cst_164 = arith.constant dense<0.000000e+00> : vector<2x8xf32>
    %373 = vector.multi_reduction <add>, %372, %cst_164 [2] : vector<2x8x8xf32> to vector<2x8xf32>
    %374 = vector.shape_cast %373 : vector<2x8xf32> to vector<2x8x1xf32>
    %375 = tpu.reciprocal %374 {approx = true} : vector<2x8x1xf32> -> vector<2x8x1xf32>
    %376 = vector.broadcast %375 : vector<2x8x1xf32> to vector<2x8x8xf32>
    %377 = arith.mulf %372, %376 : vector<2x8x8xf32>
    %378 = arith.truncf %377 : vector<2x8x8xf32> to vector<2x8x8xbf16>
    %379 = vector.extract_strided_slice %361 {offsets = [0, 0, 0], sizes = [2, 8, 8], strides = [1, 1, 1]} : vector<2x8x32xbf16> to vector<2x8x8xbf16>
    "tpu.trace_start"() <{level = 10 : i32, message = "bts,bsd->btd"}> : () -> ()
    %cst_165 = arith.constant dense<0.000000e+00> : vector<2x8x8xf32>
    %380 = tpu.matmul %378, %379, %cst_165 {dimension_numbers = #tpu.dot_dimension_numbers<[2], [1], [1], [2], [0, 0, 0, 1, 1, 2], [0], [0]>} : vector<2x8x8xbf16>, vector<2x8x8xbf16>, vector<2x8x8xf32> -> vector<2x8x8xf32>
    "tpu.trace_stop"() : () -> ()
    %c0_166 = arith.constant 0 : index
    %c0_167 = arith.constant 0 : index
    %c0_168 = arith.constant 0 : index
    %381 = vector.load %arg25[%c0_166, %c0_167, %c0_168] : memref<2x8x32xf32, #tpu.memory_space<vmem>>, vector<2x8x8xf32>
    tpu.vector_store %arg25[%c0_166, %c0_167, %c0_168], %380 {strides = array<i32>} : memref<2x8x32xf32, #tpu.memory_space<vmem>>, vector<2x8x8xf32>,
    %382 = vector.extract_strided_slice %363 {offsets = [0, 0, 8], sizes = [2, 8, 8], strides = [1, 1, 1]} : vector<2x8x32xbf16> to vector<2x8x8xbf16>
    %383 = vector.extract_strided_slice %358 {offsets = [0, 0, 8], sizes = [2, 8, 8], strides = [1, 1, 1]} : vector<2x8x32xbf16> to vector<2x8x8xbf16>
    "tpu.trace_start"() <{level = 10 : i32, message = "btd,bsd->bts"}> : () -> ()
    %cst_169 = arith.constant dense<0.000000e+00> : vector<2x8x8xf32>
    %384 = tpu.matmul %382, %383, %cst_169 {dimension_numbers = #tpu.dot_dimension_numbers<[2], [2], [1], [1], [0, 0, 0, 1, 1, 1], [0], [0]>} : vector<2x8x8xbf16>, vector<2x8x8xbf16>, vector<2x8x8xf32> -> vector<2x8x8xf32>
    "tpu.trace_stop"() : () -> ()
    %385 = arith.addf %384, %19 : vector<2x8x8xf32>
    %cst_170 = arith.constant dense<0xFF800000> : vector<2x8xf32>
    %386 = vector.multi_reduction <maximumf>, %385, %cst_170 [2] : vector<2x8x8xf32> to vector<2x8xf32>
    %387 = vector.shape_cast %386 : vector<2x8xf32> to vector<2x8x1xf32>
    %388 = vector.broadcast %387 : vector<2x8x1xf32> to vector<2x8x8xf32>
    %389 = arith.subf %385, %388 : vector<2x8x8xf32>
    %390 = math.exp %389 : vector<2x8x8xf32>
    %cst_171 = arith.constant dense<0.000000e+00> : vector<2x8xf32>
    %391 = vector.multi_reduction <add>, %390, %cst_171 [2] : vector<2x8x8xf32> to vector<2x8xf32>
    %392 = vector.shape_cast %391 : vector<2x8xf32> to vector<2x8x1xf32>
    %393 = tpu.reciprocal %392 {approx = true} : vector<2x8x1xf32> -> vector<2x8x1xf32>
    %394 = vector.broadcast %393 : vector<2x8x1xf32> to vector<2x8x8xf32>
    %395 = arith.mulf %390, %394 : vector<2x8x8xf32>
    %396 = arith.truncf %395 : vector<2x8x8xf32> to vector<2x8x8xbf16>
    %397 = vector.extract_strided_slice %361 {offsets = [0, 0, 8], sizes = [2, 8, 8], strides = [1, 1, 1]} : vector<2x8x32xbf16> to vector<2x8x8xbf16>
    "tpu.trace_start"() <{level = 10 : i32, message = "bts,bsd->btd"}> : () -> ()
    %cst_172 = arith.constant dense<0.000000e+00> : vector<2x8x8xf32>
    %398 = tpu.matmul %396, %397, %cst_172 {dimension_numbers = #tpu.dot_dimension_numbers<[2], [1], [1], [2], [0, 0, 0, 1, 1, 2], [0], [0]>} : vector<2x8x8xbf16>, vector<2x8x8xbf16>, vector<2x8x8xf32> -> vector<2x8x8xf32>
    "tpu.trace_stop"() : () -> ()
    %c0_173 = arith.constant 0 : index
    %c0_174 = arith.constant 0 : index
    %c8_175 = arith.constant 8 : index
    %399 = vector.load %arg25[%c0_173, %c0_174, %c8_175] : memref<2x8x32xf32, #tpu.memory_space<vmem>>, vector<2x8x8xf32>
    tpu.vector_store %arg25[%c0_173, %c0_174, %c8_175], %398 {strides = array<i32>} : memref<2x8x32xf32, #tpu.memory_space<vmem>>, vector<2x8x8xf32>,
    %400 = vector.extract_strided_slice %363 {offsets = [0, 0, 16], sizes = [2, 8, 8], strides = [1, 1, 1]} : vector<2x8x32xbf16> to vector<2x8x8xbf16>
    %401 = vector.extract_strided_slice %358 {offsets = [0, 0, 16], sizes = [2, 8, 8], strides = [1, 1, 1]} : vector<2x8x32xbf16> to vector<2x8x8xbf16>
    "tpu.trace_start"() <{level = 10 : i32, message = "btd,bsd->bts"}> : () -> ()
    %cst_176 = arith.constant dense<0.000000e+00> : vector<2x8x8xf32>
    %402 = tpu.matmul %400, %401, %cst_176 {dimension_numbers = #tpu.dot_dimension_numbers<[2], [2], [1], [1], [0, 0, 0, 1, 1, 1], [0], [0]>} : vector<2x8x8xbf16>, vector<2x8x8xbf16>, vector<2x8x8xf32> -> vector<2x8x8xf32>
    "tpu.trace_stop"() : () -> ()
    %403 = arith.addf %402, %19 : vector<2x8x8xf32>
    %cst_177 = arith.constant dense<0xFF800000> : vector<2x8xf32>
    %404 = vector.multi_reduction <maximumf>, %403, %cst_177 [2] : vector<2x8x8xf32> to vector<2x8xf32>
    %405 = vector.shape_cast %404 : vector<2x8xf32> to vector<2x8x1xf32>
    %406 = vector.broadcast %405 : vector<2x8x1xf32> to vector<2x8x8xf32>
    %407 = arith.subf %403, %406 : vector<2x8x8xf32>
    %408 = math.exp %407 : vector<2x8x8xf32>
    %cst_178 = arith.constant dense<0.000000e+00> : vector<2x8xf32>
    %409 = vector.multi_reduction <add>, %408, %cst_178 [2] : vector<2x8x8xf32> to vector<2x8xf32>
    %410 = vector.shape_cast %409 : vector<2x8xf32> to vector<2x8x1xf32>
    %411 = tpu.reciprocal %410 {approx = true} : vector<2x8x1xf32> -> vector<2x8x1xf32>
    %412 = vector.broadcast %411 : vector<2x8x1xf32> to vector<2x8x8xf32>
    %413 = arith.mulf %408, %412 : vector<2x8x8xf32>
    %414 = arith.truncf %413 : vector<2x8x8xf32> to vector<2x8x8xbf16>
    %415 = vector.extract_strided_slice %361 {offsets = [0, 0, 16], sizes = [2, 8, 8], strides = [1, 1, 1]} : vector<2x8x32xbf16> to vector<2x8x8xbf16>
    "tpu.trace_start"() <{level = 10 : i32, message = "bts,bsd->btd"}> : () -> ()
    %cst_179 = arith.constant dense<0.000000e+00> : vector<2x8x8xf32>
    %416 = tpu.matmul %414, %415, %cst_179 {dimension_numbers = #tpu.dot_dimension_numbers<[2], [1], [1], [2], [0, 0, 0, 1, 1, 2], [0], [0]>} : vector<2x8x8xbf16>, vector<2x8x8xbf16>, vector<2x8x8xf32> -> vector<2x8x8xf32>
    "tpu.trace_stop"() : () -> ()
    %c0_180 = arith.constant 0 : index
    %c0_181 = arith.constant 0 : index
    %c16_182 = arith.constant 16 : index
    %417 = vector.load %arg25[%c0_180, %c0_181, %c16_182] : memref<2x8x32xf32, #tpu.memory_space<vmem>>, vector<2x8x8xf32>
    tpu.vector_store %arg25[%c0_180, %c0_181, %c16_182], %416 {strides = array<i32>} : memref<2x8x32xf32, #tpu.memory_space<vmem>>, vector<2x8x8xf32>,
    %418 = vector.extract_strided_slice %363 {offsets = [0, 0, 24], sizes = [2, 8, 8], strides = [1, 1, 1]} : vector<2x8x32xbf16> to vector<2x8x8xbf16>
    %419 = vector.extract_strided_slice %358 {offsets = [0, 0, 24], sizes = [2, 8, 8], strides = [1, 1, 1]} : vector<2x8x32xbf16> to vector<2x8x8xbf16>
    "tpu.trace_start"() <{level = 10 : i32, message = "btd,bsd->bts"}> : () -> ()
    %cst_183 = arith.constant dense<0.000000e+00> : vector<2x8x8xf32>
    %420 = tpu.matmul %418, %419, %cst_183 {dimension_numbers = #tpu.dot_dimension_numbers<[2], [2], [1], [1], [0, 0, 0, 1, 1, 1], [0], [0]>} : vector<2x8x8xbf16>, vector<2x8x8xbf16>, vector<2x8x8xf32> -> vector<2x8x8xf32>
    "tpu.trace_stop"() : () -> ()
    %421 = arith.addf %420, %19 : vector<2x8x8xf32>
    %cst_184 = arith.constant dense<0xFF800000> : vector<2x8xf32>
    %422 = vector.multi_reduction <maximumf>, %421, %cst_184 [2] : vector<2x8x8xf32> to vector<2x8xf32>
    %423 = vector.shape_cast %422 : vector<2x8xf32> to vector<2x8x1xf32>
    %424 = vector.broadcast %423 : vector<2x8x1xf32> to vector<2x8x8xf32>
    %425 = arith.subf %421, %424 : vector<2x8x8xf32>
    %426 = math.exp %425 : vector<2x8x8xf32>
    %cst_185 = arith.constant dense<0.000000e+00> : vector<2x8xf32>
    %427 = vector.multi_reduction <add>, %426, %cst_185 [2] : vector<2x8x8xf32> to vector<2x8xf32>
    %428 = vector.shape_cast %427 : vector<2x8xf32> to vector<2x8x1xf32>
    %429 = tpu.reciprocal %428 {approx = true} : vector<2x8x1xf32> -> vector<2x8x1xf32>
    %430 = vector.broadcast %429 : vector<2x8x1xf32> to vector<2x8x8xf32>
    %431 = arith.mulf %426, %430 : vector<2x8x8xf32>
    %432 = arith.truncf %431 : vector<2x8x8xf32> to vector<2x8x8xbf16>
    %433 = vector.extract_strided_slice %361 {offsets = [0, 0, 24], sizes = [2, 8, 8], strides = [1, 1, 1]} : vector<2x8x32xbf16> to vector<2x8x8xbf16>
    "tpu.trace_start"() <{level = 10 : i32, message = "bts,bsd->btd"}> : () -> ()
    %cst_186 = arith.constant dense<0.000000e+00> : vector<2x8x8xf32>
    %434 = tpu.matmul %432, %433, %cst_186 {dimension_numbers = #tpu.dot_dimension_numbers<[2], [1], [1], [2], [0, 0, 0, 1, 1, 2], [0], [0]>} : vector<2x8x8xbf16>, vector<2x8x8xbf16>, vector<2x8x8xf32> -> vector<2x8x8xf32>
    "tpu.trace_stop"() : () -> ()
    %c0_187 = arith.constant 0 : index
    %c0_188 = arith.constant 0 : index
    %c24_189 = arith.constant 24 : index
    %435 = vector.load %arg25[%c0_187, %c0_188, %c24_189] : memref<2x8x32xf32, #tpu.memory_space<vmem>>, vector<2x8x8xf32>
    tpu.vector_store %arg25[%c0_187, %c0_188, %c24_189], %434 {strides = array<i32>} : memref<2x8x32xf32, #tpu.memory_space<vmem>>, vector<2x8x8xf32>,
    %c0_190 = arith.constant 0 : index
    %c0_191 = arith.constant 0 : index
    %c0_192 = arith.constant 0 : index
    %436 = vector.load %arg25[%c0_190, %c0_191, %c0_192] : memref<2x8x32xf32, #tpu.memory_space<vmem>>, vector<2x8x32xf32>
    %437 = vector.shape_cast %436 : vector<2x8x32xf32> to vector<16x32xf32>
    %438 = arith.addf %318, %437 : vector<16x32xf32>
    %c1_193 = arith.constant 1 : index
    %c0_194 = arith.constant 0 : index
    %c0_195 = arith.constant 0 : index
    %439 = vector.load %arg9[%c1_193, %c0_194, %c0_195] : memref<2x1x32xf32, #tpu.memory_space<vmem>>, vector<1x1x32xf32>
    %440 = vector.shape_cast %439 : vector<1x1x32xf32> to vector<1x32xf32>
    %c1_196 = arith.constant 1 : index
    %c0_197 = arith.constant 0 : index
    %c0_198 = arith.constant 0 : index
    %441 = vector.load %arg10[%c1_196, %c0_197, %c0_198] : memref<2x1x32xf32, #tpu.memory_space<vmem>>, vector<1x1x32xf32>
    %442 = vector.shape_cast %441 : vector<1x1x32xf32> to vector<1x32xf32>
    %cst_199 = arith.constant dense<0.000000e+00> : vector<16xf32>
    %443 = vector.multi_reduction <add>, %438, %cst_199 [1] : vector<16x32xf32> to vector<16xf32>
    %444 = vector.shape_cast %443 : vector<16xf32> to vector<16x1xf32>
    %cst_200 = arith.constant 3.200000e+01 : f32
    %445 = vector.broadcast %cst_200 : f32 to vector<16x1xf32>
    %446 = arith.divf %444, %445 : vector<16x1xf32>
    %447 = vector.broadcast %446 : vector<16x1xf32> to vector<16x32xf32>
    %448 = arith.subf %438, %447 : vector<16x32xf32>
    %449 = arith.mulf %448, %448 : vector<16x32xf32>
    %cst_201 = arith.constant dense<0.000000e+00> : vector<16xf32>
    %450 = vector.multi_reduction <add>, %449, %cst_201 [1] : vector<16x32xf32> to vector<16xf32>
    %451 = vector.shape_cast %450 : vector<16xf32> to vector<16x1xf32>
    %cst_202 = arith.constant 3.200000e+01 : f32
    %452 = vector.broadcast %cst_202 : f32 to vector<16x1xf32>
    %453 = arith.divf %451, %452 : vector<16x1xf32>
    %454 = vector.broadcast %446 : vector<16x1xf32> to vector<16x32xf32>
    %455 = arith.subf %438, %454 : vector<16x32xf32>
    %cst_203 = arith.constant 9.99999974E-6 : f32
    %456 = vector.broadcast %cst_203 : f32 to vector<16x1xf32>
    %457 = arith.addf %453, %456 : vector<16x1xf32>
    %458 = math.rsqrt %457 : vector<16x1xf32>
    %459 = vector.broadcast %458 : vector<16x1xf32> to vector<16x32xf32>
    %460 = arith.mulf %455, %459 : vector<16x32xf32>
    %461 = vector.broadcast %440 : vector<1x32xf32> to vector<16x32xf32>
    %462 = arith.mulf %460, %461 : vector<16x32xf32>
    %463 = vector.broadcast %442 : vector<1x32xf32> to vector<16x32xf32>
    %464 = arith.addf %462, %463 : vector<16x32xf32>
    %465 = arith.truncf %464 : vector<16x32xf32> to vector<16x32xbf16>
    %c1_204 = arith.constant 1 : index
    %c0_205 = arith.constant 0 : index
    %c0_206 = arith.constant 0 : index
    %466 = vector.load %arg11[%c1_204, %c0_205, %c0_206] : memref<2x32x32xbf16, #tpu.memory_space<vmem>>, vector<1x32x32xbf16>
    %467 = vector.shape_cast %466 : vector<1x32x32xbf16> to vector<32x32xbf16>
    %cst_207 = arith.constant dense<0.000000e+00> : vector<16x32xf32>
    %468 = tpu.matmul %465, %467, %cst_207 {dimension_numbers = #tpu.dot_dimension_numbers<[1], [0], [0], [1], [0, 0, 1, 1], [], []>} : vector<16x32xbf16>, vector<32x32xbf16>, vector<16x32xf32> -> vector<16x32xf32>
    %c1_208 = arith.constant 1 : index
    %c0_209 = arith.constant 0 : index
    %c0_210 = arith.constant 0 : index
    %469 = vector.load %arg12[%c1_208, %c0_209, %c0_210] : memref<2x1x32xf32, #tpu.memory_space<vmem>>, vector<1x1x32xf32>
    %470 = vector.shape_cast %469 : vector<1x1x32xf32> to vector<1x32xf32>
    %471 = vector.broadcast %470 : vector<1x32xf32> to vector<16x32xf32>
    %472 = arith.addf %468, %471 : vector<16x32xf32>
    %c1_211 = arith.constant 1 : index
    %c0_212 = arith.constant 0 : index
    %c0_213 = arith.constant 0 : index
    %473 = vector.load %arg13[%c1_211, %c0_212, %c0_213] : memref<2x32x64xbf16, #tpu.memory_space<vmem>>, vector<1x32x64xbf16>
    %474 = vector.shape_cast %473 : vector<1x32x64xbf16> to vector<32x64xbf16>
    %cst_214 = arith.constant dense<0.000000e+00> : vector<256x64xf32>
    %475 = tpu.matmul %4, %474, %cst_214 {dimension_numbers = #tpu.dot_dimension_numbers<[1], [0], [0], [1], [0, 0, 1, 1], [], []>} : vector<256x32xbf16>, vector<32x64xbf16>, vector<256x64xf32> -> vector<256x64xf32>
    %c1_215 = arith.constant 1 : index
    %c0_216 = arith.constant 0 : index
    %c0_217 = arith.constant 0 : index
    %476 = vector.load %arg14[%c1_215, %c0_216, %c0_217] : memref<2x1x64xf32, #tpu.memory_space<vmem>>, vector<1x1x64xf32>
    %477 = vector.shape_cast %476 : vector<1x1x64xf32> to vector<1x64xf32>
    %478 = vector.broadcast %477 : vector<1x64xf32> to vector<256x64xf32>
    %479 = arith.addf %475, %478 : vector<256x64xf32>
    %480 = vector.extract_strided_slice %479 {offsets = [0, 0], sizes = [256, 32], strides = [1, 1]} : vector<256x64xf32> to vector<256x32xf32>
    %481 = vector.shape_cast %480 : vector<256x32xf32> to vector<2x128x32xf32>
    %482 = arith.truncf %481 : vector<2x128x32xf32> to vector<2x128x32xbf16>
    %483 = vector.extract_strided_slice %479 {offsets = [0, 32], sizes = [256, 32], strides = [1, 1]} : vector<256x64xf32> to vector<256x32xf32>
    %484 = vector.shape_cast %483 : vector<256x32xf32> to vector<2x128x32xf32>
    %485 = arith.truncf %484 : vector<2x128x32xf32> to vector<2x128x32xbf16>
    %cst_218 = arith.constant 0.353553385 : f32
    %486 = vector.broadcast %cst_218 : f32 to vector<16x32xf32>
    %487 = arith.mulf %472, %486 : vector<16x32xf32>
    %488 = vector.shape_cast %487 : vector<16x32xf32> to vector<2x8x32xf32>
    %489 = arith.truncf %488 : vector<2x8x32xf32> to vector<2x8x32xbf16>
    %490 = vector.extract_strided_slice %489 {offsets = [0, 0, 0], sizes = [2, 8, 8], strides = [1, 1, 1]} : vector<2x8x32xbf16> to vector<2x8x8xbf16>
    %491 = vector.extract_strided_slice %482 {offsets = [0, 0, 0], sizes = [2, 128, 8], strides = [1, 1, 1]} : vector<2x128x32xbf16> to vector<2x128x8xbf16>
    "tpu.trace_start"() <{level = 10 : i32, message = "btd,bsd->bts"}> : () -> ()
    %cst_219 = arith.constant dense<0.000000e+00> : vector<2x8x128xf32>
    %492 = tpu.matmul %490, %491, %cst_219 {dimension_numbers = #tpu.dot_dimension_numbers<[2], [2], [1], [1], [0, 0, 0, 1, 1, 1], [0], [0]>} : vector<2x8x8xbf16>, vector<2x128x8xbf16>, vector<2x8x128xf32> -> vector<2x8x128xf32>
    "tpu.trace_stop"() : () -> ()
    %493 = arith.addf %492, %27 : vector<2x8x128xf32>
    %cst_220 = arith.constant dense<0xFF800000> : vector<2x8xf32>
    %494 = vector.multi_reduction <maximumf>, %493, %cst_220 [2] : vector<2x8x128xf32> to vector<2x8xf32>
    %495 = vector.shape_cast %494 : vector<2x8xf32> to vector<2x8x1xf32>
    %496 = vector.broadcast %495 : vector<2x8x1xf32> to vector<2x8x128xf32>
    %497 = arith.subf %493, %496 : vector<2x8x128xf32>
    %498 = math.exp %497 : vector<2x8x128xf32>
    %cst_221 = arith.constant dense<0.000000e+00> : vector<2x8xf32>
    %499 = vector.multi_reduction <add>, %498, %cst_221 [2] : vector<2x8x128xf32> to vector<2x8xf32>
    %500 = vector.shape_cast %499 : vector<2x8xf32> to vector<2x8x1xf32>
    %501 = tpu.reciprocal %500 {approx = true} : vector<2x8x1xf32> -> vector<2x8x1xf32>
    %502 = vector.broadcast %501 : vector<2x8x1xf32> to vector<2x8x128xf32>
    %503 = arith.mulf %498, %502 : vector<2x8x128xf32>
    %504 = arith.truncf %503 : vector<2x8x128xf32> to vector<2x8x128xbf16>
    %505 = vector.extract_strided_slice %485 {offsets = [0, 0, 0], sizes = [2, 128, 8], strides = [1, 1, 1]} : vector<2x128x32xbf16> to vector<2x128x8xbf16>
    "tpu.trace_start"() <{level = 10 : i32, message = "bts,bsd->btd"}> : () -> ()
    %cst_222 = arith.constant dense<0.000000e+00> : vector<2x8x8xf32>
    %506 = tpu.matmul %504, %505, %cst_222 {dimension_numbers = #tpu.dot_dimension_numbers<[2], [1], [1], [2], [0, 0, 0, 1, 1, 2], [0], [0]>} : vector<2x8x128xbf16>, vector<2x128x8xbf16>, vector<2x8x8xf32> -> vector<2x8x8xf32>
    "tpu.trace_stop"() : () -> ()
    %c0_223 = arith.constant 0 : index
    %c0_224 = arith.constant 0 : index
    %c0_225 = arith.constant 0 : index
    %507 = vector.load %arg25[%c0_223, %c0_224, %c0_225] : memref<2x8x32xf32, #tpu.memory_space<vmem>>, vector<2x8x8xf32>
    tpu.vector_store %arg25[%c0_223, %c0_224, %c0_225], %506 {strides = array<i32>} : memref<2x8x32xf32, #tpu.memory_space<vmem>>, vector<2x8x8xf32>,
    %508 = vector.extract_strided_slice %489 {offsets = [0, 0, 8], sizes = [2, 8, 8], strides = [1, 1, 1]} : vector<2x8x32xbf16> to vector<2x8x8xbf16>
    %509 = vector.extract_strided_slice %482 {offsets = [0, 0, 8], sizes = [2, 128, 8], strides = [1, 1, 1]} : vector<2x128x32xbf16> to vector<2x128x8xbf16>
    "tpu.trace_start"() <{level = 10 : i32, message = "btd,bsd->bts"}> : () -> ()
    %cst_226 = arith.constant dense<0.000000e+00> : vector<2x8x128xf32>
    %510 = tpu.matmul %508, %509, %cst_226 {dimension_numbers = #tpu.dot_dimension_numbers<[2], [2], [1], [1], [0, 0, 0, 1, 1, 1], [0], [0]>} : vector<2x8x8xbf16>, vector<2x128x8xbf16>, vector<2x8x128xf32> -> vector<2x8x128xf32>
    "tpu.trace_stop"() : () -> ()
    %511 = arith.addf %510, %27 : vector<2x8x128xf32>
    %cst_227 = arith.constant dense<0xFF800000> : vector<2x8xf32>
    %512 = vector.multi_reduction <maximumf>, %511, %cst_227 [2] : vector<2x8x128xf32> to vector<2x8xf32>
    %513 = vector.shape_cast %512 : vector<2x8xf32> to vector<2x8x1xf32>
    %514 = vector.broadcast %513 : vector<2x8x1xf32> to vector<2x8x128xf32>
    %515 = arith.subf %511, %514 : vector<2x8x128xf32>
    %516 = math.exp %515 : vector<2x8x128xf32>
    %cst_228 = arith.constant dense<0.000000e+00> : vector<2x8xf32>
    %517 = vector.multi_reduction <add>, %516, %cst_228 [2] : vector<2x8x128xf32> to vector<2x8xf32>
    %518 = vector.shape_cast %517 : vector<2x8xf32> to vector<2x8x1xf32>
    %519 = tpu.reciprocal %518 {approx = true} : vector<2x8x1xf32> -> vector<2x8x1xf32>
    %520 = vector.broadcast %519 : vector<2x8x1xf32> to vector<2x8x128xf32>
    %521 = arith.mulf %516, %520 : vector<2x8x128xf32>
    %522 = arith.truncf %521 : vector<2x8x128xf32> to vector<2x8x128xbf16>
    %523 = vector.extract_strided_slice %485 {offsets = [0, 0, 8], sizes = [2, 128, 8], strides = [1, 1, 1]} : vector<2x128x32xbf16> to vector<2x128x8xbf16>
    "tpu.trace_start"() <{level = 10 : i32, message = "bts,bsd->btd"}> : () -> ()
    %cst_229 = arith.constant dense<0.000000e+00> : vector<2x8x8xf32>
    %524 = tpu.matmul %522, %523, %cst_229 {dimension_numbers = #tpu.dot_dimension_numbers<[2], [1], [1], [2], [0, 0, 0, 1, 1, 2], [0], [0]>} : vector<2x8x128xbf16>, vector<2x128x8xbf16>, vector<2x8x8xf32> -> vector<2x8x8xf32>
    "tpu.trace_stop"() : () -> ()
    %c0_230 = arith.constant 0 : index
    %c0_231 = arith.constant 0 : index
    %c8_232 = arith.constant 8 : index
    %525 = vector.load %arg25[%c0_230, %c0_231, %c8_232] : memref<2x8x32xf32, #tpu.memory_space<vmem>>, vector<2x8x8xf32>
    tpu.vector_store %arg25[%c0_230, %c0_231, %c8_232], %524 {strides = array<i32>} : memref<2x8x32xf32, #tpu.memory_space<vmem>>, vector<2x8x8xf32>,
    %526 = vector.extract_strided_slice %489 {offsets = [0, 0, 16], sizes = [2, 8, 8], strides = [1, 1, 1]} : vector<2x8x32xbf16> to vector<2x8x8xbf16>
    %527 = vector.extract_strided_slice %482 {offsets = [0, 0, 16], sizes = [2, 128, 8], strides = [1, 1, 1]} : vector<2x128x32xbf16> to vector<2x128x8xbf16>
    "tpu.trace_start"() <{level = 10 : i32, message = "btd,bsd->bts"}> : () -> ()
    %cst_233 = arith.constant dense<0.000000e+00> : vector<2x8x128xf32>
    %528 = tpu.matmul %526, %527, %cst_233 {dimension_numbers = #tpu.dot_dimension_numbers<[2], [2], [1], [1], [0, 0, 0, 1, 1, 1], [0], [0]>} : vector<2x8x8xbf16>, vector<2x128x8xbf16>, vector<2x8x128xf32> -> vector<2x8x128xf32>
    "tpu.trace_stop"() : () -> ()
    %529 = arith.addf %528, %27 : vector<2x8x128xf32>
    %cst_234 = arith.constant dense<0xFF800000> : vector<2x8xf32>
    %530 = vector.multi_reduction <maximumf>, %529, %cst_234 [2] : vector<2x8x128xf32> to vector<2x8xf32>
    %531 = vector.shape_cast %530 : vector<2x8xf32> to vector<2x8x1xf32>
    %532 = vector.broadcast %531 : vector<2x8x1xf32> to vector<2x8x128xf32>
    %533 = arith.subf %529, %532 : vector<2x8x128xf32>
    %534 = math.exp %533 : vector<2x8x128xf32>
    %cst_235 = arith.constant dense<0.000000e+00> : vector<2x8xf32>
    %535 = vector.multi_reduction <add>, %534, %cst_235 [2] : vector<2x8x128xf32> to vector<2x8xf32>
    %536 = vector.shape_cast %535 : vector<2x8xf32> to vector<2x8x1xf32>
    %537 = tpu.reciprocal %536 {approx = true} : vector<2x8x1xf32> -> vector<2x8x1xf32>
    %538 = vector.broadcast %537 : vector<2x8x1xf32> to vector<2x8x128xf32>
    %539 = arith.mulf %534, %538 : vector<2x8x128xf32>
    %540 = arith.truncf %539 : vector<2x8x128xf32> to vector<2x8x128xbf16>
    %541 = vector.extract_strided_slice %485 {offsets = [0, 0, 16], sizes = [2, 128, 8], strides = [1, 1, 1]} : vector<2x128x32xbf16> to vector<2x128x8xbf16>
    "tpu.trace_start"() <{level = 10 : i32, message = "bts,bsd->btd"}> : () -> ()
    %cst_236 = arith.constant dense<0.000000e+00> : vector<2x8x8xf32>
    %542 = tpu.matmul %540, %541, %cst_236 {dimension_numbers = #tpu.dot_dimension_numbers<[2], [1], [1], [2], [0, 0, 0, 1, 1, 2], [0], [0]>} : vector<2x8x128xbf16>, vector<2x128x8xbf16>, vector<2x8x8xf32> -> vector<2x8x8xf32>
    "tpu.trace_stop"() : () -> ()
    %c0_237 = arith.constant 0 : index
    %c0_238 = arith.constant 0 : index
    %c16_239 = arith.constant 16 : index
    %543 = vector.load %arg25[%c0_237, %c0_238, %c16_239] : memref<2x8x32xf32, #tpu.memory_space<vmem>>, vector<2x8x8xf32>
    tpu.vector_store %arg25[%c0_237, %c0_238, %c16_239], %542 {strides = array<i32>} : memref<2x8x32xf32, #tpu.memory_space<vmem>>, vector<2x8x8xf32>,
    %544 = vector.extract_strided_slice %489 {offsets = [0, 0, 24], sizes = [2, 8, 8], strides = [1, 1, 1]} : vector<2x8x32xbf16> to vector<2x8x8xbf16>
    %545 = vector.extract_strided_slice %482 {offsets = [0, 0, 24], sizes = [2, 128, 8], strides = [1, 1, 1]} : vector<2x128x32xbf16> to vector<2x128x8xbf16>
    "tpu.trace_start"() <{level = 10 : i32, message = "btd,bsd->bts"}> : () -> ()
    %cst_240 = arith.constant dense<0.000000e+00> : vector<2x8x128xf32>
    %546 = tpu.matmul %544, %545, %cst_240 {dimension_numbers = #tpu.dot_dimension_numbers<[2], [2], [1], [1], [0, 0, 0, 1, 1, 1], [0], [0]>} : vector<2x8x8xbf16>, vector<2x128x8xbf16>, vector<2x8x128xf32> -> vector<2x8x128xf32>
    "tpu.trace_stop"() : () -> ()
    %547 = arith.addf %546, %27 : vector<2x8x128xf32>
    %cst_241 = arith.constant dense<0xFF800000> : vector<2x8xf32>
    %548 = vector.multi_reduction <maximumf>, %547, %cst_241 [2] : vector<2x8x128xf32> to vector<2x8xf32>
    %549 = vector.shape_cast %548 : vector<2x8xf32> to vector<2x8x1xf32>
    %550 = vector.broadcast %549 : vector<2x8x1xf32> to vector<2x8x128xf32>
    %551 = arith.subf %547, %550 : vector<2x8x128xf32>
    %552 = math.exp %551 : vector<2x8x128xf32>
    %cst_242 = arith.constant dense<0.000000e+00> : vector<2x8xf32>
    %553 = vector.multi_reduction <add>, %552, %cst_242 [2] : vector<2x8x128xf32> to vector<2x8xf32>
    %554 = vector.shape_cast %553 : vector<2x8xf32> to vector<2x8x1xf32>
    %555 = tpu.reciprocal %554 {approx = true} : vector<2x8x1xf32> -> vector<2x8x1xf32>
    %556 = vector.broadcast %555 : vector<2x8x1xf32> to vector<2x8x128xf32>
    %557 = arith.mulf %552, %556 : vector<2x8x128xf32>
    %558 = arith.truncf %557 : vector<2x8x128xf32> to vector<2x8x128xbf16>
    %559 = vector.extract_strided_slice %485 {offsets = [0, 0, 24], sizes = [2, 128, 8], strides = [1, 1, 1]} : vector<2x128x32xbf16> to vector<2x128x8xbf16>
    "tpu.trace_start"() <{level = 10 : i32, message = "bts,bsd->btd"}> : () -> ()
    %cst_243 = arith.constant dense<0.000000e+00> : vector<2x8x8xf32>
    %560 = tpu.matmul %558, %559, %cst_243 {dimension_numbers = #tpu.dot_dimension_numbers<[2], [1], [1], [2], [0, 0, 0, 1, 1, 2], [0], [0]>} : vector<2x8x128xbf16>, vector<2x128x8xbf16>, vector<2x8x8xf32> -> vector<2x8x8xf32>
    "tpu.trace_stop"() : () -> ()
    %c0_244 = arith.constant 0 : index
    %c0_245 = arith.constant 0 : index
    %c24_246 = arith.constant 24 : index
    %561 = vector.load %arg25[%c0_244, %c0_245, %c24_246] : memref<2x8x32xf32, #tpu.memory_space<vmem>>, vector<2x8x8xf32>
    tpu.vector_store %arg25[%c0_244, %c0_245, %c24_246], %560 {strides = array<i32>} : memref<2x8x32xf32, #tpu.memory_space<vmem>>, vector<2x8x8xf32>,
    %c0_247 = arith.constant 0 : index
    %c0_248 = arith.constant 0 : index
    %c0_249 = arith.constant 0 : index
    %562 = vector.load %arg25[%c0_247, %c0_248, %c0_249] : memref<2x8x32xf32, #tpu.memory_space<vmem>>, vector<2x8x32xf32>
    %563 = vector.shape_cast %562 : vector<2x8x32xf32> to vector<16x32xf32>
    %564 = arith.addf %438, %563 : vector<16x32xf32>
    %c1_250 = arith.constant 1 : index
    %c0_251 = arith.constant 0 : index
    %c0_252 = arith.constant 0 : index
    %565 = vector.load %arg15[%c1_250, %c0_251, %c0_252] : memref<2x1x32xf32, #tpu.memory_space<vmem>>, vector<1x1x32xf32>
    %566 = vector.shape_cast %565 : vector<1x1x32xf32> to vector<1x32xf32>
    %c1_253 = arith.constant 1 : index
    %c0_254 = arith.constant 0 : index
    %c0_255 = arith.constant 0 : index
    %567 = vector.load %arg16[%c1_253, %c0_254, %c0_255] : memref<2x1x32xf32, #tpu.memory_space<vmem>>, vector<1x1x32xf32>
    %568 = vector.shape_cast %567 : vector<1x1x32xf32> to vector<1x32xf32>
    %cst_256 = arith.constant dense<0.000000e+00> : vector<16xf32>
    %569 = vector.multi_reduction <add>, %564, %cst_256 [1] : vector<16x32xf32> to vector<16xf32>
    %570 = vector.shape_cast %569 : vector<16xf32> to vector<16x1xf32>
    %cst_257 = arith.constant 3.200000e+01 : f32
    %571 = vector.broadcast %cst_257 : f32 to vector<16x1xf32>
    %572 = arith.divf %570, %571 : vector<16x1xf32>
    %573 = vector.broadcast %572 : vector<16x1xf32> to vector<16x32xf32>
    %574 = arith.subf %564, %573 : vector<16x32xf32>
    %575 = arith.mulf %574, %574 : vector<16x32xf32>
    %cst_258 = arith.constant dense<0.000000e+00> : vector<16xf32>
    %576 = vector.multi_reduction <add>, %575, %cst_258 [1] : vector<16x32xf32> to vector<16xf32>
    %577 = vector.shape_cast %576 : vector<16xf32> to vector<16x1xf32>
    %cst_259 = arith.constant 3.200000e+01 : f32
    %578 = vector.broadcast %cst_259 : f32 to vector<16x1xf32>
    %579 = arith.divf %577, %578 : vector<16x1xf32>
    %580 = vector.broadcast %572 : vector<16x1xf32> to vector<16x32xf32>
    %581 = arith.subf %564, %580 : vector<16x32xf32>
    %cst_260 = arith.constant 9.99999974E-6 : f32
    %582 = vector.broadcast %cst_260 : f32 to vector<16x1xf32>
    %583 = arith.addf %579, %582 : vector<16x1xf32>
    %584 = math.rsqrt %583 : vector<16x1xf32>
    %585 = vector.broadcast %584 : vector<16x1xf32> to vector<16x32xf32>
    %586 = arith.mulf %581, %585 : vector<16x32xf32>
    %587 = vector.broadcast %566 : vector<1x32xf32> to vector<16x32xf32>
    %588 = arith.mulf %586, %587 : vector<16x32xf32>
    %589 = vector.broadcast %568 : vector<1x32xf32> to vector<16x32xf32>
    %590 = arith.addf %588, %589 : vector<16x32xf32>
    %591 = arith.truncf %590 : vector<16x32xf32> to vector<16x32xbf16>
    %c1_261 = arith.constant 1 : index
    %c0_262 = arith.constant 0 : index
    %c0_263 = arith.constant 0 : index
    %592 = vector.load %arg17[%c1_261, %c0_262, %c0_263] : memref<2x32x64xbf16, #tpu.memory_space<vmem>>, vector<1x32x64xbf16>
    %593 = vector.shape_cast %592 : vector<1x32x64xbf16> to vector<32x64xbf16>
    %cst_264 = arith.constant dense<0.000000e+00> : vector<16x64xf32>
    %594 = tpu.matmul %591, %593, %cst_264 {dimension_numbers = #tpu.dot_dimension_numbers<[1], [0], [0], [1], [0, 0, 1, 1], [], []>} : vector<16x32xbf16>, vector<32x64xbf16>, vector<16x64xf32> -> vector<16x64xf32>
    %c1_265 = arith.constant 1 : index
    %c0_266 = arith.constant 0 : index
    %c0_267 = arith.constant 0 : index
    %595 = vector.load %arg18[%c1_265, %c0_266, %c0_267] : memref<2x1x64xf32, #tpu.memory_space<vmem>>, vector<1x1x64xf32>
    %596 = vector.shape_cast %595 : vector<1x1x64xf32> to vector<1x64xf32>
    %597 = vector.broadcast %596 : vector<1x64xf32> to vector<16x64xf32>
    %598 = arith.addf %594, %597 : vector<16x64xf32>
    %cst_268 = arith.constant 0.000000e+00 : f32
    %599 = vector.broadcast %cst_268 : f32 to vector<16x64xf32>
    %600 = arith.maximumf %598, %599 : vector<16x64xf32>
    %601 = arith.truncf %600 : vector<16x64xf32> to vector<16x64xbf16>
    %c1_269 = arith.constant 1 : index
    %c0_270 = arith.constant 0 : index
    %c0_271 = arith.constant 0 : index
    %602 = vector.load %arg19[%c1_269, %c0_270, %c0_271] : memref<2x64x32xbf16, #tpu.memory_space<vmem>>, vector<1x64x32xbf16>
    %603 = vector.shape_cast %602 : vector<1x64x32xbf16> to vector<64x32xbf16>
    %cst_272 = arith.constant dense<0.000000e+00> : vector<16x32xf32>
    %604 = tpu.matmul %601, %603, %cst_272 {dimension_numbers = #tpu.dot_dimension_numbers<[1], [0], [0], [1], [0, 0, 1, 1], [], []>} : vector<16x64xbf16>, vector<64x32xbf16>, vector<16x32xf32> -> vector<16x32xf32>
    %605 = arith.addf %564, %604 : vector<16x32xf32>
    %c1_273 = arith.constant 1 : index
    %c0_274 = arith.constant 0 : index
    %c0_275 = arith.constant 0 : index
    %606 = vector.load %arg20[%c1_273, %c0_274, %c0_275] : memref<2x1x32xf32, #tpu.memory_space<vmem>>, vector<1x1x32xf32>
    %607 = vector.shape_cast %606 : vector<1x1x32xf32> to vector<1x32xf32>
    %608 = vector.broadcast %607 : vector<1x32xf32> to vector<16x32xf32>
    %609 = arith.addf %605, %608 : vector<16x32xf32>
    %c0_276 = arith.constant 0 : index
    %c0_277 = arith.constant 0 : index
    %610 = vector.load %arg21[%c0_276, %c0_277] : memref<1x32xf32, #tpu.memory_space<vmem>>, vector<1x32xf32>
    %c0_278 = arith.constant 0 : index
    %c0_279 = arith.constant 0 : index
    %611 = vector.load %arg22[%c0_278, %c0_279] : memref<1x32xf32, #tpu.memory_space<vmem>>, vector<1x32xf32>
    %cst_280 = arith.constant dense<0.000000e+00> : vector<16xf32>
    %612 = vector.multi_reduction <add>, %609, %cst_280 [1] : vector<16x32xf32> to vector<16xf32>
    %613 = vector.shape_cast %612 : vector<16xf32> to vector<16x1xf32>
    %cst_281 = arith.constant 3.200000e+01 : f32
    %614 = vector.broadcast %cst_281 : f32 to vector<16x1xf32>
    %615 = arith.divf %613, %614 : vector<16x1xf32>
    %616 = vector.broadcast %615 : vector<16x1xf32> to vector<16x32xf32>
    %617 = arith.subf %609, %616 : vector<16x32xf32>
    %618 = arith.mulf %617, %617 : vector<16x32xf32>
    %cst_282 = arith.constant dense<0.000000e+00> : vector<16xf32>
    %619 = vector.multi_reduction <add>, %618, %cst_282 [1] : vector<16x32xf32> to vector<16xf32>
    %620 = vector.shape_cast %619 : vector<16xf32> to vector<16x1xf32>
    %cst_283 = arith.constant 3.200000e+01 : f32
    %621 = vector.broadcast %cst_283 : f32 to vector<16x1xf32>
    %622 = arith.divf %620, %621 : vector<16x1xf32>
    %623 = vector.broadcast %615 : vector<16x1xf32> to vector<16x32xf32>
    %624 = arith.subf %609, %623 : vector<16x32xf32>
    %cst_284 = arith.constant 9.99999974E-6 : f32
    %625 = vector.broadcast %cst_284 : f32 to vector<16x1xf32>
    %626 = arith.addf %622, %625 : vector<16x1xf32>
    %627 = math.rsqrt %626 : vector<16x1xf32>
    %628 = vector.broadcast %627 : vector<16x1xf32> to vector<16x32xf32>
    %629 = arith.mulf %624, %628 : vector<16x32xf32>
    %630 = vector.broadcast %610 : vector<1x32xf32> to vector<16x32xf32>
    %631 = arith.mulf %629, %630 : vector<16x32xf32>
    %632 = vector.broadcast %611 : vector<1x32xf32> to vector<16x32xf32>
    %633 = arith.addf %631, %632 : vector<16x32xf32>
    %634 = arith.truncf %633 : vector<16x32xf32> to vector<16x32xbf16>
    %c0_285 = arith.constant 0 : index
    %c0_286 = arith.constant 0 : index
    %635 = vector.load %arg23[%c0_285, %c0_286] : memref<32x128xbf16, #tpu.memory_space<vmem>>, vector<32x128xbf16>
    %cst_287 = arith.constant dense<0.000000e+00> : vector<16x128xf32>
    %636 = tpu.matmul %634, %635, %cst_287 {dimension_numbers = #tpu.dot_dimension_numbers<[1], [0], [0], [1], [0, 0, 1, 1], [], []>} : vector<16x32xbf16>, vector<32x128xbf16>, vector<16x128xf32> -> vector<16x128xf32>
    %637 = tpu.iota {dimensions = array<i32: 1>} : vector<16x128xi32>
    %c45_i32 = arith.constant 45 : i32
    %638 = vector.broadcast %c45_i32 : i32 to vector<16x128xi32>
    %639 = arith.cmpi sge, %637, %638 : vector<16x128xi32>
    %cst_288 = arith.constant -1.000000e+30 : f32
    %640 = vector.broadcast %cst_288 : f32 to vector<16x128xf32>
    %641 = arith.select %639, %640, %636 : vector<16x128xi1>, vector<16x128xf32>
    %cst_289 = arith.constant dense<0xFF800000> : vector<16xf32>
    %642 = vector.multi_reduction <maximumf>, %641, %cst_289 [1] : vector<16x128xf32> to vector<16xf32>
    %643 = vector.shape_cast %642 : vector<16xf32> to vector<16x1xf32>
    %644 = vector.broadcast %643 : vector<16x1xf32> to vector<16x128xf32>
    %645 = arith.subf %641, %644 : vector<16x128xf32>
    %646 = math.exp %645 : vector<16x128xf32>
    %cst_290 = arith.constant dense<0.000000e+00> : vector<16xf32>
    %647 = vector.multi_reduction <add>, %646, %cst_290 [1] : vector<16x128xf32> to vector<16xf32>
    %648 = vector.shape_cast %647 : vector<16xf32> to vector<16x1xf32>
    %649 = math.log %648 : vector<16x1xf32>
    %650 = vector.broadcast %649 : vector<16x1xf32> to vector<16x128xf32>
    %651 = arith.subf %645, %650 : vector<16x128xf32>
    %652 = vector.shape_cast %651 : vector<16x128xf32> to vector<2x8x128xf32>
    %c0_291 = arith.constant 0 : index
    %c0_292 = arith.constant 0 : index
    %c0_293 = arith.constant 0 : index
    %653 = vector.load %arg24[%c0_291, %c0_292, %c0_293] : memref<2x8x128xf32, #tpu.memory_space<vmem>>, vector<2x8x128xf32>
    tpu.vector_store %arg24[%c0_291, %c0_292, %c0_293], %652 {strides = array<i32>} : memref<2x8x128xf32, #tpu.memory_space<vmem>>, vector<2x8x128xf32>,
    return
  }
  func.func @transform_0(%arg0: i32) -> (i32, i32, i32) {
    %c0_i32 = arith.constant 0 : i32
    %c0_i32_0 = arith.constant 0 : i32
    %c0_i32_1 = arith.constant 0 : i32
    return %arg0, %c0_i32, %c0_i32_0 : i32, i32, i32
  }
  func.func @transform_1(%arg0: i32) -> (i32, i32, i32) {
    %c0_i32 = arith.constant 0 : i32
    %c0_i32_0 = arith.constant 0 : i32
    %c0_i32_1 = arith.constant 0 : i32
    return %arg0, %c0_i32, %c0_i32_0 : i32, i32, i32
  }
  func.func @transform_2(%arg0: i32) -> (i32, i32, i32) {
    %c0_i32 = arith.constant 0 : i32
    %c0_i32_0 = arith.constant 0 : i32
    %c0_i32_1 = arith.constant 0 : i32
    return %arg0, %c0_i32, %c0_i32_0 : i32, i32, i32
  }
  func.func @transform_3(%arg0: i32) -> (i32, i32, i32) {
    %c0_i32 = arith.constant 0 : i32
    %c0_i32_0 = arith.constant 0 : i32
    %c0_i32_1 = arith.constant 0 : i32
    return %arg0, %c0_i32, %c0_i32_0 : i32, i32, i32
  }
  func.func @transform_4(%arg0: i32) -> (i32, i32, i32) {
    %c0_i32 = arith.constant 0 : i32
    %c0_i32_0 = arith.constant 0 : i32
    %c0_i32_1 = arith.constant 0 : i32
    %c0_i32_2 = arith.constant 0 : i32
    return %c0_i32, %c0_i32_0, %c0_i32_1 : i32, i32, i32
  }
  func.func @transform_5(%arg0: i32) -> (i32, i32, i32) {
    %c0_i32 = arith.constant 0 : i32
    %c0_i32_0 = arith.constant 0 : i32
    %c0_i32_1 = arith.constant 0 : i32
    %c0_i32_2 = arith.constant 0 : i32
    return %c0_i32, %c0_i32_0, %c0_i32_1 : i32, i32, i32
  }
  func.func @transform_6(%arg0: i32) -> (i32, i32, i32) {
    %c0_i32 = arith.constant 0 : i32
    %c0_i32_0 = arith.constant 0 : i32
    %c0_i32_1 = arith.constant 0 : i32
    %c0_i32_2 = arith.constant 0 : i32
    return %c0_i32, %c0_i32_0, %c0_i32_1 : i32, i32, i32
  }
  func.func @transform_7(%arg0: i32) -> (i32, i32, i32) {
    %c0_i32 = arith.constant 0 : i32
    %c0_i32_0 = arith.constant 0 : i32
    %c0_i32_1 = arith.constant 0 : i32
    %c0_i32_2 = arith.constant 0 : i32
    return %c0_i32, %c0_i32_0, %c0_i32_1 : i32, i32, i32
  }
  func.func @transform_8(%arg0: i32) -> (i32, i32, i32) {
    %c0_i32 = arith.constant 0 : i32
    %c0_i32_0 = arith.constant 0 : i32
    %c0_i32_1 = arith.constant 0 : i32
    %c0_i32_2 = arith.constant 0 : i32
    return %c0_i32, %c0_i32_0, %c0_i32_1 : i32, i32, i32
  }
  func.func @transform_9(%arg0: i32) -> (i32, i32, i32) {
    %c0_i32 = arith.constant 0 : i32
    %c0_i32_0 = arith.constant 0 : i32
    %c0_i32_1 = arith.constant 0 : i32
    %c0_i32_2 = arith.constant 0 : i32
    return %c0_i32, %c0_i32_0, %c0_i32_1 : i32, i32, i32
  }
  func.func @transform_10(%arg0: i32) -> (i32, i32, i32) {
    %c0_i32 = arith.constant 0 : i32
    %c0_i32_0 = arith.constant 0 : i32
    %c0_i32_1 = arith.constant 0 : i32
    %c0_i32_2 = arith.constant 0 : i32
    return %c0_i32, %c0_i32_0, %c0_i32_1 : i32, i32, i32
  }
  func.func @transform_11(%arg0: i32) -> (i32, i32, i32) {
    %c0_i32 = arith.constant 0 : i32
    %c0_i32_0 = arith.constant 0 : i32
    %c0_i32_1 = arith.constant 0 : i32
    %c0_i32_2 = arith.constant 0 : i32
    return %c0_i32, %c0_i32_0, %c0_i32_1 : i32, i32, i32
  }
  func.func @transform_12(%arg0: i32) -> (i32, i32, i32) {
    %c0_i32 = arith.constant 0 : i32
    %c0_i32_0 = arith.constant 0 : i32
    %c0_i32_1 = arith.constant 0 : i32
    %c0_i32_2 = arith.constant 0 : i32
    return %c0_i32, %c0_i32_0, %c0_i32_1 : i32, i32, i32
  }
  func.func @transform_13(%arg0: i32) -> (i32, i32, i32) {
    %c0_i32 = arith.constant 0 : i32
    %c0_i32_0 = arith.constant 0 : i32
    %c0_i32_1 = arith.constant 0 : i32
    %c0_i32_2 = arith.constant 0 : i32
    return %c0_i32, %c0_i32_0, %c0_i32_1 : i32, i32, i32
  }
  func.func @transform_14(%arg0: i32) -> (i32, i32, i32) {
    %c0_i32 = arith.constant 0 : i32
    %c0_i32_0 = arith.constant 0 : i32
    %c0_i32_1 = arith.constant 0 : i32
    %c0_i32_2 = arith.constant 0 : i32
    return %c0_i32, %c0_i32_0, %c0_i32_1 : i32, i32, i32
  }
  func.func @transform_15(%arg0: i32) -> (i32, i32, i32) {
    %c0_i32 = arith.constant 0 : i32
    %c0_i32_0 = arith.constant 0 : i32
    %c0_i32_1 = arith.constant 0 : i32
    %c0_i32_2 = arith.constant 0 : i32
    return %c0_i32, %c0_i32_0, %c0_i32_1 : i32, i32, i32
  }
  func.func @transform_16(%arg0: i32) -> (i32, i32, i32) {
    %c0_i32 = arith.constant 0 : i32
    %c0_i32_0 = arith.constant 0 : i32
    %c0_i32_1 = arith.constant 0 : i32
    %c0_i32_2 = arith.constant 0 : i32
    return %c0_i32, %c0_i32_0, %c0_i32_1 : i32, i32, i32
  }
  func.func @transform_17(%arg0: i32) -> (i32, i32, i32) {
    %c0_i32 = arith.constant 0 : i32
    %c0_i32_0 = arith.constant 0 : i32
    %c0_i32_1 = arith.constant 0 : i32
    %c0_i32_2 = arith.constant 0 : i32
    return %c0_i32, %c0_i32_0, %c0_i32_1 : i32, i32, i32
  }
  func.func @transform_18(%arg0: i32) -> (i32, i32, i32) {
    %c0_i32 = arith.constant 0 : i32
    %c0_i32_0 = arith.constant 0 : i32
    %c0_i32_1 = arith.constant 0 : i32
    %c0_i32_2 = arith.constant 0 : i32
    return %c0_i32, %c0_i32_0, %c0_i32_1 : i32, i32, i32
  }
  func.func @transform_19(%arg0: i32) -> (i32, i32, i32) {
    %c0_i32 = arith.constant 0 : i32
    %c0_i32_0 = arith.constant 0 : i32
    %c0_i32_1 = arith.constant 0 : i32
    %c0_i32_2 = arith.constant 0 : i32
    return %c0_i32, %c0_i32_0, %c0_i32_1 : i32, i32, i32
  }
  func.func @transform_20(%arg0: i32) -> (i32, i32) {
    %c0_i32 = arith.constant 0 : i32
    %c0_i32_0 = arith.constant 0 : i32
    %c0_i32_1 = arith.constant 0 : i32
    return %c0_i32, %c0_i32_0 : i32, i32
  }
  func.func @transform_21(%arg0: i32) -> (i32, i32) {
    %c0_i32 = arith.constant 0 : i32
    %c0_i32_0 = arith.constant 0 : i32
    %c0_i32_1 = arith.constant 0 : i32
    return %c0_i32, %c0_i32_0 : i32, i32
  }
  func.func @transform_22(%arg0: i32) -> (i32, i32) {
    %c0_i32 = arith.constant 0 : i32
    %c0_i32_0 = arith.constant 0 : i32
    %c0_i32_1 = arith.constant 0 : i32
    return %c0_i32, %c0_i32_0 : i32, i32
  }
  func.func @transform_23(%arg0: i32) -> (i32, i32, i32) {
    %c0_i32 = arith.constant 0 : i32
    %c0_i32_0 = arith.constant 0 : i32
    %c0_i32_1 = arith.constant 0 : i32
    return %arg0, %c0_i32, %c0_i32_0 : i32, i32, i32
  }
}

</mosaic_0001>

<llo_original>
// kernel: tpu_custom_call.1
$region0: #{tpu_custom_call.1}
  #allocation0 [shape = 'u32[]', space=smem, size = 0x4, offset = 0x4, fixed_abs, tag = 'smem constant byte address 0x4 - core index']
  #allocation1 [shape = 'u32[72,128]{1,0:T(1,128)}', space=vmem, size = 0x9000, scoped, tag = 'internal scratch']
  #allocation2 [shape = 'f32[2,8,32]{2,1,0:T(8,128)}', space=vmem, size = 0x2000, scoped, tag = 'scratch operand']
  %s0 = inlined_call_operand.vmem [shape: s32[2,1,1], index: 0, kind: input, shape index: {}]
  %s1 = inlined_call_operand.vmem [shape: s32[2,1,1], index: 1, kind: input, shape index: {}]
  %s2 = inlined_call_operand.vmem [shape: f32[2,8,32], index: 2, kind: input, shape index: {}]
  %s3 = inlined_call_operand.vmem [shape: f32[2,128,32], index: 3, kind: input, shape index: {}]
  %s4 = inlined_call_operand.vmem [shape: f32[2,1,32], index: 4, kind: input, shape index: {}]
  %s5 = inlined_call_operand.vmem [shape: f32[2,1,32], index: 5, kind: input, shape index: {}]
  %s6 = inlined_call_operand.vmem [shape: bf16[2,32,96], index: 6, kind: input, shape index: {}]
  %s7 = inlined_call_operand.vmem [shape: f32[2,1,96], index: 7, kind: input, shape index: {}]
  %s8 = inlined_call_operand.vmem [shape: f32[2,1,32], index: 8, kind: input, shape index: {}]
  %s9 = inlined_call_operand.vmem [shape: f32[2,1,32], index: 9, kind: input, shape index: {}]
  %s10 = inlined_call_operand.vmem [shape: bf16[2,32,32], index: 10, kind: input, shape index: {}]
  %s11 = inlined_call_operand.vmem [shape: f32[2,1,32], index: 11, kind: input, shape index: {}]
  %s12 = inlined_call_operand.vmem [shape: bf16[2,32,64], index: 12, kind: input, shape index: {}]
  %s13 = inlined_call_operand.vmem [shape: f32[2,1,64], index: 13, kind: input, shape index: {}]
  %s14 = inlined_call_operand.vmem [shape: f32[2,1,32], index: 14, kind: input, shape index: {}]
  %s15 = inlined_call_operand.vmem [shape: f32[2,1,32], index: 15, kind: input, shape index: {}]
  %s16 = inlined_call_operand.vmem [shape: bf16[2,32,64], index: 16, kind: input, shape index: {}]
  %s17 = inlined_call_operand.vmem [shape: f32[2,1,64], index: 17, kind: input, shape index: {}]
  %s18 = inlined_call_operand.vmem [shape: bf16[2,64,32], index: 18, kind: input, shape index: {}]
  %s19 = inlined_call_operand.vmem [shape: f32[2,1,32], index: 19, kind: input, shape index: {}]
  %s20 = inlined_call_operand.vmem [shape: f32[1,32], index: 20, kind: input, shape index: {}]
  %s21 = inlined_call_operand.vmem [shape: f32[1,32], index: 21, kind: input, shape index: {}]
  %s22 = inlined_call_operand.vmem [shape: bf16[32,128], index: 22, kind: input, shape index: {}]
  %s23 = inlined_call_operand.hbm [shape: f32[2,8,128], index: 23, kind: output, shape index: {}]
  %s24 = sld [smem:[#allocation0]]
  $region102: #{tpu_custom_call.1} parent=0
    _
  %s26 = ssub.s32 1, %s24
  %s27 = scalar_select 0, %s26, %s24
  $region1: #{tpu_custom_call.1} parent=0
    #allocation3 [shape = 'u8[8192]{0}', space=vmem, size = 0x2000, scoped, tag = 'output window, operand 0, single buffered']
    #allocation4 [shape = 's32[1]{0}', space=sflag, size = 0x4, scoped, tag = 'scoped memory for tpu_custom_call.1']
    %28 = vsyncpa [#allocation4], 0
    // Predicated region
    $region2: #{tpu_custom_call.1} parent=1 // pred_check
      _
    $region3: #{tpu_custom_call.1} parent=1 // pred_check_branch
      %30 = sbr.rel (0) target = $region5
    $region4: #{tpu_custom_call.1} parent=1 // pred_region
      _
    $region5: #{tpu_custom_call.1} parent=1 // pred_fallthru
      _
    // Predicated region
    $region6: #{tpu_custom_call.1} parent=1 // pred_check
      _
    $region7: #{tpu_custom_call.1} parent=1 // pred_check_branch
      %32 = sbr.rel (0) target = $region9
    $region8: #{tpu_custom_call.1} parent=1 // pred_region
      _
    $region9: #{tpu_custom_call.1} parent=1 // pred_fallthru
      _
    // Predicated region
    $region10: #{tpu_custom_call.1} parent=1 // pred_check
      _
    $region11: #{tpu_custom_call.1} parent=1 // pred_check_branch
      %34 = sbr.rel (0) target = $region13
    $region12: #{tpu_custom_call.1} parent=1 // pred_region
      _
    $region13: #{tpu_custom_call.1} parent=1 // pred_fallthru
      _
    // Predicated region
    $region14: #{tpu_custom_call.1} parent=1 // pred_check
      _
    $region15: #{tpu_custom_call.1} parent=1 // pred_check_branch
      %36 = sbr.rel (0) target = $region17
    $region16: #{tpu_custom_call.1} parent=1 // pred_region
      _
    $region17: #{tpu_custom_call.1} parent=1 // pred_fallthru
      _
    // Predicated region
    $region18: #{tpu_custom_call.1} parent=1 // pred_check
      _
    $region19: #{tpu_custom_call.1} parent=1 // pred_check_branch
      %38 = sbr.rel (0) target = $region21
    $region20: #{tpu_custom_call.1} parent=1 // pred_region
      _
    $region21: #{tpu_custom_call.1} parent=1 // pred_fallthru
      _
    // Predicated region
    $region22: #{tpu_custom_call.1} parent=1 // pred_check
      _
    $region23: #{tpu_custom_call.1} parent=1 // pred_check_branch
      %40 = sbr.rel (0) target = $region25
    $region24: #{tpu_custom_call.1} parent=1 // pred_region
      _
    $region25: #{tpu_custom_call.1} parent=1 // pred_fallthru
      _
    // Predicated region
    $region26: #{tpu_custom_call.1} parent=1 // pred_check
      _
    $region27: #{tpu_custom_call.1} parent=1 // pred_check_branch
      %42 = sbr.rel (0) target = $region29
    $region28: #{tpu_custom_call.1} parent=1 // pred_region
      _
    $region29: #{tpu_custom_call.1} parent=1 // pred_fallthru
      _
    // Predicated region
    $region30: #{tpu_custom_call.1} parent=1 // pred_check
      _
    $region31: #{tpu_custom_call.1} parent=1 // pred_check_branch
      %44 = sbr.rel (0) target = $region33
    $region32: #{tpu_custom_call.1} parent=1 // pred_region
      _
    $region33: #{tpu_custom_call.1} parent=1 // pred_fallthru
      _
    // Predicated region
    $region34: #{tpu_custom_call.1} parent=1 // pred_check
      _
    $region35: #{tpu_custom_call.1} parent=1 // pred_check_branch
      %46 = sbr.rel (0) target = $region37
    $region36: #{tpu_custom_call.1} parent=1 // pred_region
      _
    $region37: #{tpu_custom_call.1} parent=1 // pred_fallthru
      _
    // Predicated region
    $region38: #{tpu_custom_call.1} parent=1 // pred_check
      _
    $region39: #{tpu_custom_call.1} parent=1 // pred_check_branch
      %48 = sbr.rel (0) target = $region41
    $region40: #{tpu_custom_call.1} parent=1 // pred_region
      _
    $region41: #{tpu_custom_call.1} parent=1 // pred_fallthru
      _
    // Predicated region
    $region42: #{tpu_custom_call.1} parent=1 // pred_check
      _
    $region43: #{tpu_custom_call.1} parent=1 // pred_check_branch
      %50 = sbr.rel (0) target = $region45
    $region44: #{tpu_custom_call.1} parent=1 // pred_region
      _
    $region45: #{tpu_custom_call.1} parent=1 // pred_fallthru
      _
    // Predicated region
    $region46: #{tpu_custom_call.1} parent=1 // pred_check
      _
    $region47: #{tpu_custom_call.1} parent=1 // pred_check_branch
      %52 = sbr.rel (0) target = $region49
    $region48: #{tpu_custom_call.1} parent=1 // pred_region
      _
    $region49: #{tpu_custom_call.1} parent=1 // pred_fallthru
      _
    // Predicated region
    $region50: #{tpu_custom_call.1} parent=1 // pred_check
      _
    $region51: #{tpu_custom_call.1} parent=1 // pred_check_branch
      %54 = sbr.rel (0) target = $region53
    $region52: #{tpu_custom_call.1} parent=1 // pred_region
      _
    $region53: #{tpu_custom_call.1} parent=1 // pred_fallthru
      _
    // Predicated region
    $region54: #{tpu_custom_call.1} parent=1 // pred_check
      _
    $region55: #{tpu_custom_call.1} parent=1 // pred_check_branch
      %56 = sbr.rel (0) target = $region57
    $region56: #{tpu_custom_call.1} parent=1 // pred_region
      _
    $region57: #{tpu_custom_call.1} parent=1 // pred_fallthru
      _
    // Predicated region
    $region58: #{tpu_custom_call.1} parent=1 // pred_check
      _
    $region59: #{tpu_custom_call.1} parent=1 // pred_check_branch
      %58 = sbr.rel (0) target = $region61
    $region60: #{tpu_custom_call.1} parent=1 // pred_region
      _
    $region61: #{tpu_custom_call.1} parent=1 // pred_fallthru
      _
    // Predicated region
    $region62: #{tpu_custom_call.1} parent=1 // pred_check
      _
    $region63: #{tpu_custom_call.1} parent=1 // pred_check_branch
      %60 = sbr.rel (0) target = $region65
    $region64: #{tpu_custom_call.1} parent=1 // pred_region
      _
    $region65: #{tpu_custom_call.1} parent=1 // pred_fallthru
      _
    // Predicated region
    $region66: #{tpu_custom_call.1} parent=1 // pred_check
      _
    $region67: #{tpu_custom_call.1} parent=1 // pred_check_branch
      %62 = sbr.rel (0) target = $region69
    $region68: #{tpu_custom_call.1} parent=1 // pred_region
      _
    $region69: #{tpu_custom_call.1} parent=1 // pred_fallthru
      _
    // Predicated region
    $region70: #{tpu_custom_call.1} parent=1 // pred_check
      _
    $region71: #{tpu_custom_call.1} parent=1 // pred_check_branch
      %64 = sbr.rel (0) target = $region73
    $region72: #{tpu_custom_call.1} parent=1 // pred_region
      _
    $region73: #{tpu_custom_call.1} parent=1 // pred_fallthru
      _
    // Predicated region
    $region74: #{tpu_custom_call.1} parent=1 // pred_check
      _
    $region75: #{tpu_custom_call.1} parent=1 // pred_check_branch
      %66 = sbr.rel (0) target = $region77
    $region76: #{tpu_custom_call.1} parent=1 // pred_region
      _
    $region77: #{tpu_custom_call.1} parent=1 // pred_fallthru
      _
    // Predicated region
    $region78: #{tpu_custom_call.1} parent=1 // pred_check
      _
    $region79: #{tpu_custom_call.1} parent=1 // pred_check_branch
      %68 = sbr.rel (0) target = $region81
    $region80: #{tpu_custom_call.1} parent=1 // pred_region
      _
    $region81: #{tpu_custom_call.1} parent=1 // pred_fallthru
      _
    // Predicated region
    $region82: #{tpu_custom_call.1} parent=1 // pred_check
      _
    $region83: #{tpu_custom_call.1} parent=1 // pred_check_branch
      %70 = sbr.rel (0) target = $region85
    $region84: #{tpu_custom_call.1} parent=1 // pred_region
      _
    $region85: #{tpu_custom_call.1} parent=1 // pred_fallthru
      _
    // Predicated region
    $region86: #{tpu_custom_call.1} parent=1 // pred_check
      _
    $region87: #{tpu_custom_call.1} parent=1 // pred_check_branch
      %72 = sbr.rel (0) target = $region89
    $region88: #{tpu_custom_call.1} parent=1 // pred_region
      _
    $region89: #{tpu_custom_call.1} parent=1 // pred_fallthru
      _
    // Predicated region
    $region90: #{tpu_custom_call.1} parent=1 // pred_check
      _
    $region91: #{tpu_custom_call.1} parent=1 // pred_check_branch
      %74 = sbr.rel (0) target = $region93
    $region92: #{tpu_custom_call.1} parent=1 // pred_region
      _
    $region93: #{tpu_custom_call.1} parent=1 // pred_fallthru
      _
    %v76 = vld [vmem:[%s2] sm:$0xff]
    %v77 = vld [vmem:[%s2 + $0x8] sm:$0xff]
    %v78 = vld [vmem:[%s3] sm:$0xff]
    %v79 = vld [vmem:[%s3 + $0x8] sm:$0xff]
    %v80 = vld [vmem:[%s3 + $0x10] sm:$0xff]
    %v81 = vld [vmem:[%s3 + $0x18] sm:$0xff]
    %v82 = vld [vmem:[%s3 + $0x20] sm:$0xff]
    %v83 = vld [vmem:[%s3 + $0x28] sm:$0xff]
    %v84 = vld [vmem:[%s3 + $0x30] sm:$0xff]
    %v85 = vld [vmem:[%s3 + $0x38] sm:$0xff]
    %v86 = vld [vmem:[%s3 + $0x40] sm:$0xff]
    %v87 = vld [vmem:[%s3 + $0x48] sm:$0xff]
    %v88 = vld [vmem:[%s3 + $0x50] sm:$0xff]
    %v89 = vld [vmem:[%s3 + $0x58] sm:$0xff]
    %v90 = vld [vmem:[%s3 + $0x60] sm:$0xff]
    %v91 = vld [vmem:[%s3 + $0x68] sm:$0xff]
    %v92 = vld [vmem:[%s3 + $0x70] sm:$0xff]
    %v93 = vld [vmem:[%s3 + $0x78] sm:$0xff]
    %v94 = vld [vmem:[%s3 + $0x80] sm:$0xff]
    %v95 = vld [vmem:[%s3 + $0x88] sm:$0xff]
    %v96 = vld [vmem:[%s3 + $0x90] sm:$0xff]
    %v97 = vld [vmem:[%s3 + $0x98] sm:$0xff]
    %v98 = vld [vmem:[%s3 + $0xa0] sm:$0xff]
    %v99 = vld [vmem:[%s3 + $0xa8] sm:$0xff]
    %v100 = vld [vmem:[%s3 + $0xb0] sm:$0xff]
    %v101 = vld [vmem:[%s3 + $0xb8] sm:$0xff]
    %v102 = vld [vmem:[%s3 + $0xc0] sm:$0xff]
    %v103 = vld [vmem:[%s3 + $0xc8] sm:$0xff]
    %v104 = vld [vmem:[%s3 + $0xd0] sm:$0xff]
    %v105 = vld [vmem:[%s3 + $0xd8] sm:$0xff]
    %v106 = vld [vmem:[%s3 + $0xe0] sm:$0xff]
    %v107 = vld [vmem:[%s3 + $0xe8] sm:$0xff]
    %v108 = vld [vmem:[%s3 + $0xf0] sm:$0xff]
    %v109 = vld [vmem:[%s3 + $0xf8] sm:$0xff]
    %v110 = vpack.c.bf16 %v78, %v78
    %v111 = vpack.c.bf16 %v79, %v79
    %v112 = vpack.c.bf16 %v80, %v80
    %v113 = vpack.c.bf16 %v81, %v81
    %v114 = vpack.c.bf16 %v82, %v82
    %v115 = vpack.c.bf16 %v83, %v83
    %v116 = vpack.c.bf16 %v84, %v84
    %v117 = vpack.c.bf16 %v85, %v85
    %v118 = vpack.c.bf16 %v86, %v86
    %v119 = vpack.c.bf16 %v87, %v87
    %v120 = vpack.c.bf16 %v88, %v88
    %v121 = vpack.c.bf16 %v89, %v89
    %v122 = vpack.c.bf16 %v90, %v90
    %v123 = vpack.c.bf16 %v91, %v91
    %v124 = vpack.c.bf16 %v92, %v92
    %v125 = vpack.c.bf16 %v93, %v93
    %v126 = vpack.c.bf16 %v94, %v94
    %v127 = vpack.c.bf16 %v95, %v95
    %v128 = vpack.c.bf16 %v96, %v96
    %v129 = vpack.c.bf16 %v97, %v97
    %v130 = vpack.c.bf16 %v98, %v98
    %v131 = vpack.c.bf16 %v99, %v99
    %v132 = vpack.c.bf16 %v100, %v100
    %v133 = vpack.c.bf16 %v101, %v101
    %v134 = vpack.c.bf16 %v102, %v102
    %v135 = vpack.c.bf16 %v103, %v103
    %v136 = vpack.c.bf16 %v104, %v104
    %v137 = vpack.c.bf16 %v105, %v105
    %v138 = vpack.c.bf16 %v106, %v106
    %v139 = vpack.c.bf16 %v107, %v107
    %v140 = vpack.c.bf16 %v108, %v108
    %v141 = vpack.c.bf16 %v109, %v109
    %v142 = vld [vmem:[%s0] sm:$0x1]
    %v143 = vld [vmem:[%s0 + $0x1] sm:$0x1]
    %v144 = vld [vmem:[%s1] sm:$0x1]
    %v145 = vld [vmem:[%s1 + $0x1] sm:$0x1]
    %v146 = vlaneseq
    %v147 = vshrl.u32 %v146, 7
    %v148 = vlaneseq
    %v149 = vand.u32 %v148, 127
    %v150 = vperm.slane %v142, 0
    %v151 = vperm.slane %v143, 0
    %152 = vset.pattern.permute.xlu0 0
    %153 = vperm.xlu0 %152, %v150
    %v154 = vpop.permute.xlu0 %153
    %155 = vset.pattern.permute.xlu0 0
    %156 = vperm.xlu0 %155, %v151
    %v157 = vpop.permute.xlu0 %156
    %vm158 = vcmp.ge.s32.totalorder %v149, %v154
    %vm159 = vcmp.ge.s32.totalorder %v149, %v157
    %vm160 = vcmp.gt.s32.totalorder %v149, %v147
    %v161 = vsel %vm160, 1, 0
    %vm162 = vcmp.eq.s32.totalorder %v161, 1
    %vm163 = vmor %vm158, %vm162
    %vm164 = vmor %vm159, %vm162
    %v165 = vsel %vm163, -1e+30, 0.0
    %v166 = vsel %vm164, -1e+30, 0.0
    %v167 = vperm.slane %v144, 0
    %v168 = vperm.slane %v145, 0
    %169 = vset.pattern.permute.xlu0 0
    %170 = vperm.xlu0 %169, %v167
    %v171 = vpop.permute.xlu0 %170
    %172 = vset.pattern.permute.xlu0 0
    %173 = vperm.xlu0 %172, %v168
    %v174 = vpop.permute.xlu0 %173
    %vm175 = vcmp.ge.s32.totalorder %v149, %v171
    %vm176 = vcmp.ge.s32.totalorder %v149, %v174
    %v177 = vsel %vm175, -1e+30, 0.0
    %v178 = vsel %vm176, -1e+30, 0.0
    %v179 = vld [vmem:[%s4] sm:$0x1]
    %v180 = vld [vmem:[%s5] sm:$0x1]
    %vm181 = vcmask 261120
    %v182 = vsel %vm181, %v76, 0.0
    %183 = vadd.xlane.f32.xlu0 %v182
    %v184 = vpop.xlane.xlu0 %183
    %v185 = vsel %vm181, %v77, 0.0
    %186 = vadd.xlane.f32.xlu0 %v185
    %v187 = vpop.xlane.xlu0 %186
    %v188 = vrcp.pop 32.0
    %v189 = vmul.f32 32.0, %v188
    %v190 = vsub.f32 1.0, %v189
    %v191 = vmul.f32 %v188, %v190
    %v192 = vadd.f32 %v188, %v191
    %vm193 = vweird.f32 %v188
    %v194 = vsel %vm193, %v188, %v192
    %v195 = vmul.f32 %v184, %v194
    %v196 = vmul.f32 %v187, %v194
    %v197 = vsub.f32 %v76, %v195
    %v198 = vsub.f32 %v77, %v196
    %v199 = vmul.f32 %v197, %v197
    %v200 = vmul.f32 %v198, %v198
    %v201 = vsel %vm181, %v199, 0.0
    %202 = vadd.xlane.f32.xlu0 %v201
    %v203 = vpop.xlane.xlu0 %202
    %v204 = vsel %vm181, %v200, 0.0
    %205 = vadd.xlane.f32.xlu0 %v204
    %v206 = vpop.xlane.xlu0 %205
    %v207 = vmul.f32 %v203, %v194
    %v208 = vmul.f32 %v206, %v194
    %v209 = vadd.f32 %v207, 1e-05
    %v210 = vadd.f32 %v208, 1e-05
    %v211 = vrsqrt.pop %v209
    %v212 = vmul.f32 %v211, %v209
    %v213 = vmul.f32 %v212, %v211
    %v214 = vmul.f32 0.5, %v213
    %v215 = vsub.f32 1.5, %v214
    %v216 = vmul.f32 %v211, %v215
    %vm217 = vweird.f32 %v209
    %vm218 = vweird.f32 %v211
    %vm219 = vmor %vm217, %vm218
    %v220 = vsel %vm219, %v211, %v216
    %v221 = vrsqrt.pop %v210
    %v222 = vmul.f32 %v221, %v210
    %v223 = vmul.f32 %v222, %v221
    %v224 = vmul.f32 0.5, %v223
    %v225 = vsub.f32 1.5, %v224
    %v226 = vmul.f32 %v221, %v225
    %vm227 = vweird.f32 %v210
    %vm228 = vweird.f32 %v221
    %vm229 = vmor %vm227, %vm228
    %v230 = vsel %vm229, %v221, %v226
    %v231 = vmul.f32 %v197, %v220
    %v232 = vmul.f32 %v198, %v230
    %v234 = vperm.slane %v179, 0
    %v236 = vmul.f32 %v231, %v234
    %v237 = vmul.f32 %v232, %v234
    %v239 = vperm.slane %v180, 0
    %v241 = vadd.f32 %v236, %v239
    %v242 = vadd.f32 %v237, %v239
    %v243 = vpack.c.bf16 %v242, %v241
    %v244 = vld [vmem:[%s6] sm:$0xf]
    %v245 = vld [vmem:[%s6 + $0x4] sm:$0xf]
    %v246 = vld [vmem:[%s6 + $0x8] sm:$0xf]
    %v247 = vld [vmem:[%s6 + $0xc] sm:$0xf]
    %v248 = vld [vmem:[%s7] sm:$0x1]
    %v250 = vperm.slane %v248, 0
    %v256 = vunpack.c.l.b16 %v244
    %v257 = vunpack.c.l.b16 %v245
    %v258 = vunpack.c.l.b16 %v246
    %v259 = vunpack.c.l.b16 %v247
    %v260 = vpack.c.b16 %v257, %v256
    %v261 = vpack.c.b16 %v259, %v258
    %v265 = vsel %vm181, %v243, 0
    %267 = vmatpush.bf16.msra.mxu0 0
    %268 = vmatpush.bf16.msra.mxu0 0
    %269 = vmatpush.bf16.msra.mxu0 0
    %270 = vmatpush.bf16.msra.mxu0 0
    %271 = vmatpush.bf16.msra.mxu0 0
    %272 = vmatpush.bf16.msra.mxu0 0
    %273 = vmatpush.bf16.msra.mxu0 %v261
    %274 = vmatpush.bf16.msra.mxu0 %v260
    %275 = vmatmul.bf16.gmra.mxu0 %v265
    %v276 = vpop.f32.mrf.mxu0
    %v277 = vadd.f32 %v250, %v276
    %v278 = vpop.f32.mrf.mxu0
    %v279 = vadd.f32 %v250, %v278
    %280 = vdwg.mxu0
    %v281 = vmul.f32 %v277, 0.35355338
    %v282 = vmul.f32 %v279, 0.35355338
    %v283 = vpack.c.bf16 %v277, %v277
    %v284 = vpack.c.bf16 %v279, %v279
    %v285 = vpack.c.bf16 %v281, %v281
    %v286 = vpack.c.bf16 %v282, %v282
    %v288 = vunpack.c.l.b16 %v283
    %v289 = vpack.c.b16 %v288, %v288
    %290 = vrot.lane.b32.xlu0 %v289, 96
    %v291 = vpop.permute.xlu0 %290
    %vm292 = vcmask 64512
    %v294 = vsel %vm292, %v285, 0
    %v297 = vsel %vm292, %v291, 0
    %299 = vmatpush.bf16.xpose.msra.mxu0 0
    %300 = vmatpush.bf16.xpose.msra.mxu0 0
    %301 = vmatpush.bf16.xpose.msra.mxu0 0
    %302 = vmatpush.bf16.xpose.msra.mxu0 0
    %303 = vmatpush.bf16.xpose.msra.mxu0 0
    %304 = vmatpush.bf16.xpose.msra.mxu0 0
    %305 = vmatpush.bf16.xpose.msra.mxu0 0
    %306 = vmatpush.bf16.xpose.msra.mxu0 %v297
    %307 = vmatmul.bf16.gmra.mxu0 %v294
    %v308 = vpop.f32.mrf.mxu0
    %v309 = vadd.f32 %v165, %v308
    %v310 = vpop.f32.mrf.mxu0
    %311 = vdwg.mxu0
    %v313 = vunpack.c.l.b16 %v284
    %v314 = vpack.c.b16 %v313, %v313
    %315 = vrot.lane.b32.xlu0 %v314, 96
    %v316 = vpop.permute.xlu0 %315
    %v318 = vsel %vm292, %v286, 0
    %v321 = vsel %vm292, %v316, 0
    %323 = vmatpush.bf16.xpose.msra.mxu0 0
    %324 = vmatpush.bf16.xpose.msra.mxu0 0
    %325 = vmatpush.bf16.xpose.msra.mxu0 0
    %326 = vmatpush.bf16.xpose.msra.mxu0 0
    %327 = vmatpush.bf16.xpose.msra.mxu0 0
    %328 = vmatpush.bf16.xpose.msra.mxu0 0
    %329 = vmatpush.bf16.xpose.msra.mxu0 0
    %330 = vmatpush.bf16.xpose.msra.mxu0 %v321
    %331 = vmatmul.bf16.gmra.mxu0 %v318
    %v332 = vpop.f32.mrf.mxu0
    %v333 = vadd.f32 %v166, %v332
    %v334 = vpop.f32.mrf.mxu0
    %335 = vdwg.mxu0
    %v336 = vsel %vm292, %v309, -inf
    %337 = vmax.xlane.f32.xlu0 %v336
    %v338 = vpop.xlane.xlu0 %337
    %v339 = vsel %vm292, %v333, -inf
    %340 = vmax.xlane.f32.xlu0 %v339
    %v341 = vpop.xlane.xlu0 %340
    %v342 = vsub.f32 %v309, %v338
    %v343 = vsub.f32 %v333, %v341
    %v344 = vmul.f32 %v342, 1.442695
    %v345 = vpow.pop %v344
    %v346 = vmul.f32 %v343, 1.442695
    %v347 = vpow.pop %v346
    %v348 = vsel %vm292, %v345, 0.0
    %349 = vadd.xlane.f32.xlu0 %v348
    %v350 = vpop.xlane.xlu0 %349
    %v351 = vsel %vm292, %v347, 0.0
    %352 = vadd.xlane.f32.xlu0 %v351
    %v353 = vpop.xlane.xlu0 %352
    %v354 = vrcp.pop %v350
    %v355 = vrcp.pop %v353
    %v356 = vmul.f32 %v345, %v354
    %v357 = vmul.f32 %v347, %v355
    %v358 = vpack.c.bf16 %v356, %v356
    %v359 = vpack.c.bf16 %v357, %v357
    %360 = vrot.lane.b32.xlu0 %v289, 64
    %v361 = vpop.permute.xlu0 %360
    %v363 = vsel %vm292, %v358, 0
    %vm365 = vcmask 1043456
    %v367 = vsel %vm365, %v361, 0
    %369 = vmatpush.bf16.msra.mxu0 0
    %370 = vmatpush.bf16.msra.mxu0 0
    %371 = vmatpush.bf16.msra.mxu0 0
    %372 = vmatpush.bf16.msra.mxu0 0
    %373 = vmatpush.bf16.msra.mxu0 0
    %374 = vmatpush.bf16.msra.mxu0 0
    %375 = vmatpush.bf16.msra.mxu0 0
    %376 = vmatpush.bf16.msra.mxu0 %v367
    %377 = vmatmul.bf16.gmra.mxu0 %v363
    %v378 = vpop.f32.mrf.mxu0
    %v379 = vadd.f32 0.0, %v378
    %v380 = vpop.f32.mrf.mxu0
    %381 = vdwg.mxu0
    %382 = vrot.lane.b32.xlu0 %v314, 64
    %v383 = vpop.permute.xlu0 %382
    %v385 = vsel %vm292, %v359, 0
    %v388 = vsel %vm365, %v383, 0
    %390 = vmatpush.bf16.msra.mxu0 0
    %391 = vmatpush.bf16.msra.mxu0 0
    %392 = vmatpush.bf16.msra.mxu0 0
    %393 = vmatpush.bf16.msra.mxu0 0
    %394 = vmatpush.bf16.msra.mxu0 0
    %395 = vmatpush.bf16.msra.mxu0 0
    %396 = vmatpush.bf16.msra.mxu0 0
    %397 = vmatpush.bf16.msra.mxu0 %v388
    %398 = vmatmul.bf16.gmra.mxu0 %v385
    %v399 = vpop.f32.mrf.mxu0
    %v400 = vadd.f32 0.0, %v399
    %v401 = vpop.f32.mrf.mxu0
    %402 = vdwg.mxu0
    %403 = vst.msk [vmem:[#allocation2] sm:$0xff] %vm292, %v379
    %404 = vst.msk [vmem:[#allocation2 + $0x8] sm:$0xff] %vm292, %v400
    %v406 = vunpack.c.l.b16 %v285
    %v407 = vpack.c.b16 %v406, %v406
    %408 = vrot.lane.b32.xlu0 %v407, 120
    %v409 = vpop.permute.xlu0 %408
    %410 = vrot.lane.b32.xlu0 %v289, 88
    %v411 = vpop.permute.xlu0 %410
    %v413 = vsel %vm292, %v409, 0
    %v416 = vsel %vm292, %v411, 0
    %418 = vmatpush.bf16.xpose.msra.mxu0 0
    %419 = vmatpush.bf16.xpose.msra.mxu0 0
    %420 = vmatpush.bf16.xpose.msra.mxu0 0
    %421 = vmatpush.bf16.xpose.msra.mxu0 0
    %422 = vmatpush.bf16.xpose.msra.mxu0 0
    %423 = vmatpush.bf16.xpose.msra.mxu0 0
    %424 = vmatpush.bf16.xpose.msra.mxu0 0
    %425 = vmatpush.bf16.xpose.msra.mxu0 %v416
    %426 = vmatmul.bf16.gmra.mxu0 %v413
    %v427 = vpop.f32.mrf.mxu0
    %v428 = vadd.f32 %v165, %v427
    %v429 = vpop.f32.mrf.mxu0
    %430 = vdwg.mxu0
    %v432 = vunpack.c.l.b16 %v286
    %v433 = vpack.c.b16 %v432, %v432
    %434 = vrot.lane.b32.xlu0 %v433, 120
    %v435 = vpop.permute.xlu0 %434
    %436 = vrot.lane.b32.xlu0 %v314, 88
    %v437 = vpop.permute.xlu0 %436
    %v439 = vsel %vm292, %v435, 0
    %v442 = vsel %vm292, %v437, 0
    %444 = vmatpush.bf16.xpose.msra.mxu0 0
    %445 = vmatpush.bf16.xpose.msra.mxu0 0
    %446 = vmatpush.bf16.xpose.msra.mxu0 0
    %447 = vmatpush.bf16.xpose.msra.mxu0 0
    %448 = vmatpush.bf16.xpose.msra.mxu0 0
    %449 = vmatpush.bf16.xpose.msra.mxu0 0
    %450 = vmatpush.bf16.xpose.msra.mxu0 0
    %451 = vmatpush.bf16.xpose.msra.mxu0 %v442
    %452 = vmatmul.bf16.gmra.mxu0 %v439
    %v453 = vpop.f32.mrf.mxu0
    %v454 = vadd.f32 %v166, %v453
    %v455 = vpop.f32.mrf.mxu0
    %456 = vdwg.mxu0
    %v457 = vsel %vm292, %v428, -inf
    %458 = vmax.xlane.f32.xlu0 %v457
    %v459 = vpop.xlane.xlu0 %458
    %v460 = vsel %vm292, %v454, -inf
    %461 = vmax.xlane.f32.xlu0 %v460
    %v462 = vpop.xlane.xlu0 %461
    %v463 = vsub.f32 %v428, %v459
    %v464 = vsub.f32 %v454, %v462
    %v465 = vmul.f32 %v463, 1.442695
    %v466 = vpow.pop %v465
    %v467 = vmul.f32 %v464, 1.442695
    %v468 = vpow.pop %v467
    %v469 = vsel %vm292, %v466, 0.0
    %470 = vadd.xlane.f32.xlu0 %v469
    %v471 = vpop.xlane.xlu0 %470
    %v472 = vsel %vm292, %v468, 0.0
    %473 = vadd.xlane.f32.xlu0 %v472
    %v474 = vpop.xlane.xlu0 %473
    %v475 = vrcp.pop %v471
    %v476 = vrcp.pop %v474
    %v477 = vmul.f32 %v466, %v475
    %v478 = vmul.f32 %v468, %v476
    %v479 = vpack.c.bf16 %v477, %v477
    %v480 = vpack.c.bf16 %v478, %v478
    %481 = vrot.lane.b32.xlu0 %v289, 56
    %v482 = vpop.permute.xlu0 %481
    %v484 = vsel %vm292, %v479, 0
    %v487 = vsel %vm365, %v482, 0
    %489 = vmatpush.bf16.msra.mxu0 0
    %490 = vmatpush.bf16.msra.mxu0 0
    %491 = vmatpush.bf16.msra.mxu0 0
    %492 = vmatpush.bf16.msra.mxu0 0
    %493 = vmatpush.bf16.msra.mxu0 0
    %494 = vmatpush.bf16.msra.mxu0 0
    %495 = vmatpush.bf16.msra.mxu0 0
    %496 = vmatpush.bf16.msra.mxu0 %v487
    %497 = vmatmul.bf16.gmra.mxu0 %v484
    %v498 = vpop.f32.mrf.mxu0
    %v499 = vadd.f32 0.0, %v498
    %v500 = vpop.f32.mrf.mxu0
    %501 = vdwg.mxu0
    %502 = vrot.lane.b32.xlu0 %v314, 56
    %v503 = vpop.permute.xlu0 %502
    %v505 = vsel %vm292, %v480, 0
    %v508 = vsel %vm365, %v503, 0
    %510 = vmatpush.bf16.msra.mxu0 0
    %511 = vmatpush.bf16.msra.mxu0 0
    %512 = vmatpush.bf16.msra.mxu0 0
    %513 = vmatpush.bf16.msra.mxu0 0
    %514 = vmatpush.bf16.msra.mxu0 0
    %515 = vmatpush.bf16.msra.mxu0 0
    %516 = vmatpush.bf16.msra.mxu0 0
    %517 = vmatpush.bf16.msra.mxu0 %v508
    %518 = vmatmul.bf16.gmra.mxu0 %v505
    %v519 = vpop.f32.mrf.mxu0
    %v520 = vadd.f32 0.0, %v519
    %v521 = vpop.f32.mrf.mxu0
    %522 = vdwg.mxu0
    %525 = vrot.lane.b32.xlu0 %v499, 8
    %v526 = vpop.permute.xlu0 %525
    %527 = vrot.lane.b32.xlu0 %v520, 8
    %v528 = vpop.permute.xlu0 %527
    %vm531 = vcmask 130112
    %532 = vst.msk [vmem:[#allocation2] sm:$0xff] %vm531, %v526
    %533 = vst.msk [vmem:[#allocation2 + $0x8] sm:$0xff] %vm531, %v528
    %534 = vrot.lane.b32.xlu0 %v407, 112
    %v535 = vpop.permute.xlu0 %534
    %536 = vrot.lane.b32.xlu0 %v289, 80
    %v537 = vpop.permute.xlu0 %536
    %v539 = vsel %vm292, %v535, 0
    %v542 = vsel %vm292, %v537, 0
    %544 = vmatpush.bf16.xpose.msra.mxu0 0
    %545 = vmatpush.bf16.xpose.msra.mxu0 0
    %546 = vmatpush.bf16.xpose.msra.mxu0 0
    %547 = vmatpush.bf16.xpose.msra.mxu0 0
    %548 = vmatpush.bf16.xpose.msra.mxu0 0
    %549 = vmatpush.bf16.xpose.msra.mxu0 0
    %550 = vmatpush.bf16.xpose.msra.mxu0 0
    %551 = vmatpush.bf16.xpose.msra.mxu0 %v542
    %552 = vmatmul.bf16.gmra.mxu0 %v539
    %v553 = vpop.f32.mrf.mxu0
    %v554 = vadd.f32 %v165, %v553
    %v555 = vpop.f32.mrf.mxu0
    %556 = vdwg.mxu0
    %557 = vrot.lane.b32.xlu0 %v433, 112
    %v558 = vpop.permute.xlu0 %557
    %559 = vrot.lane.b32.xlu0 %v314, 80
    %v560 = vpop.permute.xlu0 %559
    %v562 = vsel %vm292, %v558, 0
    %v565 = vsel %vm292, %v560, 0
    %567 = vmatpush.bf16.xpose.msra.mxu0 0
    %568 = vmatpush.bf16.xpose.msra.mxu0 0
    %569 = vmatpush.bf16.xpose.msra.mxu0 0
    %570 = vmatpush.bf16.xpose.msra.mxu0 0
    %571 = vmatpush.bf16.xpose.msra.mxu0 0
    %572 = vmatpush.bf16.xpose.msra.mxu0 0
    %573 = vmatpush.bf16.xpose.msra.mxu0 0
    %574 = vmatpush.bf16.xpose.msra.mxu0 %v565
    %575 = vmatmul.bf16.gmra.mxu0 %v562
    %v576 = vpop.f32.mrf.mxu0
    %v577 = vadd.f32 %v166, %v576
    %v578 = vpop.f32.mrf.mxu0
    %579 = vdwg.mxu0
    %v580 = vsel %vm292, %v554, -inf
    %581 = vmax.xlane.f32.xlu0 %v580
    %v582 = vpop.xlane.xlu0 %581
    %v583 = vsel %vm292, %v577, -inf
    %584 = vmax.xlane.f32.xlu0 %v583
    %v585 = vpop.xlane.xlu0 %584
    %v586 = vsub.f32 %v554, %v582
    %v587 = vsub.f32 %v577, %v585
    %v588 = vmul.f32 %v586, 1.442695
    %v589 = vpow.pop %v588
    %v590 = vmul.f32 %v587, 1.442695
    %v591 = vpow.pop %v590
    %v592 = vsel %vm292, %v589, 0.0
    %593 = vadd.xlane.f32.xlu0 %v592
    %v594 = vpop.xlane.xlu0 %593
    %v595 = vsel %vm292, %v591, 0.0
    %596 = vadd.xlane.f32.xlu0 %v595
    %v597 = vpop.xlane.xlu0 %596
    %v598 = vrcp.pop %v594
    %v599 = vrcp.pop %v597
    %v600 = vmul.f32 %v589, %v598
    %v601 = vmul.f32 %v591, %v599
    %v602 = vpack.c.bf16 %v600, %v600
    %v603 = vpack.c.bf16 %v601, %v601
    %604 = vrot.lane.b32.xlu0 %v289, 48
    %v605 = vpop.permute.xlu0 %604
    %v607 = vsel %vm292, %v602, 0
    %v610 = vsel %vm365, %v605, 0
    %612 = vmatpush.bf16.msra.mxu0 0
    %613 = vmatpush.bf16.msra.mxu0 0
    %614 = vmatpush.bf16.msra.mxu0 0
    %615 = vmatpush.bf16.msra.mxu0 0
    %616 = vmatpush.bf16.msra.mxu0 0
    %617 = vmatpush.bf16.msra.mxu0 0
    %618 = vmatpush.bf16.msra.mxu0 0
    %619 = vmatpush.bf16.msra.mxu0 %v610
    %620 = vmatmul.bf16.gmra.mxu0 %v607
    %v621 = vpop.f32.mrf.mxu0
    %v622 = vadd.f32 0.0, %v621
    %v623 = vpop.f32.mrf.mxu0
    %624 = vdwg.mxu0
    %625 = vrot.lane.b32.xlu0 %v314, 48
    %v626 = vpop.permute.xlu0 %625
    %v628 = vsel %vm292, %v603, 0
    %v631 = vsel %vm365, %v626, 0
    %633 = vmatpush.bf16.msra.mxu0 0
    %634 = vmatpush.bf16.msra.mxu0 0
    %635 = vmatpush.bf16.msra.mxu0 0
    %636 = vmatpush.bf16.msra.mxu0 0
    %637 = vmatpush.bf16.msra.mxu0 0
    %638 = vmatpush.bf16.msra.mxu0 0
    %639 = vmatpush.bf16.msra.mxu0 0
    %640 = vmatpush.bf16.msra.mxu0 %v631
    %641 = vmatmul.bf16.gmra.mxu0 %v628
    %v642 = vpop.f32.mrf.mxu0
    %v643 = vadd.f32 0.0, %v642
    %v644 = vpop.f32.mrf.mxu0
    %645 = vdwg.mxu0
    %648 = vrot.lane.b32.xlu0 %v622, 16
    %v649 = vpop.permute.xlu0 %648
    %650 = vrot.lane.b32.xlu0 %v643, 16
    %v651 = vpop.permute.xlu0 %650
    %vm654 = vcmask 195712
    %655 = vst.msk [vmem:[#allocation2] sm:$0xff] %vm654, %v649
    %656 = vst.msk [vmem:[#allocation2 + $0x8] sm:$0xff] %vm654, %v651
    %657 = vrot.lane.b32.xlu0 %v407, 104
    %v658 = vpop.permute.xlu0 %657
    %659 = vrot.lane.b32.xlu0 %v289, 72
    %v660 = vpop.permute.xlu0 %659
    %v662 = vsel %vm292, %v658, 0
    %v665 = vsel %vm292, %v660, 0
    %667 = vmatpush.bf16.xpose.msra.mxu0 0
    %668 = vmatpush.bf16.xpose.msra.mxu0 0
    %669 = vmatpush.bf16.xpose.msra.mxu0 0
    %670 = vmatpush.bf16.xpose.msra.mxu0 0
    %671 = vmatpush.bf16.xpose.msra.mxu0 0
    %672 = vmatpush.bf16.xpose.msra.mxu0 0
    %673 = vmatpush.bf16.xpose.msra.mxu0 0
    %674 = vmatpush.bf16.xpose.msra.mxu0 %v665
    %675 = vmatmul.bf16.gmra.mxu0 %v662
    %v676 = vpop.f32.mrf.mxu0
    %v677 = vadd.f32 %v165, %v676
    %v678 = vpop.f32.mrf.mxu0
    %679 = vdwg.mxu0
    %680 = vrot.lane.b32.xlu0 %v433, 104
    %v681 = vpop.permute.xlu0 %680
    %682 = vrot.lane.b32.xlu0 %v314, 72
    %v683 = vpop.permute.xlu0 %682
    %v685 = vsel %vm292, %v681, 0
    %v688 = vsel %vm292, %v683, 0
    %690 = vmatpush.bf16.xpose.msra.mxu0 0
    %691 = vmatpush.bf16.xpose.msra.mxu0 0
    %692 = vmatpush.bf16.xpose.msra.mxu0 0
    %693 = vmatpush.bf16.xpose.msra.mxu0 0
    %694 = vmatpush.bf16.xpose.msra.mxu0 0
    %695 = vmatpush.bf16.xpose.msra.mxu0 0
    %696 = vmatpush.bf16.xpose.msra.mxu0 0
    %697 = vmatpush.bf16.xpose.msra.mxu0 %v688
    %698 = vmatmul.bf16.gmra.mxu0 %v685
    %v699 = vpop.f32.mrf.mxu0
    %v700 = vadd.f32 %v166, %v699
    %v701 = vpop.f32.mrf.mxu0
    %702 = vdwg.mxu0
    %v703 = vsel %vm292, %v677, -inf
    %704 = vmax.xlane.f32.xlu0 %v703
    %v705 = vpop.xlane.xlu0 %704
    %v706 = vsel %vm292, %v700, -inf
    %707 = vmax.xlane.f32.xlu0 %v706
    %v708 = vpop.xlane.xlu0 %707
    %v709 = vsub.f32 %v677, %v705
    %v710 = vsub.f32 %v700, %v708
    %v711 = vmul.f32 %v709, 1.442695
    %v712 = vpow.pop %v711
    %v713 = vmul.f32 %v710, 1.442695
    %v714 = vpow.pop %v713
    %v715 = vsel %vm292, %v712, 0.0
    %716 = vadd.xlane.f32.xlu0 %v715
    %v717 = vpop.xlane.xlu0 %716
    %v718 = vsel %vm292, %v714, 0.0
    %719 = vadd.xlane.f32.xlu0 %v718
    %v720 = vpop.xlane.xlu0 %719
    %v721 = vrcp.pop %v717
    %v722 = vrcp.pop %v720
    %v723 = vmul.f32 %v712, %v721
    %v724 = vmul.f32 %v714, %v722
    %v725 = vpack.c.bf16 %v723, %v723
    %v726 = vpack.c.bf16 %v724, %v724
    %727 = vrot.lane.b32.xlu0 %v289, 40
    %v728 = vpop.permute.xlu0 %727
    %v730 = vsel %vm292, %v725, 0
    %v733 = vsel %vm365, %v728, 0
    %735 = vmatpush.bf16.msra.mxu0 0
    %736 = vmatpush.bf16.msra.mxu0 0
    %737 = vmatpush.bf16.msra.mxu0 0
    %738 = vmatpush.bf16.msra.mxu0 0
    %739 = vmatpush.bf16.msra.mxu0 0
    %740 = vmatpush.bf16.msra.mxu0 0
    %741 = vmatpush.bf16.msra.mxu0 0
    %742 = vmatpush.bf16.msra.mxu0 %v733
    %743 = vmatmul.bf16.gmra.mxu0 %v730
    %v744 = vpop.f32.mrf.mxu0
    %v745 = vadd.f32 0.0, %v744
    %v746 = vpop.f32.mrf.mxu0
    %747 = vdwg.mxu0
    %748 = vrot.lane.b32.xlu0 %v314, 40
    %v749 = vpop.permute.xlu0 %748
    %v751 = vsel %vm292, %v726, 0
    %v754 = vsel %vm365, %v749, 0
    %756 = vmatpush.bf16.msra.mxu0 0
    %757 = vmatpush.bf16.msra.mxu0 0
    %758 = vmatpush.bf16.msra.mxu0 0
    %759 = vmatpush.bf16.msra.mxu0 0
    %760 = vmatpush.bf16.msra.mxu0 0
    %761 = vmatpush.bf16.msra.mxu0 0
    %762 = vmatpush.bf16.msra.mxu0 0
    %763 = vmatpush.bf16.msra.mxu0 %v754
    %764 = vmatmul.bf16.gmra.mxu0 %v751
    %v765 = vpop.f32.mrf.mxu0
    %v766 = vadd.f32 0.0, %v765
    %v767 = vpop.f32.mrf.mxu0
    %768 = vdwg.mxu0
    %771 = vrot.lane.b32.xlu0 %v745, 24
    %v772 = vpop.permute.xlu0 %771
    %773 = vrot.lane.b32.xlu0 %v766, 24
    %v774 = vpop.permute.xlu0 %773
    %vm777 = vcmask 261312
    %778 = vst.msk [vmem:[#allocation2] sm:$0xff] %vm777, %v772
    %779 = vst.msk [vmem:[#allocation2 + $0x8] sm:$0xff] %vm777, %v774
    %v780 = vld [vmem:[#allocation2] sm:$0xff]
    %v781 = vld [vmem:[#allocation2 + $0x8] sm:$0xff]
    %v782 = vadd.f32 %v76, %v780
    %v783 = vadd.f32 %v77, %v781
    %v784 = vld [vmem:[%s8] sm:$0x1]
    %v785 = vld [vmem:[%s9] sm:$0x1]
    %v786 = vsel %vm181, %v782, 0.0
    %787 = vadd.xlane.f32.xlu0 %v786
    %v788 = vpop.xlane.xlu0 %787
    %v789 = vsel %vm181, %v783, 0.0
    %790 = vadd.xlane.f32.xlu0 %v789
    %v791 = vpop.xlane.xlu0 %790
    %v792 = vmul.f32 %v788, %v194
    %v793 = vmul.f32 %v791, %v194
    %v794 = vsub.f32 %v782, %v792
    %v795 = vsub.f32 %v783, %v793
    %v796 = vmul.f32 %v794, %v794
    %v797 = vmul.f32 %v795, %v795
    %v798 = vsel %vm181, %v796, 0.0
    %799 = vadd.xlane.f32.xlu0 %v798
    %v800 = vpop.xlane.xlu0 %799
    %v801 = vsel %vm181, %v797, 0.0
    %802 = vadd.xlane.f32.xlu0 %v801
    %v803 = vpop.xlane.xlu0 %802
    %v804 = vmul.f32 %v800, %v194
    %v805 = vmul.f32 %v803, %v194
    %v806 = vadd.f32 %v804, 1e-05
    %v807 = vadd.f32 %v805, 1e-05
    %v808 = vrsqrt.pop %v806
    %v809 = vmul.f32 %v808, %v806
    %v810 = vmul.f32 %v809, %v808
    %v811 = vmul.f32 0.5, %v810
    %v812 = vsub.f32 1.5, %v811
    %v813 = vmul.f32 %v808, %v812
    %vm814 = vweird.f32 %v806
    %vm815 = vweird.f32 %v808
    %vm816 = vmor %vm814, %vm815
    %v817 = vsel %vm816, %v808, %v813
    %v818 = vrsqrt.pop %v807
    %v819 = vmul.f32 %v818, %v807
    %v820 = vmul.f32 %v819, %v818
    %v821 = vmul.f32 0.5, %v820
    %v822 = vsub.f32 1.5, %v821
    %v823 = vmul.f32 %v818, %v822
    %vm824 = vweird.f32 %v807
    %vm825 = vweird.f32 %v818
    %vm826 = vmor %vm824, %vm825
    %v827 = vsel %vm826, %v818, %v823
    %v828 = vmul.f32 %v794, %v817
    %v829 = vmul.f32 %v795, %v827
    %v831 = vperm.slane %v784, 0
    %v833 = vmul.f32 %v828, %v831
    %v834 = vmul.f32 %v829, %v831
    %v836 = vperm.slane %v785, 0
    %v838 = vadd.f32 %v833, %v836
    %v839 = vadd.f32 %v834, %v836
    %v840 = vpack.c.bf16 %v839, %v838
    %v841 = vld [vmem:[%s10] sm:$0xf]
    %v842 = vld [vmem:[%s10 + $0x4] sm:$0xf]
    %v843 = vld [vmem:[%s10 + $0x8] sm:$0xf]
    %v844 = vld [vmem:[%s10 + $0xc] sm:$0xf]
    %v845 = vld [vmem:[%s11] sm:$0x1]
    %v847 = vperm.slane %v845, 0
    %v853 = vunpack.c.l.b16 %v841
    %v854 = vunpack.c.l.b16 %v842
    %v855 = vunpack.c.l.b16 %v843
    %v856 = vunpack.c.l.b16 %v844
    %v857 = vpack.c.b16 %v854, %v853
    %v858 = vpack.c.b16 %v856, %v855
    %v862 = vsel %vm181, %v840, 0
    %864 = vmatpush.bf16.msra.mxu0 0
    %865 = vmatpush.bf16.msra.mxu0 0
    %866 = vmatpush.bf16.msra.mxu0 0
    %867 = vmatpush.bf16.msra.mxu0 0
    %868 = vmatpush.bf16.msra.mxu0 0
    %869 = vmatpush.bf16.msra.mxu0 0
    %870 = vmatpush.bf16.msra.mxu0 %v858
    %871 = vmatpush.bf16.msra.mxu0 %v857
    %872 = vmatmul.bf16.gmra.mxu0 %v862
    %v873 = vpop.f32.mrf.mxu0
    %v874 = vadd.f32 %v847, %v873
    %v875 = vpop.f32.mrf.mxu0
    %v876 = vadd.f32 %v847, %v875
    %877 = vdwg.mxu0
    %v878 = vld [vmem:[%s12] sm:$0xf]
    %v879 = vld [vmem:[%s12 + $0x4] sm:$0xf]
    %v880 = vld [vmem:[%s12 + $0x8] sm:$0xf]
    %v881 = vld [vmem:[%s12 + $0xc] sm:$0xf]
    %v882 = vld [vmem:[%s13] sm:$0x1]
    %v884 = vperm.slane %v882, 0
    %v918 = vunpack.c.l.b16 %v110
    %v919 = vunpack.c.l.b16 %v111
    %v920 = vunpack.c.l.b16 %v112
    %v921 = vunpack.c.l.b16 %v113
    %v922 = vunpack.c.l.b16 %v114
    %v923 = vunpack.c.l.b16 %v115
    %v924 = vunpack.c.l.b16 %v116
    %v925 = vunpack.c.l.b16 %v117
    %v926 = vunpack.c.l.b16 %v118
    %v927 = vunpack.c.l.b16 %v119
    %v928 = vunpack.c.l.b16 %v120
    %v929 = vunpack.c.l.b16 %v121
    %v930 = vunpack.c.l.b16 %v122
    %v931 = vunpack.c.l.b16 %v123
    %v932 = vunpack.c.l.b16 %v124
    %v933 = vunpack.c.l.b16 %v125
    %v934 = vunpack.c.l.b16 %v126
    %v935 = vunpack.c.l.b16 %v127
    %v936 = vunpack.c.l.b16 %v128
    %v937 = vunpack.c.l.b16 %v129
    %v938 = vunpack.c.l.b16 %v130
    %v939 = vunpack.c.l.b16 %v131
    %v940 = vunpack.c.l.b16 %v132
    %v941 = vunpack.c.l.b16 %v133
    %v942 = vunpack.c.l.b16 %v134
    %v943 = vunpack.c.l.b16 %v135
    %v944 = vunpack.c.l.b16 %v136
    %v945 = vunpack.c.l.b16 %v137
    %v946 = vunpack.c.l.b16 %v138
    %v947 = vunpack.c.l.b16 %v139
    %v948 = vunpack.c.l.b16 %v140
    %v949 = vunpack.c.l.b16 %v141
    %v950 = vpack.c.b16 %v919, %v918
    %v951 = vpack.c.b16 %v921, %v920
    %v952 = vpack.c.b16 %v923, %v922
    %v953 = vpack.c.b16 %v925, %v924
    %v954 = vpack.c.b16 %v927, %v926
    %v955 = vpack.c.b16 %v929, %v928
    %v956 = vpack.c.b16 %v931, %v930
    %v957 = vpack.c.b16 %v933, %v932
    %v958 = vpack.c.b16 %v935, %v934
    %v959 = vpack.c.b16 %v937, %v936
    %v960 = vpack.c.b16 %v939, %v938
    %v961 = vpack.c.b16 %v941, %v940
    %v962 = vpack.c.b16 %v943, %v942
    %v963 = vpack.c.b16 %v945, %v944
    %v964 = vpack.c.b16 %v947, %v946
    %v965 = vpack.c.b16 %v949, %v948
    %v970 = vunpack.c.l.b16 %v878
    %v971 = vunpack.c.l.b16 %v879
    %v972 = vunpack.c.l.b16 %v880
    %v973 = vunpack.c.l.b16 %v881
    %v974 = vpack.c.b16 %v971, %v970
    %v975 = vpack.c.b16 %v973, %v972
    %v979 = vsel %vm181, %v950, 0
    %v982 = vsel %vm181, %v951, 0
    %v985 = vsel %vm181, %v952, 0
    %v988 = vsel %vm181, %v953, 0
    %v991 = vsel %vm181, %v954, 0
    %v994 = vsel %vm181, %v955, 0
    %v997 = vsel %vm181, %v956, 0
    %v1000 = vsel %vm181, %v957, 0
    %v1003 = vsel %vm181, %v958, 0
    %v1006 = vsel %vm181, %v959, 0
    %v1009 = vsel %vm181, %v960, 0
    %v1012 = vsel %vm181, %v961, 0
    %v1015 = vsel %vm181, %v962, 0
    %v1018 = vsel %vm181, %v963, 0
    %v1021 = vsel %vm181, %v964, 0
    %v1024 = vsel %vm181, %v965, 0
    %1026 = vmatpush.bf16.msra.mxu0 0
    %1027 = vmatpush.bf16.msra.mxu0 0
    %1028 = vmatpush.bf16.msra.mxu0 0
    %1029 = vmatpush.bf16.msra.mxu0 0
    %1030 = vmatpush.bf16.msra.mxu0 0
    %1031 = vmatpush.bf16.msra.mxu0 0
    %1032 = vmatpush.bf16.msra.mxu0 %v975
    %1033 = vmatpush.bf16.msra.mxu0 %v974
    %1034 = vmatmul.bf16.gmra.mxu0 %v979
    %v1035 = vpop.f32.mrf.mxu0
    %v1036 = vadd.f32 %v884, %v1035
    %v1037 = vpop.f32.mrf.mxu0
    %v1038 = vadd.f32 %v884, %v1037
    %1039 = vmatmul.bf16.gmra.mxu0 %v982
    %v1040 = vpop.f32.mrf.mxu0
    %v1041 = vadd.f32 %v884, %v1040
    %v1042 = vpop.f32.mrf.mxu0
    %v1043 = vadd.f32 %v884, %v1042
    %1044 = vmatmul.bf16.gmra.mxu0 %v985
    %v1045 = vpop.f32.mrf.mxu0
    %v1046 = vadd.f32 %v884, %v1045
    %v1047 = vpop.f32.mrf.mxu0
    %v1048 = vadd.f32 %v884, %v1047
    %1049 = vmatmul.bf16.gmra.mxu0 %v988
    %v1050 = vpop.f32.mrf.mxu0
    %v1051 = vadd.f32 %v884, %v1050
    %v1052 = vpop.f32.mrf.mxu0
    %v1053 = vadd.f32 %v884, %v1052
    %1054 = vmatmul.bf16.gmra.mxu0 %v991
    %v1055 = vpop.f32.mrf.mxu0
    %v1056 = vadd.f32 %v884, %v1055
    %v1057 = vpop.f32.mrf.mxu0
    %v1058 = vadd.f32 %v884, %v1057
    %1059 = vmatmul.bf16.gmra.mxu0 %v994
    %v1060 = vpop.f32.mrf.mxu0
    %v1061 = vadd.f32 %v884, %v1060
    %v1062 = vpop.f32.mrf.mxu0
    %v1063 = vadd.f32 %v884, %v1062
    %1064 = vmatmul.bf16.gmra.mxu0 %v997
    %v1065 = vpop.f32.mrf.mxu0
    %v1066 = vadd.f32 %v884, %v1065
    %v1067 = vpop.f32.mrf.mxu0
    %v1068 = vadd.f32 %v884, %v1067
    %1069 = vmatmul.bf16.gmra.mxu0 %v1000
    %v1070 = vpop.f32.mrf.mxu0
    %v1071 = vadd.f32 %v884, %v1070
    %v1072 = vpop.f32.mrf.mxu0
    %v1073 = vadd.f32 %v884, %v1072
    %1074 = vmatmul.bf16.gmra.mxu0 %v1003
    %v1075 = vpop.f32.mrf.mxu0
    %v1076 = vadd.f32 %v884, %v1075
    %v1077 = vpop.f32.mrf.mxu0
    %v1078 = vadd.f32 %v884, %v1077
    %1079 = vmatmul.bf16.gmra.mxu0 %v1006
    %v1080 = vpop.f32.mrf.mxu0
    %v1081 = vadd.f32 %v884, %v1080
    %v1082 = vpop.f32.mrf.mxu0
    %v1083 = vadd.f32 %v884, %v1082
    %1084 = vmatmul.bf16.gmra.mxu0 %v1009
    %v1085 = vpop.f32.mrf.mxu0
    %v1086 = vadd.f32 %v884, %v1085
    %v1087 = vpop.f32.mrf.mxu0
    %v1088 = vadd.f32 %v884, %v1087
    %1089 = vmatmul.bf16.gmra.mxu0 %v1012
    %v1090 = vpop.f32.mrf.mxu0
    %v1091 = vadd.f32 %v884, %v1090
    %v1092 = vpop.f32.mrf.mxu0
    %v1093 = vadd.f32 %v884, %v1092
    %1094 = vmatmul.bf16.gmra.mxu0 %v1015
    %v1095 = vpop.f32.mrf.mxu0
    %v1096 = vadd.f32 %v884, %v1095
    %v1097 = vpop.f32.mrf.mxu0
    %v1098 = vadd.f32 %v884, %v1097
    %1099 = vmatmul.bf16.gmra.mxu0 %v1018
    %v1100 = vpop.f32.mrf.mxu0
    %v1101 = vadd.f32 %v884, %v1100
    %v1102 = vpop.f32.mrf.mxu0
    %v1103 = vadd.f32 %v884, %v1102
    %1104 = vmatmul.bf16.gmra.mxu0 %v1021
    %v1105 = vpop.f32.mrf.mxu0
    %v1106 = vadd.f32 %v884, %v1105
    %v1107 = vpop.f32.mrf.mxu0
    %v1108 = vadd.f32 %v884, %v1107
    %1109 = vmatmul.bf16.gmra.mxu0 %v1024
    %v1110 = vpop.f32.mrf.mxu0
    %v1111 = vadd.f32 %v884, %v1110
    %v1112 = vpop.f32.mrf.mxu0
    %v1113 = vadd.f32 %v884, %v1112
    %1114 = vdwg.mxu0
    %v1115 = vpack.c.bf16 %v1036, %v1036
    %v1116 = vpack.c.bf16 %v1038, %v1038
    %v1117 = vpack.c.bf16 %v1041, %v1041
    %v1118 = vpack.c.bf16 %v1043, %v1043
    %v1119 = vpack.c.bf16 %v1046, %v1046
    %v1120 = vpack.c.bf16 %v1048, %v1048
    %v1121 = vpack.c.bf16 %v1051, %v1051
    %v1122 = vpack.c.bf16 %v1053, %v1053
    %v1123 = vpack.c.bf16 %v1056, %v1056
    %v1124 = vpack.c.bf16 %v1058, %v1058
    %v1125 = vpack.c.bf16 %v1061, %v1061
    %v1126 = vpack.c.bf16 %v1063, %v1063
    %v1127 = vpack.c.bf16 %v1066, %v1066
    %v1128 = vpack.c.bf16 %v1068, %v1068
    %v1129 = vpack.c.bf16 %v1071, %v1071
    %v1130 = vpack.c.bf16 %v1073, %v1073
    %v1131 = vpack.c.bf16 %v1076, %v1076
    %v1132 = vpack.c.bf16 %v1078, %v1078
    %v1133 = vpack.c.bf16 %v1081, %v1081
    %v1134 = vpack.c.bf16 %v1083, %v1083
    %v1135 = vpack.c.bf16 %v1086, %v1086
    %v1136 = vpack.c.bf16 %v1088, %v1088
    %v1137 = vpack.c.bf16 %v1091, %v1091
    %v1138 = vpack.c.bf16 %v1093, %v1093
    %v1139 = vpack.c.bf16 %v1096, %v1096
    %v1140 = vpack.c.bf16 %v1098, %v1098
    %v1141 = vpack.c.bf16 %v1101, %v1101
    %v1142 = vpack.c.bf16 %v1103, %v1103
    %v1143 = vpack.c.bf16 %v1106, %v1106
    %v1144 = vpack.c.bf16 %v1108, %v1108
    %v1145 = vpack.c.bf16 %v1111, %v1111
    %v1146 = vpack.c.bf16 %v1113, %v1113
    %v1147 = vmul.f32 %v874, 0.35355338
    %v1148 = vmul.f32 %v876, 0.35355338
    %v1149 = vpack.c.bf16 %v1147, %v1147
    %v1150 = vpack.c.bf16 %v1148, %v1148
    %v1167 = vunpack.c.l.b16 %v1115
    %v1168 = vunpack.c.l.b16 %v1116
    %v1169 = vunpack.c.l.b16 %v1117
    %v1170 = vunpack.c.l.b16 %v1118
    %v1171 = vunpack.c.l.b16 %v1119
    %v1172 = vunpack.c.l.b16 %v1120
    %v1173 = vunpack.c.l.b16 %v1121
    %v1174 = vunpack.c.l.b16 %v1122
    %v1175 = vunpack.c.l.b16 %v1123
    %v1176 = vunpack.c.l.b16 %v1124
    %v1177 = vunpack.c.l.b16 %v1125
    %v1178 = vunpack.c.l.b16 %v1126
    %v1179 = vunpack.c.l.b16 %v1127
    %v1180 = vunpack.c.l.b16 %v1128
    %v1181 = vunpack.c.l.b16 %v1129
    %v1182 = vunpack.c.l.b16 %v1130
    %v1183 = vpack.c.b16 %v1168, %v1167
    %v1184 = vpack.c.b16 %v1170, %v1169
    %v1185 = vpack.c.b16 %v1172, %v1171
    %v1186 = vpack.c.b16 %v1174, %v1173
    %v1187 = vpack.c.b16 %v1176, %v1175
    %v1188 = vpack.c.b16 %v1178, %v1177
    %v1189 = vpack.c.b16 %v1180, %v1179
    %v1190 = vpack.c.b16 %v1182, %v1181
    %v1192 = vsel %vm292, %v1149, 0
    %v1195 = vsel %vm292, %v1183, 0
    %v1198 = vsel %vm292, %v1184, 0
    %v1201 = vsel %vm292, %v1185, 0
    %v1204 = vsel %vm292, %v1186, 0
    %v1207 = vsel %vm292, %v1187, 0
    %v1210 = vsel %vm292, %v1188, 0
    %v1213 = vsel %vm292, %v1189, 0
    %v1216 = vsel %vm292, %v1190, 0
    %1218 = vmatpush.bf16.xpose.msra.mxu0 %v1216
    %1219 = vmatpush.bf16.xpose.msra.mxu0 %v1213
    %1220 = vmatpush.bf16.xpose.msra.mxu0 %v1210
    %1221 = vmatpush.bf16.xpose.msra.mxu0 %v1207
    %1222 = vmatpush.bf16.xpose.msra.mxu0 %v1204
    %1223 = vmatpush.bf16.xpose.msra.mxu0 %v1201
    %1224 = vmatpush.bf16.xpose.msra.mxu0 %v1198
    %1225 = vmatpush.bf16.xpose.msra.mxu0 %v1195
    %1226 = vmatmul.bf16.gmra.mxu0 %v1192
    %v1227 = vpop.f32.mrf.mxu0
    %v1228 = vadd.f32 %v177, %v1227
    %v1229 = vpop.f32.mrf.mxu0
    %1230 = vdwg.mxu0
    %v1247 = vunpack.c.l.b16 %v1131
    %v1248 = vunpack.c.l.b16 %v1132
    %v1249 = vunpack.c.l.b16 %v1133
    %v1250 = vunpack.c.l.b16 %v1134
    %v1251 = vunpack.c.l.b16 %v1135
    %v1252 = vunpack.c.l.b16 %v1136
    %v1253 = vunpack.c.l.b16 %v1137
    %v1254 = vunpack.c.l.b16 %v1138
    %v1255 = vunpack.c.l.b16 %v1139
    %v1256 = vunpack.c.l.b16 %v1140
    %v1257 = vunpack.c.l.b16 %v1141
    %v1258 = vunpack.c.l.b16 %v1142
    %v1259 = vunpack.c.l.b16 %v1143
    %v1260 = vunpack.c.l.b16 %v1144
    %v1261 = vunpack.c.l.b16 %v1145
    %v1262 = vunpack.c.l.b16 %v1146
    %v1263 = vpack.c.b16 %v1248, %v1247
    %v1264 = vpack.c.b16 %v1250, %v1249
    %v1265 = vpack.c.b16 %v1252, %v1251
    %v1266 = vpack.c.b16 %v1254, %v1253
    %v1267 = vpack.c.b16 %v1256, %v1255
    %v1268 = vpack.c.b16 %v1258, %v1257
    %v1269 = vpack.c.b16 %v1260, %v1259
    %v1270 = vpack.c.b16 %v1262, %v1261
    %v1272 = vsel %vm292, %v1150, 0
    %v1275 = vsel %vm292, %v1263, 0
    %v1278 = vsel %vm292, %v1264, 0
    %v1281 = vsel %vm292, %v1265, 0
    %v1284 = vsel %vm292, %v1266, 0
    %v1287 = vsel %vm292, %v1267, 0
    %v1290 = vsel %vm292, %v1268, 0
    %v1293 = vsel %vm292, %v1269, 0
    %v1296 = vsel %vm292, %v1270, 0
    %1298 = vmatpush.bf16.xpose.msra.mxu0 %v1296
    %1299 = vmatpush.bf16.xpose.msra.mxu0 %v1293
    %1300 = vmatpush.bf16.xpose.msra.mxu0 %v1290
    %1301 = vmatpush.bf16.xpose.msra.mxu0 %v1287
    %1302 = vmatpush.bf16.xpose.msra.mxu0 %v1284
    %1303 = vmatpush.bf16.xpose.msra.mxu0 %v1281
    %1304 = vmatpush.bf16.xpose.msra.mxu0 %v1278
    %1305 = vmatpush.bf16.xpose.msra.mxu0 %v1275
    %1306 = vmatmul.bf16.gmra.mxu0 %v1272
    %v1307 = vpop.f32.mrf.mxu0
    %v1308 = vadd.f32 %v178, %v1307
    %v1309 = vpop.f32.mrf.mxu0
    %1310 = vdwg.mxu0
    %1311 = vmax.xlane.f32.xlu0 %v1228
    %v1312 = vpop.xlane.xlu0 %1311
    %1313 = vmax.xlane.f32.xlu0 %v1308
    %v1314 = vpop.xlane.xlu0 %1313
    %v1315 = vsub.f32 %v1228, %v1312
    %v1316 = vsub.f32 %v1308, %v1314
    %v1317 = vmul.f32 %v1315, 1.442695
    %v1318 = vpow.pop %v1317
    %v1319 = vmul.f32 %v1316, 1.442695
    %v1320 = vpow.pop %v1319
    %1321 = vadd.xlane.f32.xlu0 %v1318
    %v1322 = vpop.xlane.xlu0 %1321
    %1323 = vadd.xlane.f32.xlu0 %v1320
    %v1324 = vpop.xlane.xlu0 %1323
    %v1325 = vrcp.pop %v1322
    %v1326 = vrcp.pop %v1324
    %v1327 = vmul.f32 %v1318, %v1325
    %v1328 = vmul.f32 %v1320, %v1326
    %v1329 = vpack.c.bf16 %v1327, %v1327
    %v1330 = vpack.c.bf16 %v1328, %v1328
    %1331 = vrot.lane.b32.xlu0 %v1183, 96
    %v1332 = vpop.permute.xlu0 %1331
    %1333 = vrot.lane.b32.xlu0 %v1184, 96
    %v1334 = vpop.permute.xlu0 %1333
    %1335 = vrot.lane.b32.xlu0 %v1185, 96
    %v1336 = vpop.permute.xlu0 %1335
    %1337 = vrot.lane.b32.xlu0 %v1186, 96
    %v1338 = vpop.permute.xlu0 %1337
    %1339 = vrot.lane.b32.xlu0 %v1187, 96
    %v1340 = vpop.permute.xlu0 %1339
    %1341 = vrot.lane.b32.xlu0 %v1188, 96
    %v1342 = vpop.permute.xlu0 %1341
    %1343 = vrot.lane.b32.xlu0 %v1189, 96
    %v1344 = vpop.permute.xlu0 %1343
    %1345 = vrot.lane.b32.xlu0 %v1190, 96
    %v1346 = vpop.permute.xlu0 %1345
    %1355 = vmatpush.bf16.msra.mxu0 %v1346
    %1356 = vmatpush.bf16.msra.mxu0 %v1344
    %1357 = vmatpush.bf16.msra.mxu0 %v1342
    %1358 = vmatpush.bf16.msra.mxu0 %v1340
    %1359 = vmatpush.bf16.msra.mxu0 %v1338
    %1360 = vmatpush.bf16.msra.mxu0 %v1336
    %1361 = vmatpush.bf16.msra.mxu0 %v1334
    %1362 = vmatpush.bf16.msra.mxu0 %v1332
    %1363 = vmatmul.bf16.gmra.mxu0 %v1329
    %v1364 = vpop.f32.mrf.mxu0
    %v1365 = vadd.f32 0.0, %v1364
    %v1366 = vpop.f32.mrf.mxu0
    %1367 = vdwg.mxu0
    %1368 = vrot.lane.b32.xlu0 %v1263, 96
    %v1369 = vpop.permute.xlu0 %1368
    %1370 = vrot.lane.b32.xlu0 %v1264, 96
    %v1371 = vpop.permute.xlu0 %1370
    %1372 = vrot.lane.b32.xlu0 %v1265, 96
    %v1373 = vpop.permute.xlu0 %1372
    %1374 = vrot.lane.b32.xlu0 %v1266, 96
    %v1375 = vpop.permute.xlu0 %1374
    %1376 = vrot.lane.b32.xlu0 %v1267, 96
    %v1377 = vpop.permute.xlu0 %1376
    %1378 = vrot.lane.b32.xlu0 %v1268, 96
    %v1379 = vpop.permute.xlu0 %1378
    %1380 = vrot.lane.b32.xlu0 %v1269, 96
    %v1381 = vpop.permute.xlu0 %1380
    %1382 = vrot.lane.b32.xlu0 %v1270, 96
    %v1383 = vpop.permute.xlu0 %1382
    %1392 = vmatpush.bf16.msra.mxu0 %v1383
    %1393 = vmatpush.bf16.msra.mxu0 %v1381
    %1394 = vmatpush.bf16.msra.mxu0 %v1379
    %1395 = vmatpush.bf16.msra.mxu0 %v1377
    %1396 = vmatpush.bf16.msra.mxu0 %v1375
    %1397 = vmatpush.bf16.msra.mxu0 %v1373
    %1398 = vmatpush.bf16.msra.mxu0 %v1371
    %1399 = vmatpush.bf16.msra.mxu0 %v1369
    %1400 = vmatmul.bf16.gmra.mxu0 %v1330
    %v1401 = vpop.f32.mrf.mxu0
    %v1402 = vadd.f32 0.0, %v1401
    %v1403 = vpop.f32.mrf.mxu0
    %1404 = vdwg.mxu0
    %1405 = vst.msk [vmem:[#allocation2] sm:$0xff] %vm292, %v1365
    %1406 = vst.msk [vmem:[#allocation2 + $0x8] sm:$0xff] %vm292, %v1402
    %v1408 = vunpack.c.l.b16 %v1149
    %v1409 = vpack.c.b16 %v1408, %v1408
    %1410 = vrot.lane.b32.xlu0 %v1409, 120
    %v1411 = vpop.permute.xlu0 %1410
    %1412 = vrot.lane.b32.xlu0 %v1183, 120
    %v1413 = vpop.permute.xlu0 %1412
    %1414 = vrot.lane.b32.xlu0 %v1184, 120
    %v1415 = vpop.permute.xlu0 %1414
    %1416 = vrot.lane.b32.xlu0 %v1185, 120
    %v1417 = vpop.permute.xlu0 %1416
    %1418 = vrot.lane.b32.xlu0 %v1186, 120
    %v1419 = vpop.permute.xlu0 %1418
    %1420 = vrot.lane.b32.xlu0 %v1187, 120
    %v1421 = vpop.permute.xlu0 %1420
    %1422 = vrot.lane.b32.xlu0 %v1188, 120
    %v1423 = vpop.permute.xlu0 %1422
    %1424 = vrot.lane.b32.xlu0 %v1189, 120
    %v1425 = vpop.permute.xlu0 %1424
    %1426 = vrot.lane.b32.xlu0 %v1190, 120
    %v1427 = vpop.permute.xlu0 %1426
    %v1429 = vsel %vm292, %v1411, 0
    %v1432 = vsel %vm292, %v1413, 0
    %v1435 = vsel %vm292, %v1415, 0
    %v1438 = vsel %vm292, %v1417, 0
    %v1441 = vsel %vm292, %v1419, 0
    %v1444 = vsel %vm292, %v1421, 0
    %v1447 = vsel %vm292, %v1423, 0
    %v1450 = vsel %vm292, %v1425, 0
    %v1453 = vsel %vm292, %v1427, 0
    %1455 = vmatpush.bf16.xpose.msra.mxu0 %v1453
    %1456 = vmatpush.bf16.xpose.msra.mxu0 %v1450
    %1457 = vmatpush.bf16.xpose.msra.mxu0 %v1447
    %1458 = vmatpush.bf16.xpose.msra.mxu0 %v1444
    %1459 = vmatpush.bf16.xpose.msra.mxu0 %v1441
    %1460 = vmatpush.bf16.xpose.msra.mxu0 %v1438
    %1461 = vmatpush.bf16.xpose.msra.mxu0 %v1435
    %1462 = vmatpush.bf16.xpose.msra.mxu0 %v1432
    %1463 = vmatmul.bf16.gmra.mxu0 %v1429
    %v1464 = vpop.f32.mrf.mxu0
    %v1465 = vadd.f32 %v177, %v1464
    %v1466 = vpop.f32.mrf.mxu0
    %1467 = vdwg.mxu0
    %v1469 = vunpack.c.l.b16 %v1150
    %v1470 = vpack.c.b16 %v1469, %v1469
    %1471 = vrot.lane.b32.xlu0 %v1470, 120
    %v1472 = vpop.permute.xlu0 %1471
    %1473 = vrot.lane.b32.xlu0 %v1263, 120
    %v1474 = vpop.permute.xlu0 %1473
    %1475 = vrot.lane.b32.xlu0 %v1264, 120
    %v1476 = vpop.permute.xlu0 %1475
    %1477 = vrot.lane.b32.xlu0 %v1265, 120
    %v1478 = vpop.permute.xlu0 %1477
    %1479 = vrot.lane.b32.xlu0 %v1266, 120
    %v1480 = vpop.permute.xlu0 %1479
    %1481 = vrot.lane.b32.xlu0 %v1267, 120
    %v1482 = vpop.permute.xlu0 %1481
    %1483 = vrot.lane.b32.xlu0 %v1268, 120
    %v1484 = vpop.permute.xlu0 %1483
    %1485 = vrot.lane.b32.xlu0 %v1269, 120
    %v1486 = vpop.permute.xlu0 %1485
    %1487 = vrot.lane.b32.xlu0 %v1270, 120
    %v1488 = vpop.permute.xlu0 %1487
    %v1490 = vsel %vm292, %v1472, 0
    %v1493 = vsel %vm292, %v1474, 0
    %v1496 = vsel %vm292, %v1476, 0
    %v1499 = vsel %vm292, %v1478, 0
    %v1502 = vsel %vm292, %v1480, 0
    %v1505 = vsel %vm292, %v1482, 0
    %v1508 = vsel %vm292, %v1484, 0
    %v1511 = vsel %vm292, %v1486, 0
    %v1514 = vsel %vm292, %v1488, 0
    %1516 = vmatpush.bf16.xpose.msra.mxu0 %v1514
    %1517 = vmatpush.bf16.xpose.msra.mxu0 %v1511
    %1518 = vmatpush.bf16.xpose.msra.mxu0 %v1508
    %1519 = vmatpush.bf16.xpose.msra.mxu0 %v1505
    %1520 = vmatpush.bf16.xpose.msra.mxu0 %v1502
    %1521 = vmatpush.bf16.xpose.msra.mxu0 %v1499
    %1522 = vmatpush.bf16.xpose.msra.mxu0 %v1496
    %1523 = vmatpush.bf16.xpose.msra.mxu0 %v1493
    %1524 = vmatmul.bf16.gmra.mxu0 %v1490
    %v1525 = vpop.f32.mrf.mxu0
    %v1526 = vadd.f32 %v178, %v1525
    %v1527 = vpop.f32.mrf.mxu0
    %1528 = vdwg.mxu0
    %1529 = vmax.xlane.f32.xlu0 %v1465
    %v1530 = vpop.xlane.xlu0 %1529
    %1531 = vmax.xlane.f32.xlu0 %v1526
    %v1532 = vpop.xlane.xlu0 %1531
    %v1533 = vsub.f32 %v1465, %v1530
    %v1534 = vsub.f32 %v1526, %v1532
    %v1535 = vmul.f32 %v1533, 1.442695
    %v1536 = vpow.pop %v1535
    %v1537 = vmul.f32 %v1534, 1.442695
    %v1538 = vpow.pop %v1537
    %1539 = vadd.xlane.f32.xlu0 %v1536
    %v1540 = vpop.xlane.xlu0 %1539
    %1541 = vadd.xlane.f32.xlu0 %v1538
    %v1542 = vpop.xlane.xlu0 %1541
    %v1543 = vrcp.pop %v1540
    %v1544 = vrcp.pop %v1542
    %v1545 = vmul.f32 %v1536, %v1543
    %v1546 = vmul.f32 %v1538, %v1544
    %v1547 = vpack.c.bf16 %v1545, %v1545
    %v1548 = vpack.c.bf16 %v1546, %v1546
    %1549 = vrot.lane.b32.xlu0 %v1183, 88
    %v1550 = vpop.permute.xlu0 %1549
    %1551 = vrot.lane.b32.xlu0 %v1184, 88
    %v1552 = vpop.permute.xlu0 %1551
    %1553 = vrot.lane.b32.xlu0 %v1185, 88
    %v1554 = vpop.permute.xlu0 %1553
    %1555 = vrot.lane.b32.xlu0 %v1186, 88
    %v1556 = vpop.permute.xlu0 %1555
    %1557 = vrot.lane.b32.xlu0 %v1187, 88
    %v1558 = vpop.permute.xlu0 %1557
    %1559 = vrot.lane.b32.xlu0 %v1188, 88
    %v1560 = vpop.permute.xlu0 %1559
    %1561 = vrot.lane.b32.xlu0 %v1189, 88
    %v1562 = vpop.permute.xlu0 %1561
    %1563 = vrot.lane.b32.xlu0 %v1190, 88
    %v1564 = vpop.permute.xlu0 %1563
    %1573 = vmatpush.bf16.msra.mxu0 %v1564
    %1574 = vmatpush.bf16.msra.mxu0 %v1562
    %1575 = vmatpush.bf16.msra.mxu0 %v1560
    %1576 = vmatpush.bf16.msra.mxu0 %v1558
    %1577 = vmatpush.bf16.msra.mxu0 %v1556
    %1578 = vmatpush.bf16.msra.mxu0 %v1554
    %1579 = vmatpush.bf16.msra.mxu0 %v1552
    %1580 = vmatpush.bf16.msra.mxu0 %v1550
    %1581 = vmatmul.bf16.gmra.mxu0 %v1547
    %v1582 = vpop.f32.mrf.mxu0
    %v1583 = vadd.f32 0.0, %v1582
    %v1584 = vpop.f32.mrf.mxu0
    %1585 = vdwg.mxu0
    %1586 = vrot.lane.b32.xlu0 %v1263, 88
    %v1587 = vpop.permute.xlu0 %1586
    %1588 = vrot.lane.b32.xlu0 %v1264, 88
    %v1589 = vpop.permute.xlu0 %1588
    %1590 = vrot.lane.b32.xlu0 %v1265, 88
    %v1591 = vpop.permute.xlu0 %1590
    %1592 = vrot.lane.b32.xlu0 %v1266, 88
    %v1593 = vpop.permute.xlu0 %1592
    %1594 = vrot.lane.b32.xlu0 %v1267, 88
    %v1595 = vpop.permute.xlu0 %1594
    %1596 = vrot.lane.b32.xlu0 %v1268, 88
    %v1597 = vpop.permute.xlu0 %1596
    %1598 = vrot.lane.b32.xlu0 %v1269, 88
    %v1599 = vpop.permute.xlu0 %1598
    %1600 = vrot.lane.b32.xlu0 %v1270, 88
    %v1601 = vpop.permute.xlu0 %1600
    %1610 = vmatpush.bf16.msra.mxu0 %v1601
    %1611 = vmatpush.bf16.msra.mxu0 %v1599
    %1612 = vmatpush.bf16.msra.mxu0 %v1597
    %1613 = vmatpush.bf16.msra.mxu0 %v1595
    %1614 = vmatpush.bf16.msra.mxu0 %v1593
    %1615 = vmatpush.bf16.msra.mxu0 %v1591
    %1616 = vmatpush.bf16.msra.mxu0 %v1589
    %1617 = vmatpush.bf16.msra.mxu0 %v1587
    %1618 = vmatmul.bf16.gmra.mxu0 %v1548
    %v1619 = vpop.f32.mrf.mxu0
    %v1620 = vadd.f32 0.0, %v1619
    %v1621 = vpop.f32.mrf.mxu0
    %1622 = vdwg.mxu0
    %1625 = vrot.lane.b32.xlu0 %v1583, 8
    %v1626 = vpop.permute.xlu0 %1625
    %1627 = vrot.lane.b32.xlu0 %v1620, 8
    %v1628 = vpop.permute.xlu0 %1627
    %1631 = vst.msk [vmem:[#allocation2] sm:$0xff] %vm531, %v1626
    %1632 = vst.msk [vmem:[#allocation2 + $0x8] sm:$0xff] %vm531, %v1628
    %1633 = vrot.lane.b32.xlu0 %v1409, 112
    %v1634 = vpop.permute.xlu0 %1633
    %1635 = vrot.lane.b32.xlu0 %v1183, 112
    %v1636 = vpop.permute.xlu0 %1635
    %1637 = vrot.lane.b32.xlu0 %v1184, 112
    %v1638 = vpop.permute.xlu0 %1637
    %1639 = vrot.lane.b32.xlu0 %v1185, 112
    %v1640 = vpop.permute.xlu0 %1639
    %1641 = vrot.lane.b32.xlu0 %v1186, 112
    %v1642 = vpop.permute.xlu0 %1641
    %1643 = vrot.lane.b32.xlu0 %v1187, 112
    %v1644 = vpop.permute.xlu0 %1643
    %1645 = vrot.lane.b32.xlu0 %v1188, 112
    %v1646 = vpop.permute.xlu0 %1645
    %1647 = vrot.lane.b32.xlu0 %v1189, 112
    %v1648 = vpop.permute.xlu0 %1647
    %1649 = vrot.lane.b32.xlu0 %v1190, 112
    %v1650 = vpop.permute.xlu0 %1649
    %v1652 = vsel %vm292, %v1634, 0
    %v1655 = vsel %vm292, %v1636, 0
    %v1658 = vsel %vm292, %v1638, 0
    %v1661 = vsel %vm292, %v1640, 0
    %v1664 = vsel %vm292, %v1642, 0
    %v1667 = vsel %vm292, %v1644, 0
    %v1670 = vsel %vm292, %v1646, 0
    %v1673 = vsel %vm292, %v1648, 0
    %v1676 = vsel %vm292, %v1650, 0
    %1678 = vmatpush.bf16.xpose.msra.mxu0 %v1676
    %1679 = vmatpush.bf16.xpose.msra.mxu0 %v1673
    %1680 = vmatpush.bf16.xpose.msra.mxu0 %v1670
    %1681 = vmatpush.bf16.xpose.msra.mxu0 %v1667
    %1682 = vmatpush.bf16.xpose.msra.mxu0 %v1664
    %1683 = vmatpush.bf16.xpose.msra.mxu0 %v1661
    %1684 = vmatpush.bf16.xpose.msra.mxu0 %v1658
    %1685 = vmatpush.bf16.xpose.msra.mxu0 %v1655
    %1686 = vmatmul.bf16.gmra.mxu0 %v1652
    %v1687 = vpop.f32.mrf.mxu0
    %v1688 = vadd.f32 %v177, %v1687
    %v1689 = vpop.f32.mrf.mxu0
    %1690 = vdwg.mxu0
    %1691 = vrot.lane.b32.xlu0 %v1470, 112
    %v1692 = vpop.permute.xlu0 %1691
    %1693 = vrot.lane.b32.xlu0 %v1263, 112
    %v1694 = vpop.permute.xlu0 %1693
    %1695 = vrot.lane.b32.xlu0 %v1264, 112
    %v1696 = vpop.permute.xlu0 %1695
    %1697 = vrot.lane.b32.xlu0 %v1265, 112
    %v1698 = vpop.permute.xlu0 %1697
    %1699 = vrot.lane.b32.xlu0 %v1266, 112
    %v1700 = vpop.permute.xlu0 %1699
    %1701 = vrot.lane.b32.xlu0 %v1267, 112
    %v1702 = vpop.permute.xlu0 %1701
    %1703 = vrot.lane.b32.xlu0 %v1268, 112
    %v1704 = vpop.permute.xlu0 %1703
    %1705 = vrot.lane.b32.xlu0 %v1269, 112
    %v1706 = vpop.permute.xlu0 %1705
    %1707 = vrot.lane.b32.xlu0 %v1270, 112
    %v1708 = vpop.permute.xlu0 %1707
    %v1710 = vsel %vm292, %v1692, 0
    %v1713 = vsel %vm292, %v1694, 0
    %v1716 = vsel %vm292, %v1696, 0
    %v1719 = vsel %vm292, %v1698, 0
    %v1722 = vsel %vm292, %v1700, 0
    %v1725 = vsel %vm292, %v1702, 0
    %v1728 = vsel %vm292, %v1704, 0
    %v1731 = vsel %vm292, %v1706, 0
    %v1734 = vsel %vm292, %v1708, 0
    %1736 = vmatpush.bf16.xpose.msra.mxu0 %v1734
    %1737 = vmatpush.bf16.xpose.msra.mxu0 %v1731
    %1738 = vmatpush.bf16.xpose.msra.mxu0 %v1728
    %1739 = vmatpush.bf16.xpose.msra.mxu0 %v1725
    %1740 = vmatpush.bf16.xpose.msra.mxu0 %v1722
    %1741 = vmatpush.bf16.xpose.msra.mxu0 %v1719
    %1742 = vmatpush.bf16.xpose.msra.mxu0 %v1716
    %1743 = vmatpush.bf16.xpose.msra.mxu0 %v1713
    %1744 = vmatmul.bf16.gmra.mxu0 %v1710
    %v1745 = vpop.f32.mrf.mxu0
    %v1746 = vadd.f32 %v178, %v1745
    %v1747 = vpop.f32.mrf.mxu0
    %1748 = vdwg.mxu0
    %1749 = vmax.xlane.f32.xlu0 %v1688
    %v1750 = vpop.xlane.xlu0 %1749
    %1751 = vmax.xlane.f32.xlu0 %v1746
    %v1752 = vpop.xlane.xlu0 %1751
    %v1753 = vsub.f32 %v1688, %v1750
    %v1754 = vsub.f32 %v1746, %v1752
    %v1755 = vmul.f32 %v1753, 1.442695
    %v1756 = vpow.pop %v1755
    %v1757 = vmul.f32 %v1754, 1.442695
    %v1758 = vpow.pop %v1757
    %1759 = vadd.xlane.f32.xlu0 %v1756
    %v1760 = vpop.xlane.xlu0 %1759
    %1761 = vadd.xlane.f32.xlu0 %v1758
    %v1762 = vpop.xlane.xlu0 %1761
    %v1763 = vrcp.pop %v1760
    %v1764 = vrcp.pop %v1762
    %v1765 = vmul.f32 %v1756, %v1763
    %v1766 = vmul.f32 %v1758, %v1764
    %v1767 = vpack.c.bf16 %v1765, %v1765
    %v1768 = vpack.c.bf16 %v1766, %v1766
    %1769 = vrot.lane.b32.xlu0 %v1183, 80
    %v1770 = vpop.permute.xlu0 %1769
    %1771 = vrot.lane.b32.xlu0 %v1184, 80
    %v1772 = vpop.permute.xlu0 %1771
    %1773 = vrot.lane.b32.xlu0 %v1185, 80
    %v1774 = vpop.permute.xlu0 %1773
    %1775 = vrot.lane.b32.xlu0 %v1186, 80
    %v1776 = vpop.permute.xlu0 %1775
    %1777 = vrot.lane.b32.xlu0 %v1187, 80
    %v1778 = vpop.permute.xlu0 %1777
    %1779 = vrot.lane.b32.xlu0 %v1188, 80
    %v1780 = vpop.permute.xlu0 %1779
    %1781 = vrot.lane.b32.xlu0 %v1189, 80
    %v1782 = vpop.permute.xlu0 %1781
    %1783 = vrot.lane.b32.xlu0 %v1190, 80
    %v1784 = vpop.permute.xlu0 %1783
    %1793 = vmatpush.bf16.msra.mxu0 %v1784
    %1794 = vmatpush.bf16.msra.mxu0 %v1782
    %1795 = vmatpush.bf16.msra.mxu0 %v1780
    %1796 = vmatpush.bf16.msra.mxu0 %v1778
    %1797 = vmatpush.bf16.msra.mxu0 %v1776
    %1798 = vmatpush.bf16.msra.mxu0 %v1774
    %1799 = vmatpush.bf16.msra.mxu0 %v1772
    %1800 = vmatpush.bf16.msra.mxu0 %v1770
    %1801 = vmatmul.bf16.gmra.mxu0 %v1767
    %v1802 = vpop.f32.mrf.mxu0
    %v1803 = vadd.f32 0.0, %v1802
    %v1804 = vpop.f32.mrf.mxu0
    %1805 = vdwg.mxu0
    %1806 = vrot.lane.b32.xlu0 %v1263, 80
    %v1807 = vpop.permute.xlu0 %1806
    %1808 = vrot.lane.b32.xlu0 %v1264, 80
    %v1809 = vpop.permute.xlu0 %1808
    %1810 = vrot.lane.b32.xlu0 %v1265, 80
    %v1811 = vpop.permute.xlu0 %1810
    %1812 = vrot.lane.b32.xlu0 %v1266, 80
    %v1813 = vpop.permute.xlu0 %1812
    %1814 = vrot.lane.b32.xlu0 %v1267, 80
    %v1815 = vpop.permute.xlu0 %1814
    %1816 = vrot.lane.b32.xlu0 %v1268, 80
    %v1817 = vpop.permute.xlu0 %1816
    %1818 = vrot.lane.b32.xlu0 %v1269, 80
    %v1819 = vpop.permute.xlu0 %1818
    %1820 = vrot.lane.b32.xlu0 %v1270, 80
    %v1821 = vpop.permute.xlu0 %1820
    %1830 = vmatpush.bf16.msra.mxu0 %v1821
    %1831 = vmatpush.bf16.msra.mxu0 %v1819
    %1832 = vmatpush.bf16.msra.mxu0 %v1817
    %1833 = vmatpush.bf16.msra.mxu0 %v1815
    %1834 = vmatpush.bf16.msra.mxu0 %v1813
    %1835 = vmatpush.bf16.msra.mxu0 %v1811
    %1836 = vmatpush.bf16.msra.mxu0 %v1809
    %1837 = vmatpush.bf16.msra.mxu0 %v1807
    %1838 = vmatmul.bf16.gmra.mxu0 %v1768
    %v1839 = vpop.f32.mrf.mxu0
    %v1840 = vadd.f32 0.0, %v1839
    %v1841 = vpop.f32.mrf.mxu0
    %1842 = vdwg.mxu0
    %1845 = vrot.lane.b32.xlu0 %v1803, 16
    %v1846 = vpop.permute.xlu0 %1845
    %1847 = vrot.lane.b32.xlu0 %v1840, 16
    %v1848 = vpop.permute.xlu0 %1847
    %1851 = vst.msk [vmem:[#allocation2] sm:$0xff] %vm654, %v1846
    %1852 = vst.msk [vmem:[#allocation2 + $0x8] sm:$0xff] %vm654, %v1848
    %1853 = vrot.lane.b32.xlu0 %v1409, 104
    %v1854 = vpop.permute.xlu0 %1853
    %1855 = vrot.lane.b32.xlu0 %v1183, 104
    %v1856 = vpop.permute.xlu0 %1855
    %1857 = vrot.lane.b32.xlu0 %v1184, 104
    %v1858 = vpop.permute.xlu0 %1857
    %1859 = vrot.lane.b32.xlu0 %v1185, 104
    %v1860 = vpop.permute.xlu0 %1859
    %1861 = vrot.lane.b32.xlu0 %v1186, 104
    %v1862 = vpop.permute.xlu0 %1861
    %1863 = vrot.lane.b32.xlu0 %v1187, 104
    %v1864 = vpop.permute.xlu0 %1863
    %1865 = vrot.lane.b32.xlu0 %v1188, 104
    %v1866 = vpop.permute.xlu0 %1865
    %1867 = vrot.lane.b32.xlu0 %v1189, 104
    %v1868 = vpop.permute.xlu0 %1867
    %1869 = vrot.lane.b32.xlu0 %v1190, 104
    %v1870 = vpop.permute.xlu0 %1869
    %v1872 = vsel %vm292, %v1854, 0
    %v1875 = vsel %vm292, %v1856, 0
    %v1878 = vsel %vm292, %v1858, 0
    %v1881 = vsel %vm292, %v1860, 0
    %v1884 = vsel %vm292, %v1862, 0
    %v1887 = vsel %vm292, %v1864, 0
    %v1890 = vsel %vm292, %v1866, 0
    %v1893 = vsel %vm292, %v1868, 0
    %v1896 = vsel %vm292, %v1870, 0
    %1898 = vmatpush.bf16.xpose.msra.mxu0 %v1896
    %1899 = vmatpush.bf16.xpose.msra.mxu0 %v1893
    %1900 = vmatpush.bf16.xpose.msra.mxu0 %v1890
    %1901 = vmatpush.bf16.xpose.msra.mxu0 %v1887
    %1902 = vmatpush.bf16.xpose.msra.mxu0 %v1884
    %1903 = vmatpush.bf16.xpose.msra.mxu0 %v1881
    %1904 = vmatpush.bf16.xpose.msra.mxu0 %v1878
    %1905 = vmatpush.bf16.xpose.msra.mxu0 %v1875
    %1906 = vmatmul.bf16.gmra.mxu0 %v1872
    %v1907 = vpop.f32.mrf.mxu0
    %v1908 = vadd.f32 %v177, %v1907
    %v1909 = vpop.f32.mrf.mxu0
    %1910 = vdwg.mxu0
    %1911 = vrot.lane.b32.xlu0 %v1470, 104
    %v1912 = vpop.permute.xlu0 %1911
    %1913 = vrot.lane.b32.xlu0 %v1263, 104
    %v1914 = vpop.permute.xlu0 %1913
    %1915 = vrot.lane.b32.xlu0 %v1264, 104
    %v1916 = vpop.permute.xlu0 %1915
    %1917 = vrot.lane.b32.xlu0 %v1265, 104
    %v1918 = vpop.permute.xlu0 %1917
    %1919 = vrot.lane.b32.xlu0 %v1266, 104
    %v1920 = vpop.permute.xlu0 %1919
    %1921 = vrot.lane.b32.xlu0 %v1267, 104
    %v1922 = vpop.permute.xlu0 %1921
    %1923 = vrot.lane.b32.xlu0 %v1268, 104
    %v1924 = vpop.permute.xlu0 %1923
    %1925 = vrot.lane.b32.xlu0 %v1269, 104
    %v1926 = vpop.permute.xlu0 %1925
    %1927 = vrot.lane.b32.xlu0 %v1270, 104
    %v1928 = vpop.permute.xlu0 %1927
    %v1930 = vsel %vm292, %v1912, 0
    %v1933 = vsel %vm292, %v1914, 0
    %v1936 = vsel %vm292, %v1916, 0
    %v1939 = vsel %vm292, %v1918, 0
    %v1942 = vsel %vm292, %v1920, 0
    %v1945 = vsel %vm292, %v1922, 0
    %v1948 = vsel %vm292, %v1924, 0
    %v1951 = vsel %vm292, %v1926, 0
    %v1954 = vsel %vm292, %v1928, 0
    %1956 = vmatpush.bf16.xpose.msra.mxu0 %v1954
    %1957 = vmatpush.bf16.xpose.msra.mxu0 %v1951
    %1958 = vmatpush.bf16.xpose.msra.mxu0 %v1948
    %1959 = vmatpush.bf16.xpose.msra.mxu0 %v1945
    %1960 = vmatpush.bf16.xpose.msra.mxu0 %v1942
    %1961 = vmatpush.bf16.xpose.msra.mxu0 %v1939
    %1962 = vmatpush.bf16.xpose.msra.mxu0 %v1936
    %1963 = vmatpush.bf16.xpose.msra.mxu0 %v1933
    %1964 = vmatmul.bf16.gmra.mxu0 %v1930
    %v1965 = vpop.f32.mrf.mxu0
    %v1966 = vadd.f32 %v178, %v1965
    %v1967 = vpop.f32.mrf.mxu0
    %1968 = vdwg.mxu0
    %1969 = vmax.xlane.f32.xlu0 %v1908
    %v1970 = vpop.xlane.xlu0 %1969
    %1971 = vmax.xlane.f32.xlu0 %v1966
    %v1972 = vpop.xlane.xlu0 %1971
    %v1973 = vsub.f32 %v1908, %v1970
    %v1974 = vsub.f32 %v1966, %v1972
    %v1975 = vmul.f32 %v1973, 1.442695
    %v1976 = vpow.pop %v1975
    %v1977 = vmul.f32 %v1974, 1.442695
    %v1978 = vpow.pop %v1977
    %1979 = vadd.xlane.f32.xlu0 %v1976
    %v1980 = vpop.xlane.xlu0 %1979
    %1981 = vadd.xlane.f32.xlu0 %v1978
    %v1982 = vpop.xlane.xlu0 %1981
    %v1983 = vrcp.pop %v1980
    %v1984 = vrcp.pop %v1982
    %v1985 = vmul.f32 %v1976, %v1983
    %v1986 = vmul.f32 %v1978, %v1984
    %v1987 = vpack.c.bf16 %v1985, %v1985
    %v1988 = vpack.c.bf16 %v1986, %v1986
    %1989 = vrot.lane.b32.xlu0 %v1183, 72
    %v1990 = vpop.permute.xlu0 %1989
    %1991 = vrot.lane.b32.xlu0 %v1184, 72
    %v1992 = vpop.permute.xlu0 %1991
    %1993 = vrot.lane.b32.xlu0 %v1185, 72
    %v1994 = vpop.permute.xlu0 %1993
    %1995 = vrot.lane.b32.xlu0 %v1186, 72
    %v1996 = vpop.permute.xlu0 %1995
    %1997 = vrot.lane.b32.xlu0 %v1187, 72
    %v1998 = vpop.permute.xlu0 %1997
    %1999 = vrot.lane.b32.xlu0 %v1188, 72
    %v2000 = vpop.permute.xlu0 %1999
    %2001 = vrot.lane.b32.xlu0 %v1189, 72
    %v2002 = vpop.permute.xlu0 %2001
    %2003 = vrot.lane.b32.xlu0 %v1190, 72
    %v2004 = vpop.permute.xlu0 %2003
    %2013 = vmatpush.bf16.msra.mxu0 %v2004
    %2014 = vmatpush.bf16.msra.mxu0 %v2002
    %2015 = vmatpush.bf16.msra.mxu0 %v2000
    %2016 = vmatpush.bf16.msra.mxu0 %v1998
    %2017 = vmatpush.bf16.msra.mxu0 %v1996
    %2018 = vmatpush.bf16.msra.mxu0 %v1994
    %2019 = vmatpush.bf16.msra.mxu0 %v1992
    %2020 = vmatpush.bf16.msra.mxu0 %v1990
    %2021 = vmatmul.bf16.gmra.mxu0 %v1987
    %v2022 = vpop.f32.mrf.mxu0
    %v2023 = vadd.f32 0.0, %v2022
    %v2024 = vpop.f32.mrf.mxu0
    %2025 = vdwg.mxu0
    %2026 = vrot.lane.b32.xlu0 %v1263, 72
    %v2027 = vpop.permute.xlu0 %2026
    %2028 = vrot.lane.b32.xlu0 %v1264, 72
    %v2029 = vpop.permute.xlu0 %2028
    %2030 = vrot.lane.b32.xlu0 %v1265, 72
    %v2031 = vpop.permute.xlu0 %2030
    %2032 = vrot.lane.b32.xlu0 %v1266, 72
    %v2033 = vpop.permute.xlu0 %2032
    %2034 = vrot.lane.b32.xlu0 %v1267, 72
    %v2035 = vpop.permute.xlu0 %2034
    %2036 = vrot.lane.b32.xlu0 %v1268, 72
    %v2037 = vpop.permute.xlu0 %2036
    %2038 = vrot.lane.b32.xlu0 %v1269, 72
    %v2039 = vpop.permute.xlu0 %2038
    %2040 = vrot.lane.b32.xlu0 %v1270, 72
    %v2041 = vpop.permute.xlu0 %2040
    %2050 = vmatpush.bf16.msra.mxu0 %v2041
    %2051 = vmatpush.bf16.msra.mxu0 %v2039
    %2052 = vmatpush.bf16.msra.mxu0 %v2037
    %2053 = vmatpush.bf16.msra.mxu0 %v2035
    %2054 = vmatpush.bf16.msra.mxu0 %v2033
    %2055 = vmatpush.bf16.msra.mxu0 %v2031
    %2056 = vmatpush.bf16.msra.mxu0 %v2029
    %2057 = vmatpush.bf16.msra.mxu0 %v2027
    %2058 = vmatmul.bf16.gmra.mxu0 %v1988
    %v2059 = vpop.f32.mrf.mxu0
    %v2060 = vadd.f32 0.0, %v2059
    %v2061 = vpop.f32.mrf.mxu0
    %2062 = vdwg.mxu0
    %2065 = vrot.lane.b32.xlu0 %v2023, 24
    %v2066 = vpop.permute.xlu0 %2065
    %2067 = vrot.lane.b32.xlu0 %v2060, 24
    %v2068 = vpop.permute.xlu0 %2067
    %2071 = vst.msk [vmem:[#allocation2] sm:$0xff] %vm777, %v2066
    %2072 = vst.msk [vmem:[#allocation2 + $0x8] sm:$0xff] %vm777, %v2068
    %v2073 = vld [vmem:[#allocation2] sm:$0xff]
    %v2074 = vld [vmem:[#allocation2 + $0x8] sm:$0xff]
    %v2075 = vadd.f32 %v782, %v2073
    %v2076 = vadd.f32 %v783, %v2074
    %v2077 = vld [vmem:[%s14] sm:$0x1]
    %v2078 = vld [vmem:[%s15] sm:$0x1]
    %v2079 = vsel %vm181, %v2075, 0.0
    %2080 = vadd.xlane.f32.xlu0 %v2079
    %v2081 = vpop.xlane.xlu0 %2080
    %v2082 = vsel %vm181, %v2076, 0.0
    %2083 = vadd.xlane.f32.xlu0 %v2082
    %v2084 = vpop.xlane.xlu0 %2083
    %v2085 = vmul.f32 %v2081, %v194
    %v2086 = vmul.f32 %v2084, %v194
    %v2087 = vsub.f32 %v2075, %v2085
    %v2088 = vsub.f32 %v2076, %v2086
    %v2089 = vmul.f32 %v2087, %v2087
    %v2090 = vmul.f32 %v2088, %v2088
    %v2091 = vsel %vm181, %v2089, 0.0
    %2092 = vadd.xlane.f32.xlu0 %v2091
    %v2093 = vpop.xlane.xlu0 %2092
    %v2094 = vsel %vm181, %v2090, 0.0
    %2095 = vadd.xlane.f32.xlu0 %v2094
    %v2096 = vpop.xlane.xlu0 %2095
    %v2097 = vmul.f32 %v2093, %v194
    %v2098 = vmul.f32 %v2096, %v194
    %v2099 = vadd.f32 %v2097, 1e-05
    %v2100 = vadd.f32 %v2098, 1e-05
    %v2101 = vrsqrt.pop %v2099
    %v2102 = vmul.f32 %v2101, %v2099
    %v2103 = vmul.f32 %v2102, %v2101
    %v2104 = vmul.f32 0.5, %v2103
    %v2105 = vsub.f32 1.5, %v2104
    %v2106 = vmul.f32 %v2101, %v2105
    %vm2107 = vweird.f32 %v2099
    %vm2108 = vweird.f32 %v2101
    %vm2109 = vmor %vm2107, %vm2108
    %v2110 = vsel %vm2109, %v2101, %v2106
    %v2111 = vrsqrt.pop %v2100
    %v2112 = vmul.f32 %v2111, %v2100
    %v2113 = vmul.f32 %v2112, %v2111
    %v2114 = vmul.f32 0.5, %v2113
    %v2115 = vsub.f32 1.5, %v2114
    %v2116 = vmul.f32 %v2111, %v2115
    %vm2117 = vweird.f32 %v2100
    %vm2118 = vweird.f32 %v2111
    %vm2119 = vmor %vm2117, %vm2118
    %v2120 = vsel %vm2119, %v2111, %v2116
    %v2121 = vmul.f32 %v2087, %v2110
    %v2122 = vmul.f32 %v2088, %v2120
    %v2124 = vperm.slane %v2077, 0
    %v2126 = vmul.f32 %v2121, %v2124
    %v2127 = vmul.f32 %v2122, %v2124
    %v2129 = vperm.slane %v2078, 0
    %v2131 = vadd.f32 %v2126, %v2129
    %v2132 = vadd.f32 %v2127, %v2129
    %v2133 = vpack.c.bf16 %v2132, %v2131
    %v2134 = vld [vmem:[%s16] sm:$0xf]
    %v2135 = vld [vmem:[%s16 + $0x4] sm:$0xf]
    %v2136 = vld [vmem:[%s16 + $0x8] sm:$0xf]
    %v2137 = vld [vmem:[%s16 + $0xc] sm:$0xf]
    %v2138 = vld [vmem:[%s17] sm:$0x1]
    %v2140 = vperm.slane %v2138, 0
    %v2146 = vunpack.c.l.b16 %v2134
    %v2147 = vunpack.c.l.b16 %v2135
    %v2148 = vunpack.c.l.b16 %v2136
    %v2149 = vunpack.c.l.b16 %v2137
    %v2150 = vpack.c.b16 %v2147, %v2146
    %v2151 = vpack.c.b16 %v2149, %v2148
    %v2155 = vsel %vm181, %v2133, 0
    %2157 = vmatpush.bf16.msra.mxu0 0
    %2158 = vmatpush.bf16.msra.mxu0 0
    %2159 = vmatpush.bf16.msra.mxu0 0
    %2160 = vmatpush.bf16.msra.mxu0 0
    %2161 = vmatpush.bf16.msra.mxu0 0
    %2162 = vmatpush.bf16.msra.mxu0 0
    %2163 = vmatpush.bf16.msra.mxu0 %v2151
    %2164 = vmatpush.bf16.msra.mxu0 %v2150
    %2165 = vmatmul.bf16.gmra.mxu0 %v2155
    %v2166 = vpop.f32.mrf.mxu0
    %v2167 = vadd.f32 %v2140, %v2166
    %v2168 = vpop.f32.mrf.mxu0
    %v2169 = vadd.f32 %v2140, %v2168
    %2170 = vdwg.mxu0
    %v2171 = vmax.f32 %v2167, 0.0
    %v2172 = vmax.f32 %v2169, 0.0
    %v2173 = vpack.c.bf16 %v2172, %v2171
    %v2174 = vld [vmem:[%s18] sm:$0xf]
    %v2175 = vld [vmem:[%s18 + $0x4] sm:$0xf]
    %v2176 = vld [vmem:[%s18 + $0x8] sm:$0xf]
    %v2177 = vld [vmem:[%s18 + $0xc] sm:$0xf]
    %v2178 = vld [vmem:[%s18 + $0x10] sm:$0xf]
    %v2179 = vld [vmem:[%s18 + $0x14] sm:$0xf]
    %v2180 = vld [vmem:[%s18 + $0x18] sm:$0xf]
    %v2181 = vld [vmem:[%s18 + $0x1c] sm:$0xf]
    %v2190 = vunpack.c.l.b16 %v2174
    %v2191 = vunpack.c.l.b16 %v2175
    %v2192 = vunpack.c.l.b16 %v2176
    %v2193 = vunpack.c.l.b16 %v2177
    %v2194 = vunpack.c.l.b16 %v2178
    %v2195 = vunpack.c.l.b16 %v2179
    %v2196 = vunpack.c.l.b16 %v2180
    %v2197 = vunpack.c.l.b16 %v2181
    %v2198 = vpack.c.b16 %v2191, %v2190
    %v2199 = vpack.c.b16 %v2193, %v2192
    %v2200 = vpack.c.b16 %v2195, %v2194
    %v2201 = vpack.c.b16 %v2197, %v2196
    %vm2206 = vcmask 523264
    %v2208 = vsel %vm2206, %v2173, 0
    %2210 = vmatpush.bf16.msra.mxu0 0
    %2211 = vmatpush.bf16.msra.mxu0 0
    %2212 = vmatpush.bf16.msra.mxu0 0
    %2213 = vmatpush.bf16.msra.mxu0 0
    %2214 = vmatpush.bf16.msra.mxu0 %v2201
    %2215 = vmatpush.bf16.msra.mxu0 %v2200
    %2216 = vmatpush.bf16.msra.mxu0 %v2199
    %2217 = vmatpush.bf16.msra.mxu0 %v2198
    %2218 = vmatmul.bf16.gmra.mxu0 %v2208
    %v2219 = vpop.f32.mrf.mxu0
    %v2220 = vadd.f32 0.0, %v2219
    %v2221 = vpop.f32.mrf.mxu0
    %v2222 = vadd.f32 0.0, %v2221
    %2223 = vdwg.mxu0
    %v2224 = vadd.f32 %v2075, %v2220
    %v2225 = vadd.f32 %v2076, %v2222
    %v2226 = vld [vmem:[%s19] sm:$0x1]
    %v2228 = vperm.slane %v2226, 0
    %v2230 = vadd.f32 %v2224, %v2228
    %v2231 = vadd.f32 %v2225, %v2228
    %s2232 = scalar_lea.vmem %s4, 1
    %v2233 = vld [vmem:[%s2232] sm:$0x1]
    %s2234 = scalar_lea.vmem %s5, 1
    %v2235 = vld [vmem:[%s2234] sm:$0x1]
    %v2236 = vsel %vm181, %v2230, 0.0
    %2237 = vadd.xlane.f32.xlu0 %v2236
    %v2238 = vpop.xlane.xlu0 %2237
    %v2239 = vsel %vm181, %v2231, 0.0
    %2240 = vadd.xlane.f32.xlu0 %v2239
    %v2241 = vpop.xlane.xlu0 %2240
    %v2242 = vmul.f32 %v2238, %v194
    %v2243 = vmul.f32 %v2241, %v194
    %v2244 = vsub.f32 %v2230, %v2242
    %v2245 = vsub.f32 %v2231, %v2243
    %v2246 = vmul.f32 %v2244, %v2244
    %v2247 = vmul.f32 %v2245, %v2245
    %v2248 = vsel %vm181, %v2246, 0.0
    %2249 = vadd.xlane.f32.xlu0 %v2248
    %v2250 = vpop.xlane.xlu0 %2249
    %v2251 = vsel %vm181, %v2247, 0.0
    %2252 = vadd.xlane.f32.xlu0 %v2251
    %v2253 = vpop.xlane.xlu0 %2252
    %v2254 = vmul.f32 %v2250, %v194
    %v2255 = vmul.f32 %v2253, %v194
    %v2256 = vadd.f32 %v2254, 1e-05
    %v2257 = vadd.f32 %v2255, 1e-05
    %v2258 = vrsqrt.pop %v2256
    %v2259 = vmul.f32 %v2258, %v2256
    %v2260 = vmul.f32 %v2259, %v2258
    %v2261 = vmul.f32 0.5, %v2260
    %v2262 = vsub.f32 1.5, %v2261
    %v2263 = vmul.f32 %v2258, %v2262
    %vm2264 = vweird.f32 %v2256
    %vm2265 = vweird.f32 %v2258
    %vm2266 = vmor %vm2264, %vm2265
    %v2267 = vsel %vm2266, %v2258, %v2263
    %v2268 = vrsqrt.pop %v2257
    %v2269 = vmul.f32 %v2268, %v2257
    %v2270 = vmul.f32 %v2269, %v2268
    %v2271 = vmul.f32 0.5, %v2270
    %v2272 = vsub.f32 1.5, %v2271
    %v2273 = vmul.f32 %v2268, %v2272
    %vm2274 = vweird.f32 %v2257
    %vm2275 = vweird.f32 %v2268
    %vm2276 = vmor %vm2274, %vm2275
    %v2277 = vsel %vm2276, %v2268, %v2273
    %v2278 = vmul.f32 %v2244, %v2267
    %v2279 = vmul.f32 %v2245, %v2277
    %v2281 = vperm.slane %v2233, 0
    %v2283 = vmul.f32 %v2278, %v2281
    %v2284 = vmul.f32 %v2279, %v2281
    %v2286 = vperm.slane %v2235, 0
    %v2288 = vadd.f32 %v2283, %v2286
    %v2289 = vadd.f32 %v2284, %v2286
    %v2290 = vpack.c.bf16 %v2289, %v2288
    %s2291 = scalar_lea.vmem %s6, 16
    %v2292 = vld [vmem:[%s2291] sm:$0xf]
    %v2293 = vld [vmem:[%s2291 + $0x4] sm:$0xf]
    %v2294 = vld [vmem:[%s2291 + $0x8] sm:$0xf]
    %v2295 = vld [vmem:[%s2291 + $0xc] sm:$0xf]
    %s2296 = scalar_lea.vmem %s7, 1
    %v2297 = vld [vmem:[%s2296] sm:$0x1]
    %v2299 = vperm.slane %v2297, 0
    %v2305 = vunpack.c.l.b16 %v2292
    %v2306 = vunpack.c.l.b16 %v2293
    %v2307 = vunpack.c.l.b16 %v2294
    %v2308 = vunpack.c.l.b16 %v2295
    %v2309 = vpack.c.b16 %v2306, %v2305
    %v2310 = vpack.c.b16 %v2308, %v2307
    %v2314 = vsel %vm181, %v2290, 0
    %2316 = vmatpush.bf16.msra.mxu0 0
    %2317 = vmatpush.bf16.msra.mxu0 0
    %2318 = vmatpush.bf16.msra.mxu0 0
    %2319 = vmatpush.bf16.msra.mxu0 0
    %2320 = vmatpush.bf16.msra.mxu0 0
    %2321 = vmatpush.bf16.msra.mxu0 0
    %2322 = vmatpush.bf16.msra.mxu0 %v2310
    %2323 = vmatpush.bf16.msra.mxu0 %v2309
    %2324 = vmatmul.bf16.gmra.mxu0 %v2314
    %v2325 = vpop.f32.mrf.mxu0
    %v2326 = vadd.f32 %v2299, %v2325
    %v2327 = vpop.f32.mrf.mxu0
    %v2328 = vadd.f32 %v2299, %v2327
    %2329 = vdwg.mxu0
    %v2330 = vmul.f32 %v2326, 0.35355338
    %v2331 = vmul.f32 %v2328, 0.35355338
    %v2332 = vpack.c.bf16 %v2326, %v2326
    %v2333 = vpack.c.bf16 %v2328, %v2328
    %v2334 = vpack.c.bf16 %v2330, %v2330
    %v2335 = vpack.c.bf16 %v2331, %v2331
    %v2337 = vunpack.c.l.b16 %v2332
    %v2338 = vpack.c.b16 %v2337, %v2337
    %2339 = vrot.lane.b32.xlu0 %v2338, 96
    %v2340 = vpop.permute.xlu0 %2339
    %v2342 = vsel %vm292, %v2334, 0
    %v2345 = vsel %vm292, %v2340, 0
    %2347 = vmatpush.bf16.xpose.msra.mxu0 0
    %2348 = vmatpush.bf16.xpose.msra.mxu0 0
    %2349 = vmatpush.bf16.xpose.msra.mxu0 0
    %2350 = vmatpush.bf16.xpose.msra.mxu0 0
    %2351 = vmatpush.bf16.xpose.msra.mxu0 0
    %2352 = vmatpush.bf16.xpose.msra.mxu0 0
    %2353 = vmatpush.bf16.xpose.msra.mxu0 0
    %2354 = vmatpush.bf16.xpose.msra.mxu0 %v2345
    %2355 = vmatmul.bf16.gmra.mxu0 %v2342
    %v2356 = vpop.f32.mrf.mxu0
    %v2357 = vadd.f32 %v165, %v2356
    %v2358 = vpop.f32.mrf.mxu0
    %2359 = vdwg.mxu0
    %v2361 = vunpack.c.l.b16 %v2333
    %v2362 = vpack.c.b16 %v2361, %v2361
    %2363 = vrot.lane.b32.xlu0 %v2362, 96
    %v2364 = vpop.permute.xlu0 %2363
    %v2366 = vsel %vm292, %v2335, 0
    %v2369 = vsel %vm292, %v2364, 0
    %2371 = vmatpush.bf16.xpose.msra.mxu0 0
    %2372 = vmatpush.bf16.xpose.msra.mxu0 0
    %2373 = vmatpush.bf16.xpose.msra.mxu0 0
    %2374 = vmatpush.bf16.xpose.msra.mxu0 0
    %2375 = vmatpush.bf16.xpose.msra.mxu0 0
    %2376 = vmatpush.bf16.xpose.msra.mxu0 0
    %2377 = vmatpush.bf16.xpose.msra.mxu0 0
    %2378 = vmatpush.bf16.xpose.msra.mxu0 %v2369
    %2379 = vmatmul.bf16.gmra.mxu0 %v2366
    %v2380 = vpop.f32.mrf.mxu0
    %v2381 = vadd.f32 %v166, %v2380
    %v2382 = vpop.f32.mrf.mxu0
    %2383 = vdwg.mxu0
    %v2384 = vsel %vm292, %v2357, -inf
    %2385 = vmax.xlane.f32.xlu0 %v2384
    %v2386 = vpop.xlane.xlu0 %2385
    %v2387 = vsel %vm292, %v2381, -inf
    %2388 = vmax.xlane.f32.xlu0 %v2387
    %v2389 = vpop.xlane.xlu0 %2388
    %v2390 = vsub.f32 %v2357, %v2386
    %v2391 = vsub.f32 %v2381, %v2389
    %v2392 = vmul.f32 %v2390, 1.442695
    %v2393 = vpow.pop %v2392
    %v2394 = vmul.f32 %v2391, 1.442695
    %v2395 = vpow.pop %v2394
    %v2396 = vsel %vm292, %v2393, 0.0
    %2397 = vadd.xlane.f32.xlu0 %v2396
    %v2398 = vpop.xlane.xlu0 %2397
    %v2399 = vsel %vm292, %v2395, 0.0
    %2400 = vadd.xlane.f32.xlu0 %v2399
    %v2401 = vpop.xlane.xlu0 %2400
    %v2402 = vrcp.pop %v2398
    %v2403 = vrcp.pop %v2401
    %v2404 = vmul.f32 %v2393, %v2402
    %v2405 = vmul.f32 %v2395, %v2403
    %v2406 = vpack.c.bf16 %v2404, %v2404
    %v2407 = vpack.c.bf16 %v2405, %v2405
    %2408 = vrot.lane.b32.xlu0 %v2338, 64
    %v2409 = vpop.permute.xlu0 %2408
    %v2411 = vsel %vm292, %v2406, 0
    %v2414 = vsel %vm365, %v2409, 0
    %2416 = vmatpush.bf16.msra.mxu0 0
    %2417 = vmatpush.bf16.msra.mxu0 0
    %2418 = vmatpush.bf16.msra.mxu0 0
    %2419 = vmatpush.bf16.msra.mxu0 0
    %2420 = vmatpush.bf16.msra.mxu0 0
    %2421 = vmatpush.bf16.msra.mxu0 0
    %2422 = vmatpush.bf16.msra.mxu0 0
    %2423 = vmatpush.bf16.msra.mxu0 %v2414
    %2424 = vmatmul.bf16.gmra.mxu0 %v2411
    %v2425 = vpop.f32.mrf.mxu0
    %v2426 = vadd.f32 0.0, %v2425
    %v2427 = vpop.f32.mrf.mxu0
    %2428 = vdwg.mxu0
    %2429 = vrot.lane.b32.xlu0 %v2362, 64
    %v2430 = vpop.permute.xlu0 %2429
    %v2432 = vsel %vm292, %v2407, 0
    %v2435 = vsel %vm365, %v2430, 0
    %2437 = vmatpush.bf16.msra.mxu0 0
    %2438 = vmatpush.bf16.msra.mxu0 0
    %2439 = vmatpush.bf16.msra.mxu0 0
    %2440 = vmatpush.bf16.msra.mxu0 0
    %2441 = vmatpush.bf16.msra.mxu0 0
    %2442 = vmatpush.bf16.msra.mxu0 0
    %2443 = vmatpush.bf16.msra.mxu0 0
    %2444 = vmatpush.bf16.msra.mxu0 %v2435
    %2445 = vmatmul.bf16.gmra.mxu0 %v2432
    %v2446 = vpop.f32.mrf.mxu0
    %v2447 = vadd.f32 0.0, %v2446
    %v2448 = vpop.f32.mrf.mxu0
    %2449 = vdwg.mxu0
    %2450 = vst.msk [vmem:[#allocation2] sm:$0xff] %vm292, %v2426
    %2451 = vst.msk [vmem:[#allocation2 + $0x8] sm:$0xff] %vm292, %v2447
    %v2453 = vunpack.c.l.b16 %v2334
    %v2454 = vpack.c.b16 %v2453, %v2453
    %2455 = vrot.lane.b32.xlu0 %v2454, 120
    %v2456 = vpop.permute.xlu0 %2455
    %2457 = vrot.lane.b32.xlu0 %v2338, 88
    %v2458 = vpop.permute.xlu0 %2457
    %v2460 = vsel %vm292, %v2456, 0
    %v2463 = vsel %vm292, %v2458, 0
    %2465 = vmatpush.bf16.xpose.msra.mxu0 0
    %2466 = vmatpush.bf16.xpose.msra.mxu0 0
    %2467 = vmatpush.bf16.xpose.msra.mxu0 0
    %2468 = vmatpush.bf16.xpose.msra.mxu0 0
    %2469 = vmatpush.bf16.xpose.msra.mxu0 0
    %2470 = vmatpush.bf16.xpose.msra.mxu0 0
    %2471 = vmatpush.bf16.xpose.msra.mxu0 0
    %2472 = vmatpush.bf16.xpose.msra.mxu0 %v2463
    %2473 = vmatmul.bf16.gmra.mxu0 %v2460
    %v2474 = vpop.f32.mrf.mxu0
    %v2475 = vadd.f32 %v165, %v2474
    %v2476 = vpop.f32.mrf.mxu0
    %2477 = vdwg.mxu0
    %v2479 = vunpack.c.l.b16 %v2335
    %v2480 = vpack.c.b16 %v2479, %v2479
    %2481 = vrot.lane.b32.xlu0 %v2480, 120
    %v2482 = vpop.permute.xlu0 %2481
    %2483 = vrot.lane.b32.xlu0 %v2362, 88
    %v2484 = vpop.permute.xlu0 %2483
    %v2486 = vsel %vm292, %v2482, 0
    %v2489 = vsel %vm292, %v2484, 0
    %2491 = vmatpush.bf16.xpose.msra.mxu0 0
    %2492 = vmatpush.bf16.xpose.msra.mxu0 0
    %2493 = vmatpush.bf16.xpose.msra.mxu0 0
    %2494 = vmatpush.bf16.xpose.msra.mxu0 0
    %2495 = vmatpush.bf16.xpose.msra.mxu0 0
    %2496 = vmatpush.bf16.xpose.msra.mxu0 0
    %2497 = vmatpush.bf16.xpose.msra.mxu0 0
    %2498 = vmatpush.bf16.xpose.msra.mxu0 %v2489
    %2499 = vmatmul.bf16.gmra.mxu0 %v2486
    %v2500 = vpop.f32.mrf.mxu0
    %v2501 = vadd.f32 %v166, %v2500
    %v2502 = vpop.f32.mrf.mxu0
    %2503 = vdwg.mxu0
    %v2504 = vsel %vm292, %v2475, -inf
    %2505 = vmax.xlane.f32.xlu0 %v2504
    %v2506 = vpop.xlane.xlu0 %2505
    %v2507 = vsel %vm292, %v2501, -inf
    %2508 = vmax.xlane.f32.xlu0 %v2507
    %v2509 = vpop.xlane.xlu0 %2508
    %v2510 = vsub.f32 %v2475, %v2506
    %v2511 = vsub.f32 %v2501, %v2509
    %v2512 = vmul.f32 %v2510, 1.442695
    %v2513 = vpow.pop %v2512
    %v2514 = vmul.f32 %v2511, 1.442695
    %v2515 = vpow.pop %v2514
    %v2516 = vsel %vm292, %v2513, 0.0
    %2517 = vadd.xlane.f32.xlu0 %v2516
    %v2518 = vpop.xlane.xlu0 %2517
    %v2519 = vsel %vm292, %v2515, 0.0
    %2520 = vadd.xlane.f32.xlu0 %v2519
    %v2521 = vpop.xlane.xlu0 %2520
    %v2522 = vrcp.pop %v2518
    %v2523 = vrcp.pop %v2521
    %v2524 = vmul.f32 %v2513, %v2522
    %v2525 = vmul.f32 %v2515, %v2523
    %v2526 = vpack.c.bf16 %v2524, %v2524
    %v2527 = vpack.c.bf16 %v2525, %v2525
    %2528 = vrot.lane.b32.xlu0 %v2338, 56
    %v2529 = vpop.permute.xlu0 %2528
    %v2531 = vsel %vm292, %v2526, 0
    %v2534 = vsel %vm365, %v2529, 0
    %2536 = vmatpush.bf16.msra.mxu0 0
    %2537 = vmatpush.bf16.msra.mxu0 0
    %2538 = vmatpush.bf16.msra.mxu0 0
    %2539 = vmatpush.bf16.msra.mxu0 0
    %2540 = vmatpush.bf16.msra.mxu0 0
    %2541 = vmatpush.bf16.msra.mxu0 0
    %2542 = vmatpush.bf16.msra.mxu0 0
    %2543 = vmatpush.bf16.msra.mxu0 %v2534
    %2544 = vmatmul.bf16.gmra.mxu0 %v2531
    %v2545 = vpop.f32.mrf.mxu0
    %v2546 = vadd.f32 0.0, %v2545
    %v2547 = vpop.f32.mrf.mxu0
    %2548 = vdwg.mxu0
    %2549 = vrot.lane.b32.xlu0 %v2362, 56
    %v2550 = vpop.permute.xlu0 %2549
    %v2552 = vsel %vm292, %v2527, 0
    %v2555 = vsel %vm365, %v2550, 0
    %2557 = vmatpush.bf16.msra.mxu0 0
    %2558 = vmatpush.bf16.msra.mxu0 0
    %2559 = vmatpush.bf16.msra.mxu0 0
    %2560 = vmatpush.bf16.msra.mxu0 0
    %2561 = vmatpush.bf16.msra.mxu0 0
    %2562 = vmatpush.bf16.msra.mxu0 0
    %2563 = vmatpush.bf16.msra.mxu0 0
    %2564 = vmatpush.bf16.msra.mxu0 %v2555
    %2565 = vmatmul.bf16.gmra.mxu0 %v2552
    %v2566 = vpop.f32.mrf.mxu0
    %v2567 = vadd.f32 0.0, %v2566
    %v2568 = vpop.f32.mrf.mxu0
    %2569 = vdwg.mxu0
    %2572 = vrot.lane.b32.xlu0 %v2546, 8
    %v2573 = vpop.permute.xlu0 %2572
    %2574 = vrot.lane.b32.xlu0 %v2567, 8
    %v2575 = vpop.permute.xlu0 %2574
    %2578 = vst.msk [vmem:[#allocation2] sm:$0xff] %vm531, %v2573
    %2579 = vst.msk [vmem:[#allocation2 + $0x8] sm:$0xff] %vm531, %v2575
    %2580 = vrot.lane.b32.xlu0 %v2454, 112
    %v2581 = vpop.permute.xlu0 %2580
    %2582 = vrot.lane.b32.xlu0 %v2338, 80
    %v2583 = vpop.permute.xlu0 %2582
    %v2585 = vsel %vm292, %v2581, 0
    %v2588 = vsel %vm292, %v2583, 0
    %2590 = vmatpush.bf16.xpose.msra.mxu0 0
    %2591 = vmatpush.bf16.xpose.msra.mxu0 0
    %2592 = vmatpush.bf16.xpose.msra.mxu0 0
    %2593 = vmatpush.bf16.xpose.msra.mxu0 0
    %2594 = vmatpush.bf16.xpose.msra.mxu0 0
    %2595 = vmatpush.bf16.xpose.msra.mxu0 0
    %2596 = vmatpush.bf16.xpose.msra.mxu0 0
    %2597 = vmatpush.bf16.xpose.msra.mxu0 %v2588
    %2598 = vmatmul.bf16.gmra.mxu0 %v2585
    %v2599 = vpop.f32.mrf.mxu0
    %v2600 = vadd.f32 %v165, %v2599
    %v2601 = vpop.f32.mrf.mxu0
    %2602 = vdwg.mxu0
    %2603 = vrot.lane.b32.xlu0 %v2480, 112
    %v2604 = vpop.permute.xlu0 %2603
    %2605 = vrot.lane.b32.xlu0 %v2362, 80
    %v2606 = vpop.permute.xlu0 %2605
    %v2608 = vsel %vm292, %v2604, 0
    %v2611 = vsel %vm292, %v2606, 0
    %2613 = vmatpush.bf16.xpose.msra.mxu0 0
    %2614 = vmatpush.bf16.xpose.msra.mxu0 0
    %2615 = vmatpush.bf16.xpose.msra.mxu0 0
    %2616 = vmatpush.bf16.xpose.msra.mxu0 0
    %2617 = vmatpush.bf16.xpose.msra.mxu0 0
    %2618 = vmatpush.bf16.xpose.msra.mxu0 0
    %2619 = vmatpush.bf16.xpose.msra.mxu0 0
    %2620 = vmatpush.bf16.xpose.msra.mxu0 %v2611
    %2621 = vmatmul.bf16.gmra.mxu0 %v2608
    %v2622 = vpop.f32.mrf.mxu0
    %v2623 = vadd.f32 %v166, %v2622
    %v2624 = vpop.f32.mrf.mxu0
    %2625 = vdwg.mxu0
    %v2626 = vsel %vm292, %v2600, -inf
    %2627 = vmax.xlane.f32.xlu0 %v2626
    %v2628 = vpop.xlane.xlu0 %2627
    %v2629 = vsel %vm292, %v2623, -inf
    %2630 = vmax.xlane.f32.xlu0 %v2629
    %v2631 = vpop.xlane.xlu0 %2630
    %v2632 = vsub.f32 %v2600, %v2628
    %v2633 = vsub.f32 %v2623, %v2631
    %v2634 = vmul.f32 %v2632, 1.442695
    %v2635 = vpow.pop %v2634
    %v2636 = vmul.f32 %v2633, 1.442695
    %v2637 = vpow.pop %v2636
    %v2638 = vsel %vm292, %v2635, 0.0
    %2639 = vadd.xlane.f32.xlu0 %v2638
    %v2640 = vpop.xlane.xlu0 %2639
    %v2641 = vsel %vm292, %v2637, 0.0
    %2642 = vadd.xlane.f32.xlu0 %v2641
    %v2643 = vpop.xlane.xlu0 %2642
    %v2644 = vrcp.pop %v2640
    %v2645 = vrcp.pop %v2643
    %v2646 = vmul.f32 %v2635, %v2644
    %v2647 = vmul.f32 %v2637, %v2645
    %v2648 = vpack.c.bf16 %v2646, %v2646
    %v2649 = vpack.c.bf16 %v2647, %v2647
    %2650 = vrot.lane.b32.xlu0 %v2338, 48
    %v2651 = vpop.permute.xlu0 %2650
    %v2653 = vsel %vm292, %v2648, 0
    %v2656 = vsel %vm365, %v2651, 0
    %2658 = vmatpush.bf16.msra.mxu0 0
    %2659 = vmatpush.bf16.msra.mxu0 0
    %2660 = vmatpush.bf16.msra.mxu0 0
    %2661 = vmatpush.bf16.msra.mxu0 0
    %2662 = vmatpush.bf16.msra.mxu0 0
    %2663 = vmatpush.bf16.msra.mxu0 0
    %2664 = vmatpush.bf16.msra.mxu0 0
    %2665 = vmatpush.bf16.msra.mxu0 %v2656
    %2666 = vmatmul.bf16.gmra.mxu0 %v2653
    %v2667 = vpop.f32.mrf.mxu0
    %v2668 = vadd.f32 0.0, %v2667
    %v2669 = vpop.f32.mrf.mxu0
    %2670 = vdwg.mxu0
    %2671 = vrot.lane.b32.xlu0 %v2362, 48
    %v2672 = vpop.permute.xlu0 %2671
    %v2674 = vsel %vm292, %v2649, 0
    %v2677 = vsel %vm365, %v2672, 0
    %2679 = vmatpush.bf16.msra.mxu0 0
    %2680 = vmatpush.bf16.msra.mxu0 0
    %2681 = vmatpush.bf16.msra.mxu0 0
    %2682 = vmatpush.bf16.msra.mxu0 0
    %2683 = vmatpush.bf16.msra.mxu0 0
    %2684 = vmatpush.bf16.msra.mxu0 0
    %2685 = vmatpush.bf16.msra.mxu0 0
    %2686 = vmatpush.bf16.msra.mxu0 %v2677
    %2687 = vmatmul.bf16.gmra.mxu0 %v2674
    %v2688 = vpop.f32.mrf.mxu0
    %v2689 = vadd.f32 0.0, %v2688
    %v2690 = vpop.f32.mrf.mxu0
    %2691 = vdwg.mxu0
    %2694 = vrot.lane.b32.xlu0 %v2668, 16
    %v2695 = vpop.permute.xlu0 %2694
    %2696 = vrot.lane.b32.xlu0 %v2689, 16
    %v2697 = vpop.permute.xlu0 %2696
    %2700 = vst.msk [vmem:[#allocation2] sm:$0xff] %vm654, %v2695
    %2701 = vst.msk [vmem:[#allocation2 + $0x8] sm:$0xff] %vm654, %v2697
    %2702 = vrot.lane.b32.xlu0 %v2454, 104
    %v2703 = vpop.permute.xlu0 %2702
    %2704 = vrot.lane.b32.xlu0 %v2338, 72
    %v2705 = vpop.permute.xlu0 %2704
    %v2707 = vsel %vm292, %v2703, 0
    %v2710 = vsel %vm292, %v2705, 0
    %2712 = vmatpush.bf16.xpose.msra.mxu0 0
    %2713 = vmatpush.bf16.xpose.msra.mxu0 0
    %2714 = vmatpush.bf16.xpose.msra.mxu0 0
    %2715 = vmatpush.bf16.xpose.msra.mxu0 0
    %2716 = vmatpush.bf16.xpose.msra.mxu0 0
    %2717 = vmatpush.bf16.xpose.msra.mxu0 0
    %2718 = vmatpush.bf16.xpose.msra.mxu0 0
    %2719 = vmatpush.bf16.xpose.msra.mxu0 %v2710
    %2720 = vmatmul.bf16.gmra.mxu0 %v2707
    %v2721 = vpop.f32.mrf.mxu0
    %v2722 = vadd.f32 %v165, %v2721
    %v2723 = vpop.f32.mrf.mxu0
    %2724 = vdwg.mxu0
    %2725 = vrot.lane.b32.xlu0 %v2480, 104
    %v2726 = vpop.permute.xlu0 %2725
    %2727 = vrot.lane.b32.xlu0 %v2362, 72
    %v2728 = vpop.permute.xlu0 %2727
    %v2730 = vsel %vm292, %v2726, 0
    %v2733 = vsel %vm292, %v2728, 0
    %2735 = vmatpush.bf16.xpose.msra.mxu0 0
    %2736 = vmatpush.bf16.xpose.msra.mxu0 0
    %2737 = vmatpush.bf16.xpose.msra.mxu0 0
    %2738 = vmatpush.bf16.xpose.msra.mxu0 0
    %2739 = vmatpush.bf16.xpose.msra.mxu0 0
    %2740 = vmatpush.bf16.xpose.msra.mxu0 0
    %2741 = vmatpush.bf16.xpose.msra.mxu0 0
    %2742 = vmatpush.bf16.xpose.msra.mxu0 %v2733
    %2743 = vmatmul.bf16.gmra.mxu0 %v2730
    %v2744 = vpop.f32.mrf.mxu0
    %v2745 = vadd.f32 %v166, %v2744
    %v2746 = vpop.f32.mrf.mxu0
    %2747 = vdwg.mxu0
    %v2748 = vsel %vm292, %v2722, -inf
    %2749 = vmax.xlane.f32.xlu0 %v2748
    %v2750 = vpop.xlane.xlu0 %2749
    %v2751 = vsel %vm292, %v2745, -inf
    %2752 = vmax.xlane.f32.xlu0 %v2751
    %v2753 = vpop.xlane.xlu0 %2752
    %v2754 = vsub.f32 %v2722, %v2750
    %v2755 = vsub.f32 %v2745, %v2753
    %v2756 = vmul.f32 %v2754, 1.442695
    %v2757 = vpow.pop %v2756
    %v2758 = vmul.f32 %v2755, 1.442695
    %v2759 = vpow.pop %v2758
    %v2760 = vsel %vm292, %v2757, 0.0
    %2761 = vadd.xlane.f32.xlu0 %v2760
    %v2762 = vpop.xlane.xlu0 %2761
    %v2763 = vsel %vm292, %v2759, 0.0
    %2764 = vadd.xlane.f32.xlu0 %v2763
    %v2765 = vpop.xlane.xlu0 %2764
    %v2766 = vrcp.pop %v2762
    %v2767 = vrcp.pop %v2765
    %v2768 = vmul.f32 %v2757, %v2766
    %v2769 = vmul.f32 %v2759, %v2767
    %v2770 = vpack.c.bf16 %v2768, %v2768
    %v2771 = vpack.c.bf16 %v2769, %v2769
    %2772 = vrot.lane.b32.xlu0 %v2338, 40
    %v2773 = vpop.permute.xlu0 %2772
    %v2775 = vsel %vm292, %v2770, 0
    %v2778 = vsel %vm365, %v2773, 0
    %2780 = vmatpush.bf16.msra.mxu0 0
    %2781 = vmatpush.bf16.msra.mxu0 0
    %2782 = vmatpush.bf16.msra.mxu0 0
    %2783 = vmatpush.bf16.msra.mxu0 0
    %2784 = vmatpush.bf16.msra.mxu0 0
    %2785 = vmatpush.bf16.msra.mxu0 0
    %2786 = vmatpush.bf16.msra.mxu0 0
    %2787 = vmatpush.bf16.msra.mxu0 %v2778
    %2788 = vmatmul.bf16.gmra.mxu0 %v2775
    %v2789 = vpop.f32.mrf.mxu0
    %v2790 = vadd.f32 0.0, %v2789
    %v2791 = vpop.f32.mrf.mxu0
    %2792 = vdwg.mxu0
    %2793 = vrot.lane.b32.xlu0 %v2362, 40
    %v2794 = vpop.permute.xlu0 %2793
    %v2796 = vsel %vm292, %v2771, 0
    %v2799 = vsel %vm365, %v2794, 0
    %2801 = vmatpush.bf16.msra.mxu0 0
    %2802 = vmatpush.bf16.msra.mxu0 0
    %2803 = vmatpush.bf16.msra.mxu0 0
    %2804 = vmatpush.bf16.msra.mxu0 0
    %2805 = vmatpush.bf16.msra.mxu0 0
    %2806 = vmatpush.bf16.msra.mxu0 0
    %2807 = vmatpush.bf16.msra.mxu0 0
    %2808 = vmatpush.bf16.msra.mxu0 %v2799
    %2809 = vmatmul.bf16.gmra.mxu0 %v2796
    %v2810 = vpop.f32.mrf.mxu0
    %v2811 = vadd.f32 0.0, %v2810
    %v2812 = vpop.f32.mrf.mxu0
    %2813 = vdwg.mxu0
    %2816 = vrot.lane.b32.xlu0 %v2790, 24
    %v2817 = vpop.permute.xlu0 %2816
    %2818 = vrot.lane.b32.xlu0 %v2811, 24
    %v2819 = vpop.permute.xlu0 %2818
    %2822 = vst.msk [vmem:[#allocation2] sm:$0xff] %vm777, %v2817
    %2823 = vst.msk [vmem:[#allocation2 + $0x8] sm:$0xff] %vm777, %v2819
    %v2824 = vld [vmem:[#allocation2] sm:$0xff]
    %v2825 = vld [vmem:[#allocation2 + $0x8] sm:$0xff]
    %v2826 = vadd.f32 %v2230, %v2824
    %v2827 = vadd.f32 %v2231, %v2825
    %s2828 = scalar_lea.vmem %s8, 1
    %v2829 = vld [vmem:[%s2828] sm:$0x1]
    %s2830 = scalar_lea.vmem %s9, 1
    %v2831 = vld [vmem:[%s2830] sm:$0x1]
    %v2832 = vsel %vm181, %v2826, 0.0
    %2833 = vadd.xlane.f32.xlu0 %v2832
    %v2834 = vpop.xlane.xlu0 %2833
    %v2835 = vsel %vm181, %v2827, 0.0
    %2836 = vadd.xlane.f32.xlu0 %v2835
    %v2837 = vpop.xlane.xlu0 %2836
    %v2838 = vmul.f32 %v2834, %v194
    %v2839 = vmul.f32 %v2837, %v194
    %v2840 = vsub.f32 %v2826, %v2838
    %v2841 = vsub.f32 %v2827, %v2839
    %v2842 = vmul.f32 %v2840, %v2840
    %v2843 = vmul.f32 %v2841, %v2841
    %v2844 = vsel %vm181, %v2842, 0.0
    %2845 = vadd.xlane.f32.xlu0 %v2844
    %v2846 = vpop.xlane.xlu0 %2845
    %v2847 = vsel %vm181, %v2843, 0.0
    %2848 = vadd.xlane.f32.xlu0 %v2847
    %v2849 = vpop.xlane.xlu0 %2848
    %v2850 = vmul.f32 %v2846, %v194
    %v2851 = vmul.f32 %v2849, %v194
    %v2852 = vadd.f32 %v2850, 1e-05
    %v2853 = vadd.f32 %v2851, 1e-05
    %v2854 = vrsqrt.pop %v2852
    %v2855 = vmul.f32 %v2854, %v2852
    %v2856 = vmul.f32 %v2855, %v2854
    %v2857 = vmul.f32 0.5, %v2856
    %v2858 = vsub.f32 1.5, %v2857
    %v2859 = vmul.f32 %v2854, %v2858
    %vm2860 = vweird.f32 %v2852
    %vm2861 = vweird.f32 %v2854
    %vm2862 = vmor %vm2860, %vm2861
    %v2863 = vsel %vm2862, %v2854, %v2859
    %v2864 = vrsqrt.pop %v2853
    %v2865 = vmul.f32 %v2864, %v2853
    %v2866 = vmul.f32 %v2865, %v2864
    %v2867 = vmul.f32 0.5, %v2866
    %v2868 = vsub.f32 1.5, %v2867
    %v2869 = vmul.f32 %v2864, %v2868
    %vm2870 = vweird.f32 %v2853
    %vm2871 = vweird.f32 %v2864
    %vm2872 = vmor %vm2870, %vm2871
    %v2873 = vsel %vm2872, %v2864, %v2869
    %v2874 = vmul.f32 %v2840, %v2863
    %v2875 = vmul.f32 %v2841, %v2873
    %v2877 = vperm.slane %v2829, 0
    %v2879 = vmul.f32 %v2874, %v2877
    %v2880 = vmul.f32 %v2875, %v2877
    %v2882 = vperm.slane %v2831, 0
    %v2884 = vadd.f32 %v2879, %v2882
    %v2885 = vadd.f32 %v2880, %v2882
    %v2886 = vpack.c.bf16 %v2885, %v2884
    %s2887 = scalar_lea.vmem %s10, 16
    %v2888 = vld [vmem:[%s2887] sm:$0xf]
    %v2889 = vld [vmem:[%s2887 + $0x4] sm:$0xf]
    %v2890 = vld [vmem:[%s2887 + $0x8] sm:$0xf]
    %v2891 = vld [vmem:[%s2887 + $0xc] sm:$0xf]
    %s2892 = scalar_lea.vmem %s11, 1
    %v2893 = vld [vmem:[%s2892] sm:$0x1]
    %v2895 = vperm.slane %v2893, 0
    %v2901 = vunpack.c.l.b16 %v2888
    %v2902 = vunpack.c.l.b16 %v2889
    %v2903 = vunpack.c.l.b16 %v2890
    %v2904 = vunpack.c.l.b16 %v2891
    %v2905 = vpack.c.b16 %v2902, %v2901
    %v2906 = vpack.c.b16 %v2904, %v2903
    %v2910 = vsel %vm181, %v2886, 0
    %2912 = vmatpush.bf16.msra.mxu0 0
    %2913 = vmatpush.bf16.msra.mxu0 0
    %2914 = vmatpush.bf16.msra.mxu0 0
    %2915 = vmatpush.bf16.msra.mxu0 0
    %2916 = vmatpush.bf16.msra.mxu0 0
    %2917 = vmatpush.bf16.msra.mxu0 0
    %2918 = vmatpush.bf16.msra.mxu0 %v2906
    %2919 = vmatpush.bf16.msra.mxu0 %v2905
    %2920 = vmatmul.bf16.gmra.mxu0 %v2910
    %v2921 = vpop.f32.mrf.mxu0
    %v2922 = vadd.f32 %v2895, %v2921
    %v2923 = vpop.f32.mrf.mxu0
    %v2924 = vadd.f32 %v2895, %v2923
    %2925 = vdwg.mxu0
    %s2926 = scalar_lea.vmem %s12, 16
    %v2927 = vld [vmem:[%s2926] sm:$0xf]
    %v2928 = vld [vmem:[%s2926 + $0x4] sm:$0xf]
    %v2929 = vld [vmem:[%s2926 + $0x8] sm:$0xf]
    %v2930 = vld [vmem:[%s2926 + $0xc] sm:$0xf]
    %s2931 = scalar_lea.vmem %s13, 1
    %v2932 = vld [vmem:[%s2931] sm:$0x1]
    %v2934 = vperm.slane %v2932, 0
    %v2940 = vunpack.c.l.b16 %v2927
    %v2941 = vunpack.c.l.b16 %v2928
    %v2942 = vunpack.c.l.b16 %v2929
    %v2943 = vunpack.c.l.b16 %v2930
    %v2944 = vpack.c.b16 %v2941, %v2940
    %v2945 = vpack.c.b16 %v2943, %v2942
    %2948 = vmatpush.bf16.msra.mxu0 0
    %2949 = vmatpush.bf16.msra.mxu0 0
    %2950 = vmatpush.bf16.msra.mxu0 0
    %2951 = vmatpush.bf16.msra.mxu0 0
    %2952 = vmatpush.bf16.msra.mxu0 0
    %2953 = vmatpush.bf16.msra.mxu0 0
    %2954 = vmatpush.bf16.msra.mxu0 %v2945
    %2955 = vmatpush.bf16.msra.mxu0 %v2944
    %2956 = vmatmul.bf16.gmra.mxu0 %v979
    %v2957 = vpop.f32.mrf.mxu0
    %v2958 = vadd.f32 %v2934, %v2957
    %v2959 = vpop.f32.mrf.mxu0
    %v2960 = vadd.f32 %v2934, %v2959
    %2961 = vmatmul.bf16.gmra.mxu0 %v982
    %v2962 = vpop.f32.mrf.mxu0
    %v2963 = vadd.f32 %v2934, %v2962
    %v2964 = vpop.f32.mrf.mxu0
    %v2965 = vadd.f32 %v2934, %v2964
    %2966 = vmatmul.bf16.gmra.mxu0 %v985
    %v2967 = vpop.f32.mrf.mxu0
    %v2968 = vadd.f32 %v2934, %v2967
    %v2969 = vpop.f32.mrf.mxu0
    %v2970 = vadd.f32 %v2934, %v2969
    %2971 = vmatmul.bf16.gmra.mxu0 %v988
    %v2972 = vpop.f32.mrf.mxu0
    %v2973 = vadd.f32 %v2934, %v2972
    %v2974 = vpop.f32.mrf.mxu0
    %v2975 = vadd.f32 %v2934, %v2974
    %2976 = vmatmul.bf16.gmra.mxu0 %v991
    %v2977 = vpop.f32.mrf.mxu0
    %v2978 = vadd.f32 %v2934, %v2977
    %v2979 = vpop.f32.mrf.mxu0
    %v2980 = vadd.f32 %v2934, %v2979
    %2981 = vmatmul.bf16.gmra.mxu0 %v994
    %v2982 = vpop.f32.mrf.mxu0
    %v2983 = vadd.f32 %v2934, %v2982
    %v2984 = vpop.f32.mrf.mxu0
    %v2985 = vadd.f32 %v2934, %v2984
    %2986 = vmatmul.bf16.gmra.mxu0 %v997
    %v2987 = vpop.f32.mrf.mxu0
    %v2988 = vadd.f32 %v2934, %v2987
    %v2989 = vpop.f32.mrf.mxu0
    %v2990 = vadd.f32 %v2934, %v2989
    %2991 = vmatmul.bf16.gmra.mxu0 %v1000
    %v2992 = vpop.f32.mrf.mxu0
    %v2993 = vadd.f32 %v2934, %v2992
    %v2994 = vpop.f32.mrf.mxu0
    %v2995 = vadd.f32 %v2934, %v2994
    %2996 = vmatmul.bf16.gmra.mxu0 %v1003
    %v2997 = vpop.f32.mrf.mxu0
    %v2998 = vadd.f32 %v2934, %v2997
    %v2999 = vpop.f32.mrf.mxu0
    %v3000 = vadd.f32 %v2934, %v2999
    %3001 = vmatmul.bf16.gmra.mxu0 %v1006
    %v3002 = vpop.f32.mrf.mxu0
    %v3003 = vadd.f32 %v2934, %v3002
    %v3004 = vpop.f32.mrf.mxu0
    %v3005 = vadd.f32 %v2934, %v3004
    %3006 = vmatmul.bf16.gmra.mxu0 %v1009
    %v3007 = vpop.f32.mrf.mxu0
    %v3008 = vadd.f32 %v2934, %v3007
    %v3009 = vpop.f32.mrf.mxu0
    %v3010 = vadd.f32 %v2934, %v3009
    %3011 = vmatmul.bf16.gmra.mxu0 %v1012
    %v3012 = vpop.f32.mrf.mxu0
    %v3013 = vadd.f32 %v2934, %v3012
    %v3014 = vpop.f32.mrf.mxu0
    %v3015 = vadd.f32 %v2934, %v3014
    %3016 = vmatmul.bf16.gmra.mxu0 %v1015
    %v3017 = vpop.f32.mrf.mxu0
    %v3018 = vadd.f32 %v2934, %v3017
    %v3019 = vpop.f32.mrf.mxu0
    %v3020 = vadd.f32 %v2934, %v3019
    %3021 = vmatmul.bf16.gmra.mxu0 %v1018
    %v3022 = vpop.f32.mrf.mxu0
    %v3023 = vadd.f32 %v2934, %v3022
    %v3024 = vpop.f32.mrf.mxu0
    %v3025 = vadd.f32 %v2934, %v3024
    %3026 = vmatmul.bf16.gmra.mxu0 %v1021
    %v3027 = vpop.f32.mrf.mxu0
    %v3028 = vadd.f32 %v2934, %v3027
    %v3029 = vpop.f32.mrf.mxu0
    %v3030 = vadd.f32 %v2934, %v3029
    %3031 = vmatmul.bf16.gmra.mxu0 %v1024
    %v3032 = vpop.f32.mrf.mxu0
    %v3033 = vadd.f32 %v2934, %v3032
    %v3034 = vpop.f32.mrf.mxu0
    %v3035 = vadd.f32 %v2934, %v3034
    %3036 = vdwg.mxu0
    %v3037 = vpack.c.bf16 %v2958, %v2958
    %v3038 = vpack.c.bf16 %v2960, %v2960
    %v3039 = vpack.c.bf16 %v2963, %v2963
    %v3040 = vpack.c.bf16 %v2965, %v2965
    %v3041 = vpack.c.bf16 %v2968, %v2968
    %v3042 = vpack.c.bf16 %v2970, %v2970
    %v3043 = vpack.c.bf16 %v2973, %v2973
    %v3044 = vpack.c.bf16 %v2975, %v2975
    %v3045 = vpack.c.bf16 %v2978, %v2978
    %v3046 = vpack.c.bf16 %v2980, %v2980
    %v3047 = vpack.c.bf16 %v2983, %v2983
    %v3048 = vpack.c.bf16 %v2985, %v2985
    %v3049 = vpack.c.bf16 %v2988, %v2988
    %v3050 = vpack.c.bf16 %v2990, %v2990
    %v3051 = vpack.c.bf16 %v2993, %v2993
    %v3052 = vpack.c.bf16 %v2995, %v2995
    %v3053 = vpack.c.bf16 %v2998, %v2998
    %v3054 = vpack.c.bf16 %v3000, %v3000
    %v3055 = vpack.c.bf16 %v3003, %v3003
    %v3056 = vpack.c.bf16 %v3005, %v3005
    %v3057 = vpack.c.bf16 %v3008, %v3008
    %v3058 = vpack.c.bf16 %v3010, %v3010
    %v3059 = vpack.c.bf16 %v3013, %v3013
    %v3060 = vpack.c.bf16 %v3015, %v3015
    %v3061 = vpack.c.bf16 %v3018, %v3018
    %v3062 = vpack.c.bf16 %v3020, %v3020
    %v3063 = vpack.c.bf16 %v3023, %v3023
    %v3064 = vpack.c.bf16 %v3025, %v3025
    %v3065 = vpack.c.bf16 %v3028, %v3028
    %v3066 = vpack.c.bf16 %v3030, %v3030
    %v3067 = vpack.c.bf16 %v3033, %v3033
    %v3068 = vpack.c.bf16 %v3035, %v3035
    %v3069 = vmul.f32 %v2922, 0.35355338
    %v3070 = vmul.f32 %v2924, 0.35355338
    %v3071 = vpack.c.bf16 %v3069, %v3069
    %v3072 = vpack.c.bf16 %v3070, %v3070
    %v3089 = vunpack.c.l.b16 %v3037
    %v3090 = vunpack.c.l.b16 %v3038
    %v3091 = vunpack.c.l.b16 %v3039
    %v3092 = vunpack.c.l.b16 %v3040
    %v3093 = vunpack.c.l.b16 %v3041
    %v3094 = vunpack.c.l.b16 %v3042
    %v3095 = vunpack.c.l.b16 %v3043
    %v3096 = vunpack.c.l.b16 %v3044
    %v3097 = vunpack.c.l.b16 %v3045
    %v3098 = vunpack.c.l.b16 %v3046
    %v3099 = vunpack.c.l.b16 %v3047
    %v3100 = vunpack.c.l.b16 %v3048
    %v3101 = vunpack.c.l.b16 %v3049
    %v3102 = vunpack.c.l.b16 %v3050
    %v3103 = vunpack.c.l.b16 %v3051
    %v3104 = vunpack.c.l.b16 %v3052
    %v3105 = vpack.c.b16 %v3090, %v3089
    %v3106 = vpack.c.b16 %v3092, %v3091
    %v3107 = vpack.c.b16 %v3094, %v3093
    %v3108 = vpack.c.b16 %v3096, %v3095
    %v3109 = vpack.c.b16 %v3098, %v3097
    %v3110 = vpack.c.b16 %v3100, %v3099
    %v3111 = vpack.c.b16 %v3102, %v3101
    %v3112 = vpack.c.b16 %v3104, %v3103
    %v3114 = vsel %vm292, %v3071, 0
    %v3117 = vsel %vm292, %v3105, 0
    %v3120 = vsel %vm292, %v3106, 0
    %v3123 = vsel %vm292, %v3107, 0
    %v3126 = vsel %vm292, %v3108, 0
    %v3129 = vsel %vm292, %v3109, 0
    %v3132 = vsel %vm292, %v3110, 0
    %v3135 = vsel %vm292, %v3111, 0
    %v3138 = vsel %vm292, %v3112, 0
    %3140 = vmatpush.bf16.xpose.msra.mxu0 %v3138
    %3141 = vmatpush.bf16.xpose.msra.mxu0 %v3135
    %3142 = vmatpush.bf16.xpose.msra.mxu0 %v3132
    %3143 = vmatpush.bf16.xpose.msra.mxu0 %v3129
    %3144 = vmatpush.bf16.xpose.msra.mxu0 %v3126
    %3145 = vmatpush.bf16.xpose.msra.mxu0 %v3123
    %3146 = vmatpush.bf16.xpose.msra.mxu0 %v3120
    %3147 = vmatpush.bf16.xpose.msra.mxu0 %v3117
    %3148 = vmatmul.bf16.gmra.mxu0 %v3114
    %v3149 = vpop.f32.mrf.mxu0
    %v3150 = vadd.f32 %v177, %v3149
    %v3151 = vpop.f32.mrf.mxu0
    %3152 = vdwg.mxu0
    %v3169 = vunpack.c.l.b16 %v3053
    %v3170 = vunpack.c.l.b16 %v3054
    %v3171 = vunpack.c.l.b16 %v3055
    %v3172 = vunpack.c.l.b16 %v3056
    %v3173 = vunpack.c.l.b16 %v3057
    %v3174 = vunpack.c.l.b16 %v3058
    %v3175 = vunpack.c.l.b16 %v3059
    %v3176 = vunpack.c.l.b16 %v3060
    %v3177 = vunpack.c.l.b16 %v3061
    %v3178 = vunpack.c.l.b16 %v3062
    %v3179 = vunpack.c.l.b16 %v3063
    %v3180 = vunpack.c.l.b16 %v3064
    %v3181 = vunpack.c.l.b16 %v3065
    %v3182 = vunpack.c.l.b16 %v3066
    %v3183 = vunpack.c.l.b16 %v3067
    %v3184 = vunpack.c.l.b16 %v3068
    %v3185 = vpack.c.b16 %v3170, %v3169
    %v3186 = vpack.c.b16 %v3172, %v3171
    %v3187 = vpack.c.b16 %v3174, %v3173
    %v3188 = vpack.c.b16 %v3176, %v3175
    %v3189 = vpack.c.b16 %v3178, %v3177
    %v3190 = vpack.c.b16 %v3180, %v3179
    %v3191 = vpack.c.b16 %v3182, %v3181
    %v3192 = vpack.c.b16 %v3184, %v3183
    %v3194 = vsel %vm292, %v3072, 0
    %v3197 = vsel %vm292, %v3185, 0
    %v3200 = vsel %vm292, %v3186, 0
    %v3203 = vsel %vm292, %v3187, 0
    %v3206 = vsel %vm292, %v3188, 0
    %v3209 = vsel %vm292, %v3189, 0
    %v3212 = vsel %vm292, %v3190, 0
    %v3215 = vsel %vm292, %v3191, 0
    %v3218 = vsel %vm292, %v3192, 0
    %3220 = vmatpush.bf16.xpose.msra.mxu0 %v3218
    %3221 = vmatpush.bf16.xpose.msra.mxu0 %v3215
    %3222 = vmatpush.bf16.xpose.msra.mxu0 %v3212
    %3223 = vmatpush.bf16.xpose.msra.mxu0 %v3209
    %3224 = vmatpush.bf16.xpose.msra.mxu0 %v3206
    %3225 = vmatpush.bf16.xpose.msra.mxu0 %v3203
    %3226 = vmatpush.bf16.xpose.msra.mxu0 %v3200
    %3227 = vmatpush.bf16.xpose.msra.mxu0 %v3197
    %3228 = vmatmul.bf16.gmra.mxu0 %v3194
    %v3229 = vpop.f32.mrf.mxu0
    %v3230 = vadd.f32 %v178, %v3229
    %v3231 = vpop.f32.mrf.mxu0
    %3232 = vdwg.mxu0
    %3233 = vmax.xlane.f32.xlu0 %v3150
    %v3234 = vpop.xlane.xlu0 %3233
    %3235 = vmax.xlane.f32.xlu0 %v3230
    %v3236 = vpop.xlane.xlu0 %3235
    %v3237 = vsub.f32 %v3150, %v3234
    %v3238 = vsub.f32 %v3230, %v3236
    %v3239 = vmul.f32 %v3237, 1.442695
    %v3240 = vpow.pop %v3239
    %v3241 = vmul.f32 %v3238, 1.442695
    %v3242 = vpow.pop %v3241
    %3243 = vadd.xlane.f32.xlu0 %v3240
    %v3244 = vpop.xlane.xlu0 %3243
    %3245 = vadd.xlane.f32.xlu0 %v3242
    %v3246 = vpop.xlane.xlu0 %3245
    %v3247 = vrcp.pop %v3244
    %v3248 = vrcp.pop %v3246
    %v3249 = vmul.f32 %v3240, %v3247
    %v3250 = vmul.f32 %v3242, %v3248
    %v3251 = vpack.c.bf16 %v3249, %v3249
    %v3252 = vpack.c.bf16 %v3250, %v3250
    %3253 = vrot.lane.b32.xlu0 %v3105, 96
    %v3254 = vpop.permute.xlu0 %3253
    %3255 = vrot.lane.b32.xlu0 %v3106, 96
    %v3256 = vpop.permute.xlu0 %3255
    %3257 = vrot.lane.b32.xlu0 %v3107, 96
    %v3258 = vpop.permute.xlu0 %3257
    %3259 = vrot.lane.b32.xlu0 %v3108, 96
    %v3260 = vpop.permute.xlu0 %3259
    %3261 = vrot.lane.b32.xlu0 %v3109, 96
    %v3262 = vpop.permute.xlu0 %3261
    %3263 = vrot.lane.b32.xlu0 %v3110, 96
    %v3264 = vpop.permute.xlu0 %3263
    %3265 = vrot.lane.b32.xlu0 %v3111, 96
    %v3266 = vpop.permute.xlu0 %3265
    %3267 = vrot.lane.b32.xlu0 %v3112, 96
    %v3268 = vpop.permute.xlu0 %3267
    %3277 = vmatpush.bf16.msra.mxu0 %v3268
    %3278 = vmatpush.bf16.msra.mxu0 %v3266
    %3279 = vmatpush.bf16.msra.mxu0 %v3264
    %3280 = vmatpush.bf16.msra.mxu0 %v3262
    %3281 = vmatpush.bf16.msra.mxu0 %v3260
    %3282 = vmatpush.bf16.msra.mxu0 %v3258
    %3283 = vmatpush.bf16.msra.mxu0 %v3256
    %3284 = vmatpush.bf16.msra.mxu0 %v3254
    %3285 = vmatmul.bf16.gmra.mxu0 %v3251
    %v3286 = vpop.f32.mrf.mxu0
    %v3287 = vadd.f32 0.0, %v3286
    %v3288 = vpop.f32.mrf.mxu0
    %3289 = vdwg.mxu0
    %3290 = vrot.lane.b32.xlu0 %v3185, 96
    %v3291 = vpop.permute.xlu0 %3290
    %3292 = vrot.lane.b32.xlu0 %v3186, 96
    %v3293 = vpop.permute.xlu0 %3292
    %3294 = vrot.lane.b32.xlu0 %v3187, 96
    %v3295 = vpop.permute.xlu0 %3294
    %3296 = vrot.lane.b32.xlu0 %v3188, 96
    %v3297 = vpop.permute.xlu0 %3296
    %3298 = vrot.lane.b32.xlu0 %v3189, 96
    %v3299 = vpop.permute.xlu0 %3298
    %3300 = vrot.lane.b32.xlu0 %v3190, 96
    %v3301 = vpop.permute.xlu0 %3300
    %3302 = vrot.lane.b32.xlu0 %v3191, 96
    %v3303 = vpop.permute.xlu0 %3302
    %3304 = vrot.lane.b32.xlu0 %v3192, 96
    %v3305 = vpop.permute.xlu0 %3304
    %3314 = vmatpush.bf16.msra.mxu0 %v3305
    %3315 = vmatpush.bf16.msra.mxu0 %v3303
    %3316 = vmatpush.bf16.msra.mxu0 %v3301
    %3317 = vmatpush.bf16.msra.mxu0 %v3299
    %3318 = vmatpush.bf16.msra.mxu0 %v3297
    %3319 = vmatpush.bf16.msra.mxu0 %v3295
    %3320 = vmatpush.bf16.msra.mxu0 %v3293
    %3321 = vmatpush.bf16.msra.mxu0 %v3291
    %3322 = vmatmul.bf16.gmra.mxu0 %v3252
    %v3323 = vpop.f32.mrf.mxu0
    %v3324 = vadd.f32 0.0, %v3323
    %v3325 = vpop.f32.mrf.mxu0
    %3326 = vdwg.mxu0
    %3327 = vst.msk [vmem:[#allocation2] sm:$0xff] %vm292, %v3287
    %3328 = vst.msk [vmem:[#allocation2 + $0x8] sm:$0xff] %vm292, %v3324
    %v3330 = vunpack.c.l.b16 %v3071
    %v3331 = vpack.c.b16 %v3330, %v3330
    %3332 = vrot.lane.b32.xlu0 %v3331, 120
    %v3333 = vpop.permute.xlu0 %3332
    %3334 = vrot.lane.b32.xlu0 %v3105, 120
    %v3335 = vpop.permute.xlu0 %3334
    %3336 = vrot.lane.b32.xlu0 %v3106, 120
    %v3337 = vpop.permute.xlu0 %3336
    %3338 = vrot.lane.b32.xlu0 %v3107, 120
    %v3339 = vpop.permute.xlu0 %3338
    %3340 = vrot.lane.b32.xlu0 %v3108, 120
    %v3341 = vpop.permute.xlu0 %3340
    %3342 = vrot.lane.b32.xlu0 %v3109, 120
    %v3343 = vpop.permute.xlu0 %3342
    %3344 = vrot.lane.b32.xlu0 %v3110, 120
    %v3345 = vpop.permute.xlu0 %3344
    %3346 = vrot.lane.b32.xlu0 %v3111, 120
    %v3347 = vpop.permute.xlu0 %3346
    %3348 = vrot.lane.b32.xlu0 %v3112, 120
    %v3349 = vpop.permute.xlu0 %3348
    %v3351 = vsel %vm292, %v3333, 0
    %v3354 = vsel %vm292, %v3335, 0
    %v3357 = vsel %vm292, %v3337, 0
    %v3360 = vsel %vm292, %v3339, 0
    %v3363 = vsel %vm292, %v3341, 0
    %v3366 = vsel %vm292, %v3343, 0
    %v3369 = vsel %vm292, %v3345, 0
    %v3372 = vsel %vm292, %v3347, 0
    %v3375 = vsel %vm292, %v3349, 0
    %3377 = vmatpush.bf16.xpose.msra.mxu0 %v3375
    %3378 = vmatpush.bf16.xpose.msra.mxu0 %v3372
    %3379 = vmatpush.bf16.xpose.msra.mxu0 %v3369
    %3380 = vmatpush.bf16.xpose.msra.mxu0 %v3366
    %3381 = vmatpush.bf16.xpose.msra.mxu0 %v3363
    %3382 = vmatpush.bf16.xpose.msra.mxu0 %v3360
    %3383 = vmatpush.bf16.xpose.msra.mxu0 %v3357
    %3384 = vmatpush.bf16.xpose.msra.mxu0 %v3354
    %3385 = vmatmul.bf16.gmra.mxu0 %v3351
    %v3386 = vpop.f32.mrf.mxu0
    %v3387 = vadd.f32 %v177, %v3386
    %v3388 = vpop.f32.mrf.mxu0
    %3389 = vdwg.mxu0
    %v3391 = vunpack.c.l.b16 %v3072
    %v3392 = vpack.c.b16 %v3391, %v3391
    %3393 = vrot.lane.b32.xlu0 %v3392, 120
    %v3394 = vpop.permute.xlu0 %3393
    %3395 = vrot.lane.b32.xlu0 %v3185, 120
    %v3396 = vpop.permute.xlu0 %3395
    %3397 = vrot.lane.b32.xlu0 %v3186, 120
    %v3398 = vpop.permute.xlu0 %3397
    %3399 = vrot.lane.b32.xlu0 %v3187, 120
    %v3400 = vpop.permute.xlu0 %3399
    %3401 = vrot.lane.b32.xlu0 %v3188, 120
    %v3402 = vpop.permute.xlu0 %3401
    %3403 = vrot.lane.b32.xlu0 %v3189, 120
    %v3404 = vpop.permute.xlu0 %3403
    %3405 = vrot.lane.b32.xlu0 %v3190, 120
    %v3406 = vpop.permute.xlu0 %3405
    %3407 = vrot.lane.b32.xlu0 %v3191, 120
    %v3408 = vpop.permute.xlu0 %3407
    %3409 = vrot.lane.b32.xlu0 %v3192, 120
    %v3410 = vpop.permute.xlu0 %3409
    %v3412 = vsel %vm292, %v3394, 0
    %v3415 = vsel %vm292, %v3396, 0
    %v3418 = vsel %vm292, %v3398, 0
    %v3421 = vsel %vm292, %v3400, 0
    %v3424 = vsel %vm292, %v3402, 0
    %v3427 = vsel %vm292, %v3404, 0
    %v3430 = vsel %vm292, %v3406, 0
    %v3433 = vsel %vm292, %v3408, 0
    %v3436 = vsel %vm292, %v3410, 0
    %3438 = vmatpush.bf16.xpose.msra.mxu0 %v3436
    %3439 = vmatpush.bf16.xpose.msra.mxu0 %v3433
    %3440 = vmatpush.bf16.xpose.msra.mxu0 %v3430
    %3441 = vmatpush.bf16.xpose.msra.mxu0 %v3427
    %3442 = vmatpush.bf16.xpose.msra.mxu0 %v3424
    %3443 = vmatpush.bf16.xpose.msra.mxu0 %v3421
    %3444 = vmatpush.bf16.xpose.msra.mxu0 %v3418
    %3445 = vmatpush.bf16.xpose.msra.mxu0 %v3415
    %3446 = vmatmul.bf16.gmra.mxu0 %v3412
    %v3447 = vpop.f32.mrf.mxu0
    %v3448 = vadd.f32 %v178, %v3447
    %v3449 = vpop.f32.mrf.mxu0
    %3450 = vdwg.mxu0
    %3451 = vmax.xlane.f32.xlu0 %v3387
    %v3452 = vpop.xlane.xlu0 %3451
    %3453 = vmax.xlane.f32.xlu0 %v3448
    %v3454 = vpop.xlane.xlu0 %3453
    %v3455 = vsub.f32 %v3387, %v3452
    %v3456 = vsub.f32 %v3448, %v3454
    %v3457 = vmul.f32 %v3455, 1.442695
    %v3458 = vpow.pop %v3457
    %v3459 = vmul.f32 %v3456, 1.442695
    %v3460 = vpow.pop %v3459
    %3461 = vadd.xlane.f32.xlu0 %v3458
    %v3462 = vpop.xlane.xlu0 %3461
    %3463 = vadd.xlane.f32.xlu0 %v3460
    %v3464 = vpop.xlane.xlu0 %3463
    %v3465 = vrcp.pop %v3462
    %v3466 = vrcp.pop %v3464
    %v3467 = vmul.f32 %v3458, %v3465
    %v3468 = vmul.f32 %v3460, %v3466
    %v3469 = vpack.c.bf16 %v3467, %v3467
    %v3470 = vpack.c.bf16 %v3468, %v3468
    %3471 = vrot.lane.b32.xlu0 %v3105, 88
    %v3472 = vpop.permute.xlu0 %3471
    %3473 = vrot.lane.b32.xlu0 %v3106, 88
    %v3474 = vpop.permute.xlu0 %3473
    %3475 = vrot.lane.b32.xlu0 %v3107, 88
    %v3476 = vpop.permute.xlu0 %3475
    %3477 = vrot.lane.b32.xlu0 %v3108, 88
    %v3478 = vpop.permute.xlu0 %3477
    %3479 = vrot.lane.b32.xlu0 %v3109, 88
    %v3480 = vpop.permute.xlu0 %3479
    %3481 = vrot.lane.b32.xlu0 %v3110, 88
    %v3482 = vpop.permute.xlu0 %3481
    %3483 = vrot.lane.b32.xlu0 %v3111, 88
    %v3484 = vpop.permute.xlu0 %3483
    %3485 = vrot.lane.b32.xlu0 %v3112, 88
    %v3486 = vpop.permute.xlu0 %3485
    %3495 = vmatpush.bf16.msra.mxu0 %v3486
    %3496 = vmatpush.bf16.msra.mxu0 %v3484
    %3497 = vmatpush.bf16.msra.mxu0 %v3482
    %3498 = vmatpush.bf16.msra.mxu0 %v3480
    %3499 = vmatpush.bf16.msra.mxu0 %v3478
    %3500 = vmatpush.bf16.msra.mxu0 %v3476
    %3501 = vmatpush.bf16.msra.mxu0 %v3474
    %3502 = vmatpush.bf16.msra.mxu0 %v3472
    %3503 = vmatmul.bf16.gmra.mxu0 %v3469
    %v3504 = vpop.f32.mrf.mxu0
    %v3505 = vadd.f32 0.0, %v3504
    %v3506 = vpop.f32.mrf.mxu0
    %3507 = vdwg.mxu0
    %3508 = vrot.lane.b32.xlu0 %v3185, 88
    %v3509 = vpop.permute.xlu0 %3508
    %3510 = vrot.lane.b32.xlu0 %v3186, 88
    %v3511 = vpop.permute.xlu0 %3510
    %3512 = vrot.lane.b32.xlu0 %v3187, 88
    %v3513 = vpop.permute.xlu0 %3512
    %3514 = vrot.lane.b32.xlu0 %v3188, 88
    %v3515 = vpop.permute.xlu0 %3514
    %3516 = vrot.lane.b32.xlu0 %v3189, 88
    %v3517 = vpop.permute.xlu0 %3516
    %3518 = vrot.lane.b32.xlu0 %v3190, 88
    %v3519 = vpop.permute.xlu0 %3518
    %3520 = vrot.lane.b32.xlu0 %v3191, 88
    %v3521 = vpop.permute.xlu0 %3520
    %3522 = vrot.lane.b32.xlu0 %v3192, 88
    %v3523 = vpop.permute.xlu0 %3522
    %3532 = vmatpush.bf16.msra.mxu0 %v3523
    %3533 = vmatpush.bf16.msra.mxu0 %v3521
    %3534 = vmatpush.bf16.msra.mxu0 %v3519
    %3535 = vmatpush.bf16.msra.mxu0 %v3517
    %3536 = vmatpush.bf16.msra.mxu0 %v3515
    %3537 = vmatpush.bf16.msra.mxu0 %v3513
    %3538 = vmatpush.bf16.msra.mxu0 %v3511
    %3539 = vmatpush.bf16.msra.mxu0 %v3509
    %3540 = vmatmul.bf16.gmra.mxu0 %v3470
    %v3541 = vpop.f32.mrf.mxu0
    %v3542 = vadd.f32 0.0, %v3541
    %v3543 = vpop.f32.mrf.mxu0
    %3544 = vdwg.mxu0
    %3547 = vrot.lane.b32.xlu0 %v3505, 8
    %v3548 = vpop.permute.xlu0 %3547
    %3549 = vrot.lane.b32.xlu0 %v3542, 8
    %v3550 = vpop.permute.xlu0 %3549
    %3553 = vst.msk [vmem:[#allocation2] sm:$0xff] %vm531, %v3548
    %3554 = vst.msk [vmem:[#allocation2 + $0x8] sm:$0xff] %vm531, %v3550
    %3555 = vrot.lane.b32.xlu0 %v3331, 112
    %v3556 = vpop.permute.xlu0 %3555
    %3557 = vrot.lane.b32.xlu0 %v3105, 112
    %v3558 = vpop.permute.xlu0 %3557
    %3559 = vrot.lane.b32.xlu0 %v3106, 112
    %v3560 = vpop.permute.xlu0 %3559
    %3561 = vrot.lane.b32.xlu0 %v3107, 112
    %v3562 = vpop.permute.xlu0 %3561
    %3563 = vrot.lane.b32.xlu0 %v3108, 112
    %v3564 = vpop.permute.xlu0 %3563
    %3565 = vrot.lane.b32.xlu0 %v3109, 112
    %v3566 = vpop.permute.xlu0 %3565
    %3567 = vrot.lane.b32.xlu0 %v3110, 112
    %v3568 = vpop.permute.xlu0 %3567
    %3569 = vrot.lane.b32.xlu0 %v3111, 112
    %v3570 = vpop.permute.xlu0 %3569
    %3571 = vrot.lane.b32.xlu0 %v3112, 112
    %v3572 = vpop.permute.xlu0 %3571
    %v3574 = vsel %vm292, %v3556, 0
    %v3577 = vsel %vm292, %v3558, 0
    %v3580 = vsel %vm292, %v3560, 0
    %v3583 = vsel %vm292, %v3562, 0
    %v3586 = vsel %vm292, %v3564, 0
    %v3589 = vsel %vm292, %v3566, 0
    %v3592 = vsel %vm292, %v3568, 0
    %v3595 = vsel %vm292, %v3570, 0
    %v3598 = vsel %vm292, %v3572, 0
    %3600 = vmatpush.bf16.xpose.msra.mxu0 %v3598
    %3601 = vmatpush.bf16.xpose.msra.mxu0 %v3595
    %3602 = vmatpush.bf16.xpose.msra.mxu0 %v3592
    %3603 = vmatpush.bf16.xpose.msra.mxu0 %v3589
    %3604 = vmatpush.bf16.xpose.msra.mxu0 %v3586
    %3605 = vmatpush.bf16.xpose.msra.mxu0 %v3583
    %3606 = vmatpush.bf16.xpose.msra.mxu0 %v3580
    %3607 = vmatpush.bf16.xpose.msra.mxu0 %v3577
    %3608 = vmatmul.bf16.gmra.mxu0 %v3574
    %v3609 = vpop.f32.mrf.mxu0
    %v3610 = vadd.f32 %v177, %v3609
    %v3611 = vpop.f32.mrf.mxu0
    %3612 = vdwg.mxu0
    %3613 = vrot.lane.b32.xlu0 %v3392, 112
    %v3614 = vpop.permute.xlu0 %3613
    %3615 = vrot.lane.b32.xlu0 %v3185, 112
    %v3616 = vpop.permute.xlu0 %3615
    %3617 = vrot.lane.b32.xlu0 %v3186, 112
    %v3618 = vpop.permute.xlu0 %3617
    %3619 = vrot.lane.b32.xlu0 %v3187, 112
    %v3620 = vpop.permute.xlu0 %3619
    %3621 = vrot.lane.b32.xlu0 %v3188, 112
    %v3622 = vpop.permute.xlu0 %3621
    %3623 = vrot.lane.b32.xlu0 %v3189, 112
    %v3624 = vpop.permute.xlu0 %3623
    %3625 = vrot.lane.b32.xlu0 %v3190, 112
    %v3626 = vpop.permute.xlu0 %3625
    %3627 = vrot.lane.b32.xlu0 %v3191, 112
    %v3628 = vpop.permute.xlu0 %3627
    %3629 = vrot.lane.b32.xlu0 %v3192, 112
    %v3630 = vpop.permute.xlu0 %3629
    %v3632 = vsel %vm292, %v3614, 0
    %v3635 = vsel %vm292, %v3616, 0
    %v3638 = vsel %vm292, %v3618, 0
    %v3641 = vsel %vm292, %v3620, 0
    %v3644 = vsel %vm292, %v3622, 0
    %v3647 = vsel %vm292, %v3624, 0
    %v3650 = vsel %vm292, %v3626, 0
    %v3653 = vsel %vm292, %v3628, 0
    %v3656 = vsel %vm292, %v3630, 0
    %3658 = vmatpush.bf16.xpose.msra.mxu0 %v3656
    %3659 = vmatpush.bf16.xpose.msra.mxu0 %v3653
    %3660 = vmatpush.bf16.xpose.msra.mxu0 %v3650
    %3661 = vmatpush.bf16.xpose.msra.mxu0 %v3647
    %3662 = vmatpush.bf16.xpose.msra.mxu0 %v3644
    %3663 = vmatpush.bf16.xpose.msra.mxu0 %v3641
    %3664 = vmatpush.bf16.xpose.msra.mxu0 %v3638
    %3665 = vmatpush.bf16.xpose.msra.mxu0 %v3635
    %3666 = vmatmul.bf16.gmra.mxu0 %v3632
    %v3667 = vpop.f32.mrf.mxu0
    %v3668 = vadd.f32 %v178, %v3667
    %v3669 = vpop.f32.mrf.mxu0
    %3670 = vdwg.mxu0
    %3671 = vmax.xlane.f32.xlu0 %v3610
    %v3672 = vpop.xlane.xlu0 %3671
    %3673 = vmax.xlane.f32.xlu0 %v3668
    %v3674 = vpop.xlane.xlu0 %3673
    %v3675 = vsub.f32 %v3610, %v3672
    %v3676 = vsub.f32 %v3668, %v3674
    %v3677 = vmul.f32 %v3675, 1.442695
    %v3678 = vpow.pop %v3677
    %v3679 = vmul.f32 %v3676, 1.442695
    %v3680 = vpow.pop %v3679
    %3681 = vadd.xlane.f32.xlu0 %v3678
    %v3682 = vpop.xlane.xlu0 %3681
    %3683 = vadd.xlane.f32.xlu0 %v3680
    %v3684 = vpop.xlane.xlu0 %3683
    %v3685 = vrcp.pop %v3682
    %v3686 = vrcp.pop %v3684
    %v3687 = vmul.f32 %v3678, %v3685
    %v3688 = vmul.f32 %v3680, %v3686
    %v3689 = vpack.c.bf16 %v3687, %v3687
    %v3690 = vpack.c.bf16 %v3688, %v3688
    %3691 = vrot.lane.b32.xlu0 %v3105, 80
    %v3692 = vpop.permute.xlu0 %3691
    %3693 = vrot.lane.b32.xlu0 %v3106, 80
    %v3694 = vpop.permute.xlu0 %3693
    %3695 = vrot.lane.b32.xlu0 %v3107, 80
    %v3696 = vpop.permute.xlu0 %3695
    %3697 = vrot.lane.b32.xlu0 %v3108, 80
    %v3698 = vpop.permute.xlu0 %3697
    %3699 = vrot.lane.b32.xlu0 %v3109, 80
    %v3700 = vpop.permute.xlu0 %3699
    %3701 = vrot.lane.b32.xlu0 %v3110, 80
    %v3702 = vpop.permute.xlu0 %3701
    %3703 = vrot.lane.b32.xlu0 %v3111, 80
    %v3704 = vpop.permute.xlu0 %3703
    %3705 = vrot.lane.b32.xlu0 %v3112, 80
    %v3706 = vpop.permute.xlu0 %3705
    %3715 = vmatpush.bf16.msra.mxu0 %v3706
    %3716 = vmatpush.bf16.msra.mxu0 %v3704
    %3717 = vmatpush.bf16.msra.mxu0 %v3702
    %3718 = vmatpush.bf16.msra.mxu0 %v3700
    %3719 = vmatpush.bf16.msra.mxu0 %v3698
    %3720 = vmatpush.bf16.msra.mxu0 %v3696
    %3721 = vmatpush.bf16.msra.mxu0 %v3694
    %3722 = vmatpush.bf16.msra.mxu0 %v3692
    %3723 = vmatmul.bf16.gmra.mxu0 %v3689
    %v3724 = vpop.f32.mrf.mxu0
    %v3725 = vadd.f32 0.0, %v3724
    %v3726 = vpop.f32.mrf.mxu0
    %3727 = vdwg.mxu0
    %3728 = vrot.lane.b32.xlu0 %v3185, 80
    %v3729 = vpop.permute.xlu0 %3728
    %3730 = vrot.lane.b32.xlu0 %v3186, 80
    %v3731 = vpop.permute.xlu0 %3730
    %3732 = vrot.lane.b32.xlu0 %v3187, 80
    %v3733 = vpop.permute.xlu0 %3732
    %3734 = vrot.lane.b32.xlu0 %v3188, 80
    %v3735 = vpop.permute.xlu0 %3734
    %3736 = vrot.lane.b32.xlu0 %v3189, 80
    %v3737 = vpop.permute.xlu0 %3736
    %3738 = vrot.lane.b32.xlu0 %v3190, 80
    %v3739 = vpop.permute.xlu0 %3738
    %3740 = vrot.lane.b32.xlu0 %v3191, 80
    %v3741 = vpop.permute.xlu0 %3740
    %3742 = vrot.lane.b32.xlu0 %v3192, 80
    %v3743 = vpop.permute.xlu0 %3742
    %3752 = vmatpush.bf16.msra.mxu0 %v3743
    %3753 = vmatpush.bf16.msra.mxu0 %v3741
    %3754 = vmatpush.bf16.msra.mxu0 %v3739
    %3755 = vmatpush.bf16.msra.mxu0 %v3737
    %3756 = vmatpush.bf16.msra.mxu0 %v3735
    %3757 = vmatpush.bf16.msra.mxu0 %v3733
    %3758 = vmatpush.bf16.msra.mxu0 %v3731
    %3759 = vmatpush.bf16.msra.mxu0 %v3729
    %3760 = vmatmul.bf16.gmra.mxu0 %v3690
    %v3761 = vpop.f32.mrf.mxu0
    %v3762 = vadd.f32 0.0, %v3761
    %v3763 = vpop.f32.mrf.mxu0
    %3764 = vdwg.mxu0
    %3767 = vrot.lane.b32.xlu0 %v3725, 16
    %v3768 = vpop.permute.xlu0 %3767
    %3769 = vrot.lane.b32.xlu0 %v3762, 16
    %v3770 = vpop.permute.xlu0 %3769
    %3773 = vst.msk [vmem:[#allocation2] sm:$0xff] %vm654, %v3768
    %3774 = vst.msk [vmem:[#allocation2 + $0x8] sm:$0xff] %vm654, %v3770
    %3775 = vrot.lane.b32.xlu0 %v3331, 104
    %v3776 = vpop.permute.xlu0 %3775
    %3777 = vrot.lane.b32.xlu0 %v3105, 104
    %v3778 = vpop.permute.xlu0 %3777
    %3779 = vrot.lane.b32.xlu0 %v3106, 104
    %v3780 = vpop.permute.xlu0 %3779
    %3781 = vrot.lane.b32.xlu0 %v3107, 104
    %v3782 = vpop.permute.xlu0 %3781
    %3783 = vrot.lane.b32.xlu0 %v3108, 104
    %v3784 = vpop.permute.xlu0 %3783
    %3785 = vrot.lane.b32.xlu0 %v3109, 104
    %v3786 = vpop.permute.xlu0 %3785
    %3787 = vrot.lane.b32.xlu0 %v3110, 104
    %v3788 = vpop.permute.xlu0 %3787
    %3789 = vrot.lane.b32.xlu0 %v3111, 104
    %v3790 = vpop.permute.xlu0 %3789
    %3791 = vrot.lane.b32.xlu0 %v3112, 104
    %v3792 = vpop.permute.xlu0 %3791
    %v3794 = vsel %vm292, %v3776, 0
    %v3797 = vsel %vm292, %v3778, 0
    %v3800 = vsel %vm292, %v3780, 0
    %v3803 = vsel %vm292, %v3782, 0
    %v3806 = vsel %vm292, %v3784, 0
    %v3809 = vsel %vm292, %v3786, 0
    %v3812 = vsel %vm292, %v3788, 0
    %v3815 = vsel %vm292, %v3790, 0
    %v3818 = vsel %vm292, %v3792, 0
    %3820 = vmatpush.bf16.xpose.msra.mxu0 %v3818
    %3821 = vmatpush.bf16.xpose.msra.mxu0 %v3815
    %3822 = vmatpush.bf16.xpose.msra.mxu0 %v3812
    %3823 = vmatpush.bf16.xpose.msra.mxu0 %v3809
    %3824 = vmatpush.bf16.xpose.msra.mxu0 %v3806
    %3825 = vmatpush.bf16.xpose.msra.mxu0 %v3803
    %3826 = vmatpush.bf16.xpose.msra.mxu0 %v3800
    %3827 = vmatpush.bf16.xpose.msra.mxu0 %v3797
    %3828 = vmatmul.bf16.gmra.mxu0 %v3794
    %v3829 = vpop.f32.mrf.mxu0
    %v3830 = vadd.f32 %v177, %v3829
    %v3831 = vpop.f32.mrf.mxu0
    %3832 = vdwg.mxu0
    %3833 = vrot.lane.b32.xlu0 %v3392, 104
    %v3834 = vpop.permute.xlu0 %3833
    %3835 = vrot.lane.b32.xlu0 %v3185, 104
    %v3836 = vpop.permute.xlu0 %3835
    %3837 = vrot.lane.b32.xlu0 %v3186, 104
    %v3838 = vpop.permute.xlu0 %3837
    %3839 = vrot.lane.b32.xlu0 %v3187, 104
    %v3840 = vpop.permute.xlu0 %3839
    %3841 = vrot.lane.b32.xlu0 %v3188, 104
    %v3842 = vpop.permute.xlu0 %3841
    %3843 = vrot.lane.b32.xlu0 %v3189, 104
    %v3844 = vpop.permute.xlu0 %3843
    %3845 = vrot.lane.b32.xlu0 %v3190, 104
    %v3846 = vpop.permute.xlu0 %3845
    %3847 = vrot.lane.b32.xlu0 %v3191, 104
    %v3848 = vpop.permute.xlu0 %3847
    %3849 = vrot.lane.b32.xlu0 %v3192, 104
    %v3850 = vpop.permute.xlu0 %3849
    %v3852 = vsel %vm292, %v3834, 0
    %v3855 = vsel %vm292, %v3836, 0
    %v3858 = vsel %vm292, %v3838, 0
    %v3861 = vsel %vm292, %v3840, 0
    %v3864 = vsel %vm292, %v3842, 0
    %v3867 = vsel %vm292, %v3844, 0
    %v3870 = vsel %vm292, %v3846, 0
    %v3873 = vsel %vm292, %v3848, 0
    %v3876 = vsel %vm292, %v3850, 0
    %3878 = vmatpush.bf16.xpose.msra.mxu0 %v3876
    %3879 = vmatpush.bf16.xpose.msra.mxu0 %v3873
    %3880 = vmatpush.bf16.xpose.msra.mxu0 %v3870
    %3881 = vmatpush.bf16.xpose.msra.mxu0 %v3867
    %3882 = vmatpush.bf16.xpose.msra.mxu0 %v3864
    %3883 = vmatpush.bf16.xpose.msra.mxu0 %v3861
    %3884 = vmatpush.bf16.xpose.msra.mxu0 %v3858
    %3885 = vmatpush.bf16.xpose.msra.mxu0 %v3855
    %3886 = vmatmul.bf16.gmra.mxu0 %v3852
    %v3887 = vpop.f32.mrf.mxu0
    %v3888 = vadd.f32 %v178, %v3887
    %v3889 = vpop.f32.mrf.mxu0
    %3890 = vdwg.mxu0
    %3891 = vmax.xlane.f32.xlu0 %v3830
    %v3892 = vpop.xlane.xlu0 %3891
    %3893 = vmax.xlane.f32.xlu0 %v3888
    %v3894 = vpop.xlane.xlu0 %3893
    %v3895 = vsub.f32 %v3830, %v3892
    %v3896 = vsub.f32 %v3888, %v3894
    %v3897 = vmul.f32 %v3895, 1.442695
    %v3898 = vpow.pop %v3897
    %v3899 = vmul.f32 %v3896, 1.442695
    %v3900 = vpow.pop %v3899
    %3901 = vadd.xlane.f32.xlu0 %v3898
    %v3902 = vpop.xlane.xlu0 %3901
    %3903 = vadd.xlane.f32.xlu0 %v3900
    %v3904 = vpop.xlane.xlu0 %3903
    %v3905 = vrcp.pop %v3902
    %v3906 = vrcp.pop %v3904
    %v3907 = vmul.f32 %v3898, %v3905
    %v3908 = vmul.f32 %v3900, %v3906
    %v3909 = vpack.c.bf16 %v3907, %v3907
    %v3910 = vpack.c.bf16 %v3908, %v3908
    %3911 = vrot.lane.b32.xlu0 %v3105, 72
    %v3912 = vpop.permute.xlu0 %3911
    %3913 = vrot.lane.b32.xlu0 %v3106, 72
    %v3914 = vpop.permute.xlu0 %3913
    %3915 = vrot.lane.b32.xlu0 %v3107, 72
    %v3916 = vpop.permute.xlu0 %3915
    %3917 = vrot.lane.b32.xlu0 %v3108, 72
    %v3918 = vpop.permute.xlu0 %3917
    %3919 = vrot.lane.b32.xlu0 %v3109, 72
    %v3920 = vpop.permute.xlu0 %3919
    %3921 = vrot.lane.b32.xlu0 %v3110, 72
    %v3922 = vpop.permute.xlu0 %3921
    %3923 = vrot.lane.b32.xlu0 %v3111, 72
    %v3924 = vpop.permute.xlu0 %3923
    %3925 = vrot.lane.b32.xlu0 %v3112, 72
    %v3926 = vpop.permute.xlu0 %3925
    %3935 = vmatpush.bf16.msra.mxu0 %v3926
    %3936 = vmatpush.bf16.msra.mxu0 %v3924
    %3937 = vmatpush.bf16.msra.mxu0 %v3922
    %3938 = vmatpush.bf16.msra.mxu0 %v3920
    %3939 = vmatpush.bf16.msra.mxu0 %v3918
    %3940 = vmatpush.bf16.msra.mxu0 %v3916
    %3941 = vmatpush.bf16.msra.mxu0 %v3914
    %3942 = vmatpush.bf16.msra.mxu0 %v3912
    %3943 = vmatmul.bf16.gmra.mxu0 %v3909
    %v3944 = vpop.f32.mrf.mxu0
    %v3945 = vadd.f32 0.0, %v3944
    %v3946 = vpop.f32.mrf.mxu0
    %3947 = vdwg.mxu0
    %3948 = vrot.lane.b32.xlu0 %v3185, 72
    %v3949 = vpop.permute.xlu0 %3948
    %3950 = vrot.lane.b32.xlu0 %v3186, 72
    %v3951 = vpop.permute.xlu0 %3950
    %3952 = vrot.lane.b32.xlu0 %v3187, 72
    %v3953 = vpop.permute.xlu0 %3952
    %3954 = vrot.lane.b32.xlu0 %v3188, 72
    %v3955 = vpop.permute.xlu0 %3954
    %3956 = vrot.lane.b32.xlu0 %v3189, 72
    %v3957 = vpop.permute.xlu0 %3956
    %3958 = vrot.lane.b32.xlu0 %v3190, 72
    %v3959 = vpop.permute.xlu0 %3958
    %3960 = vrot.lane.b32.xlu0 %v3191, 72
    %v3961 = vpop.permute.xlu0 %3960
    %3962 = vrot.lane.b32.xlu0 %v3192, 72
    %v3963 = vpop.permute.xlu0 %3962
    %3972 = vmatpush.bf16.msra.mxu0 %v3963
    %3973 = vmatpush.bf16.msra.mxu0 %v3961
    %3974 = vmatpush.bf16.msra.mxu0 %v3959
    %3975 = vmatpush.bf16.msra.mxu0 %v3957
    %3976 = vmatpush.bf16.msra.mxu0 %v3955
    %3977 = vmatpush.bf16.msra.mxu0 %v3953
    %3978 = vmatpush.bf16.msra.mxu0 %v3951
    %3979 = vmatpush.bf16.msra.mxu0 %v3949
    %3980 = vmatmul.bf16.gmra.mxu0 %v3910
    %v3981 = vpop.f32.mrf.mxu0
    %v3982 = vadd.f32 0.0, %v3981
    %v3983 = vpop.f32.mrf.mxu0
    %3984 = vdwg.mxu0
    %3987 = vrot.lane.b32.xlu0 %v3945, 24
    %v3988 = vpop.permute.xlu0 %3987
    %3989 = vrot.lane.b32.xlu0 %v3982, 24
    %v3990 = vpop.permute.xlu0 %3989
    %3993 = vst.msk [vmem:[#allocation2] sm:$0xff] %vm777, %v3988
    %3994 = vst.msk [vmem:[#allocation2 + $0x8] sm:$0xff] %vm777, %v3990
    %v3995 = vld [vmem:[#allocation2] sm:$0xff]
    %v3996 = vld [vmem:[#allocation2 + $0x8] sm:$0xff]
    %v3997 = vadd.f32 %v2826, %v3995
    %v3998 = vadd.f32 %v2827, %v3996
    %s3999 = scalar_lea.vmem %s14, 1
    %v4000 = vld [vmem:[%s3999] sm:$0x1]
    %s4001 = scalar_lea.vmem %s15, 1
    %v4002 = vld [vmem:[%s4001] sm:$0x1]
    %v4003 = vsel %vm181, %v3997, 0.0
    %4004 = vadd.xlane.f32.xlu0 %v4003
    %v4005 = vpop.xlane.xlu0 %4004
    %v4006 = vsel %vm181, %v3998, 0.0
    %4007 = vadd.xlane.f32.xlu0 %v4006
    %v4008 = vpop.xlane.xlu0 %4007
    %v4009 = vmul.f32 %v4005, %v194
    %v4010 = vmul.f32 %v4008, %v194
    %v4011 = vsub.f32 %v3997, %v4009
    %v4012 = vsub.f32 %v3998, %v4010
    %v4013 = vmul.f32 %v4011, %v4011
    %v4014 = vmul.f32 %v4012, %v4012
    %v4015 = vsel %vm181, %v4013, 0.0
    %4016 = vadd.xlane.f32.xlu0 %v4015
    %v4017 = vpop.xlane.xlu0 %4016
    %v4018 = vsel %vm181, %v4014, 0.0
    %4019 = vadd.xlane.f32.xlu0 %v4018
    %v4020 = vpop.xlane.xlu0 %4019
    %v4021 = vmul.f32 %v4017, %v194
    %v4022 = vmul.f32 %v4020, %v194
    %v4023 = vadd.f32 %v4021, 1e-05
    %v4024 = vadd.f32 %v4022, 1e-05
    %v4025 = vrsqrt.pop %v4023
    %v4026 = vmul.f32 %v4025, %v4023
    %v4027 = vmul.f32 %v4026, %v4025
    %v4028 = vmul.f32 0.5, %v4027
    %v4029 = vsub.f32 1.5, %v4028
    %v4030 = vmul.f32 %v4025, %v4029
    %vm4031 = vweird.f32 %v4023
    %vm4032 = vweird.f32 %v4025
    %vm4033 = vmor %vm4031, %vm4032
    %v4034 = vsel %vm4033, %v4025, %v4030
    %v4035 = vrsqrt.pop %v4024
    %v4036 = vmul.f32 %v4035, %v4024
    %v4037 = vmul.f32 %v4036, %v4035
    %v4038 = vmul.f32 0.5, %v4037
    %v4039 = vsub.f32 1.5, %v4038
    %v4040 = vmul.f32 %v4035, %v4039
    %vm4041 = vweird.f32 %v4024
    %vm4042 = vweird.f32 %v4035
    %vm4043 = vmor %vm4041, %vm4042
    %v4044 = vsel %vm4043, %v4035, %v4040
    %v4045 = vmul.f32 %v4011, %v4034
    %v4046 = vmul.f32 %v4012, %v4044
    %v4048 = vperm.slane %v4000, 0
    %v4050 = vmul.f32 %v4045, %v4048
    %v4051 = vmul.f32 %v4046, %v4048
    %v4053 = vperm.slane %v4002, 0
    %v4055 = vadd.f32 %v4050, %v4053
    %v4056 = vadd.f32 %v4051, %v4053
    %v4057 = vpack.c.bf16 %v4056, %v4055
    %s4058 = scalar_lea.vmem %s16, 16
    %v4059 = vld [vmem:[%s4058] sm:$0xf]
    %v4060 = vld [vmem:[%s4058 + $0x4] sm:$0xf]
    %v4061 = vld [vmem:[%s4058 + $0x8] sm:$0xf]
    %v4062 = vld [vmem:[%s4058 + $0xc] sm:$0xf]
    %s4063 = scalar_lea.vmem %s17, 1
    %v4064 = vld [vmem:[%s4063] sm:$0x1]
    %v4066 = vperm.slane %v4064, 0
    %v4072 = vunpack.c.l.b16 %v4059
    %v4073 = vunpack.c.l.b16 %v4060
    %v4074 = vunpack.c.l.b16 %v4061
    %v4075 = vunpack.c.l.b16 %v4062
    %v4076 = vpack.c.b16 %v4073, %v4072
    %v4077 = vpack.c.b16 %v4075, %v4074
    %v4081 = vsel %vm181, %v4057, 0
    %4083 = vmatpush.bf16.msra.mxu0 0
    %4084 = vmatpush.bf16.msra.mxu0 0
    %4085 = vmatpush.bf16.msra.mxu0 0
    %4086 = vmatpush.bf16.msra.mxu0 0
    %4087 = vmatpush.bf16.msra.mxu0 0
    %4088 = vmatpush.bf16.msra.mxu0 0
    %4089 = vmatpush.bf16.msra.mxu0 %v4077
    %4090 = vmatpush.bf16.msra.mxu0 %v4076
    %4091 = vmatmul.bf16.gmra.mxu0 %v4081
    %v4092 = vpop.f32.mrf.mxu0
    %v4093 = vadd.f32 %v4066, %v4092
    %v4094 = vpop.f32.mrf.mxu0
    %v4095 = vadd.f32 %v4066, %v4094
    %4096 = vdwg.mxu0
    %v4097 = vmax.f32 %v4093, 0.0
    %v4098 = vmax.f32 %v4095, 0.0
    %v4099 = vpack.c.bf16 %v4098, %v4097
    %s4100 = scalar_lea.vmem %s18, 32
    %v4101 = vld [vmem:[%s4100] sm:$0xf]
    %v4102 = vld [vmem:[%s4100 + $0x4] sm:$0xf]
    %v4103 = vld [vmem:[%s4100 + $0x8] sm:$0xf]
    %v4104 = vld [vmem:[%s4100 + $0xc] sm:$0xf]
    %v4105 = vld [vmem:[%s4100 + $0x10] sm:$0xf]
    %v4106 = vld [vmem:[%s4100 + $0x14] sm:$0xf]
    %v4107 = vld [vmem:[%s4100 + $0x18] sm:$0xf]
    %v4108 = vld [vmem:[%s4100 + $0x1c] sm:$0xf]
    %v4117 = vunpack.c.l.b16 %v4101
    %v4118 = vunpack.c.l.b16 %v4102
    %v4119 = vunpack.c.l.b16 %v4103
    %v4120 = vunpack.c.l.b16 %v4104
    %v4121 = vunpack.c.l.b16 %v4105
    %v4122 = vunpack.c.l.b16 %v4106
    %v4123 = vunpack.c.l.b16 %v4107
    %v4124 = vunpack.c.l.b16 %v4108
    %v4125 = vpack.c.b16 %v4118, %v4117
    %v4126 = vpack.c.b16 %v4120, %v4119
    %v4127 = vpack.c.b16 %v4122, %v4121
    %v4128 = vpack.c.b16 %v4124, %v4123
    %v4134 = vsel %vm2206, %v4099, 0
    %4136 = vmatpush.bf16.msra.mxu0 0
    %4137 = vmatpush.bf16.msra.mxu0 0
    %4138 = vmatpush.bf16.msra.mxu0 0
    %4139 = vmatpush.bf16.msra.mxu0 0
    %4140 = vmatpush.bf16.msra.mxu0 %v4128
    %4141 = vmatpush.bf16.msra.mxu0 %v4127
    %4142 = vmatpush.bf16.msra.mxu0 %v4126
    %4143 = vmatpush.bf16.msra.mxu0 %v4125
    %4144 = vmatmul.bf16.gmra.mxu0 %v4134
    %v4145 = vpop.f32.mrf.mxu0
    %v4146 = vadd.f32 0.0, %v4145
    %v4147 = vpop.f32.mrf.mxu0
    %v4148 = vadd.f32 0.0, %v4147
    %4149 = vdwg.mxu0
    %v4150 = vadd.f32 %v3997, %v4146
    %v4151 = vadd.f32 %v3998, %v4148
    %s4152 = scalar_lea.vmem %s19, 1
    %v4153 = vld [vmem:[%s4152] sm:$0x1]
    %v4155 = vperm.slane %v4153, 0
    %v4157 = vadd.f32 %v4150, %v4155
    %v4158 = vadd.f32 %v4151, %v4155
    %v4159 = vld [vmem:[%s20] sm:$0x1]
    %v4160 = vld [vmem:[%s21] sm:$0x1]
    %v4161 = vsel %vm181, %v4157, 0.0
    %4162 = vadd.xlane.f32.xlu0 %v4161
    %v4163 = vpop.xlane.xlu0 %4162
    %v4164 = vsel %vm181, %v4158, 0.0
    %4165 = vadd.xlane.f32.xlu0 %v4164
    %v4166 = vpop.xlane.xlu0 %4165
    %v4167 = vmul.f32 %v4163, %v194
    %v4168 = vmul.f32 %v4166, %v194
    %v4169 = vsub.f32 %v4157, %v4167
    %v4170 = vsub.f32 %v4158, %v4168
    %v4171 = vmul.f32 %v4169, %v4169
    %v4172 = vmul.f32 %v4170, %v4170
    %v4173 = vsel %vm181, %v4171, 0.0
    %4174 = vadd.xlane.f32.xlu0 %v4173
    %v4175 = vpop.xlane.xlu0 %4174
    %v4176 = vsel %vm181, %v4172, 0.0
    %4177 = vadd.xlane.f32.xlu0 %v4176
    %v4178 = vpop.xlane.xlu0 %4177
    %v4179 = vmul.f32 %v4175, %v194
    %v4180 = vmul.f32 %v4178, %v194
    %v4181 = vadd.f32 %v4179, 1e-05
    %v4182 = vadd.f32 %v4180, 1e-05
    %v4183 = vrsqrt.pop %v4181
    %v4184 = vmul.f32 %v4183, %v4181
    %v4185 = vmul.f32 %v4184, %v4183
    %v4186 = vmul.f32 0.5, %v4185
    %v4187 = vsub.f32 1.5, %v4186
    %v4188 = vmul.f32 %v4183, %v4187
    %vm4189 = vweird.f32 %v4181
    %vm4190 = vweird.f32 %v4183
    %vm4191 = vmor %vm4189, %vm4190
    %v4192 = vsel %vm4191, %v4183, %v4188
    %v4193 = vrsqrt.pop %v4182
    %v4194 = vmul.f32 %v4193, %v4182
    %v4195 = vmul.f32 %v4194, %v4193
    %v4196 = vmul.f32 0.5, %v4195
    %v4197 = vsub.f32 1.5, %v4196
    %v4198 = vmul.f32 %v4193, %v4197
    %vm4199 = vweird.f32 %v4182
    %vm4200 = vweird.f32 %v4193
    %vm4201 = vmor %vm4199, %vm4200
    %v4202 = vsel %vm4201, %v4193, %v4198
    %v4203 = vmul.f32 %v4169, %v4192
    %v4204 = vmul.f32 %v4170, %v4202
    %v4206 = vperm.slane %v4159, 0
    %v4208 = vmul.f32 %v4203, %v4206
    %v4209 = vmul.f32 %v4204, %v4206
    %v4211 = vperm.slane %v4160, 0
    %v4213 = vadd.f32 %v4208, %v4211
    %v4214 = vadd.f32 %v4209, %v4211
    %v4215 = vpack.c.bf16 %v4214, %v4213
    %v4216 = vld [vmem:[%s22] sm:$0xf]
    %v4217 = vld [vmem:[%s22 + $0x4] sm:$0xf]
    %v4218 = vld [vmem:[%s22 + $0x8] sm:$0xf]
    %v4219 = vld [vmem:[%s22 + $0xc] sm:$0xf]
    %v4224 = vunpack.c.l.b16 %v4216
    %v4225 = vunpack.c.l.b16 %v4217
    %v4226 = vunpack.c.l.b16 %v4218
    %v4227 = vunpack.c.l.b16 %v4219
    %v4228 = vpack.c.b16 %v4225, %v4224
    %v4229 = vpack.c.b16 %v4227, %v4226
    %v4233 = vsel %vm181, %v4215, 0
    %4235 = vmatpush.bf16.msra.mxu0 0
    %4236 = vmatpush.bf16.msra.mxu0 0
    %4237 = vmatpush.bf16.msra.mxu0 0
    %4238 = vmatpush.bf16.msra.mxu0 0
    %4239 = vmatpush.bf16.msra.mxu0 0
    %4240 = vmatpush.bf16.msra.mxu0 0
    %4241 = vmatpush.bf16.msra.mxu0 %v4229
    %4242 = vmatpush.bf16.msra.mxu0 %v4228
    %4243 = vmatmul.bf16.gmra.mxu0 %v4233
    %v4244 = vpop.f32.mrf.mxu0
    %v4245 = vadd.f32 0.0, %v4244
    %v4246 = vpop.f32.mrf.mxu0
    %v4247 = vadd.f32 0.0, %v4246
    %4248 = vdwg.mxu0
    %vm4249 = vcmp.ge.s32.totalorder %v149, 45
    %v4250 = vsel %vm4249, -1e+30, %v4245
    %v4251 = vsel %vm4249, -1e+30, %v4247
    %4252 = vmax.xlane.f32.xlu0 %v4250
    %v4253 = vpop.xlane.xlu0 %4252
    %4254 = vmax.xlane.f32.xlu0 %v4251
    %v4255 = vpop.xlane.xlu0 %4254
    %v4256 = vsub.f32 %v4250, %v4253
    %v4257 = vsub.f32 %v4251, %v4255
    %v4258 = vmul.f32 %v4256, 1.442695
    %v4259 = vpow.pop %v4258
    %v4260 = vmul.f32 %v4257, 1.442695
    %v4261 = vpow.pop %v4260
    %4262 = vadd.xlane.f32.xlu0 %v4259
    %v4263 = vpop.xlane.xlu0 %4262
    %4264 = vadd.xlane.f32.xlu0 %v4261
    %v4265 = vpop.xlane.xlu0 %4264
    %v4266 = vlog2.pop %v4263
    %v4267 = vmul.f32 %v4266, 0.6931472
    %v4268 = vlog2.pop %v4265
    %v4269 = vmul.f32 %v4268, 0.6931472
    %v4270 = vsub.f32 %v4256, %v4267
    %v4271 = vsub.f32 %v4257, %v4269
    %4272 = vst [vmem:[#allocation3] sm:$0xff] %v4270
    %4273 = vst [vmem:[#allocation3 + $0x8] sm:$0xff] %v4271
    // Predicated region
    $region94: #{tpu_custom_call.1} parent=1 // pred_check
      _
    $region95: #{tpu_custom_call.1} parent=1 // pred_check_branch
      %4275 = sbr.rel (0) target = $region97
    $region96: #{tpu_custom_call.1} parent=1 // pred_region
      %4277 = vsyncadd [#allocation4], 0
      %s4278 = sshll.u32 [#allocation3], 4
      %s4279 = int_to_ptr.vmem [resolvable:$true] %s4278
      %s4280 = sshll.u32 %s23, 4
      %s4281 = int_to_ptr.hbm [resolvable:$true] %s4280
      %4286 = dma.vmem_to_hbm [thread:$0]  %s4279, 256, %s4281, [#allocation4], 128, 128, 8
    $region97: #{tpu_custom_call.1} parent=1 // pred_fallthru
      _
    // Predicated region
    $region98: #{tpu_custom_call.1} parent=1 // pred_check
      _
    $region99: #{tpu_custom_call.1} parent=1 // pred_check_branch
      %4288 = sbr.rel (0) target = $region101
    $region100: #{tpu_custom_call.1} parent=1 // pred_region
      %4290 = dma.done [#allocation4], 256
    $region101: #{tpu_custom_call.1} parent=1 // pred_fallthru
      _
    %4291 = vsyncpa [#allocation4], 1

// kernel: tpu_custom_call.1
$region0: #{tpu_custom_call.1}
  #allocation0 [shape = 'u32[]', space=smem, size = 0x4, offset = 0x4, fixed_abs, tag = 'smem constant byte address 0x4 - core index']
  #allocation1 [shape = 'u32[72,128]{1,0:T(1,128)}', space=vmem, size = 0x9000, scoped, tag = 'internal scratch']
  #allocation2 [shape = 'f32[2,8,32]{2,1,0:T(8,128)}', space=vmem, size = 0x2000, scoped, tag = 'scratch operand']
  %s0 = inlined_call_operand.vmem [shape: s32[2,1,1], index: 0, kind: input, shape index: {}]
  %s1 = inlined_call_operand.vmem [shape: s32[2,1,1], index: 1, kind: input, shape index: {}]
  %s2 = inlined_call_operand.vmem [shape: f32[2,8,32], index: 2, kind: input, shape index: {}]
  %s3 = inlined_call_operand.vmem [shape: f32[2,128,32], index: 3, kind: input, shape index: {}]
  %s4 = inlined_call_operand.vmem [shape: f32[2,1,32], index: 4, kind: input, shape index: {}]
  %s5 = inlined_call_operand.vmem [shape: f32[2,1,32], index: 5, kind: input, shape index: {}]
  %s6 = inlined_call_operand.vmem [shape: bf16[2,32,96], index: 6, kind: input, shape index: {}]
  %s7 = inlined_call_operand.vmem [shape: f32[2,1,96], index: 7, kind: input, shape index: {}]
  %s8 = inlined_call_operand.vmem [shape: f32[2,1,32], index: 8, kind: input, shape index: {}]
  %s9 = inlined_call_operand.vmem [shape: f32[2,1,32], index: 9, kind: input, shape index: {}]
  %s10 = inlined_call_operand.vmem [shape: bf16[2,32,32], index: 10, kind: input, shape index: {}]
  %s11 = inlined_call_operand.vmem [shape: f32[2,1,32], index: 11, kind: input, shape index: {}]
  %s12 = inlined_call_operand.vmem [shape: bf16[2,32,64], index: 12, kind: input, shape index: {}]
  %s13 = inlined_call_operand.vmem [shape: f32[2,1,64], index: 13, kind: input, shape index: {}]
  %s14 = inlined_call_operand.vmem [shape: f32[2,1,32], index: 14, kind: input, shape index: {}]
  %s15 = inlined_call_operand.vmem [shape: f32[2,1,32], index: 15, kind: input, shape index: {}]
  %s16 = inlined_call_operand.vmem [shape: bf16[2,32,64], index: 16, kind: input, shape index: {}]
  %s17 = inlined_call_operand.vmem [shape: f32[2,1,64], index: 17, kind: input, shape index: {}]
  %s18 = inlined_call_operand.vmem [shape: bf16[2,64,32], index: 18, kind: input, shape index: {}]
  %s19 = inlined_call_operand.vmem [shape: f32[2,1,32], index: 19, kind: input, shape index: {}]
  %s20 = inlined_call_operand.vmem [shape: f32[1,32], index: 20, kind: input, shape index: {}]
  %s21 = inlined_call_operand.vmem [shape: f32[1,32], index: 21, kind: input, shape index: {}]
  %s22 = inlined_call_operand.vmem [shape: bf16[32,128], index: 22, kind: input, shape index: {}]
  %s23 = inlined_call_operand.hbm [shape: f32[2,8,128], index: 23, kind: output, shape index: {}]
  %s24 = sld [smem:[#allocation0]]
  $region102: #{tpu_custom_call.1} parent=0
    _
  %s26 = ssub.s32 1, %s24
  %s27 = scalar_select 0, %s26, %s24
  $region1: #{tpu_custom_call.1} parent=0
    #allocation3 [shape = 'u8[8192]{0}', space=vmem, size = 0x2000, scoped, tag = 'output window, operand 0, single buffered']
    #allocation4 [shape = 's32[1]{0}', space=sflag, size = 0x4, scoped, tag = 'scoped memory for tpu_custom_call.1']
    %28 = vsyncpa [#allocation4], 0
    // Predicated region
    $region2: #{tpu_custom_call.1} parent=1 // pred_check
      _
    $region3: #{tpu_custom_call.1} parent=1 // pred_check_branch
      %30 = sbr.rel (0) target = $region5
    $region4: #{tpu_custom_call.1} parent=1 // pred_region
      _
    $region5: #{tpu_custom_call.1} parent=1 // pred_fallthru
      _
    // Predicated region
    $region6: #{tpu_custom_call.1} parent=1 // pred_check
      _
    $region7: #{tpu_custom_call.1} parent=1 // pred_check_branch
      %32 = sbr.rel (0) target = $region9
    $region8: #{tpu_custom_call.1} parent=1 // pred_region
      _
    $region9: #{tpu_custom_call.1} parent=1 // pred_fallthru
      _
    // Predicated region
    $region10: #{tpu_custom_call.1} parent=1 // pred_check
      _
    $region11: #{tpu_custom_call.1} parent=1 // pred_check_branch
      %34 = sbr.rel (0) target = $region13
    $region12: #{tpu_custom_call.1} parent=1 // pred_region
      _
    $region13: #{tpu_custom_call.1} parent=1 // pred_fallthru
      _
    // Predicated region
    $region14: #{tpu_custom_call.1} parent=1 // pred_check
      _
    $region15: #{tpu_custom_call.1} parent=1 // pred_check_branch
      %36 = sbr.rel (0) target = $region17
    $region16: #{tpu_custom_call.1} parent=1 // pred_region
      _
    $region17: #{tpu_custom_call.1} parent=1 // pred_fallthru
      _
    // Predicated region
    $region18: #{tpu_custom_call.1} parent=1 // pred_check
      _
    $region19: #{tpu_custom_call.1} parent=1 // pred_check_branch
      %38 = sbr.rel (0) target = $region21
    $region20: #{tpu_custom_call.1} parent=1 // pred_region
      _
    $region21: #{tpu_custom_call.1} parent=1 // pred_fallthru
      _
    // Predicated region
    $region22: #{tpu_custom_call.1} parent=1 // pred_check
      _
    $region23: #{tpu_custom_call.1} parent=1 // pred_check_branch
      %40 = sbr.rel (0) target = $region25
    $region24: #{tpu_custom_call.1} parent=1 // pred_region
      _
    $region25: #{tpu_custom_call.1} parent=1 // pred_fallthru
      _
    // Predicated region
    $region26: #{tpu_custom_call.1} parent=1 // pred_check
      _
    $region27: #{tpu_custom_call.1} parent=1 // pred_check_branch
      %42 = sbr.rel (0) target = $region29
    $region28: #{tpu_custom_call.1} parent=1 // pred_region
      _
    $region29: #{tpu_custom_call.1} parent=1 // pred_fallthru
      _
    // Predicated region
    $region30: #{tpu_custom_call.1} parent=1 // pred_check
      _
    $region31: #{tpu_custom_call.1} parent=1 // pred_check_branch
      %44 = sbr.rel (0) target = $region33
    $region32: #{tpu_custom_call.1} parent=1 // pred_region
      _
    $region33: #{tpu_custom_call.1} parent=1 // pred_fallthru
      _
    // Predicated region
    $region34: #{tpu_custom_call.1} parent=1 // pred_check
      _
    $region35: #{tpu_custom_call.1} parent=1 // pred_check_branch
      %46 = sbr.rel (0) target = $region37
    $region36: #{tpu_custom_call.1} parent=1 // pred_region
      _
    $region37: #{tpu_custom_call.1} parent=1 // pred_fallthru
      _
    // Predicated region
    $region38: #{tpu_custom_call.1} parent=1 // pred_check
      _
    $region39: #{tpu_custom_call.1} parent=1 // pred_check_branch
      %48 = sbr.rel (0) target = $region41
    $region40: #{tpu_custom_call.1} parent=1 // pred_region
      _
    $region41: #{tpu_custom_call.1} parent=1 // pred_fallthru
      _
    // Predicated region
    $region42: #{tpu_custom_call.1} parent=1 // pred_check
      _
    $region43: #{tpu_custom_call.1} parent=1 // pred_check_branch
      %50 = sbr.rel (0) target = $region45
    $region44: #{tpu_custom_call.1} parent=1 // pred_region
      _
    $region45: #{tpu_custom_call.1} parent=1 // pred_fallthru
      _
    // Predicated region
    $region46: #{tpu_custom_call.1} parent=1 // pred_check
      _
    $region47: #{tpu_custom_call.1} parent=1 // pred_check_branch
      %52 = sbr.rel (0) target = $region49
    $region48: #{tpu_custom_call.1} parent=1 // pred_region
      _
    $region49: #{tpu_custom_call.1} parent=1 // pred_fallthru
      _
    // Predicated region
    $region50: #{tpu_custom_call.1} parent=1 // pred_check
      _
    $region51: #{tpu_custom_call.1} parent=1 // pred_check_branch
      %54 = sbr.rel (0) target = $region53
    $region52: #{tpu_custom_call.1} parent=1 // pred_region
      _
    $region53: #{tpu_custom_call.1} parent=1 // pred_fallthru
      _
    // Predicated region
    $region54: #{tpu_custom_call.1} parent=1 // pred_check
      _
    $region55: #{tpu_custom_call.1} parent=1 // pred_check_branch
      %56 = sbr.rel (0) target = $region57
    $region56: #{tpu_custom_call.1} parent=1 // pred_region
      _
    $region57: #{tpu_custom_call.1} parent=1 // pred_fallthru
      _
    // Predicated region
    $region58: #{tpu_custom_call.1} parent=1 // pred_check
      _
    $region59: #{tpu_custom_call.1} parent=1 // pred_check_branch
      %58 = sbr.rel (0) target = $region61
    $region60: #{tpu_custom_call.1} parent=1 // pred_region
      _
    $region61: #{tpu_custom_call.1} parent=1 // pred_fallthru
      _
    // Predicated region
    $region62: #{tpu_custom_call.1} parent=1 // pred_check
      _
    $region63: #{tpu_custom_call.1} parent=1 // pred_check_branch
      %60 = sbr.rel (0) target = $region65
    $region64: #{tpu_custom_call.1} parent=1 // pred_region
      _
    $region65: #{tpu_custom_call.1} parent=1 // pred_fallthru
      _
    // Predicated region
    $region66: #{tpu_custom_call.1} parent=1 // pred_check
      _
    $region67: #{tpu_custom_call.1} parent=1 // pred_check_branch
      %62 = sbr.rel (0) target = $region69
    $region68: #{tpu_custom_call.1} parent=1 // pred_region
      _
    $region69: #{tpu_custom_call.1} parent=1 // pred_fallthru
      _
    // Predicated region
    $region70: #{tpu_custom_call.1} parent=1 // pred_check
      _
    $region71: #{tpu_custom_call.1} parent=1 // pred_check_branch
      %64 = sbr.rel (0) target = $region73
    $region72: #{tpu_custom_call.1} parent=1 // pred_region
      _
    $region73: #{tpu_custom_call.1} parent=1 // pred_fallthru
      _
    // Predicated region
    $region74: #{tpu_custom_call.1} parent=1 // pred_check
      _
    $region75: #{tpu_custom_call.1} parent=1 // pred_check_branch
      %66 = sbr.rel (0) target = $region77
    $region76: #{tpu_custom_call.1} parent=1 // pred_region
      _
    $region77: #{tpu_custom_call.1} parent=1 // pred_fallthru
      _
    // Predicated region
    $region78: #{tpu_custom_call.1} parent=1 // pred_check
      _
    $region79: #{tpu_custom_call.1} parent=1 // pred_check_branch
      %68 = sbr.rel (0) target = $region81
    $region80: #{tpu_custom_call.1} parent=1 // pred_region
      _
    $region81: #{tpu_custom_call.1} parent=1 // pred_fallthru
      _
    // Predicated region
    $region82: #{tpu_custom_call.1} parent=1 // pred_check
      _
    $region83: #{tpu_custom_call.1} parent=1 // pred_check_branch
      %70 = sbr.rel (0) target = $region85
    $region84: #{tpu_custom_call.1} parent=1 // pred_region
      _
    $region85: #{tpu_custom_call.1} parent=1 // pred_fallthru
      _
    // Predicated region
    $region86: #{tpu_custom_call.1} parent=1 // pred_check
      _
    $region87: #{tpu_custom_call.1} parent=1 // pred_check_branch
      %72 = sbr.rel (0) target = $region89
    $region88: #{tpu_custom_call.1} parent=1 // pred_region
      _
    $region89: #{tpu_custom_call.1} parent=1 // pred_fallthru
      _
    // Predicated region
    $region90: #{tpu_custom_call.1} parent=1 // pred_check
      _
    $region91: #{tpu_custom_call.1} parent=1 // pred_check_branch
      %74 = sbr.rel (0) target = $region93
    $region92: #{tpu_custom_call.1} parent=1 // pred_region
      _
    $region93: #{tpu_custom_call.1} parent=1 // pred_fallthru
      _
    %v76 = vld [vmem:[%s2] sm:$0xff]
    %v77 = vld [vmem:[%s2 + $0x8] sm:$0xff]
    %v78 = vld [vmem:[%s3] sm:$0xff]
    %v79 = vld [vmem:[%s3 + $0x8] sm:$0xff]
    %v80 = vld [vmem:[%s3 + $0x10] sm:$0xff]
    %v81 = vld [vmem:[%s3 + $0x18] sm:$0xff]
    %v82 = vld [vmem:[%s3 + $0x20] sm:$0xff]
    %v83 = vld [vmem:[%s3 + $0x28] sm:$0xff]
    %v84 = vld [vmem:[%s3 + $0x30] sm:$0xff]
    %v85 = vld [vmem:[%s3 + $0x38] sm:$0xff]
    %v86 = vld [vmem:[%s3 + $0x40] sm:$0xff]
    %v87 = vld [vmem:[%s3 + $0x48] sm:$0xff]
    %v88 = vld [vmem:[%s3 + $0x50] sm:$0xff]
    %v89 = vld [vmem:[%s3 + $0x58] sm:$0xff]
    %v90 = vld [vmem:[%s3 + $0x60] sm:$0xff]
    %v91 = vld [vmem:[%s3 + $0x68] sm:$0xff]
    %v92 = vld [vmem:[%s3 + $0x70] sm:$0xff]
    %v93 = vld [vmem:[%s3 + $0x78] sm:$0xff]
    %v94 = vld [vmem:[%s3 + $0x80] sm:$0xff]
    %v95 = vld [vmem:[%s3 + $0x88] sm:$0xff]
    %v96 = vld [vmem:[%s3 + $0x90] sm:$0xff]
    %v97 = vld [vmem:[%s3 + $0x98] sm:$0xff]
    %v98 = vld [vmem:[%s3 + $0xa0] sm:$0xff]
    %v99 = vld [vmem:[%s3 + $0xa8] sm:$0xff]
    %v100 = vld [vmem:[%s3 + $0xb0] sm:$0xff]
    %v101 = vld [vmem:[%s3 + $0xb8] sm:$0xff]
    %v102 = vld [vmem:[%s3 + $0xc0] sm:$0xff]
    %v103 = vld [vmem:[%s3 + $0xc8] sm:$0xff]
    %v104 = vld [vmem:[%s3 + $0xd0] sm:$0xff]
    %v105 = vld [vmem:[%s3 + $0xd8] sm:$0xff]
    %v106 = vld [vmem:[%s3 + $0xe0] sm:$0xff]
    %v107 = vld [vmem:[%s3 + $0xe8] sm:$0xff]
    %v108 = vld [vmem:[%s3 + $0xf0] sm:$0xff]
    %v109 = vld [vmem:[%s3 + $0xf8] sm:$0xff]
    %v110 = vpack.c.bf16 %v78, %v78
    %v111 = vpack.c.bf16 %v79, %v79
    %v112 = vpack.c.bf16 %v80, %v80
    %v113 = vpack.c.bf16 %v81, %v81
    %v114 = vpack.c.bf16 %v82, %v82
    %v115 = vpack.c.bf16 %v83, %v83
    %v116 = vpack.c.bf16 %v84, %v84
    %v117 = vpack.c.bf16 %v85, %v85
    %v118 = vpack.c.bf16 %v86, %v86
    %v119 = vpack.c.bf16 %v87, %v87
    %v120 = vpack.c.bf16 %v88, %v88
    %v121 = vpack.c.bf16 %v89, %v89
    %v122 = vpack.c.bf16 %v90, %v90
    %v123 = vpack.c.bf16 %v91, %v91
    %v124 = vpack.c.bf16 %v92, %v92
    %v125 = vpack.c.bf16 %v93, %v93
    %v126 = vpack.c.bf16 %v94, %v94
    %v127 = vpack.c.bf16 %v95, %v95
    %v128 = vpack.c.bf16 %v96, %v96
    %v129 = vpack.c.bf16 %v97, %v97
    %v130 = vpack.c.bf16 %v98, %v98
    %v131 = vpack.c.bf16 %v99, %v99
    %v132 = vpack.c.bf16 %v100, %v100
    %v133 = vpack.c.bf16 %v101, %v101
    %v134 = vpack.c.bf16 %v102, %v102
    %v135 = vpack.c.bf16 %v103, %v103
    %v136 = vpack.c.bf16 %v104, %v104
    %v137 = vpack.c.bf16 %v105, %v105
    %v138 = vpack.c.bf16 %v106, %v106
    %v139 = vpack.c.bf16 %v107, %v107
    %v140 = vpack.c.bf16 %v108, %v108
    %v141 = vpack.c.bf16 %v109, %v109
    %v142 = vld [vmem:[%s0] sm:$0x1]
    %v143 = vld [vmem:[%s0 + $0x1] sm:$0x1]
    %v144 = vld [vmem:[%s1] sm:$0x1]
    %v145 = vld [vmem:[%s1 + $0x1] sm:$0x1]
    %v146 = vlaneseq
    %v147 = vshrl.u32 %v146, 7
    %v148 = vlaneseq
    %v149 = vand.u32 %v148, 127
    %v150 = vperm.slane %v142, 0
    %v151 = vperm.slane %v143, 0
    %152 = vset.pattern.permute.xlu0 0
    %153 = vperm.xlu0 %152, %v150
    %v154 = vpop.permute.xlu0 %153
    %155 = vset.pattern.permute.xlu0 0
    %156 = vperm.xlu0 %155, %v151
    %v157 = vpop.permute.xlu0 %156
    %vm158 = vcmp.ge.s32.totalorder %v149, %v154
    %vm159 = vcmp.ge.s32.totalorder %v149, %v157
    %vm160 = vcmp.gt.s32.totalorder %v149, %v147
    %v161 = vsel %vm160, 1, 0
    %vm162 = vcmp.eq.s32.totalorder %v161, 1
    %vm163 = vmor %vm158, %vm162
    %vm164 = vmor %vm159, %vm162
    %v165 = vsel %vm163, -1e+30, 0.0
    %v166 = vsel %vm164, -1e+30, 0.0
    %v167 = vperm.slane %v144, 0
    %v168 = vperm.slane %v145, 0
    %169 = vset.pattern.permute.xlu0 0
    %170 = vperm.xlu0 %169, %v167
    %v171 = vpop.permute.xlu0 %170
    %172 = vset.pattern.permute.xlu0 0
    %173 = vperm.xlu0 %172, %v168
    %v174 = vpop.permute.xlu0 %173
    %vm175 = vcmp.ge.s32.totalorder %v149, %v171
    %vm176 = vcmp.ge.s32.totalorder %v149, %v174
    %v177 = vsel %vm175, -1e+30, 0.0
    %v178 = vsel %vm176, -1e+30, 0.0
    %v179 = vld [vmem:[%s4] sm:$0x1]
    %v180 = vld [vmem:[%s5] sm:$0x1]
    %vm181 = vcmask 261120
    %v182 = vsel %vm181, %v76, 0.0
    %183 = vadd.xlane.f32.xlu0 %v182
    %v184 = vpop.xlane.xlu0 %183
    %v185 = vsel %vm181, %v77, 0.0
    %186 = vadd.xlane.f32.xlu0 %v185
    %v187 = vpop.xlane.xlu0 %186
    %v188 = vrcp.pop 32.0
    %v189 = vmul.f32 32.0, %v188
    %v190 = vsub.f32 1.0, %v189
    %v191 = vmul.f32 %v188, %v190
    %v192 = vadd.f32 %v188, %v191
    %vm193 = vweird.f32 %v188
    %v194 = vsel %vm193, %v188, %v192
    %v195 = vmul.f32 %v184, %v194
    %v196 = vmul.f32 %v187, %v194
    %v197 = vsub.f32 %v76, %v195
    %v198 = vsub.f32 %v77, %v196
    %v199 = vmul.f32 %v197, %v197
    %v200 = vmul.f32 %v198, %v198
    %v201 = vsel %vm181, %v199, 0.0
    %202 = vadd.xlane.f32.xlu0 %v201
    %v203 = vpop.xlane.xlu0 %202
    %v204 = vsel %vm181, %v200, 0.0
    %205 = vadd.xlane.f32.xlu0 %v204
    %v206 = vpop.xlane.xlu0 %205
    %v207 = vmul.f32 %v203, %v194
    %v208 = vmul.f32 %v206, %v194
    %v209 = vadd.f32 %v207, 1e-05
    %v210 = vadd.f32 %v208, 1e-05
    %v211 = vrsqrt.pop %v209
    %v212 = vmul.f32 %v211, %v209
    %v213 = vmul.f32 %v212, %v211
    %v214 = vmul.f32 0.5, %v213
    %v215 = vsub.f32 1.5, %v214
    %v216 = vmul.f32 %v211, %v215
    %vm217 = vweird.f32 %v209
    %vm218 = vweird.f32 %v211
    %vm219 = vmor %vm217, %vm218
    %v220 = vsel %vm219, %v211, %v216
    %v221 = vrsqrt.pop %v210
    %v222 = vmul.f32 %v221, %v210
    %v223 = vmul.f32 %v222, %v221
    %v224 = vmul.f32 0.5, %v223
    %v225 = vsub.f32 1.5, %v224
    %v226 = vmul.f32 %v221, %v225
    %vm227 = vweird.f32 %v210
    %vm228 = vweird.f32 %v221
    %vm229 = vmor %vm227, %vm228
    %v230 = vsel %vm229, %v221, %v226
    %v231 = vmul.f32 %v197, %v220
    %v232 = vmul.f32 %v198, %v230
    %v234 = vperm.slane %v179, 0
    %v236 = vmul.f32 %v231, %v234
    %v237 = vmul.f32 %v232, %v234
    %v239 = vperm.slane %v180, 0
    %v241 = vadd.f32 %v236, %v239
    %v242 = vadd.f32 %v237, %v239
    %v243 = vpack.c.bf16 %v242, %v241
    %v244 = vld [vmem:[%s6] sm:$0xf]
    %v245 = vld [vmem:[%s6 + $0x4] sm:$0xf]
    %v246 = vld [vmem:[%s6 + $0x8] sm:$0xf]
    %v247 = vld [vmem:[%s6 + $0xc] sm:$0xf]
    %v248 = vld [vmem:[%s7] sm:$0x1]
    %v250 = vperm.slane %v248, 0
    %v256 = vunpack.c.l.b16 %v244
    %v257 = vunpack.c.l.b16 %v245
    %v258 = vunpack.c.l.b16 %v246
    %v259 = vunpack.c.l.b16 %v247
    %v260 = vpack.c.b16 %v257, %v256
    %v261 = vpack.c.b16 %v259, %v258
    %v265 = vsel %vm181, %v243, 0
    %267 = vmatpush.bf16.msra.mxu0 0
    %268 = vmatpush.bf16.msra.mxu0 0
    %269 = vmatpush.bf16.msra.mxu0 0
    %270 = vmatpush.bf16.msra.mxu0 0
    %271 = vmatpush.bf16.msra.mxu0 0
    %272 = vmatpush.bf16.msra.mxu0 0
    %273 = vmatpush.bf16.msra.mxu0 %v261
    %274 = vmatpush.bf16.msra.mxu0 %v260
    %275 = vmatmul.bf16.gmra.mxu0 %v265
    %v276 = vpop.f32.mrf.mxu0
    %v277 = vadd.f32 %v250, %v276
    %v278 = vpop.f32.mrf.mxu0
    %v279 = vadd.f32 %v250, %v278
    %280 = vdwg.mxu0
    %v281 = vmul.f32 %v277, 0.35355338
    %v282 = vmul.f32 %v279, 0.35355338
    %v283 = vpack.c.bf16 %v277, %v277
    %v284 = vpack.c.bf16 %v279, %v279
    %v285 = vpack.c.bf16 %v281, %v281
    %v286 = vpack.c.bf16 %v282, %v282
    %v288 = vunpack.c.l.b16 %v283
    %v289 = vpack.c.b16 %v288, %v288
    %290 = vrot.lane.b32.xlu0 %v289, 96
    %v291 = vpop.permute.xlu0 %290
    %vm292 = vcmask 64512
    %v294 = vsel %vm292, %v285, 0
    %v297 = vsel %vm292, %v291, 0
    %299 = vmatpush.bf16.xpose.msra.mxu0 0
    %300 = vmatpush.bf16.xpose.msra.mxu0 0
    %301 = vmatpush.bf16.xpose.msra.mxu0 0
    %302 = vmatpush.bf16.xpose.msra.mxu0 0
    %303 = vmatpush.bf16.xpose.msra.mxu0 0
    %304 = vmatpush.bf16.xpose.msra.mxu0 0
    %305 = vmatpush.bf16.xpose.msra.mxu0 0
    %306 = vmatpush.bf16.xpose.msra.mxu0 %v297
    %307 = vmatmul.bf16.gmra.mxu0 %v294
    %v308 = vpop.f32.mrf.mxu0
    %v309 = vadd.f32 %v165, %v308
    %v310 = vpop.f32.mrf.mxu0
    %311 = vdwg.mxu0
    %v313 = vunpack.c.l.b16 %v284
    %v314 = vpack.c.b16 %v313, %v313
    %315 = vrot.lane.b32.xlu0 %v314, 96
    %v316 = vpop.permute.xlu0 %315
    %v318 = vsel %vm292, %v286, 0
    %v321 = vsel %vm292, %v316, 0
    %323 = vmatpush.bf16.xpose.msra.mxu0 0
    %324 = vmatpush.bf16.xpose.msra.mxu0 0
    %325 = vmatpush.bf16.xpose.msra.mxu0 0
    %326 = vmatpush.bf16.xpose.msra.mxu0 0
    %327 = vmatpush.bf16.xpose.msra.mxu0 0
    %328 = vmatpush.bf16.xpose.msra.mxu0 0
    %329 = vmatpush.bf16.xpose.msra.mxu0 0
    %330 = vmatpush.bf16.xpose.msra.mxu0 %v321
    %331 = vmatmul.bf16.gmra.mxu0 %v318
    %v332 = vpop.f32.mrf.mxu0
    %v333 = vadd.f32 %v166, %v332
    %v334 = vpop.f32.mrf.mxu0
    %335 = vdwg.mxu0
    %v336 = vsel %vm292, %v309, -inf
    %337 = vmax.xlane.f32.xlu0 %v336
    %v338 = vpop.xlane.xlu0 %337
    %v339 = vsel %vm292, %v333, -inf
    %340 = vmax.xlane.f32.xlu0 %v339
    %v341 = vpop.xlane.xlu0 %340
    %v342 = vsub.f32 %v309, %v338
    %v343 = vsub.f32 %v333, %v341
    %v344 = vmul.f32 %v342, 1.442695
    %v345 = vpow.pop %v344
    %v346 = vmul.f32 %v343, 1.442695
    %v347 = vpow.pop %v346
    %v348 = vsel %vm292, %v345, 0.0
    %349 = vadd.xlane.f32.xlu0 %v348
    %v350 = vpop.xlane.xlu0 %349
    %v351 = vsel %vm292, %v347, 0.0
    %352 = vadd.xlane.f32.xlu0 %v351
    %v353 = vpop.xlane.xlu0 %352
    %v354 = vrcp.pop %v350
    %v355 = vrcp.pop %v353
    %v356 = vmul.f32 %v345, %v354
    %v357 = vmul.f32 %v347, %v355
    %v358 = vpack.c.bf16 %v356, %v356
    %v359 = vpack.c.bf16 %v357, %v357
    %360 = vrot.lane.b32.xlu0 %v289, 64
    %v361 = vpop.permute.xlu0 %360
    %v363 = vsel %vm292, %v358, 0
    %vm365 = vcmask 1043456
    %v367 = vsel %vm365, %v361, 0
    %369 = vmatpush.bf16.msra.mxu0 0
    %370 = vmatpush.bf16.msra.mxu0 0
    %371 = vmatpush.bf16.msra.mxu0 0
    %372 = vmatpush.bf16.msra.mxu0 0
    %373 = vmatpush.bf16.msra.mxu0 0
    %374 = vmatpush.bf16.msra.mxu0 0
    %375 = vmatpush.bf16.msra.mxu0 0
    %376 = vmatpush.bf16.msra.mxu0 %v367
    %377 = vmatmul.bf16.gmra.mxu0 %v363
    %v378 = vpop.f32.mrf.mxu0
    %v379 = vadd.f32 0.0, %v378
    %v380 = vpop.f32.mrf.mxu0
    %381 = vdwg.mxu0
    %382 = vrot.lane.b32.xlu0 %v314, 64
    %v383 = vpop.permute.xlu0 %382
    %v385 = vsel %vm292, %v359, 0
    %v388 = vsel %vm365, %v383, 0
    %390 = vmatpush.bf16.msra.mxu0 0
    %391 = vmatpush.bf16.msra.mxu0 0
    %392 = vmatpush.bf16.msra.mxu0 0
    %393 = vmatpush.bf16.msra.mxu0 0
    %394 = vmatpush.bf16.msra.mxu0 0
    %395 = vmatpush.bf16.msra.mxu0 0
    %396 = vmatpush.bf16.msra.mxu0 0
    %397 = vmatpush.bf16.msra.mxu0 %v388
    %398 = vmatmul.bf16.gmra.mxu0 %v385
    %v399 = vpop.f32.mrf.mxu0
    %v400 = vadd.f32 0.0, %v399
    %v401 = vpop.f32.mrf.mxu0
    %402 = vdwg.mxu0
    %403 = vst.msk [vmem:[#allocation2] sm:$0xff] %vm292, %v379
    %404 = vst.msk [vmem:[#allocation2 + $0x8] sm:$0xff] %vm292, %v400
    %v406 = vunpack.c.l.b16 %v285
    %v407 = vpack.c.b16 %v406, %v406
    %408 = vrot.lane.b32.xlu0 %v407, 120
    %v409 = vpop.permute.xlu0 %408
    %410 = vrot.lane.b32.xlu0 %v289, 88
    %v411 = vpop.permute.xlu0 %410
    %v413 = vsel %vm292, %v409, 0
    %v416 = vsel %vm292, %v411, 0
    %418 = vmatpush.bf16.xpose.msra.mxu0 0
    %419 = vmatpush.bf16.xpose.msra.mxu0 0
    %420 = vmatpush.bf16.xpose.msra.mxu0 0
    %421 = vmatpush.bf16.xpose.msra.mxu0 0
    %422 = vmatpush.bf16.xpose.msra.mxu0 0
    %423 = vmatpush.bf16.xpose.msra.mxu0 0
    %424 = vmatpush.bf16.xpose.msra.mxu0 0
    %425 = vmatpush.bf16.xpose.msra.mxu0 %v416
    %426 = vmatmul.bf16.gmra.mxu0 %v413
    %v427 = vpop.f32.mrf.mxu0
    %v428 = vadd.f32 %v165, %v427
    %v429 = vpop.f32.mrf.mxu0
    %430 = vdwg.mxu0
    %v432 = vunpack.c.l.b16 %v286
    %v433 = vpack.c.b16 %v432, %v432
    %434 = vrot.lane.b32.xlu0 %v433, 120
    %v435 = vpop.permute.xlu0 %434
    %436 = vrot.lane.b32.xlu0 %v314, 88
    %v437 = vpop.permute.xlu0 %436
    %v439 = vsel %vm292, %v435, 0
    %v442 = vsel %vm292, %v437, 0
    %444 = vmatpush.bf16.xpose.msra.mxu0 0
    %445 = vmatpush.bf16.xpose.msra.mxu0 0
    %446 = vmatpush.bf16.xpose.msra.mxu0 0
    %447 = vmatpush.bf16.xpose.msra.mxu0 0
    %448 = vmatpush.bf16.xpose.msra.mxu0 0
    %449 = vmatpush.bf16.xpose.msra.mxu0 0
    %450 = vmatpush.bf16.xpose.msra.mxu0 0
    %451 = vmatpush.bf16.xpose.msra.mxu0 %v442
    %452 = vmatmul.bf16.gmra.mxu0 %v439
    %v453 = vpop.f32.mrf.mxu0
    %v454 = vadd.f32 %v166, %v453
    %v455 = vpop.f32.mrf.mxu0
    %456 = vdwg.mxu0
    %v457 = vsel %vm292, %v428, -inf
    %458 = vmax.xlane.f32.xlu0 %v457
    %v459 = vpop.xlane.xlu0 %458
    %v460 = vsel %vm292, %v454, -inf
    %461 = vmax.xlane.f32.xlu0 %v460
    %v462 = vpop.xlane.xlu0 %461
    %v463 = vsub.f32 %v428, %v459
    %v464 = vsub.f32 %v454, %v462
    %v465 = vmul.f32 %v463, 1.442695
    %v466 = vpow.pop %v465
    %v467 = vmul.f32 %v464, 1.442695
    %v468 = vpow.pop %v467
    %v469 = vsel %vm292, %v466, 0.0
    %470 = vadd.xlane.f32.xlu0 %v469
    %v471 = vpop.xlane.xlu0 %470
    %v472 = vsel %vm292, %v468, 0.0
    %473 = vadd.xlane.f32.xlu0 %v472
    %v474 = vpop.xlane.xlu0 %473
    %v475 = vrcp.pop %v471
    %v476 = vrcp.pop %v474
    %v477 = vmul.f32 %v466, %v475
    %v478 = vmul.f32 %v468, %v476
    %v479 = vpack.c.bf16 %v477, %v477
    %v480 = vpack.c.bf16 %v478, %v478
    %481 = vrot.lane.b32.xlu0 %v289, 56
    %v482 = vpop.permute.xlu0 %481
    %v484 = vsel %vm292, %v479, 0
    %v487 = vsel %vm365, %v482, 0
    %489 = vmatpush.bf16.msra.mxu0 0
    %490 = vmatpush.bf16.msra.mxu0 0
    %491 = vmatpush.bf16.msra.mxu0 0
    %492 = vmatpush.bf16.msra.mxu0 0
    %493 = vmatpush.bf16.msra.mxu0 0
    %494 = vmatpush.bf16.msra.mxu0 0
    %495 = vmatpush.bf16.msra.mxu0 0
    %496 = vmatpush.bf16.msra.mxu0 %v487
    %497 = vmatmul.bf16.gmra.mxu0 %v484
    %v498 = vpop.f32.mrf.mxu0
    %v499 = vadd.f32 0.0, %v498
    %v500 = vpop.f32.mrf.mxu0
    %501 = vdwg.mxu0
    %502 = vrot.lane.b32.xlu0 %v314, 56
    %v503 = vpop.permute.xlu0 %502
    %v505 = vsel %vm292, %v480, 0
    %v508 = vsel %vm365, %v503, 0
    %510 = vmatpush.bf16.msra.mxu0 0
    %511 = vmatpush.bf16.msra.mxu0 0
    %512 = vmatpush.bf16.msra.mxu0 0
    %513 = vmatpush.bf16.msra.mxu0 0
    %514 = vmatpush.bf16.msra.mxu0 0
    %515 = vmatpush.bf16.msra.mxu0 0
    %516 = vmatpush.bf16.msra.mxu0 0
    %517 = vmatpush.bf16.msra.mxu0 %v508
    %518 = vmatmul.bf16.gmra.mxu0 %v505
    %v519 = vpop.f32.mrf.mxu0
    %v520 = vadd.f32 0.0, %v519
    %v521 = vpop.f32.mrf.mxu0
    %522 = vdwg.mxu0
    %525 = vrot.lane.b32.xlu0 %v499, 8
    %v526 = vpop.permute.xlu0 %525
    %527 = vrot.lane.b32.xlu0 %v520, 8
    %v528 = vpop.permute.xlu0 %527
    %vm531 = vcmask 130112
    %532 = vst.msk [vmem:[#allocation2] sm:$0xff] %vm531, %v526
    %533 = vst.msk [vmem:[#allocation2 + $0x8] sm:$0xff] %vm531, %v528
    %534 = vrot.lane.b32.xlu0 %v407, 112
    %v535 = vpop.permute.xlu0 %534
    %536 = vrot.lane.b32.xlu0 %v289, 80
    %v537 = vpop.permute.xlu0 %536
    %v539 = vsel %vm292, %v535, 0
    %v542 = vsel %vm292, %v537, 0
    %544 = vmatpush.bf16.xpose.msra.mxu0 0
    %545 = vmatpush.bf16.xpose.msra.mxu0 0
    %546 = vmatpush.bf16.xpose.msra.mxu0 0
    %547 = vmatpush.bf16.xpose.msra.mxu0 0
    %548 = vmatpush.bf16.xpose.msra.mxu0 0
    %549 = vmatpush.bf16.xpose.msra.mxu0 0
    %550 = vmatpush.bf16.xpose.msra.mxu0 0
    %551 = vmatpush.bf16.xpose.msra.mxu0 %v542
    %552 = vmatmul.bf16.gmra.mxu0 %v539
    %v553 = vpop.f32.mrf.mxu0
    %v554 = vadd.f32 %v165, %v553
    %v555 = vpop.f32.mrf.mxu0
    %556 = vdwg.mxu0
    %557 = vrot.lane.b32.xlu0 %v433, 112
    %v558 = vpop.permute.xlu0 %557
    %559 = vrot.lane.b32.xlu0 %v314, 80
    %v560 = vpop.permute.xlu0 %559
    %v562 = vsel %vm292, %v558, 0
    %v565 = vsel %vm292, %v560, 0
    %567 = vmatpush.bf16.xpose.msra.mxu0 0
    %568 = vmatpush.bf16.xpose.msra.mxu0 0
    %569 = vmatpush.bf16.xpose.msra.mxu0 0
    %570 = vmatpush.bf16.xpose.msra.mxu0 0
    %571 = vmatpush.bf16.xpose.msra.mxu0 0
    %572 = vmatpush.bf16.xpose.msra.mxu0 0
    %573 = vmatpush.bf16.xpose.msra.mxu0 0
    %574 = vmatpush.bf16.xpose.msra.mxu0 %v565
    %575 = vmatmul.bf16.gmra.mxu0 %v562
    %v576 = vpop.f32.mrf.mxu0
    %v577 = vadd.f32 %v166, %v576
    %v578 = vpop.f32.mrf.mxu0
    %579 = vdwg.mxu0
    %v580 = vsel %vm292, %v554, -inf
    %581 = vmax.xlane.f32.xlu0 %v580
    %v582 = vpop.xlane.xlu0 %581
    %v583 = vsel %vm292, %v577, -inf
    %584 = vmax.xlane.f32.xlu0 %v583
    %v585 = vpop.xlane.xlu0 %584
    %v586 = vsub.f32 %v554, %v582
    %v587 = vsub.f32 %v577, %v585
    %v588 = vmul.f32 %v586, 1.442695
    %v589 = vpow.pop %v588
    %v590 = vmul.f32 %v587, 1.442695
    %v591 = vpow.pop %v590
    %v592 = vsel %vm292, %v589, 0.0
    %593 = vadd.xlane.f32.xlu0 %v592
    %v594 = vpop.xlane.xlu0 %593
    %v595 = vsel %vm292, %v591, 0.0
    %596 = vadd.xlane.f32.xlu0 %v595
    %v597 = vpop.xlane.xlu0 %596
    %v598 = vrcp.pop %v594
    %v599 = vrcp.pop %v597
    %v600 = vmul.f32 %v589, %v598
    %v601 = vmul.f32 %v591, %v599
    %v602 = vpack.c.bf16 %v600, %v600
    %v603 = vpack.c.bf16 %v601, %v601
    %604 = vrot.lane.b32.xlu0 %v289, 48
    %v605 = vpop.permute.xlu0 %604
    %v607 = vsel %vm292, %v602, 0
    %v610 = vsel %vm365, %v605, 0
    %612 = vmatpush.bf16.msra.mxu0 0
    %613 = vmatpush.bf16.msra.mxu0 0
    %614 = vmatpush.bf16.msra.mxu0 0
    %615 = vmatpush.bf16.msra.mxu0 0
    %616 = vmatpush.bf16.msra.mxu0 0
    %617 = vmatpush.bf16.msra.mxu0 0
    %618 = vmatpush.bf16.msra.mxu0 0
    %619 = vmatpush.bf16.msra.mxu0 %v610
    %620 = vmatmul.bf16.gmra.mxu0 %v607
    %v621 = vpop.f32.mrf.mxu0
    %v622 = vadd.f32 0.0, %v621
    %v623 = vpop.f32.mrf.mxu0
    %624 = vdwg.mxu0
    %625 = vrot.lane.b32.xlu0 %v314, 48
    %v626 = vpop.permute.xlu0 %625
    %v628 = vsel %vm292, %v603, 0
    %v631 = vsel %vm365, %v626, 0
    %633 = vmatpush.bf16.msra.mxu0 0
    %634 = vmatpush.bf16.msra.mxu0 0
    %635 = vmatpush.bf16.msra.mxu0 0
    %636 = vmatpush.bf16.msra.mxu0 0
    %637 = vmatpush.bf16.msra.mxu0 0
    %638 = vmatpush.bf16.msra.mxu0 0
    %639 = vmatpush.bf16.msra.mxu0 0
    %640 = vmatpush.bf16.msra.mxu0 %v631
    %641 = vmatmul.bf16.gmra.mxu0 %v628
    %v642 = vpop.f32.mrf.mxu0
    %v643 = vadd.f32 0.0, %v642
    %v644 = vpop.f32.mrf.mxu0
    %645 = vdwg.mxu0
    %648 = vrot.lane.b32.xlu0 %v622, 16
    %v649 = vpop.permute.xlu0 %648
    %650 = vrot.lane.b32.xlu0 %v643, 16
    %v651 = vpop.permute.xlu0 %650
    %vm654 = vcmask 195712
    %655 = vst.msk [vmem:[#allocation2] sm:$0xff] %vm654, %v649
    %656 = vst.msk [vmem:[#allocation2 + $0x8] sm:$0xff] %vm654, %v651
    %657 = vrot.lane.b32.xlu0 %v407, 104
    %v658 = vpop.permute.xlu0 %657
    %659 = vrot.lane.b32.xlu0 %v289, 72
    %v660 = vpop.permute.xlu0 %659
    %v662 = vsel %vm292, %v658, 0
    %v665 = vsel %vm292, %v660, 0
    %667 = vmatpush.bf16.xpose.msra.mxu0 0
    %668 = vmatpush.bf16.xpose.msra.mxu0 0
    %669 = vmatpush.bf16.xpose.msra.mxu0 0
    %670 = vmatpush.bf16.xpose.msra.mxu0 0
    %671 = vmatpush.bf16.xpose.msra.mxu0 0
    %672 = vmatpush.bf16.xpose.msra.mxu0 0
    %673 = vmatpush.bf16.xpose.msra.mxu0 0
    %674 = vmatpush.bf16.xpose.msra.mxu0 %v665
    %675 = vmatmul.bf16.gmra.mxu0 %v662
    %v676 = vpop.f32.mrf.mxu0
    %v677 = vadd.f32 %v165, %v676
    %v678 = vpop.f32.mrf.mxu0
    %679 = vdwg.mxu0
    %680 = vrot.lane.b32.xlu0 %v433, 104
    %v681 = vpop.permute.xlu0 %680
    %682 = vrot.lane.b32.xlu0 %v314, 72
    %v683 = vpop.permute.xlu0 %682
    %v685 = vsel %vm292, %v681, 0
    %v688 = vsel %vm292, %v683, 0
    %690 = vmatpush.bf16.xpose.msra.mxu0 0
    %691 = vmatpush.bf16.xpose.msra.mxu0 0
    %692 = vmatpush.bf16.xpose.msra.mxu0 0
    %693 = vmatpush.bf16.xpose.msra.mxu0 0
    %694 = vmatpush.bf16.xpose.msra.mxu0 0
    %695 = vmatpush.bf16.xpose.msra.mxu0 0
    %696 = vmatpush.bf16.xpose.msra.mxu0 0
    %697 = vmatpush.bf16.xpose.msra.mxu0 %v688
    %698 = vmatmul.bf16.gmra.mxu0 %v685
    %v699 = vpop.f32.mrf.mxu0
    %v700 = vadd.f32 %v166, %v699
    %v701 = vpop.f32.mrf.mxu0
    %702 = vdwg.mxu0
    %v703 = vsel %vm292, %v677, -inf
    %704 = vmax.xlane.f32.xlu0 %v703
    %v705 = vpop.xlane.xlu0 %704
    %v706 = vsel %vm292, %v700, -inf
    %707 = vmax.xlane.f32.xlu0 %v706
    %v708 = vpop.xlane.xlu0 %707
    %v709 = vsub.f32 %v677, %v705
    %v710 = vsub.f32 %v700, %v708
    %v711 = vmul.f32 %v709, 1.442695
    %v712 = vpow.pop %v711
    %v713 = vmul.f32 %v710, 1.442695
    %v714 = vpow.pop %v713
    %v715 = vsel %vm292, %v712, 0.0
    %716 = vadd.xlane.f32.xlu0 %v715
    %v717 = vpop.xlane.xlu0 %716
    %v718 = vsel %vm292, %v714, 0.0
    %719 = vadd.xlane.f32.xlu0 %v718
    %v720 = vpop.xlane.xlu0 %719
    %v721 = vrcp.pop %v717
    %v722 = vrcp.pop %v720
    %v723 = vmul.f32 %v712, %v721
    %v724 = vmul.f32 %v714, %v722
    %v725 = vpack.c.bf16 %v723, %v723
    %v726 = vpack.c.bf16 %v724, %v724
    %727 = vrot.lane.b32.xlu0 %v289, 40
    %v728 = vpop.permute.xlu0 %727
    %v730 = vsel %vm292, %v725, 0
    %v733 = vsel %vm365, %v728, 0
    %735 = vmatpush.bf16.msra.mxu0 0
    %736 = vmatpush.bf16.msra.mxu0 0
    %737 = vmatpush.bf16.msra.mxu0 0
    %738 = vmatpush.bf16.msra.mxu0 0
    %739 = vmatpush.bf16.msra.mxu0 0
    %740 = vmatpush.bf16.msra.mxu0 0
    %741 = vmatpush.bf16.msra.mxu0 0
    %742 = vmatpush.bf16.msra.mxu0 %v733
    %743 = vmatmul.bf16.gmra.mxu0 %v730
    %v744 = vpop.f32.mrf.mxu0
    %v745 = vadd.f32 0.0, %v744
    %v746 = vpop.f32.mrf.mxu0
    %747 = vdwg.mxu0
    %748 = vrot.lane.b32.xlu0 %v314, 40
    %v749 = vpop.permute.xlu0 %748
    %v751 = vsel %vm292, %v726, 0
    %v754 = vsel %vm365, %v749, 0
    %756 = vmatpush.bf16.msra.mxu0 0
    %757 = vmatpush.bf16.msra.mxu0 0
    %758 = vmatpush.bf16.msra.mxu0 0
    %759 = vmatpush.bf16.msra.mxu0 0
    %760 = vmatpush.bf16.msra.mxu0 0
    %761 = vmatpush.bf16.msra.mxu0 0
    %762 = vmatpush.bf16.msra.mxu0 0
    %763 = vmatpush.bf16.msra.mxu0 %v754
    %764 = vmatmul.bf16.gmra.mxu0 %v751
    %v765 = vpop.f32.mrf.mxu0
    %v766 = vadd.f32 0.0, %v765
    %v767 = vpop.f32.mrf.mxu0
    %768 = vdwg.mxu0
    %771 = vrot.lane.b32.xlu0 %v745, 24
    %v772 = vpop.permute.xlu0 %771
    %773 = vrot.lane.b32.xlu0 %v766, 24
    %v774 = vpop.permute.xlu0 %773
    %vm777 = vcmask 261312
    %778 = vst.msk [vmem:[#allocation2] sm:$0xff] %vm777, %v772
    %779 = vst.msk [vmem:[#allocation2 + $0x8] sm:$0xff] %vm777, %v774
    %v780 = vld [vmem:[#allocation2] sm:$0xff]
    %v781 = vld [vmem:[#allocation2 + $0x8] sm:$0xff]
    %v782 = vadd.f32 %v76, %v780
    %v783 = vadd.f32 %v77, %v781
    %v784 = vld [vmem:[%s8] sm:$0x1]
    %v785 = vld [vmem:[%s9] sm:$0x1]
    %v786 = vsel %vm181, %v782, 0.0
    %787 = vadd.xlane.f32.xlu0 %v786
    %v788 = vpop.xlane.xlu0 %787
    %v789 = vsel %vm181, %v783, 0.0
    %790 = vadd.xlane.f32.xlu0 %v789
    %v791 = vpop.xlane.xlu0 %790
    %v792 = vmul.f32 %v788, %v194
    %v793 = vmul.f32 %v791, %v194
    %v794 = vsub.f32 %v782, %v792
    %v795 = vsub.f32 %v783, %v793
    %v796 = vmul.f32 %v794, %v794
    %v797 = vmul.f32 %v795, %v795
    %v798 = vsel %vm181, %v796, 0.0
    %799 = vadd.xlane.f32.xlu0 %v798
    %v800 = vpop.xlane.xlu0 %799
    %v801 = vsel %vm181, %v797, 0.0
    %802 = vadd.xlane.f32.xlu0 %v801
    %v803 = vpop.xlane.xlu0 %802
    %v804 = vmul.f32 %v800, %v194
    %v805 = vmul.f32 %v803, %v194
    %v806 = vadd.f32 %v804, 1e-05
    %v807 = vadd.f32 %v805, 1e-05
    %v808 = vrsqrt.pop %v806
    %v809 = vmul.f32 %v808, %v806
    %v810 = vmul.f32 %v809, %v808
    %v811 = vmul.f32 0.5, %v810
    %v812 = vsub.f32 1.5, %v811
    %v813 = vmul.f32 %v808, %v812
    %vm814 = vweird.f32 %v806
    %vm815 = vweird.f32 %v808
    %vm816 = vmor %vm814, %vm815
    %v817 = vsel %vm816, %v808, %v813
    %v818 = vrsqrt.pop %v807
    %v819 = vmul.f32 %v818, %v807
    %v820 = vmul.f32 %v819, %v818
    %v821 = vmul.f32 0.5, %v820
    %v822 = vsub.f32 1.5, %v821
    %v823 = vmul.f32 %v818, %v822
    %vm824 = vweird.f32 %v807
    %vm825 = vweird.f32 %v818
    %vm826 = vmor %vm824, %vm825
    %v827 = vsel %vm826, %v818, %v823
    %v828 = vmul.f32 %v794, %v817
    %v829 = vmul.f32 %v795, %v827
    %v831 = vperm.slane %v784, 0
    %v833 = vmul.f32 %v828, %v831
    %v834 = vmul.f32 %v829, %v831
    %v836 = vperm.slane %v785, 0
    %v838 = vadd.f32 %v833, %v836
    %v839 = vadd.f32 %v834, %v836
    %v840 = vpack.c.bf16 %v839, %v838
    %v841 = vld [vmem:[%s10] sm:$0xf]
    %v842 = vld [vmem:[%s10 + $0x4] sm:$0xf]
    %v843 = vld [vmem:[%s10 + $0x8] sm:$0xf]
    %v844 = vld [vmem:[%s10 + $0xc] sm:$0xf]
    %v845 = vld [vmem:[%s11] sm:$0x1]
    %v847 = vperm.slane %v845, 0
    %v853 = vunpack.c.l.b16 %v841
    %v854 = vunpack.c.l.b16 %v842
    %v855 = vunpack.c.l.b16 %v843
    %v856 = vunpack.c.l.b16 %v844
    %v857 = vpack.c.b16 %v854, %v853
    %v858 = vpack.c.b16 %v856, %v855
    %v862 = vsel %vm181, %v840, 0
    %864 = vmatpush.bf16.msra.mxu0 0
    %865 = vmatpush.bf16.msra.mxu0 0
    %866 = vmatpush.bf16.msra.mxu0 0
    %867 = vmatpush.bf16.msra.mxu0 0
    %868 = vmatpush.bf16.msra.mxu0 0
    %869 = vmatpush.bf16.msra.mxu0 0
    %870 = vmatpush.bf16.msra.mxu0 %v858
    %871 = vmatpush.bf16.msra.mxu0 %v857
    %872 = vmatmul.bf16.gmra.mxu0 %v862
    %v873 = vpop.f32.mrf.mxu0
    %v874 = vadd.f32 %v847, %v873
    %v875 = vpop.f32.mrf.mxu0
    %v876 = vadd.f32 %v847, %v875
    %877 = vdwg.mxu0
    %v878 = vld [vmem:[%s12] sm:$0xf]
    %v879 = vld [vmem:[%s12 + $0x4] sm:$0xf]
    %v880 = vld [vmem:[%s12 + $0x8] sm:$0xf]
    %v881 = vld [vmem:[%s12 + $0xc] sm:$0xf]
    %v882 = vld [vmem:[%s13] sm:$0x1]
    %v884 = vperm.slane %v882, 0
    %v918 = vunpack.c.l.b16 %v110
    %v919 = vunpack.c.l.b16 %v111
    %v920 = vunpack.c.l.b16 %v112
    %v921 = vunpack.c.l.b16 %v113
    %v922 = vunpack.c.l.b16 %v114
    %v923 = vunpack.c.l.b16 %v115
    %v924 = vunpack.c.l.b16 %v116
    %v925 = vunpack.c.l.b16 %v117
    %v926 = vunpack.c.l.b16 %v118
    %v927 = vunpack.c.l.b16 %v119
    %v928 = vunpack.c.l.b16 %v120
    %v929 = vunpack.c.l.b16 %v121
    %v930 = vunpack.c.l.b16 %v122
    %v931 = vunpack.c.l.b16 %v123
    %v932 = vunpack.c.l.b16 %v124
    %v933 = vunpack.c.l.b16 %v125
    %v934 = vunpack.c.l.b16 %v126
    %v935 = vunpack.c.l.b16 %v127
    %v936 = vunpack.c.l.b16 %v128
    %v937 = vunpack.c.l.b16 %v129
    %v938 = vunpack.c.l.b16 %v130
    %v939 = vunpack.c.l.b16 %v131
    %v940 = vunpack.c.l.b16 %v132
    %v941 = vunpack.c.l.b16 %v133
    %v942 = vunpack.c.l.b16 %v134
    %v943 = vunpack.c.l.b16 %v135
    %v944 = vunpack.c.l.b16 %v136
    %v945 = vunpack.c.l.b16 %v137
    %v946 = vunpack.c.l.b16 %v138
    %v947 = vunpack.c.l.b16 %v139
    %v948 = vunpack.c.l.b16 %v140
    %v949 = vunpack.c.l.b16 %v141
    %v950 = vpack.c.b16 %v919, %v918
    %v951 = vpack.c.b16 %v921, %v920
    %v952 = vpack.c.b16 %v923, %v922
    %v953 = vpack.c.b16 %v925, %v924
    %v954 = vpack.c.b16 %v927, %v926
    %v955 = vpack.c.b16 %v929, %v928
    %v956 = vpack.c.b16 %v931, %v930
    %v957 = vpack.c.b16 %v933, %v932
    %v958 = vpack.c.b16 %v935, %v934
    %v959 = vpack.c.b16 %v937, %v936
    %v960 = vpack.c.b16 %v939, %v938
    %v961 = vpack.c.b16 %v941, %v940
    %v962 = vpack.c.b16 %v943, %v942
    %v963 = vpack.c.b16 %v945, %v944
    %v964 = vpack.c.b16 %v947, %v946
    %v965 = vpack.c.b16 %v949, %v948
    %v970 = vunpack.c.l.b16 %v878
    %v971 = vunpack.c.l.b16 %v879
    %v972 = vunpack.c.l.b16 %v880
    %v973 = vunpack.c.l.b16 %v881
    %v974 = vpack.c.b16 %v971, %v970
    %v975 = vpack.c.b16 %v973, %v972
    %v979 = vsel %vm181, %v950, 0
    %v982 = vsel %vm181, %v951, 0
    %v985 = vsel %vm181, %v952, 0
    %v988 = vsel %vm181, %v953, 0
    %v991 = vsel %vm181, %v954, 0
    %v994 = vsel %vm181, %v955, 0
    %v997 = vsel %vm181, %v956, 0
    %v1000 = vsel %vm181, %v957, 0
    %v1003 = vsel %vm181, %v958, 0
    %v1006 = vsel %vm181, %v959, 0
    %v1009 = vsel %vm181, %v960, 0
    %v1012 = vsel %vm181, %v961, 0
    %v1015 = vsel %vm181, %v962, 0
    %v1018 = vsel %vm181, %v963, 0
    %v1021 = vsel %vm181, %v964, 0
    %v1024 = vsel %vm181, %v965, 0
    %1026 = vmatpush.bf16.msra.mxu0 0
    %1027 = vmatpush.bf16.msra.mxu0 0
    %1028 = vmatpush.bf16.msra.mxu0 0
    %1029 = vmatpush.bf16.msra.mxu0 0
    %1030 = vmatpush.bf16.msra.mxu0 0
    %1031 = vmatpush.bf16.msra.mxu0 0
    %1032 = vmatpush.bf16.msra.mxu0 %v975
    %1033 = vmatpush.bf16.msra.mxu0 %v974
    %1034 = vmatmul.bf16.gmra.mxu0 %v979
    %v1035 = vpop.f32.mrf.mxu0
    %v1036 = vadd.f32 %v884, %v1035
    %v1037 = vpop.f32.mrf.mxu0
    %v1038 = vadd.f32 %v884, %v1037
    %1039 = vmatmul.bf16.gmra.mxu0 %v982
    %v1040 = vpop.f32.mrf.mxu0
    %v1041 = vadd.f32 %v884, %v1040
    %v1042 = vpop.f32.mrf.mxu0
    %v1043 = vadd.f32 %v884, %v1042
    %1044 = vmatmul.bf16.gmra.mxu0 %v985
    %v1045 = vpop.f32.mrf.mxu0
    %v1046 = vadd.f32 %v884, %v1045
    %v1047 = vpop.f32.mrf.mxu0
    %v1048 = vadd.f32 %v884, %v1047
    %1049 = vmatmul.bf16.gmra.mxu0 %v988
    %v1050 = vpop.f32.mrf.mxu0
    %v1051 = vadd.f32 %v884, %v1050
    %v1052 = vpop.f32.mrf.mxu0
    %v1053 = vadd.f32 %v884, %v1052
    %1054 = vmatmul.bf16.gmra.mxu0 %v991
    %v1055 = vpop.f32.mrf.mxu0
    %v1056 = vadd.f32 %v884, %v1055
    %v1057 = vpop.f32.mrf.mxu0
    %v1058 = vadd.f32 %v884, %v1057
    %1059 = vmatmul.bf16.gmra.mxu0 %v994
    %v1060 = vpop.f32.mrf.mxu0
    %v1061 = vadd.f32 %v884, %v1060
    %v1062 = vpop.f32.mrf.mxu0
    %v1063 = vadd.f32 %v884, %v1062
    %1064 = vmatmul.bf16.gmra.mxu0 %v997
    %v1065 = vpop.f32.mrf.mxu0
    %v1066 = vadd.f32 %v884, %v1065
    %v1067 = vpop.f32.mrf.mxu0
    %v1068 = vadd.f32 %v884, %v1067
    %1069 = vmatmul.bf16.gmra.mxu0 %v1000
    %v1070 = vpop.f32.mrf.mxu0
    %v1071 = vadd.f32 %v884, %v1070
    %v1072 = vpop.f32.mrf.mxu0
    %v1073 = vadd.f32 %v884, %v1072
    %1074 = vmatmul.bf16.gmra.mxu0 %v1003
    %v1075 = vpop.f32.mrf.mxu0
    %v1076 = vadd.f32 %v884, %v1075
    %v1077 = vpop.f32.mrf.mxu0
    %v1078 = vadd.f32 %v884, %v1077
    %1079 = vmatmul.bf16.gmra.mxu0 %v1006
    %v1080 = vpop.f32.mrf.mxu0
    %v1081 = vadd.f32 %v884, %v1080
    %v1082 = vpop.f32.mrf.mxu0
    %v1083 = vadd.f32 %v884, %v1082
    %1084 = vmatmul.bf16.gmra.mxu0 %v1009
    %v1085 = vpop.f32.mrf.mxu0
    %v1086 = vadd.f32 %v884, %v1085
    %v1087 = vpop.f32.mrf.mxu0
    %v1088 = vadd.f32 %v884, %v1087
    %1089 = vmatmul.bf16.gmra.mxu0 %v1012
    %v1090 = vpop.f32.mrf.mxu0
    %v1091 = vadd.f32 %v884, %v1090
    %v1092 = vpop.f32.mrf.mxu0
    %v1093 = vadd.f32 %v884, %v1092
    %1094 = vmatmul.bf16.gmra.mxu0 %v1015
    %v1095 = vpop.f32.mrf.mxu0
    %v1096 = vadd.f32 %v884, %v1095
    %v1097 = vpop.f32.mrf.mxu0
    %v1098 = vadd.f32 %v884, %v1097
    %1099 = vmatmul.bf16.gmra.mxu0 %v1018
    %v1100 = vpop.f32.mrf.mxu0
    %v1101 = vadd.f32 %v884, %v1100
    %v1102 = vpop.f32.mrf.mxu0
    %v1103 = vadd.f32 %v884, %v1102
    %1104 = vmatmul.bf16.gmra.mxu0 %v1021
    %v1105 = vpop.f32.mrf.mxu0
    %v1106 = vadd.f32 %v884, %v1105
    %v1107 = vpop.f32.mrf.mxu0
    %v1108 = vadd.f32 %v884, %v1107
    %1109 = vmatmul.bf16.gmra.mxu0 %v1024
    %v1110 = vpop.f32.mrf.mxu0
    %v1111 = vadd.f32 %v884, %v1110
    %v1112 = vpop.f32.mrf.mxu0
    %v1113 = vadd.f32 %v884, %v1112
    %1114 = vdwg.mxu0
    %v1115 = vpack.c.bf16 %v1036, %v1036
    %v1116 = vpack.c.bf16 %v1038, %v1038
    %v1117 = vpack.c.bf16 %v1041, %v1041
    %v1118 = vpack.c.bf16 %v1043, %v1043
    %v1119 = vpack.c.bf16 %v1046, %v1046
    %v1120 = vpack.c.bf16 %v1048, %v1048
    %v1121 = vpack.c.bf16 %v1051, %v1051
    %v1122 = vpack.c.bf16 %v1053, %v1053
    %v1123 = vpack.c.bf16 %v1056, %v1056
    %v1124 = vpack.c.bf16 %v1058, %v1058
    %v1125 = vpack.c.bf16 %v1061, %v1061
    %v1126 = vpack.c.bf16 %v1063, %v1063
    %v1127 = vpack.c.bf16 %v1066, %v1066
    %v1128 = vpack.c.bf16 %v1068, %v1068
    %v1129 = vpack.c.bf16 %v1071, %v1071
    %v1130 = vpack.c.bf16 %v1073, %v1073
    %v1131 = vpack.c.bf16 %v1076, %v1076
    %v1132 = vpack.c.bf16 %v1078, %v1078
    %v1133 = vpack.c.bf16 %v1081, %v1081
    %v1134 = vpack.c.bf16 %v1083, %v1083
    %v1135 = vpack.c.bf16 %v1086, %v1086
    %v1136 = vpack.c.bf16 %v1088, %v1088
    %v1137 = vpack.c.bf16 %v1091, %v1091
    %v1138 = vpack.c.bf16 %v1093, %v1093
    %v1139 = vpack.c.bf16 %v1096, %v1096
    %v1140 = vpack.c.bf16 %v1098, %v1098
    %v1141 = vpack.c.bf16 %v1101, %v1101
    %v1142 = vpack.c.bf16 %v1103, %v1103
    %v1143 = vpack.c.bf16 %v1106, %v1106
    %v1144 = vpack.c.bf16 %v1108, %v1108
    %v1145 = vpack.c.bf16 %v1111, %v1111
    %v1146 = vpack.c.bf16 %v1113, %v1113
    %v1147 = vmul.f32 %v874, 0.35355338
    %v1148 = vmul.f32 %v876, 0.35355338
    %v1149 = vpack.c.bf16 %v1147, %v1147
    %v1150 = vpack.c.bf16 %v1148, %v1148
    %v1167 = vunpack.c.l.b16 %v1115
    %v1168 = vunpack.c.l.b16 %v1116
    %v1169 = vunpack.c.l.b16 %v1117
    %v1170 = vunpack.c.l.b16 %v1118
    %v1171 = vunpack.c.l.b16 %v1119
    %v1172 = vunpack.c.l.b16 %v1120
    %v1173 = vunpack.c.l.b16 %v1121
    %v1174 = vunpack.c.l.b16 %v1122
    %v1175 = vunpack.c.l.b16 %v1123
    %v1176 = vunpack.c.l.b16 %v1124
    %v1177 = vunpack.c.l.b16 %v1125
    %v1178 = vunpack.c.l.b16 %v1126
    %v1179 = vunpack.c.l.b16 %v1127
    %v1180 = vunpack.c.l.b16 %v1128
    %v1181 = vunpack.c.l.b16 %v1129
    %v1182 = vunpack.c.l.b16 %v1130
    %v1183 = vpack.c.b16 %v1168, %v1167
    %v1184 = vpack.c.b16 %v1170, %v1169
    %v1185 = vpack.c.b16 %v1172, %v1171
    %v1186 = vpack.c.b16 %v1174, %v1173
    %v1187 = vpack.c.b16 %v1176, %v1175
    %v1188 = vpack.c.b16 %v1178, %v1177
    %v1189 = vpack.c.b16 %v1180, %v1179
    %v1190 = vpack.c.b16 %v1182, %v1181
    %v1192 = vsel %vm292, %v1149, 0
    %v1195 = vsel %vm292, %v1183, 0
    %v1198 = vsel %vm292, %v1184, 0
    %v1201 = vsel %vm292, %v1185, 0
    %v1204 = vsel %vm292, %v1186, 0
    %v1207 = vsel %vm292, %v1187, 0
    %v1210 = vsel %vm292, %v1188, 0
    %v1213 = vsel %vm292, %v1189, 0
    %v1216 = vsel %vm292, %v1190, 0
    %1218 = vmatpush.bf16.xpose.msra.mxu0 %v1216
    %1219 = vmatpush.bf16.xpose.msra.mxu0 %v1213
    %1220 = vmatpush.bf16.xpose.msra.mxu0 %v1210
    %1221 = vmatpush.bf16.xpose.msra.mxu0 %v1207
    %1222 = vmatpush.bf16.xpose.msra.mxu0 %v1204
    %1223 = vmatpush.bf16.xpose.msra.mxu0 %v1201
    %1224 = vmatpush.bf16.xpose.msra.mxu0 %v1198
    %1225 = vmatpush.bf16.xpose.msra.mxu0 %v1195
    %1226 = vmatmul.bf16.gmra.mxu0 %v1192
    %v1227 = vpop.f32.mrf.mxu0
    %v1228 = vadd.f32 %v177, %v1227
    %v1229 = vpop.f32.mrf.mxu0
    %1230 = vdwg.mxu0
    %v1247 = vunpack.c.l.b16 %v1131
    %v1248 = vunpack.c.l.b16 %v1132
    %v1249 = vunpack.c.l.b16 %v1133
    %v1250 = vunpack.c.l.b16 %v1134
    %v1251 = vunpack.c.l.b16 %v1135
    %v1252 = vunpack.c.l.b16 %v1136
    %v1253 = vunpack.c.l.b16 %v1137
    %v1254 = vunpack.c.l.b16 %v1138
    %v1255 = vunpack.c.l.b16 %v1139
    %v1256 = vunpack.c.l.b16 %v1140
    %v1257 = vunpack.c.l.b16 %v1141
    %v1258 = vunpack.c.l.b16 %v1142
    %v1259 = vunpack.c.l.b16 %v1143
    %v1260 = vunpack.c.l.b16 %v1144
    %v1261 = vunpack.c.l.b16 %v1145
    %v1262 = vunpack.c.l.b16 %v1146
    %v1263 = vpack.c.b16 %v1248, %v1247
    %v1264 = vpack.c.b16 %v1250, %v1249
    %v1265 = vpack.c.b16 %v1252, %v1251
    %v1266 = vpack.c.b16 %v1254, %v1253
    %v1267 = vpack.c.b16 %v1256, %v1255
    %v1268 = vpack.c.b16 %v1258, %v1257
    %v1269 = vpack.c.b16 %v1260, %v1259
    %v1270 = vpack.c.b16 %v1262, %v1261
    %v1272 = vsel %vm292, %v1150, 0
    %v1275 = vsel %vm292, %v1263, 0
    %v1278 = vsel %vm292, %v1264, 0
    %v1281 = vsel %vm292, %v1265, 0
    %v1284 = vsel %vm292, %v1266, 0
    %v1287 = vsel %vm292, %v1267, 0
    %v1290 = vsel %vm292, %v1268, 0
    %v1293 = vsel %vm292, %v1269, 0
    %v1296 = vsel %vm292, %v1270, 0
    %1298 = vmatpush.bf16.xpose.msra.mxu0 %v1296
    %1299 = vmatpush.bf16.xpose.msra.mxu0 %v1293
    %1300 = vmatpush.bf16.xpose.msra.mxu0 %v1290
    %1301 = vmatpush.bf16.xpose.msra.mxu0 %v1287
    %1302 = vmatpush.bf16.xpose.msra.mxu0 %v1284
    %1303 = vmatpush.bf16.xpose.msra.mxu0 %v1281
    %1304 = vmatpush.bf16.xpose.msra.mxu0 %v1278
    %1305 = vmatpush.bf16.xpose.msra.mxu0 %v1275
    %1306 = vmatmul.bf16.gmra.mxu0 %v1272
    %v1307 = vpop.f32.mrf.mxu0
    %v1308 = vadd.f32 %v178, %v1307
    %v1309 = vpop.f32.mrf.mxu0
    %1310 = vdwg.mxu0
    %1311 = vmax.xlane.f32.xlu0 %v1228
    %v1312 = vpop.xlane.xlu0 %1311
    %1313 = vmax.xlane.f32.xlu0 %v1308
    %v1314 = vpop.xlane.xlu0 %1313
    %v1315 = vsub.f32 %v1228, %v1312
    %v1316 = vsub.f32 %v1308, %v1314
    %v1317 = vmul.f32 %v1315, 1.442695
    %v1318 = vpow.pop %v1317
    %v1319 = vmul.f32 %v1316, 1.442695
    %v1320 = vpow.pop %v1319
    %1321 = vadd.xlane.f32.xlu0 %v1318
    %v1322 = vpop.xlane.xlu0 %1321
    %1323 = vadd.xlane.f32.xlu0 %v1320
    %v1324 = vpop.xlane.xlu0 %1323
    %v1325 = vrcp.pop %v1322
    %v1326 = vrcp.pop %v1324
    %v1327 = vmul.f32 %v1318, %v1325
    %v1328 = vmul.f32 %v1320, %v1326
    %v1329 = vpack.c.bf16 %v1327, %v1327
    %v1330 = vpack.c.bf16 %v1328, %v1328
    %1331 = vrot.lane.b32.xlu0 %v1183, 96
    %v1332 = vpop.permute.xlu0 %1331
    %1333 = vrot.lane.b32.xlu0 %v1184, 96
    %v1334 = vpop.permute.xlu0 %1333
    %1335 = vrot.lane.b32.xlu0 %v1185, 96
    %v1336 = vpop.permute.xlu0 %1335
    %1337 = vrot.lane.b32.xlu0 %v1186, 96
    %v1338 = vpop.permute.xlu0 %1337
    %1339 = vrot.lane.b32.xlu0 %v1187, 96
    %v1340 = vpop.permute.xlu0 %1339
    %1341 = vrot.lane.b32.xlu0 %v1188, 96
    %v1342 = vpop.permute.xlu0 %1341
    %1343 = vrot.lane.b32.xlu0 %v1189, 96
    %v1344 = vpop.permute.xlu0 %1343
    %1345 = vrot.lane.b32.xlu0 %v1190, 96
    %v1346 = vpop.permute.xlu0 %1345
    %1355 = vmatpush.bf16.msra.mxu0 %v1346
    %1356 = vmatpush.bf16.msra.mxu0 %v1344
    %1357 = vmatpush.bf16.msra.mxu0 %v1342
    %1358 = vmatpush.bf16.msra.mxu0 %v1340
    %1359 = vmatpush.bf16.msra.mxu0 %v1338
    %1360 = vmatpush.bf16.msra.mxu0 %v1336
    %1361 = vmatpush.bf16.msra.mxu0 %v1334
    %1362 = vmatpush.bf16.msra.mxu0 %v1332
    %1363 = vmatmul.bf16.gmra.mxu0 %v1329
    %v1364 = vpop.f32.mrf.mxu0
    %v1365 = vadd.f32 0.0, %v1364
    %v1366 = vpop.f32.mrf.mxu0
    %1367 = vdwg.mxu0
    %1368 = vrot.lane.b32.xlu0 %v1263, 96
    %v1369 = vpop.permute.xlu0 %1368
    %1370 = vrot.lane.b32.xlu0 %v1264, 96
    %v1371 = vpop.permute.xlu0 %1370
    %1372 = vrot.lane.b32.xlu0 %v1265, 96
    %v1373 = vpop.permute.xlu0 %1372
    %1374 = vrot.lane.b32.xlu0 %v1266, 96
    %v1375 = vpop.permute.xlu0 %1374
    %1376 = vrot.lane.b32.xlu0 %v1267, 96
    %v1377 = vpop.permute.xlu0 %1376
    %1378 = vrot.lane.b32.xlu0 %v1268, 96
    %v1379 = vpop.permute.xlu0 %1378
    %1380 = vrot.lane.b32.xlu0 %v1269, 96
    %v1381 = vpop.permute.xlu0 %1380
    %1382 = vrot.lane.b32.xlu0 %v1270, 96
    %v1383 = vpop.permute.xlu0 %1382
    %1392 = vmatpush.bf16.msra.mxu0 %v1383
    %1393 = vmatpush.bf16.msra.mxu0 %v1381
    %1394 = vmatpush.bf16.msra.mxu0 %v1379
    %1395 = vmatpush.bf16.msra.mxu0 %v1377
    %1396 = vmatpush.bf16.msra.mxu0 %v1375
    %1397 = vmatpush.bf16.msra.mxu0 %v1373
    %1398 = vmatpush.bf16.msra.mxu0 %v1371
    %1399 = vmatpush.bf16.msra.mxu0 %v1369
    %1400 = vmatmul.bf16.gmra.mxu0 %v1330
    %v1401 = vpop.f32.mrf.mxu0
    %v1402 = vadd.f32 0.0, %v1401
    %v1403 = vpop.f32.mrf.mxu0
    %1404 = vdwg.mxu0
    %1405 = vst.msk [vmem:[#allocation2] sm:$0xff] %vm292, %v1365
    %1406 = vst.msk [vmem:[#allocation2 + $0x8] sm:$0xff] %vm292, %v1402
    %v1408 = vunpack.c.l.b16 %v1149
    %v1409 = vpack.c.b16 %v1408, %v1408
    %1410 = vrot.lane.b32.xlu0 %v1409, 120
    %v1411 = vpop.permute.xlu0 %1410
    %1412 = vrot.lane.b32.xlu0 %v1183, 120
    %v1413 = vpop.permute.xlu0 %1412
    %1414 = vrot.lane.b32.xlu0 %v1184, 120
    %v1415 = vpop.permute.xlu0 %1414
    %1416 = vrot.lane.b32.xlu0 %v1185, 120
    %v1417 = vpop.permute.xlu0 %1416
    %1418 = vrot.lane.b32.xlu0 %v1186, 120
    %v1419 = vpop.permute.xlu0 %1418
    %1420 = vrot.lane.b32.xlu0 %v1187, 120
    %v1421 = vpop.permute.xlu0 %1420
    %1422 = vrot.lane.b32.xlu0 %v1188, 120
    %v1423 = vpop.permute.xlu0 %1422
    %1424 = vrot.lane.b32.xlu0 %v1189, 120
    %v1425 = vpop.permute.xlu0 %1424
    %1426 = vrot.lane.b32.xlu0 %v1190, 120
    %v1427 = vpop.permute.xlu0 %1426
    %v1429 = vsel %vm292, %v1411, 0
    %v1432 = vsel %vm292, %v1413, 0
    %v1435 = vsel %vm292, %v1415, 0
    %v1438 = vsel %vm292, %v1417, 0
    %v1441 = vsel %vm292, %v1419, 0
    %v1444 = vsel %vm292, %v1421, 0
    %v1447 = vsel %vm292, %v1423, 0
    %v1450 = vsel %vm292, %v1425, 0
    %v1453 = vsel %vm292, %v1427, 0
    %1455 = vmatpush.bf16.xpose.msra.mxu0 %v1453
    %1456 = vmatpush.bf16.xpose.msra.mxu0 %v1450
    %1457 = vmatpush.bf16.xpose.msra.mxu0 %v1447
    %1458 = vmatpush.bf16.xpose.msra.mxu0 %v1444
    %1459 = vmatpush.bf16.xpose.msra.mxu0 %v1441
    %1460 = vmatpush.bf16.xpose.msra.mxu0 %v1438
    %1461 = vmatpush.bf16.xpose.msra.mxu0 %v1435
    %1462 = vmatpush.bf16.xpose.msra.mxu0 %v1432
    %1463 = vmatmul.bf16.gmra.mxu0 %v1429
    %v1464 = vpop.f32.mrf.mxu0
    %v1465 = vadd.f32 %v177, %v1464
    %v1466 = vpop.f32.mrf.mxu0
    %1467 = vdwg.mxu0
    %v1469 = vunpack.c.l.b16 %v1150
    %v1470 = vpack.c.b16 %v1469, %v1469
    %1471 = vrot.lane.b32.xlu0 %v1470, 120
    %v1472 = vpop.permute.xlu0 %1471
    %1473 = vrot.lane.b32.xlu0 %v1263, 120
    %v1474 = vpop.permute.xlu0 %1473
    %1475 = vrot.lane.b32.xlu0 %v1264, 120
    %v1476 = vpop.permute.xlu0 %1475
    %1477 = vrot.lane.b32.xlu0 %v1265, 120
    %v1478 = vpop.permute.xlu0 %1477
    %1479 = vrot.lane.b32.xlu0 %v1266, 120
    %v1480 = vpop.permute.xlu0 %1479
    %1481 = vrot.lane.b32.xlu0 %v1267, 120
    %v1482 = vpop.permute.xlu0 %1481
    %1483 = vrot.lane.b32.xlu0 %v1268, 120
    %v1484 = vpop.permute.xlu0 %1483
    %1485 = vrot.lane.b32.xlu0 %v1269, 120
    %v1486 = vpop.permute.xlu0 %1485
    %1487 = vrot.lane.b32.xlu0 %v1270, 120
    %v1488 = vpop.permute.xlu0 %1487
    %v1490 = vsel %vm292, %v1472, 0
    %v1493 = vsel %vm292, %v1474, 0
    %v1496 = vsel %vm292, %v1476, 0
    %v1499 = vsel %vm292, %v1478, 0
    %v1502 = vsel %vm292, %v1480, 0
    %v1505 = vsel %vm292, %v1482, 0
    %v1508 = vsel %vm292, %v1484, 0
    %v1511 = vsel %vm292, %v1486, 0
    %v1514 = vsel %vm292, %v1488, 0
    %1516 = vmatpush.bf16.xpose.msra.mxu0 %v1514
    %1517 = vmatpush.bf16.xpose.msra.mxu0 %v1511
    %1518 = vmatpush.bf16.xpose.msra.mxu0 %v1508
    %1519 = vmatpush.bf16.xpose.msra.mxu0 %v1505
    %1520 = vmatpush.bf16.xpose.msra.mxu0 %v1502
    %1521 = vmatpush.bf16.xpose.msra.mxu0 %v1499
    %1522 = vmatpush.bf16.xpose.msra.mxu0 %v1496
    %1523 = vmatpush.bf16.xpose.msra.mxu0 %v1493
    %1524 = vmatmul.bf16.gmra.mxu0 %v1490
    %v1525 = vpop.f32.mrf.mxu0
    %v1526 = vadd.f32 %v178, %v1525
    %v1527 = vpop.f32.mrf.mxu0
    %1528 = vdwg.mxu0
    %1529 = vmax.xlane.f32.xlu0 %v1465
    %v1530 = vpop.xlane.xlu0 %1529
    %1531 = vmax.xlane.f32.xlu0 %v1526
    %v1532 = vpop.xlane.xlu0 %1531
    %v1533 = vsub.f32 %v1465, %v1530
    %v1534 = vsub.f32 %v1526, %v1532
    %v1535 = vmul.f32 %v1533, 1.442695
    %v1536 = vpow.pop %v1535
    %v1537 = vmul.f32 %v1534, 1.442695
    %v1538 = vpow.pop %v1537
    %1539 = vadd.xlane.f32.xlu0 %v1536
    %v1540 = vpop.xlane.xlu0 %1539
    %1541 = vadd.xlane.f32.xlu0 %v1538
    %v1542 = vpop.xlane.xlu0 %1541
    %v1543 = vrcp.pop %v1540
    %v1544 = vrcp.pop %v1542
    %v1545 = vmul.f32 %v1536, %v1543
    %v1546 = vmul.f32 %v1538, %v1544
    %v1547 = vpack.c.bf16 %v1545, %v1545
    %v1548 = vpack.c.bf16 %v1546, %v1546
    %1549 = vrot.lane.b32.xlu0 %v1183, 88
    %v1550 = vpop.permute.xlu0 %1549
    %1551 = vrot.lane.b32.xlu0 %v1184, 88
    %v1552 = vpop.permute.xlu0 %1551
    %1553 = vrot.lane.b32.xlu0 %v1185, 88
    %v1554 = vpop.permute.xlu0 %1553
    %1555 = vrot.lane.b32.xlu0 %v1186, 88
    %v1556 = vpop.permute.xlu0 %1555
    %1557 = vrot.lane.b32.xlu0 %v1187, 88
    %v1558 = vpop.permute.xlu0 %1557
    %1559 = vrot.lane.b32.xlu0 %v1188, 88
    %v1560 = vpop.permute.xlu0 %1559
    %1561 = vrot.lane.b32.xlu0 %v1189, 88
    %v1562 = vpop.permute.xlu0 %1561
    %1563 = vrot.lane.b32.xlu0 %v1190, 88
    %v1564 = vpop.permute.xlu0 %1563
    %1573 = vmatpush.bf16.msra.mxu0 %v1564
    %1574 = vmatpush.bf16.msra.mxu0 %v1562
    %1575 = vmatpush.bf16.msra.mxu0 %v1560
    %1576 = vmatpush.bf16.msra.mxu0 %v1558
    %1577 = vmatpush.bf16.msra.mxu0 %v1556
    %1578 = vmatpush.bf16.msra.mxu0 %v1554
    %1579 = vmatpush.bf16.msra.mxu0 %v1552
    %1580 = vmatpush.bf16.msra.mxu0 %v1550
    %1581 = vmatmul.bf16.gmra.mxu0 %v1547
    %v1582 = vpop.f32.mrf.mxu0
    %v1583 = vadd.f32 0.0, %v1582
    %v1584 = vpop.f32.mrf.mxu0
    %1585 = vdwg.mxu0
    %1586 = vrot.lane.b32.xlu0 %v1263, 88
    %v1587 = vpop.permute.xlu0 %1586
    %1588 = vrot.lane.b32.xlu0 %v1264, 88
    %v1589 = vpop.permute.xlu0 %1588
    %1590 = vrot.lane.b32.xlu0 %v1265, 88
    %v1591 = vpop.permute.xlu0 %1590
    %1592 = vrot.lane.b32.xlu0 %v1266, 88
    %v1593 = vpop.permute.xlu0 %1592
    %1594 = vrot.lane.b32.xlu0 %v1267, 88
    %v1595 = vpop.permute.xlu0 %1594
    %1596 = vrot.lane.b32.xlu0 %v1268, 88
    %v1597 = vpop.permute.xlu0 %1596
    %1598 = vrot.lane.b32.xlu0 %v1269, 88
    %v1599 = vpop.permute.xlu0 %1598
    %1600 = vrot.lane.b32.xlu0 %v1270, 88
    %v1601 = vpop.permute.xlu0 %1600
    %1610 = vmatpush.bf16.msra.mxu0 %v1601
    %1611 = vmatpush.bf16.msra.mxu0 %v1599
    %1612 = vmatpush.bf16.msra.mxu0 %v1597
    %1613 = vmatpush.bf16.msra.mxu0 %v1595
    %1614 = vmatpush.bf16.msra.mxu0 %v1593
    %1615 = vmatpush.bf16.msra.mxu0 %v1591
    %1616 = vmatpush.bf16.msra.mxu0 %v1589
    %1617 = vmatpush.bf16.msra.mxu0 %v1587
    %1618 = vmatmul.bf16.gmra.mxu0 %v1548
    %v1619 = vpop.f32.mrf.mxu0
    %v1620 = vadd.f32 0.0, %v1619
    %v1621 = vpop.f32.mrf.mxu0
    %1622 = vdwg.mxu0
    %1625 = vrot.lane.b32.xlu0 %v1583, 8
    %v1626 = vpop.permute.xlu0 %1625
    %1627 = vrot.lane.b32.xlu0 %v1620, 8
    %v1628 = vpop.permute.xlu0 %1627
    %1631 = vst.msk [vmem:[#allocation2] sm:$0xff] %vm531, %v1626
    %1632 = vst.msk [vmem:[#allocation2 + $0x8] sm:$0xff] %vm531, %v1628
    %1633 = vrot.lane.b32.xlu0 %v1409, 112
    %v1634 = vpop.permute.xlu0 %1633
    %1635 = vrot.lane.b32.xlu0 %v1183, 112
    %v1636 = vpop.permute.xlu0 %1635
    %1637 = vrot.lane.b32.xlu0 %v1184, 112
    %v1638 = vpop.permute.xlu0 %1637
    %1639 = vrot.lane.b32.xlu0 %v1185, 112
    %v1640 = vpop.permute.xlu0 %1639
    %1641 = vrot.lane.b32.xlu0 %v1186, 112
    %v1642 = vpop.permute.xlu0 %1641
    %1643 = vrot.lane.b32.xlu0 %v1187, 112
    %v1644 = vpop.permute.xlu0 %1643
    %1645 = vrot.lane.b32.xlu0 %v1188, 112
    %v1646 = vpop.permute.xlu0 %1645
    %1647 = vrot.lane.b32.xlu0 %v1189, 112
    %v1648 = vpop.permute.xlu0 %1647
    %1649 = vrot.lane.b32.xlu0 %v1190, 112
    %v1650 = vpop.permute.xlu0 %1649
    %v1652 = vsel %vm292, %v1634, 0
    %v1655 = vsel %vm292, %v1636, 0
    %v1658 = vsel %vm292, %v1638, 0
    %v1661 = vsel %vm292, %v1640, 0
    %v1664 = vsel %vm292, %v1642, 0
    %v1667 = vsel %vm292, %v1644, 0
    %v1670 = vsel %vm292, %v1646, 0
    %v1673 = vsel %vm292, %v1648, 0
    %v1676 = vsel %vm292, %v1650, 0
    %1678 = vmatpush.bf16.xpose.msra.mxu0 %v1676
    %1679 = vmatpush.bf16.xpose.msra.mxu0 %v1673
    %1680 = vmatpush.bf16.xpose.msra.mxu0 %v1670
    %1681 = vmatpush.bf16.xpose.msra.mxu0 %v1667
    %1682 = vmatpush.bf16.xpose.msra.mxu0 %v1664
    %1683 = vmatpush.bf16.xpose.msra.mxu0 %v1661
    %1684 = vmatpush.bf16.xpose.msra.mxu0 %v1658
    %1685 = vmatpush.bf16.xpose.msra.mxu0 %v1655
    %1686 = vmatmul.bf16.gmra.mxu0 %v1652
    %v1687 = vpop.f32.mrf.mxu0
    %v1688 = vadd.f32 %v177, %v1687
    %v1689 = vpop.f32.mrf.mxu0
    %1690 = vdwg.mxu0
    %1691 = vrot.lane.b32.xlu0 %v1470, 112
    %v1692 = vpop.permute.xlu0 %1691
    %1693 = vrot.lane.b32.xlu0 %v1263, 112
    %v1694 = vpop.permute.xlu0 %1693
    %1695 = vrot.lane.b32.xlu0 %v1264, 112
    %v1696 = vpop.permute.xlu0 %1695
    %1697 = vrot.lane.b32.xlu0 %v1265, 112
    %v1698 = vpop.permute.xlu0 %1697
    %1699 = vrot.lane.b32.xlu0 %v1266, 112
    %v1700 = vpop.permute.xlu0 %1699
    %1701 = vrot.lane.b32.xlu0 %v1267, 112
    %v1702 = vpop.permute.xlu0 %1701
    %1703 = vrot.lane.b32.xlu0 %v1268, 112
    %v1704 = vpop.permute.xlu0 %1703
    %1705 = vrot.lane.b32.xlu0 %v1269, 112
    %v1706 = vpop.permute.xlu0 %1705
    %1707 = vrot.lane.b32.xlu0 %v1270, 112
    %v1708 = vpop.permute.xlu0 %1707
    %v1710 = vsel %vm292, %v1692, 0
    %v1713 = vsel %vm292, %v1694, 0
    %v1716 = vsel %vm292, %v1696, 0
    %v1719 = vsel %vm292, %v1698, 0
    %v1722 = vsel %vm292, %v1700, 0
    %v1725 = vsel %vm292, %v1702, 0
    %v1728 = vsel %vm292, %v1704, 0
    %v1731 = vsel %vm292, %v1706, 0
    %v1734 = vsel %vm292, %v1708, 0
    %1736 = vmatpush.bf16.xpose.msra.mxu0 %v1734
    %1737 = vmatpush.bf16.xpose.msra.mxu0 %v1731
    %1738 = vmatpush.bf16.xpose.msra.mxu0 %v1728
    %1739 = vmatpush.bf16.xpose.msra.mxu0 %v1725
    %1740 = vmatpush.bf16.xpose.msra.mxu0 %v1722
    %1741 = vmatpush.bf16.xpose.msra.mxu0 %v1719
    %1742 = vmatpush.bf16.xpose.msra.mxu0 %v1716
    %1743 = vmatpush.bf16.xpose.msra.mxu0 %v1713
    %1744 = vmatmul.bf16.gmra.mxu0 %v1710
    %v1745 = vpop.f32.mrf.mxu0
    %v1746 = vadd.f32 %v178, %v1745
    %v1747 = vpop.f32.mrf.mxu0
    %1748 = vdwg.mxu0
    %1749 = vmax.xlane.f32.xlu0 %v1688
    %v1750 = vpop.xlane.xlu0 %1749
    %1751 = vmax.xlane.f32.xlu0 %v1746
    %v1752 = vpop.xlane.xlu0 %1751
    %v1753 = vsub.f32 %v1688, %v1750
    %v1754 = vsub.f32 %v1746, %v1752
    %v1755 = vmul.f32 %v1753, 1.442695
    %v1756 = vpow.pop %v1755
    %v1757 = vmul.f32 %v1754, 1.442695
    %v1758 = vpow.pop %v1757
    %1759 = vadd.xlane.f32.xlu0 %v1756
    %v1760 = vpop.xlane.xlu0 %1759
    %1761 = vadd.xlane.f32.xlu0 %v1758
    %v1762 = vpop.xlane.xlu0 %1761
    %v1763 = vrcp.pop %v1760
    %v1764 = vrcp.pop %v1762
    %v1765 = vmul.f32 %v1756, %v1763
    %v1766 = vmul.f32 %v1758, %v1764
    %v1767 = vpack.c.bf16 %v1765, %v1765
    %v1768 = vpack.c.bf16 %v1766, %v1766
    %1769 = vrot.lane.b32.xlu0 %v1183, 80
    %v1770 = vpop.permute.xlu0 %1769
    %1771 = vrot.lane.b32.xlu0 %v1184, 80
    %v1772 = vpop.permute.xlu0 %1771
    %1773 = vrot.lane.b32.xlu0 %v1185, 80
    %v1774 = vpop.permute.xlu0 %1773
    %1775 = vrot.lane.b32.xlu0 %v1186, 80
    %v1776 = vpop.permute.xlu0 %1775
    %1777 = vrot.lane.b32.xlu0 %v1187, 80
    %v1778 = vpop.permute.xlu0 %1777
    %1779 = vrot.lane.b32.xlu0 %v1188, 80
    %v1780 = vpop.permute.xlu0 %1779
    %1781 = vrot.lane.b32.xlu0 %v1189, 80
    %v1782 = vpop.permute.xlu0 %1781
    %1783 = vrot.lane.b32.xlu0 %v1190, 80
    %v1784 = vpop.permute.xlu0 %1783
    %1793 = vmatpush.bf16.msra.mxu0 %v1784
    %1794 = vmatpush.bf16.msra.mxu0 %v1782
    %1795 = vmatpush.bf16.msra.mxu0 %v1780
    %1796 = vmatpush.bf16.msra.mxu0 %v1778
    %1797 = vmatpush.bf16.msra.mxu0 %v1776
    %1798 = vmatpush.bf16.msra.mxu0 %v1774
    %1799 = vmatpush.bf16.msra.mxu0 %v1772
    %1800 = vmatpush.bf16.msra.mxu0 %v1770
    %1801 = vmatmul.bf16.gmra.mxu0 %v1767
    %v1802 = vpop.f32.mrf.mxu0
    %v1803 = vadd.f32 0.0, %v1802
    %v1804 = vpop.f32.mrf.mxu0
    %1805 = vdwg.mxu0
    %1806 = vrot.lane.b32.xlu0 %v1263, 80
    %v1807 = vpop.permute.xlu0 %1806
    %1808 = vrot.lane.b32.xlu0 %v1264, 80
    %v1809 = vpop.permute.xlu0 %1808
    %1810 = vrot.lane.b32.xlu0 %v1265, 80
    %v1811 = vpop.permute.xlu0 %1810
    %1812 = vrot.lane.b32.xlu0 %v1266, 80
    %v1813 = vpop.permute.xlu0 %1812
    %1814 = vrot.lane.b32.xlu0 %v1267, 80
    %v1815 = vpop.permute.xlu0 %1814
    %1816 = vrot.lane.b32.xlu0 %v1268, 80
    %v1817 = vpop.permute.xlu0 %1816
    %1818 = vrot.lane.b32.xlu0 %v1269, 80
    %v1819 = vpop.permute.xlu0 %1818
    %1820 = vrot.lane.b32.xlu0 %v1270, 80
    %v1821 = vpop.permute.xlu0 %1820
    %1830 = vmatpush.bf16.msra.mxu0 %v1821
    %1831 = vmatpush.bf16.msra.mxu0 %v1819
    %1832 = vmatpush.bf16.msra.mxu0 %v1817
    %1833 = vmatpush.bf16.msra.mxu0 %v1815
    %1834 = vmatpush.bf16.msra.mxu0 %v1813
    %1835 = vmatpush.bf16.msra.mxu0 %v1811
    %1836 = vmatpush.bf16.msra.mxu0 %v1809
    %1837 = vmatpush.bf16.msra.mxu0 %v1807
    %1838 = vmatmul.bf16.gmra.mxu0 %v1768
    %v1839 = vpop.f32.mrf.mxu0
    %v1840 = vadd.f32 0.0, %v1839
    %v1841 = vpop.f32.mrf.mxu0
    %1842 = vdwg.mxu0
    %1845 = vrot.lane.b32.xlu0 %v1803, 16
    %v1846 = vpop.permute.xlu0 %1845
    %1847 = vrot.lane.b32.xlu0 %v1840, 16
    %v1848 = vpop.permute.xlu0 %1847
    %1851 = vst.msk [vmem:[#allocation2] sm:$0xff] %vm654, %v1846
    %1852 = vst.msk [vmem:[#allocation2 + $0x8] sm:$0xff] %vm654, %v1848
    %1853 = vrot.lane.b32.xlu0 %v1409, 104
    %v1854 = vpop.permute.xlu0 %1853
    %1855 = vrot.lane.b32.xlu0 %v1183, 104
    %v1856 = vpop.permute.xlu0 %1855
    %1857 = vrot.lane.b32.xlu0 %v1184, 104
    %v1858 = vpop.permute.xlu0 %1857
    %1859 = vrot.lane.b32.xlu0 %v1185, 104
    %v1860 = vpop.permute.xlu0 %1859
    %1861 = vrot.lane.b32.xlu0 %v1186, 104
    %v1862 = vpop.permute.xlu0 %1861
    %1863 = vrot.lane.b32.xlu0 %v1187, 104
    %v1864 = vpop.permute.xlu0 %1863
    %1865 = vrot.lane.b32.xlu0 %v1188, 104
    %v1866 = vpop.permute.xlu0 %1865
    %1867 = vrot.lane.b32.xlu0 %v1189, 104
    %v1868 = vpop.permute.xlu0 %1867
    %1869 = vrot.lane.b32.xlu0 %v1190, 104
    %v1870 = vpop.permute.xlu0 %1869
    %v1872 = vsel %vm292, %v1854, 0
    %v1875 = vsel %vm292, %v1856, 0
    %v1878 = vsel %vm292, %v1858, 0
    %v1881 = vsel %vm292, %v1860, 0
    %v1884 = vsel %vm292, %v1862, 0
    %v1887 = vsel %vm292, %v1864, 0
    %v1890 = vsel %vm292, %v1866, 0
    %v1893 = vsel %vm292, %v1868, 0
    %v1896 = vsel %vm292, %v1870, 0
    %1898 = vmatpush.bf16.xpose.msra.mxu0 %v1896
    %1899 = vmatpush.bf16.xpose.msra.mxu0 %v1893
    %1900 = vmatpush.bf16.xpose.msra.mxu0 %v1890
    %1901 = vmatpush.bf16.xpose.msra.mxu0 %v1887
    %1902 = vmatpush.bf16.xpose.msra.mxu0 %v1884
    %1903 = vmatpush.bf16.xpose.msra.mxu0 %v1881
    %1904 = vmatpush.bf16.xpose.msra.mxu0 %v1878
    %1905 = vmatpush.bf16.xpose.msra.mxu0 %v1875
    %1906 = vmatmul.bf16.gmra.mxu0 %v1872
    %v1907 = vpop.f32.mrf.mxu0
    %v1908 = vadd.f32 %v177, %v1907
    %v1909 = vpop.f32.mrf.mxu0
    %1910 = vdwg.mxu0
    %1911 = vrot.lane.b32.xlu0 %v1470, 104
    %v1912 = vpop.permute.xlu0 %1911
    %1913 = vrot.lane.b32.xlu0 %v1263, 104
    %v1914 = vpop.permute.xlu0 %1913
    %1915 = vrot.lane.b32.xlu0 %v1264, 104
    %v1916 = vpop.permute.xlu0 %1915
    %1917 = vrot.lane.b32.xlu0 %v1265, 104
    %v1918 = vpop.permute.xlu0 %1917
    %1919 = vrot.lane.b32.xlu0 %v1266, 104
    %v1920 = vpop.permute.xlu0 %1919
    %1921 = vrot.lane.b32.xlu0 %v1267, 104
    %v1922 = vpop.permute.xlu0 %1921
    %1923 = vrot.lane.b32.xlu0 %v1268, 104
    %v1924 = vpop.permute.xlu0 %1923
    %1925 = vrot.lane.b32.xlu0 %v1269, 104
    %v1926 = vpop.permute.xlu0 %1925
    %1927 = vrot.lane.b32.xlu0 %v1270, 104
    %v1928 = vpop.permute.xlu0 %1927
    %v1930 = vsel %vm292, %v1912, 0
    %v1933 = vsel %vm292, %v1914, 0
    %v1936 = vsel %vm292, %v1916, 0
    %v1939 = vsel %vm292, %v1918, 0
    %v1942 = vsel %vm292, %v1920, 0
    %v1945 = vsel %vm292, %v1922, 0
    %v1948 = vsel %vm292, %v1924, 0
    %v1951 = vsel %vm292, %v1926, 0
    %v1954 = vsel %vm292, %v1928, 0
    %1956 = vmatpush.bf16.xpose.msra.mxu0 %v1954
    %1957 = vmatpush.bf16.xpose.msra.mxu0 %v1951
    %1958 = vmatpush.bf16.xpose.msra.mxu0 %v1948
    %1959 = vmatpush.bf16.xpose.msra.mxu0 %v1945
    %1960 = vmatpush.bf16.xpose.msra.mxu0 %v1942
    %1961 = vmatpush.bf16.xpose.msra.mxu0 %v1939
    %1962 = vmatpush.bf16.xpose.msra.mxu0 %v1936
    %1963 = vmatpush.bf16.xpose.msra.mxu0 %v1933
    %1964 = vmatmul.bf16.gmra.mxu0 %v1930
    %v1965 = vpop.f32.mrf.mxu0
    %v1966 = vadd.f32 %v178, %v1965
    %v1967 = vpop.f32.mrf.mxu0
    %1968 = vdwg.mxu0
    %1969 = vmax.xlane.f32.xlu0 %v1908
    %v1970 = vpop.xlane.xlu0 %1969
    %1971 = vmax.xlane.f32.xlu0 %v1966
    %v1972 = vpop.xlane.xlu0 %1971
    %v1973 = vsub.f32 %v1908, %v1970
    %v1974 = vsub.f32 %v1966, %v1972
    %v1975 = vmul.f32 %v1973, 1.442695
    %v1976 = vpow.pop %v1975
    %v1977 = vmul.f32 %v1974, 1.442695
    %v1978 = vpow.pop %v1977
    %1979 = vadd.xlane.f32.xlu0 %v1976
    %v1980 = vpop.xlane.xlu0 %1979
    %1981 = vadd.xlane.f32.xlu0 %v1978
    %v1982 = vpop.xlane.xlu0 %1981
    %v1983 = vrcp.pop %v1980
    %v1984 = vrcp.pop %v1982
    %v1985 = vmul.f32 %v1976, %v1983
    %v1986 = vmul.f32 %v1978, %v1984
    %v1987 = vpack.c.bf16 %v1985, %v1985
    %v1988 = vpack.c.bf16 %v1986, %v1986
    %1989 = vrot.lane.b32.xlu0 %v1183, 72
    %v1990 = vpop.permute.xlu0 %1989
    %1991 = vrot.lane.b32.xlu0 %v1184, 72
    %v1992 = vpop.permute.xlu0 %1991
    %1993 = vrot.lane.b32.xlu0 %v1185, 72
    %v1994 = vpop.permute.xlu0 %1993
    %1995 = vrot.lane.b32.xlu0 %v1186, 72
    %v1996 = vpop.permute.xlu0 %1995
    %1997 = vrot.lane.b32.xlu0 %v1187, 72
    %v1998 = vpop.permute.xlu0 %1997
    %1999 = vrot.lane.b32.xlu0 %v1188, 72
    %v2000 = vpop.permute.xlu0 %1999
    %2001 = vrot.lane.b32.xlu0 %v1189, 72
    %v2002 = vpop.permute.xlu0 %2001
    %2003 = vrot.lane.b32.xlu0 %v1190, 72
    %v2004 = vpop.permute.xlu0 %2003
    %2013 = vmatpush.bf16.msra.mxu0 %v2004
    %2014 = vmatpush.bf16.msra.mxu0 %v2002
    %2015 = vmatpush.bf16.msra.mxu0 %v2000
    %2016 = vmatpush.bf16.msra.mxu0 %v1998
    %2017 = vmatpush.bf16.msra.mxu0 %v1996
    %2018 = vmatpush.bf16.msra.mxu0 %v1994
    %2019 = vmatpush.bf16.msra.mxu0 %v1992
    %2020 = vmatpush.bf16.msra.mxu0 %v1990
    %2021 = vmatmul.bf16.gmra.mxu0 %v1987
    %v2022 = vpop.f32.mrf.mxu0
    %v2023 = vadd.f32 0.0, %v2022
    %v2024 = vpop.f32.mrf.mxu0
    %2025 = vdwg.mxu0
    %2026 = vrot.lane.b32.xlu0 %v1263, 72
    %v2027 = vpop.permute.xlu0 %2026
    %2028 = vrot.lane.b32.xlu0 %v1264, 72
    %v2029 = vpop.permute.xlu0 %2028
    %2030 = vrot.lane.b32.xlu0 %v1265, 72
    %v2031 = vpop.permute.xlu0 %2030
    %2032 = vrot.lane.b32.xlu0 %v1266, 72
    %v2033 = vpop.permute.xlu0 %2032
    %2034 = vrot.lane.b32.xlu0 %v1267, 72
    %v2035 = vpop.permute.xlu0 %2034
    %2036 = vrot.lane.b32.xlu0 %v1268, 72
    %v2037 = vpop.permute.xlu0 %2036
    %2038 = vrot.lane.b32.xlu0 %v1269, 72
    %v2039 = vpop.permute.xlu0 %2038
    %2040 = vrot.lane.b32.xlu0 %v1270, 72
    %v2041 = vpop.permute.xlu0 %2040
    %2050 = vmatpush.bf16.msra.mxu0 %v2041
    %2051 = vmatpush.bf16.msra.mxu0 %v2039
    %2052 = vmatpush.bf16.msra.mxu0 %v2037
    %2053 = vmatpush.bf16.msra.mxu0 %v2035
    %2054 = vmatpush.bf16.msra.mxu0 %v2033
    %2055 = vmatpush.bf16.msra.mxu0 %v2031
    %2056 = vmatpush.bf16.msra.mxu0 %v2029
    %2057 = vmatpush.bf16.msra.mxu0 %v2027
    %2058 = vmatmul.bf16.gmra.mxu0 %v1988
    %v2059 = vpop.f32.mrf.mxu0
    %v2060 = vadd.f32 0.0, %v2059
    %v2061 = vpop.f32.mrf.mxu0
    %2062 = vdwg.mxu0
    %2065 = vrot.lane.b32.xlu0 %v2023, 24
    %v2066 = vpop.permute.xlu0 %2065
    %2067 = vrot.lane.b32.xlu0 %v2060, 24
    %v2068 = vpop.permute.xlu0 %2067
    %2071 = vst.msk [vmem:[#allocation2] sm:$0xff] %vm777, %v2066
    %2072 = vst.msk [vmem:[#allocation2 + $0x8] sm:$0xff] %vm777, %v2068
    %v2073 = vld [vmem:[#allocation2] sm:$0xff]
    %v2074 = vld [vmem:[#allocation2 + $0x8] sm:$0xff]
    %v2075 = vadd.f32 %v782, %v2073
    %v2076 = vadd.f32 %v783, %v2074
    %v2077 = vld [vmem:[%s14] sm:$0x1]
    %v2078 = vld [vmem:[%s15] sm:$0x1]
    %v2079 = vsel %vm181, %v2075, 0.0
    %2080 = vadd.xlane.f32.xlu0 %v2079
    %v2081 = vpop.xlane.xlu0 %2080
    %v2082 = vsel %vm181, %v2076, 0.0
    %2083 = vadd.xlane.f32.xlu0 %v2082
    %v2084 = vpop.xlane.xlu0 %2083
    %v2085 = vmul.f32 %v2081, %v194
    %v2086 = vmul.f32 %v2084, %v194
    %v2087 = vsub.f32 %v2075, %v2085
    %v2088 = vsub.f32 %v2076, %v2086
    %v2089 = vmul.f32 %v2087, %v2087
    %v2090 = vmul.f32 %v2088, %v2088
    %v2091 = vsel %vm181, %v2089, 0.0
    %2092 = vadd.xlane.f32.xlu0 %v2091
    %v2093 = vpop.xlane.xlu0 %2092
    %v2094 = vsel %vm181, %v2090, 0.0
    %2095 = vadd.xlane.f32.xlu0 %v2094
    %v2096 = vpop.xlane.xlu0 %2095
    %v2097 = vmul.f32 %v2093, %v194
    %v2098 = vmul.f32 %v2096, %v194
    %v2099 = vadd.f32 %v2097, 1e-05
    %v2100 = vadd.f32 %v2098, 1e-05
    %v2101 = vrsqrt.pop %v2099
    %v2102 = vmul.f32 %v2101, %v2099
    %v2103 = vmul.f32 %v2102, %v2101
    %v2104 = vmul.f32 0.5, %v2103
    %v2105 = vsub.f32 1.5, %v2104
    %v2106 = vmul.f32 %v2101, %v2105
    %vm2107 = vweird.f32 %v2099
    %vm2108 = vweird.f32 %v2101
    %vm2109 = vmor %vm2107, %vm2108
    %v2110 = vsel %vm2109, %v2101, %v2106
    %v2111 = vrsqrt.pop %v2100
    %v2112 = vmul.f32 %v2111, %v2100
    %v2113 = vmul.f32 %v2112, %v2111
    %v2114 = vmul.f32 0.5, %v2113
    %v2115 = vsub.f32 1.5, %v2114
    %v2116 = vmul.f32 %v2111, %v2115
    %vm2117 = vweird.f32 %v2100
    %vm2118 = vweird.f32 %v2111
    %vm2119 = vmor %vm2117, %vm2118
    %v2120 = vsel %vm2119, %v2111, %v2116
    %v2121 = vmul.f32 %v2087, %v2110
    %v2122 = vmul.f32 %v2088, %v2120
    %v2124 = vperm.slane %v2077, 0
    %v2126 = vmul.f32 %v2121, %v2124
    %v2127 = vmul.f32 %v2122, %v2124
    %v2129 = vperm.slane %v2078, 0
    %v2131 = vadd.f32 %v2126, %v2129
    %v2132 = vadd.f32 %v2127, %v2129
    %v2133 = vpack.c.bf16 %v2132, %v2131
    %v2134 = vld [vmem:[%s16] sm:$0xf]
    %v2135 = vld [vmem:[%s16 + $0x4] sm:$0xf]
    %v2136 = vld [vmem:[%s16 + $0x8] sm:$0xf]
    %v2137 = vld [vmem:[%s16 + $0xc] sm:$0xf]
    %v2138 = vld [vmem:[%s17] sm:$0x1]
    %v2140 = vperm.slane %v2138, 0
    %v2146 = vunpack.c.l.b16 %v2134
    %v2147 = vunpack.c.l.b16 %v2135
    %v2148 = vunpack.c.l.b16 %v2136
    %v2149 = vunpack.c.l.b16 %v2137
    %v2150 = vpack.c.b16 %v2147, %v2146
    %v2151 = vpack.c.b16 %v2149, %v2148
    %v2155 = vsel %vm181, %v2133, 0
    %2157 = vmatpush.bf16.msra.mxu0 0
    %2158 = vmatpush.bf16.msra.mxu0 0
    %2159 = vmatpush.bf16.msra.mxu0 0
    %2160 = vmatpush.bf16.msra.mxu0 0
    %2161 = vmatpush.bf16.msra.mxu0 0
    %2162 = vmatpush.bf16.msra.mxu0 0
    %2163 = vmatpush.bf16.msra.mxu0 %v2151
    %2164 = vmatpush.bf16.msra.mxu0 %v2150
    %2165 = vmatmul.bf16.gmra.mxu0 %v2155
    %v2166 = vpop.f32.mrf.mxu0
    %v2167 = vadd.f32 %v2140, %v2166
    %v2168 = vpop.f32.mrf.mxu0
    %v2169 = vadd.f32 %v2140, %v2168
    %2170 = vdwg.mxu0
    %v2171 = vmax.f32 %v2167, 0.0
    %v2172 = vmax.f32 %v2169, 0.0
    %v2173 = vpack.c.bf16 %v2172, %v2171
    %v2174 = vld [vmem:[%s18] sm:$0xf]
    %v2175 = vld [vmem:[%s18 + $0x4] sm:$0xf]
    %v2176 = vld [vmem:[%s18 + $0x8] sm:$0xf]
    %v2177 = vld [vmem:[%s18 + $0xc] sm:$0xf]
    %v2178 = vld [vmem:[%s18 + $0x10] sm:$0xf]
    %v2179 = vld [vmem:[%s18 + $0x14] sm:$0xf]
    %v2180 = vld [vmem:[%s18 + $0x18] sm:$0xf]
    %v2181 = vld [vmem:[%s18 + $0x1c] sm:$0xf]
    %v2190 = vunpack.c.l.b16 %v2174
    %v2191 = vunpack.c.l.b16 %v2175
    %v2192 = vunpack.c.l.b16 %v2176
    %v2193 = vunpack.c.l.b16 %v2177
    %v2194 = vunpack.c.l.b16 %v2178
    %v2195 = vunpack.c.l.b16 %v2179
    %v2196 = vunpack.c.l.b16 %v2180
    %v2197 = vunpack.c.l.b16 %v2181
    %v2198 = vpack.c.b16 %v2191, %v2190
    %v2199 = vpack.c.b16 %v2193, %v2192
    %v2200 = vpack.c.b16 %v2195, %v2194
    %v2201 = vpack.c.b16 %v2197, %v2196
    %vm2206 = vcmask 523264
    %v2208 = vsel %vm2206, %v2173, 0
    %2210 = vmatpush.bf16.msra.mxu0 0
    %2211 = vmatpush.bf16.msra.mxu0 0
    %2212 = vmatpush.bf16.msra.mxu0 0
    %2213 = vmatpush.bf16.msra.mxu0 0
    %2214 = vmatpush.bf16.msra.mxu0 %v2201
    %2215 = vmatpush.bf16.msra.mxu0 %v2200
    %2216 = vmatpush.bf16.msra.mxu0 %v2199
    %2217 = vmatpush.bf16.msra.mxu0 %v2198
    %2218 = vmatmul.bf16.gmra.mxu0 %v2208
    %v2219 = vpop.f32.mrf.mxu0
    %v2220 = vadd.f32 0.0, %v2219
    %v2221 = vpop.f32.mrf.mxu0
    %v2222 = vadd.f32 0.0, %v2221
    %2223 = vdwg.mxu0
    %v2224 = vadd.f32 %v2075, %v2220
    %v2225 = vadd.f32 %v2076, %v2222
    %v2226 = vld [vmem:[%s19] sm:$0x1]
    %v2228 = vperm.slane %v2226, 0
    %v2230 = vadd.f32 %v2224, %v2228
    %v2231 = vadd.f32 %v2225, %v2228
    %s2232 = scalar_lea.vmem %s4, 1
    %v2233 = vld [vmem:[%s2232] sm:$0x1]
    %s2234 = scalar_lea.vmem %s5, 1
    %v2235 = vld [vmem:[%s2234] sm:$0x1]
    %v2236 = vsel %vm181, %v2230, 0.0
    %2237 = vadd.xlane.f32.xlu0 %v2236
    %v2238 = vpop.xlane.xlu0 %2237
    %v2239 = vsel %vm181, %v2231, 0.0
    %2240 = vadd.xlane.f32.xlu0 %v2239
    %v2241 = vpop.xlane.xlu0 %2240
    %v2242 = vmul.f32 %v2238, %v194
    %v2243 = vmul.f32 %v2241, %v194
    %v2244 = vsub.f32 %v2230, %v2242
    %v2245 = vsub.f32 %v2231, %v2243
    %v2246 = vmul.f32 %v2244, %v2244
    %v2247 = vmul.f32 %v2245, %v2245
    %v2248 = vsel %vm181, %v2246, 0.0
    %2249 = vadd.xlane.f32.xlu0 %v2248
    %v2250 = vpop.xlane.xlu0 %2249
    %v2251 = vsel %vm181, %v2247, 0.0
    %2252 = vadd.xlane.f32.xlu0 %v2251
    %v2253 = vpop.xlane.xlu0 %2252
    %v2254 = vmul.f32 %v2250, %v194
    %v2255 = vmul.f32 %v2253, %v194
    %v2256 = vadd.f32 %v2254, 1e-05
    %v2257 = vadd.f32 %v2255, 1e-05
    %v2258 = vrsqrt.pop %v2256
    %v2259 = vmul.f32 %v2258, %v2256
    %v2260 = vmul.f32 %v2259, %v2258
    %v2261 = vmul.f32 0.5, %v2260
    %v2262 = vsub.f32 1.5, %v2261
    %v2263 = vmul.f32 %v2258, %v2262
    %vm2264 = vweird.f32 %v2256
    %vm2265 = vweird.f32 %v2258
    %vm2266 = vmor %vm2264, %vm2265
    %v2267 = vsel %vm2266, %v2258, %v2263
    %v2268 = vrsqrt.pop %v2257
    %v2269 = vmul.f32 %v2268, %v2257
    %v2270 = vmul.f32 %v2269, %v2268
    %v2271 = vmul.f32 0.5, %v2270
    %v2272 = vsub.f32 1.5, %v2271
    %v2273 = vmul.f32 %v2268, %v2272
    %vm2274 = vweird.f32 %v2257
    %vm2275 = vweird.f32 %v2268
    %vm2276 = vmor %vm2274, %vm2275
    %v2277 = vsel %vm2276, %v2268, %v2273
    %v2278 = vmul.f32 %v2244, %v2267
    %v2279 = vmul.f32 %v2245, %v2277
    %v2281 = vperm.slane %v2233, 0
    %v2283 = vmul.f32 %v2278, %v2281
    %v2284 = vmul.f32 %v2279, %v2281
    %v2286 = vperm.slane %v2235, 0
    %v2288 = vadd.f32 %v2283, %v2286
    %v2289 = vadd.f32 %v2284, %v2286
    %v2290 = vpack.c.bf16 %v2289, %v2288
    %s2291 = scalar_lea.vmem %s6, 16
    %v2292 = vld [vmem:[%s2291] sm:$0xf]
    %v2293 = vld [vmem:[%s2291 + $0x4] sm:$0xf]
    %v2294 = vld [vmem:[%s2291 + $0x8] sm:$0xf]
    %v2295 = vld [vmem:[%s2291 + $0xc] sm:$0xf]
    %s2296 = scalar_lea.vmem %s7, 1
    %v2297 = vld [vmem:[%s2296] sm:$0x1]
    %v2299 = vperm.slane %v2297, 0
    %v2305 = vunpack.c.l.b16 %v2292
    %v2306 = vunpack.c.l.b16 %v2293
    %v2307 = vunpack.c.l.b16 %v2294
    %v2308 = vunpack.c.l.b16 %v2295
    %v2309 = vpack.c.b16 %v2306, %v2305
    %v2310 = vpack.c.b16 %v2308, %v2307
    %v2314 = vsel %vm181, %v2290, 0
    %2316 = vmatpush.bf16.msra.mxu0 0
    %2317 = vmatpush.bf16.msra.mxu0 0
    %2318 = vmatpush.bf16.msra.mxu0 0
    %2319 = vmatpush.bf16.msra.mxu0 0
    %2320 = vmatpush.bf16.msra.mxu0 0
    %2321 = vmatpush.bf16.msra.mxu0 0
    %2322 = vmatpush.bf16.msra.mxu0 %v2310
    %2323 = vmatpush.bf16.msra.mxu0 %v2309
    %2324 = vmatmul.bf16.gmra.mxu0 %v2314
    %v2325 = vpop.f32.mrf.mxu0
    %v2326 = vadd.f32 %v2299, %v2325
    %v2327 = vpop.f32.mrf.mxu0
    %v2328 = vadd.f32 %v2299, %v2327
    %2329 = vdwg.mxu0
    %v2330 = vmul.f32 %v2326, 0.35355338
    %v2331 = vmul.f32 %v2328, 0.35355338
    %v2332 = vpack.c.bf16 %v2326, %v2326
    %v2333 = vpack.c.bf16 %v2328, %v2328
    %v2334 = vpack.c.bf16 %v2330, %v2330
    %v2335 = vpack.c.bf16 %v2331, %v2331
    %v2337 = vunpack.c.l.b16 %v2332
    %v2338 = vpack.c.b16 %v2337, %v2337
    %2339 = vrot.lane.b32.xlu0 %v2338, 96
    %v2340 = vpop.permute.xlu0 %2339
    %v2342 = vsel %vm292, %v2334, 0
    %v2345 = vsel %vm292, %v2340, 0
    %2347 = vmatpush.bf16.xpose.msra.mxu0 0
    %2348 = vmatpush.bf16.xpose.msra.mxu0 0
    %2349 = vmatpush.bf16.xpose.msra.mxu0 0
    %2350 = vmatpush.bf16.xpose.msra.mxu0 0
    %2351 = vmatpush.bf16.xpose.msra.mxu0 0
    %2352 = vmatpush.bf16.xpose.msra.mxu0 0
    %2353 = vmatpush.bf16.xpose.msra.mxu0 0
    %2354 = vmatpush.bf16.xpose.msra.mxu0 %v2345
    %2355 = vmatmul.bf16.gmra.mxu0 %v2342
    %v2356 = vpop.f32.mrf.mxu0
    %v2357 = vadd.f32 %v165, %v2356
    %v2358 = vpop.f32.mrf.mxu0
    %2359 = vdwg.mxu0
    %v2361 = vunpack.c.l.b16 %v2333
    %v2362 = vpack.c.b16 %v2361, %v2361
    %2363 = vrot.lane.b32.xlu0 %v2362, 96
    %v2364 = vpop.permute.xlu0 %2363
    %v2366 = vsel %vm292, %v2335, 0
    %v2369 = vsel %vm292, %v2364, 0
    %2371 = vmatpush.bf16.xpose.msra.mxu0 0
    %2372 = vmatpush.bf16.xpose.msra.mxu0 0
    %2373 = vmatpush.bf16.xpose.msra.mxu0 0
    %2374 = vmatpush.bf16.xpose.msra.mxu0 0
    %2375 = vmatpush.bf16.xpose.msra.mxu0 0
    %2376 = vmatpush.bf16.xpose.msra.mxu0 0
    %2377 = vmatpush.bf16.xpose.msra.mxu0 0
    %2378 = vmatpush.bf16.xpose.msra.mxu0 %v2369
    %2379 = vmatmul.bf16.gmra.mxu0 %v2366
    %v2380 = vpop.f32.mrf.mxu0
    %v2381 = vadd.f32 %v166, %v2380
    %v2382 = vpop.f32.mrf.mxu0
    %2383 = vdwg.mxu0
    %v2384 = vsel %vm292, %v2357, -inf
    %2385 = vmax.xlane.f32.xlu0 %v2384
    %v2386 = vpop.xlane.xlu0 %2385
    %v2387 = vsel %vm292, %v2381, -inf
    %2388 = vmax.xlane.f32.xlu0 %v2387
    %v2389 = vpop.xlane.xlu0 %2388
    %v2390 = vsub.f32 %v2357, %v2386
    %v2391 = vsub.f32 %v2381, %v2389
    %v2392 = vmul.f32 %v2390, 1.442695
    %v2393 = vpow.pop %v2392
    %v2394 = vmul.f32 %v2391, 1.442695
    %v2395 = vpow.pop %v2394
    %v2396 = vsel %vm292, %v2393, 0.0
    %2397 = vadd.xlane.f32.xlu0 %v2396
    %v2398 = vpop.xlane.xlu0 %2397
    %v2399 = vsel %vm292, %v2395, 0.0
    %2400 = vadd.xlane.f32.xlu0 %v2399
    %v2401 = vpop.xlane.xlu0 %2400
    %v2402 = vrcp.pop %v2398
    %v2403 = vrcp.pop %v2401
    %v2404 = vmul.f32 %v2393, %v2402
    %v2405 = vmul.f32 %v2395, %v2403
    %v2406 = vpack.c.bf16 %v2404, %v2404
    %v2407 = vpack.c.bf16 %v2405, %v2405
    %2408 = vrot.lane.b32.xlu0 %v2338, 64
    %v2409 = vpop.permute.xlu0 %2408
    %v2411 = vsel %vm292, %v2406, 0
    %v2414 = vsel %vm365, %v2409, 0
    %2416 = vmatpush.bf16.msra.mxu0 0
    %2417 = vmatpush.bf16.msra.mxu0 0
    %2418 = vmatpush.bf16.msra.mxu0 0
    %2419 = vmatpush.bf16.msra.mxu0 0
    %2420 = vmatpush.bf16.msra.mxu0 0
    %2421 = vmatpush.bf16.msra.mxu0 0
    %2422 = vmatpush.bf16.msra.mxu0 0
    %2423 = vmatpush.bf16.msra.mxu0 %v2414
    %2424 = vmatmul.bf16.gmra.mxu0 %v2411
    %v2425 = vpop.f32.mrf.mxu0
    %v2426 = vadd.f32 0.0, %v2425
    %v2427 = vpop.f32.mrf.mxu0
    %2428 = vdwg.mxu0
    %2429 = vrot.lane.b32.xlu0 %v2362, 64
    %v2430 = vpop.permute.xlu0 %2429
    %v2432 = vsel %vm292, %v2407, 0
    %v2435 = vsel %vm365, %v2430, 0
    %2437 = vmatpush.bf16.msra.mxu0 0
    %2438 = vmatpush.bf16.msra.mxu0 0
    %2439 = vmatpush.bf16.msra.mxu0 0
    %2440 = vmatpush.bf16.msra.mxu0 0
    %2441 = vmatpush.bf16.msra.mxu0 0
    %2442 = vmatpush.bf16.msra.mxu0 0
    %2443 = vmatpush.bf16.msra.mxu0 0
    %2444 = vmatpush.bf16.msra.mxu0 %v2435
    %2445 = vmatmul.bf16.gmra.mxu0 %v2432
    %v2446 = vpop.f32.mrf.mxu0
    %v2447 = vadd.f32 0.0, %v2446
    %v2448 = vpop.f32.mrf.mxu0
    %2449 = vdwg.mxu0
    %2450 = vst.msk [vmem:[#allocation2] sm:$0xff] %vm292, %v2426
    %2451 = vst.msk [vmem:[#allocation2 + $0x8] sm:$0xff] %vm292, %v2447
    %v2453 = vunpack.c.l.b16 %v2334
    %v2454 = vpack.c.b16 %v2453, %v2453
    %2455 = vrot.lane.b32.xlu0 %v2454, 120
    %v2456 = vpop.permute.xlu0 %2455
    %2457 = vrot.lane.b32.xlu0 %v2338, 88
    %v2458 = vpop.permute.xlu0 %2457
    %v2460 = vsel %vm292, %v2456, 0
    %v2463 = vsel %vm292, %v2458, 0
    %2465 = vmatpush.bf16.xpose.msra.mxu0 0
    %2466 = vmatpush.bf16.xpose.msra.mxu0 0
    %2467 = vmatpush.bf16.xpose.msra.mxu0 0
    %2468 = vmatpush.bf16.xpose.msra.mxu0 0
    %2469 = vmatpush.bf16.xpose.msra.mxu0 0
    %2470 = vmatpush.bf16.xpose.msra.mxu0 0
    %2471 = vmatpush.bf16.xpose.msra.mxu0 0
    %2472 = vmatpush.bf16.xpose.msra.mxu0 %v2463
    %2473 = vmatmul.bf16.gmra.mxu0 %v2460
    %v2474 = vpop.f32.mrf.mxu0
    %v2475 = vadd.f32 %v165, %v2474
    %v2476 = vpop.f32.mrf.mxu0
    %2477 = vdwg.mxu0
    %v2479 = vunpack.c.l.b16 %v2335
    %v2480 = vpack.c.b16 %v2479, %v2479
    %2481 = vrot.lane.b32.xlu0 %v2480, 120
    %v2482 = vpop.permute.xlu0 %2481
    %2483 = vrot.lane.b32.xlu0 %v2362, 88
    %v2484 = vpop.permute.xlu0 %2483
    %v2486 = vsel %vm292, %v2482, 0
    %v2489 = vsel %vm292, %v2484, 0
    %2491 = vmatpush.bf16.xpose.msra.mxu0 0
    %2492 = vmatpush.bf16.xpose.msra.mxu0 0
    %2493 = vmatpush.bf16.xpose.msra.mxu0 0
    %2494 = vmatpush.bf16.xpose.msra.mxu0 0
    %2495 = vmatpush.bf16.xpose.msra.mxu0 0
    %2496 = vmatpush.bf16.xpose.msra.mxu0 0
    %2497 = vmatpush.bf16.xpose.msra.mxu0 0
    %2498 = vmatpush.bf16.xpose.msra.mxu0 %v2489
    %2499 = vmatmul.bf16.gmra.mxu0 %v2486
    %v2500 = vpop.f32.mrf.mxu0
    %v2501 = vadd.f32 %v166, %v2500
    %v2502 = vpop.f32.mrf.mxu0
    %2503 = vdwg.mxu0
    %v2504 = vsel %vm292, %v2475, -inf
    %2505 = vmax.xlane.f32.xlu0 %v2504
    %v2506 = vpop.xlane.xlu0 %2505
    %v2507 = vsel %vm292, %v2501, -inf
    %2508 = vmax.xlane.f32.xlu0 %v2507
    %v2509 = vpop.xlane.xlu0 %2508
    %v2510 = vsub.f32 %v2475, %v2506
    %v2511 = vsub.f32 %v2501, %v2509
    %v2512 = vmul.f32 %v2510, 1.442695
    %v2513 = vpow.pop %v2512
    %v2514 = vmul.f32 %v2511, 1.442695
    %v2515 = vpow.pop %v2514
    %v2516 = vsel %vm292, %v2513, 0.0
    %2517 = vadd.xlane.f32.xlu0 %v2516
    %v2518 = vpop.xlane.xlu0 %2517
    %v2519 = vsel %vm292, %v2515, 0.0
    %2520 = vadd.xlane.f32.xlu0 %v2519
    %v2521 = vpop.xlane.xlu0 %2520
    %v2522 = vrcp.pop %v2518
    %v2523 = vrcp.pop %v2521
    %v2524 = vmul.f32 %v2513, %v2522
    %v2525 = vmul.f32 %v2515, %v2523
    %v2526 = vpack.c.bf16 %v2524, %v2524
    %v2527 = vpack.c.bf16 %v2525, %v2525
    %2528 = vrot.lane.b32.xlu0 %v2338, 56
    %v2529 = vpop.permute.xlu0 %2528
    %v2531 = vsel %vm292, %v2526, 0
    %v2534 = vsel %vm365, %v2529, 0
    %2536 = vmatpush.bf16.msra.mxu0 0
    %2537 = vmatpush.bf16.msra.mxu0 0
    %2538 = vmatpush.bf16.msra.mxu0 0
    %2539 = vmatpush.bf16.msra.mxu0 0
    %2540 = vmatpush.bf16.msra.mxu0 0
    %2541 = vmatpush.bf16.msra.mxu0 0
    %2542 = vmatpush.bf16.msra.mxu0 0
    %2543 = vmatpush.bf16.msra.mxu0 %v2534
    %2544 = vmatmul.bf16.gmra.mxu0 %v2531
    %v2545 = vpop.f32.mrf.mxu0
    %v2546 = vadd.f32 0.0, %v2545
    %v2547 = vpop.f32.mrf.mxu0
    %2548 = vdwg.mxu0
    %2549 = vrot.lane.b32.xlu0 %v2362, 56
    %v2550 = vpop.permute.xlu0 %2549
    %v2552 = vsel %vm292, %v2527, 0
    %v2555 = vsel %vm365, %v2550, 0
    %2557 = vmatpush.bf16.msra.mxu0 0
    %2558 = vmatpush.bf16.msra.mxu0 0
    %2559 = vmatpush.bf16.msra.mxu0 0
    %2560 = vmatpush.bf16.msra.mxu0 0
    %2561 = vmatpush.bf16.msra.mxu0 0
    %2562 = vmatpush.bf16.msra.mxu0 0
    %2563 = vmatpush.bf16.msra.mxu0 0
    %2564 = vmatpush.bf16.msra.mxu0 %v2555
    %2565 = vmatmul.bf16.gmra.mxu0 %v2552
    %v2566 = vpop.f32.mrf.mxu0
    %v2567 = vadd.f32 0.0, %v2566
    %v2568 = vpop.f32.mrf.mxu0
    %2569 = vdwg.mxu0
    %2572 = vrot.lane.b32.xlu0 %v2546, 8
    %v2573 = vpop.permute.xlu0 %2572
    %2574 = vrot.lane.b32.xlu0 %v2567, 8
    %v2575 = vpop.permute.xlu0 %2574
    %2578 = vst.msk [vmem:[#allocation2] sm:$0xff] %vm531, %v2573
    %2579 = vst.msk [vmem:[#allocation2 + $0x8] sm:$0xff] %vm531, %v2575
    %2580 = vrot.lane.b32.xlu0 %v2454, 112
    %v2581 = vpop.permute.xlu0 %2580
    %2582 = vrot.lane.b32.xlu0 %v2338, 80
    %v2583 = vpop.permute.xlu0 %2582
    %v2585 = vsel %vm292, %v2581, 0
    %v2588 = vsel %vm292, %v2583, 0
    %2590 = vmatpush.bf16.xpose.msra.mxu0 0
    %2591 = vmatpush.bf16.xpose.msra.mxu0 0
    %2592 = vmatpush.bf16.xpose.msra.mxu0 0
    %2593 = vmatpush.bf16.xpose.msra.mxu0 0
    %2594 = vmatpush.bf16.xpose.msra.mxu0 0
    %2595 = vmatpush.bf16.xpose.msra.mxu0 0
    %2596 = vmatpush.bf16.xpose.msra.mxu0 0
    %2597 = vmatpush.bf16.xpose.msra.mxu0 %v2588
    %2598 = vmatmul.bf16.gmra.mxu0 %v2585
    %v2599 = vpop.f32.mrf.mxu0
    %v2600 = vadd.f32 %v165, %v2599
    %v2601 = vpop.f32.mrf.mxu0
    %2602 = vdwg.mxu0
    %2603 = vrot.lane.b32.xlu0 %v2480, 112
    %v2604 = vpop.permute.xlu0 %2603
    %2605 = vrot.lane.b32.xlu0 %v2362, 80
    %v2606 = vpop.permute.xlu0 %2605
    %v2608 = vsel %vm292, %v2604, 0
    %v2611 = vsel %vm292, %v2606, 0
    %2613 = vmatpush.bf16.xpose.msra.mxu0 0
    %2614 = vmatpush.bf16.xpose.msra.mxu0 0
    %2615 = vmatpush.bf16.xpose.msra.mxu0 0
    %2616 = vmatpush.bf16.xpose.msra.mxu0 0
    %2617 = vmatpush.bf16.xpose.msra.mxu0 0
    %2618 = vmatpush.bf16.xpose.msra.mxu0 0
    %2619 = vmatpush.bf16.xpose.msra.mxu0 0
    %2620 = vmatpush.bf16.xpose.msra.mxu0 %v2611
    %2621 = vmatmul.bf16.gmra.mxu0 %v2608
    %v2622 = vpop.f32.mrf.mxu0
    %v2623 = vadd.f32 %v166, %v2622
    %v2624 = vpop.f32.mrf.mxu0
    %2625 = vdwg.mxu0
    %v2626 = vsel %vm292, %v2600, -inf
    %2627 = vmax.xlane.f32.xlu0 %v2626
    %v2628 = vpop.xlane.xlu0 %2627
    %v2629 = vsel %vm292, %v2623, -inf
    %2630 = vmax.xlane.f32.xlu0 %v2629
    %v2631 = vpop.xlane.xlu0 %2630
    %v2632 = vsub.f32 %v2600, %v2628
    %v2633 = vsub.f32 %v2623, %v2631
    %v2634 = vmul.f32 %v2632, 1.442695
    %v2635 = vpow.pop %v2634
    %v2636 = vmul.f32 %v2633, 1.442695
    %v2637 = vpow.pop %v2636
    %v2638 = vsel %vm292, %v2635, 0.0
    %2639 = vadd.xlane.f32.xlu0 %v2638
    %v2640 = vpop.xlane.xlu0 %2639
    %v2641 = vsel %vm292, %v2637, 0.0
    %2642 = vadd.xlane.f32.xlu0 %v2641
    %v2643 = vpop.xlane.xlu0 %2642
    %v2644 = vrcp.pop %v2640
    %v2645 = vrcp.pop %v2643
    %v2646 = vmul.f32 %v2635, %v2644
    %v2647 = vmul.f32 %v2637, %v2645
    %v2648 = vpack.c.bf16 %v2646, %v2646
    %v2649 = vpack.c.bf16 %v2647, %v2647
    %2650 = vrot.lane.b32.xlu0 %v2338, 48
    %v2651 = vpop.permute.xlu0 %2650
    %v2653 = vsel %vm292, %v2648, 0
    %v2656 = vsel %vm365, %v2651, 0
    %2658 = vmatpush.bf16.msra.mxu0 0
    %2659 = vmatpush.bf16.msra.mxu0 0
    %2660 = vmatpush.bf16.msra.mxu0 0
    %2661 = vmatpush.bf16.msra.mxu0 0
    %2662 = vmatpush.bf16.msra.mxu0 0
    %2663 = vmatpush.bf16.msra.mxu0 0
    %2664 = vmatpush.bf16.msra.mxu0 0
    %2665 = vmatpush.bf16.msra.mxu0 %v2656
    %2666 = vmatmul.bf16.gmra.mxu0 %v2653
    %v2667 = vpop.f32.mrf.mxu0
    %v2668 = vadd.f32 0.0, %v2667
    %v2669 = vpop.f32.mrf.mxu0
    %2670 = vdwg.mxu0
    %2671 = vrot.lane.b32.xlu0 %v2362, 48
    %v2672 = vpop.permute.xlu0 %2671
    %v2674 = vsel %vm292, %v2649, 0
    %v2677 = vsel %vm365, %v2672, 0
    %2679 = vmatpush.bf16.msra.mxu0 0
    %2680 = vmatpush.bf16.msra.mxu0 0
    %2681 = vmatpush.bf16.msra.mxu0 0
    %2682 = vmatpush.bf16.msra.mxu0 0
    %2683 = vmatpush.bf16.msra.mxu0 0
    %2684 = vmatpush.bf16.msra.mxu0 0
    %2685 = vmatpush.bf16.msra.mxu0 0
    %2686 = vmatpush.bf16.msra.mxu0 %v2677
    %2687 = vmatmul.bf16.gmra.mxu0 %v2674
    %v2688 = vpop.f32.mrf.mxu0
    %v2689 = vadd.f32 0.0, %v2688
    %v2690 = vpop.f32.mrf.mxu0
    %2691 = vdwg.mxu0
    %2694 = vrot.lane.b32.xlu0 %v2668, 16
    %v2695 = vpop.permute.xlu0 %2694
    %2696 = vrot.lane.b32.xlu0 %v2689, 16
    %v2697 = vpop.permute.xlu0 %2696
    %2700 = vst.msk [vmem:[#allocation2] sm:$0xff] %vm654, %v2695
    %2701 = vst.msk [vmem:[#allocation2 + $0x8] sm:$0xff] %vm654, %v2697
    %2702 = vrot.lane.b32.xlu0 %v2454, 104
    %v2703 = vpop.permute.xlu0 %2702
    %2704 = vrot.lane.b32.xlu0 %v2338, 72
    %v2705 = vpop.permute.xlu0 %2704
    %v2707 = vsel %vm292, %v2703, 0
    %v2710 = vsel %vm292, %v2705, 0
    %2712 = vmatpush.bf16.xpose.msra.mxu0 0
    %2713 = vmatpush.bf16.xpose.msra.mxu0 0
    %2714 = vmatpush.bf16.xpose.msra.mxu0 0
    %2715 = vmatpush.bf16.xpose.msra.mxu0 0
    %2716 = vmatpush.bf16.xpose.msra.mxu0 0
    %2717 = vmatpush.bf16.xpose.msra.mxu0 0
    %2718 = vmatpush.bf16.xpose.msra.mxu0 0
    %2719 = vmatpush.bf16.xpose.msra.mxu0 %v2710
    %2720 = vmatmul.bf16.gmra.mxu0 %v2707
    %v2721 = vpop.f32.mrf.mxu0
    %v2722 = vadd.f32 %v165, %v2721
    %v2723 = vpop.f32.mrf.mxu0
    %2724 = vdwg.mxu0
    %2725 = vrot.lane.b32.xlu0 %v2480, 104
    %v2726 = vpop.permute.xlu0 %2725
    %2727 = vrot.lane.b32.xlu0 %v2362, 72
    %v2728 = vpop.permute.xlu0 %2727
    %v2730 = vsel %vm292, %v2726, 0
    %v2733 = vsel %vm292, %v2728, 0
    %2735 = vmatpush.bf16.xpose.msra.mxu0 0
    %2736 = vmatpush.bf16.xpose.msra.mxu0 0
    %2737 = vmatpush.bf16.xpose.msra.mxu0 0
    %2738 = vmatpush.bf16.xpose.msra.mxu0 0
    %2739 = vmatpush.bf16.xpose.msra.mxu0 0
    %2740 = vmatpush.bf16.xpose.msra.mxu0 0
    %2741 = vmatpush.bf16.xpose.msra.mxu0 0
    %2742 = vmatpush.bf16.xpose.msra.mxu0 %v2733
    %2743 = vmatmul.bf16.gmra.mxu0 %v2730
    %v2744 = vpop.f32.mrf.mxu0
    %v2745 = vadd.f32 %v166, %v2744
    %v2746 = vpop.f32.mrf.mxu0
    %2747 = vdwg.mxu0
    %v2748 = vsel %vm292, %v2722, -inf
    %2749 = vmax.xlane.f32.xlu0 %v2748
    %v2750 = vpop.xlane.xlu0 %2749
    %v2751 = vsel %vm292, %v2745, -inf
    %2752 = vmax.xlane.f32.xlu0 %v2751
    %v2753 = vpop.xlane.xlu0 %2752
    %v2754 = vsub.f32 %v2722, %v2750
    %v2755 = vsub.f32 %v2745, %v2753
    %v2756 = vmul.f32 %v2754, 1.442695
    %v2757 = vpow.pop %v2756
    %v2758 = vmul.f32 %v2755, 1.442695
    %v2759 = vpow.pop %v2758
    %v2760 = vsel %vm292, %v2757, 0.0
    %2761 = vadd.xlane.f32.xlu0 %v2760
    %v2762 = vpop.xlane.xlu0 %2761
    %v2763 = vsel %vm292, %v2759, 0.0
    %2764 = vadd.xlane.f32.xlu0 %v2763
    %v2765 = vpop.xlane.xlu0 %2764
    %v2766 = vrcp.pop %v2762
    %v2767 = vrcp.pop %v2765
    %v2768 = vmul.f32 %v2757, %v2766
    %v2769 = vmul.f32 %v2759, %v2767
    %v2770 = vpack.c.bf16 %v2768, %v2768
    %v2771 = vpack.c.bf16 %v2769, %v2769
    %2772 = vrot.lane.b32.xlu0 %v2338, 40
    %v2773 = vpop.permute.xlu0 %2772
    %v2775 = vsel %vm292, %v2770, 0
    %v2778 = vsel %vm365, %v2773, 0
    %2780 = vmatpush.bf16.msra.mxu0 0
    %2781 = vmatpush.bf16.msra.mxu0 0
    %2782 = vmatpush.bf16.msra.mxu0 0
    %2783 = vmatpush.bf16.msra.mxu0 0
    %2784 = vmatpush.bf16.msra.mxu0 0
    %2785 = vmatpush.bf16.msra.mxu0 0
    %2786 = vmatpush.bf16.msra.mxu0 0
    %2787 = vmatpush.bf16.msra.mxu0 %v2778
    %2788 = vmatmul.bf16.gmra.mxu0 %v2775
    %v2789 = vpop.f32.mrf.mxu0
    %v2790 = vadd.f32 0.0, %v2789
    %v2791 = vpop.f32.mrf.mxu0
    %2792 = vdwg.mxu0
    %2793 = vrot.lane.b32.xlu0 %v2362, 40
    %v2794 = vpop.permute.xlu0 %2793
    %v2796 = vsel %vm292, %v2771, 0
    %v2799 = vsel %vm365, %v2794, 0
    %2801 = vmatpush.bf16.msra.mxu0 0
    %2802 = vmatpush.bf16.msra.mxu0 0
    %2803 = vmatpush.bf16.msra.mxu0 0
    %2804 = vmatpush.bf16.msra.mxu0 0
    %2805 = vmatpush.bf16.msra.mxu0 0
    %2806 = vmatpush.bf16.msra.mxu0 0
    %2807 = vmatpush.bf16.msra.mxu0 0
    %2808 = vmatpush.bf16.msra.mxu0 %v2799
    %2809 = vmatmul.bf16.gmra.mxu0 %v2796
    %v2810 = vpop.f32.mrf.mxu0
    %v2811 = vadd.f32 0.0, %v2810
    %v2812 = vpop.f32.mrf.mxu0
    %2813 = vdwg.mxu0
    %2816 = vrot.lane.b32.xlu0 %v2790, 24
    %v2817 = vpop.permute.xlu0 %2816
    %2818 = vrot.lane.b32.xlu0 %v2811, 24
    %v2819 = vpop.permute.xlu0 %2818
    %2822 = vst.msk [vmem:[#allocation2] sm:$0xff] %vm777, %v2817
    %2823 = vst.msk [vmem:[#allocation2 + $0x8] sm:$0xff] %vm777, %v2819
    %v2824 = vld [vmem:[#allocation2] sm:$0xff]
    %v2825 = vld [vmem:[#allocation2 + $0x8] sm:$0xff]
    %v2826 = vadd.f32 %v2230, %v2824
    %v2827 = vadd.f32 %v2231, %v2825
    %s2828 = scalar_lea.vmem %s8, 1
    %v2829 = vld [vmem:[%s2828] sm:$0x1]
    %s2830 = scalar_lea.vmem %s9, 1
    %v2831 = vld [vmem:[%s2830] sm:$0x1]
    %v2832 = vsel %vm181, %v2826, 0.0
    %2833 = vadd.xlane.f32.xlu0 %v2832
    %v2834 = vpop.xlane.xlu0 %2833
    %v2835 = vsel %vm181, %v2827, 0.0
    %2836 = vadd.xlane.f32.xlu0 %v2835
    %v2837 = vpop.xlane.xlu0 %2836
    %v2838 = vmul.f32 %v2834, %v194
    %v2839 = vmul.f32 %v2837, %v194
    %v2840 = vsub.f32 %v2826, %v2838
    %v2841 = vsub.f32 %v2827, %v2839
    %v2842 = vmul.f32 %v2840, %v2840
    %v2843 = vmul.f32 %v2841, %v2841
    %v2844 = vsel %vm181, %v2842, 0.0
    %2845 = vadd.xlane.f32.xlu0 %v2844
    %v2846 = vpop.xlane.xlu0 %2845
    %v2847 = vsel %vm181, %v2843, 0.0
    %2848 = vadd.xlane.f32.xlu0 %v2847
    %v2849 = vpop.xlane.xlu0 %2848
    %v2850 = vmul.f32 %v2846, %v194
    %v2851 = vmul.f32 %v2849, %v194
    %v2852 = vadd.f32 %v2850, 1e-05
    %v2853 = vadd.f32 %v2851, 1e-05
    %v2854 = vrsqrt.pop %v2852
    %v2855 = vmul.f32 %v2854, %v2852
    %v2856 = vmul.f32 %v2855, %v2854
    %v2857 = vmul.f32 0.5, %v2856
    %v2858 = vsub.f32 1.5, %v2857
    %v2859 = vmul.f32 %v2854, %v2858
    %vm2860 = vweird.f32 %v2852
    %vm2861 = vweird.f32 %v2854
    %vm2862 = vmor %vm2860, %vm2861
    %v2863 = vsel %vm2862, %v2854, %v2859
    %v2864 = vrsqrt.pop %v2853
    %v2865 = vmul.f32 %v2864, %v2853
    %v2866 = vmul.f32 %v2865, %v2864
    %v2867 = vmul.f32 0.5, %v2866
    %v2868 = vsub.f32 1.5, %v2867
    %v2869 = vmul.f32 %v2864, %v2868
    %vm2870 = vweird.f32 %v2853
    %vm2871 = vweird.f32 %v2864
    %vm2872 = vmor %vm2870, %vm2871
    %v2873 = vsel %vm2872, %v2864, %v2869
    %v2874 = vmul.f32 %v2840, %v2863
    %v2875 = vmul.f32 %v2841, %v2873
    %v2877 = vperm.slane %v2829, 0
    %v2879 = vmul.f32 %v2874, %v2877
    %v2880 = vmul.f32 %v2875, %v2877
    %v2882 = vperm.slane %v2831, 0
    %v2884 = vadd.f32 %v2879, %v2882
    %v2885 = vadd.f32 %v2880, %v2882
    %v2886 = vpack.c.bf16 %v2885, %v2884
    %s2887 = scalar_lea.vmem %s10, 16
    %v2888 = vld [vmem:[%s2887] sm:$0xf]
    %v2889 = vld [vmem:[%s2887 + $0x4] sm:$0xf]
    %v2890 = vld [vmem:[%s2887 + $0x8] sm:$0xf]
    %v2891 = vld [vmem:[%s2887 + $0xc] sm:$0xf]
    %s2892 = scalar_lea.vmem %s11, 1
    %v2893 = vld [vmem:[%s2892] sm:$0x1]
    %v2895 = vperm.slane %v2893, 0
    %v2901 = vunpack.c.l.b16 %v2888
    %v2902 = vunpack.c.l.b16 %v2889
    %v2903 = vunpack.c.l.b16 %v2890
    %v2904 = vunpack.c.l.b16 %v2891
    %v2905 = vpack.c.b16 %v2902, %v2901
    %v2906 = vpack.c.b16 %v2904, %v2903
    %v2910 = vsel %vm181, %v2886, 0
    %2912 = vmatpush.bf16.msra.mxu0 0
    %2913 = vmatpush.bf16.msra.mxu0 0
    %2914 = vmatpush.bf16.msra.mxu0 0
    %2915 = vmatpush.bf16.msra.mxu0 0
    %2916 = vmatpush.bf16.msra.mxu0 0
    %2917 = vmatpush.bf16.msra.mxu0 0
    %2918 = vmatpush.bf16.msra.mxu0 %v2906
    %2919 = vmatpush.bf16.msra.mxu0 %v2905
    %2920 = vmatmul.bf16.gmra.mxu0 %v2910
    %v2921 = vpop.f32.mrf.mxu0
    %v2922 = vadd.f32 %v2895, %v2921
    %v2923 = vpop.f32.mrf.mxu0
    %v2924 = vadd.f32 %v2895, %v2923
    %2925 = vdwg.mxu0
    %s2926 = scalar_lea.vmem %s12, 16
    %v2927 = vld [vmem:[%s2926] sm:$0xf]
    %v2928 = vld [vmem:[%s2926 + $0x4] sm:$0xf]
    %v2929 = vld [vmem:[%s2926 + $0x8] sm:$0xf]
    %v2930 = vld [vmem:[%s2926 + $0xc] sm:$0xf]
    %s2931 = scalar_lea.vmem %s13, 1
    %v2932 = vld [vmem:[%s2931] sm:$0x1]
    %v2934 = vperm.slane %v2932, 0
    %v2940 = vunpack.c.l.b16 %v2927
    %v2941 = vunpack.c.l.b16 %v2928
    %v2942 = vunpack.c.l.b16 %v2929
    %v2943 = vunpack.c.l.b16 %v2930
    %v2944 = vpack.c.b16 %v2941, %v2940
    %v2945 = vpack.c.b16 %v2943, %v2942
    %2948 = vmatpush.bf16.msra.mxu0 0
    %2949 = vmatpush.bf16.msra.mxu0 0
    %2950 = vmatpush.bf16.msra.mxu0 0
    %2951 = vmatpush.bf16.msra.mxu0 0
    %2952 = vmatpush.bf16.msra.mxu0 0
    %2953 = vmatpush.bf16.msra.mxu0 0
    %2954 = vmatpush.bf16.msra.mxu0 %v2945
    %2955 = vmatpush.bf16.msra.mxu0 %v2944
    %2956 = vmatmul.bf16.gmra.mxu0 %v979
    %v2957 = vpop.f32.mrf.mxu0
    %v2958 = vadd.f32 %v2934, %v2957
    %v2959 = vpop.f32.mrf.mxu0
    %v2960 = vadd.f32 %v2934, %v2959
    %2961 = vmatmul.bf16.gmra.mxu0 %v982
    %v2962 = vpop.f32.mrf.mxu0
    %v2963 = vadd.f32 %v2934, %v2962
    %v2964 = vpop.f32.mrf.mxu0
    %v2965 = vadd.f32 %v2934, %v2964
    %2966 = vmatmul.bf16.gmra.mxu0 %v985
    %v2967 = vpop.f32.mrf.mxu0
    %v2968 = vadd.f32 %v2934, %v2967
    %v2969 = vpop.f32.mrf.mxu0
    %v2970 = vadd.f32 %v2934, %v2969
    %2971 = vmatmul.bf16.gmra.mxu0 %v988
    %v2972 = vpop.f32.mrf.mxu0
    %v2973 = vadd.f32 %v2934, %v2972
    %v2974 = vpop.f32.mrf.mxu0
    %v2975 = vadd.f32 %v2934, %v2974
    %2976 = vmatmul.bf16.gmra.mxu0 %v991
    %v2977 = vpop.f32.mrf.mxu0
    %v2978 = vadd.f32 %v2934, %v2977
    %v2979 = vpop.f32.mrf.mxu0
    %v2980 = vadd.f32 %v2934, %v2979
    %2981 = vmatmul.bf16.gmra.mxu0 %v994
    %v2982 = vpop.f32.mrf.mxu0
    %v2983 = vadd.f32 %v2934, %v2982
    %v2984 = vpop.f32.mrf.mxu0
    %v2985 = vadd.f32 %v2934, %v2984
    %2986 = vmatmul.bf16.gmra.mxu0 %v997
    %v2987 = vpop.f32.mrf.mxu0
    %v2988 = vadd.f32 %v2934, %v2987
    %v2989 = vpop.f32.mrf.mxu0
    %v2990 = vadd.f32 %v2934, %v2989
    %2991 = vmatmul.bf16.gmra.mxu0 %v1000
    %v2992 = vpop.f32.mrf.mxu0
    %v2993 = vadd.f32 %v2934, %v2992
    %v2994 = vpop.f32.mrf.mxu0
    %v2995 = vadd.f32 %v2934, %v2994
    %2996 = vmatmul.bf16.gmra.mxu0 %v1003
    %v2997 = vpop.f32.mrf.mxu0
    %v2998 = vadd.f32 %v2934, %v2997
    %v2999 = vpop.f32.mrf.mxu0
    %v3000 = vadd.f32 %v2934, %v2999
    %3001 = vmatmul.bf16.gmra.mxu0 %v1006
    %v3002 = vpop.f32.mrf.mxu0
    %v3003 = vadd.f32 %v2934, %v3002
    %v3004 = vpop.f32.mrf.mxu0
    %v3005 = vadd.f32 %v2934, %v3004
    %3006 = vmatmul.bf16.gmra.mxu0 %v1009
    %v3007 = vpop.f32.mrf.mxu0
    %v3008 = vadd.f32 %v2934, %v3007
    %v3009 = vpop.f32.mrf.mxu0
    %v3010 = vadd.f32 %v2934, %v3009
    %3011 = vmatmul.bf16.gmra.mxu0 %v1012
    %v3012 = vpop.f32.mrf.mxu0
    %v3013 = vadd.f32 %v2934, %v3012
    %v3014 = vpop.f32.mrf.mxu0
    %v3015 = vadd.f32 %v2934, %v3014
    %3016 = vmatmul.bf16.gmra.mxu0 %v1015
    %v3017 = vpop.f32.mrf.mxu0
    %v3018 = vadd.f32 %v2934, %v3017
    %v3019 = vpop.f32.mrf.mxu0
    %v3020 = vadd.f32 %v2934, %v3019
    %3021 = vmatmul.bf16.gmra.mxu0 %v1018
    %v3022 = vpop.f32.mrf.mxu0
    %v3023 = vadd.f32 %v2934, %v3022
    %v3024 = vpop.f32.mrf.mxu0
    %v3025 = vadd.f32 %v2934, %v3024
    %3026 = vmatmul.bf16.gmra.mxu0 %v1021
    %v3027 = vpop.f32.mrf.mxu0
    %v3028 = vadd.f32 %v2934, %v3027
    %v3029 = vpop.f32.mrf.mxu0
    %v3030 = vadd.f32 %v2934, %v3029
    %3031 = vmatmul.bf16.gmra.mxu0 %v1024
    %v3032 = vpop.f32.mrf.mxu0
    %v3033 = vadd.f32 %v2934, %v3032
    %v3034 = vpop.f32.mrf.mxu0
    %v3035 = vadd.f32 %v2934, %v3034
    %3036 = vdwg.mxu0
    %v3037 = vpack.c.bf16 %v2958, %v2958
    %v3038 = vpack.c.bf16 %v2960, %v2960
    %v3039 = vpack.c.bf16 %v2963, %v2963
    %v3040 = vpack.c.bf16 %v2965, %v2965
    %v3041 = vpack.c.bf16 %v2968, %v2968
    %v3042 = vpack.c.bf16 %v2970, %v2970
    %v3043 = vpack.c.bf16 %v2973, %v2973
    %v3044 = vpack.c.bf16 %v2975, %v2975
    %v3045 = vpack.c.bf16 %v2978, %v2978
    %v3046 = vpack.c.bf16 %v2980, %v2980
    %v3047 = vpack.c.bf16 %v2983, %v2983
    %v3048 = vpack.c.bf16 %v2985, %v2985
    %v3049 = vpack.c.bf16 %v2988, %v2988
    %v3050 = vpack.c.bf16 %v2990, %v2990
    %v3051 = vpack.c.bf16 %v2993, %v2993
    %v3052 = vpack.c.bf16 %v2995, %v2995
    %v3053 = vpack.c.bf16 %v2998, %v2998
    %v3054 = vpack.c.bf16 %v3000, %v3000
    %v3055 = vpack.c.bf16 %v3003, %v3003
    %v3056 = vpack.c.bf16 %v3005, %v3005
    %v3057 = vpack.c.bf16 %v3008, %v3008
    %v3058 = vpack.c.bf16 %v3010, %v3010
    %v3059 = vpack.c.bf16 %v3013, %v3013
    %v3060 = vpack.c.bf16 %v3015, %v3015
    %v3061 = vpack.c.bf16 %v3018, %v3018
    %v3062 = vpack.c.bf16 %v3020, %v3020
    %v3063 = vpack.c.bf16 %v3023, %v3023
    %v3064 = vpack.c.bf16 %v3025, %v3025
    %v3065 = vpack.c.bf16 %v3028, %v3028
    %v3066 = vpack.c.bf16 %v3030, %v3030
    %v3067 = vpack.c.bf16 %v3033, %v3033
    %v3068 = vpack.c.bf16 %v3035, %v3035
    %v3069 = vmul.f32 %v2922, 0.35355338
    %v3070 = vmul.f32 %v2924, 0.35355338
    %v3071 = vpack.c.bf16 %v3069, %v3069
    %v3072 = vpack.c.bf16 %v3070, %v3070
    %v3089 = vunpack.c.l.b16 %v3037
    %v3090 = vunpack.c.l.b16 %v3038
    %v3091 = vunpack.c.l.b16 %v3039
    %v3092 = vunpack.c.l.b16 %v3040
    %v3093 = vunpack.c.l.b16 %v3041
    %v3094 = vunpack.c.l.b16 %v3042
    %v3095 = vunpack.c.l.b16 %v3043
    %v3096 = vunpack.c.l.b16 %v3044
    %v3097 = vunpack.c.l.b16 %v3045
    %v3098 = vunpack.c.l.b16 %v3046
    %v3099 = vunpack.c.l.b16 %v3047
    %v3100 = vunpack.c.l.b16 %v3048
    %v3101 = vunpack.c.l.b16 %v3049
    %v3102 = vunpack.c.l.b16 %v3050
    %v3103 = vunpack.c.l.b16 %v3051
    %v3104 = vunpack.c.l.b16 %v3052
    %v3105 = vpack.c.b16 %v3090, %v3089
    %v3106 = vpack.c.b16 %v3092, %v3091
    %v3107 = vpack.c.b16 %v3094, %v3093
    %v3108 = vpack.c.b16 %v3096, %v3095
    %v3109 = vpack.c.b16 %v3098, %v3097
    %v3110 = vpack.c.b16 %v3100, %v3099
    %v3111 = vpack.c.b16 %v3102, %v3101
    %v3112 = vpack.c.b16 %v3104, %v3103
    %v3114 = vsel %vm292, %v3071, 0
    %v3117 = vsel %vm292, %v3105, 0
    %v3120 = vsel %vm292, %v3106, 0
    %v3123 = vsel %vm292, %v3107, 0
    %v3126 = vsel %vm292, %v3108, 0
    %v3129 = vsel %vm292, %v3109, 0
    %v3132 = vsel %vm292, %v3110, 0
    %v3135 = vsel %vm292, %v3111, 0
    %v3138 = vsel %vm292, %v3112, 0
    %3140 = vmatpush.bf16.xpose.msra.mxu0 %v3138
    %3141 = vmatpush.bf16.xpose.msra.mxu0 %v3135
    %3142 = vmatpush.bf16.xpose.msra.mxu0 %v3132
    %3143 = vmatpush.bf16.xpose.msra.mxu0 %v3129
    %3144 = vmatpush.bf16.xpose.msra.mxu0 %v3126
    %3145 = vmatpush.bf16.xpose.msra.mxu0 %v3123
    %3146 = vmatpush.bf16.xpose.msra.mxu0 %v3120
    %3147 = vmatpush.bf16.xpose.msra.mxu0 %v3117
    %3148 = vmatmul.bf16.gmra.mxu0 %v3114
    %v3149 = vpop.f32.mrf.mxu0
    %v3150 = vadd.f32 %v177, %v3149
    %v3151 = vpop.f32.mrf.mxu0
    %3152 = vdwg.mxu0
    %v3169 = vunpack.c.l.b16 %v3053
    %v3170 = vunpack.c.l.b16 %v3054
    %v3171 = vunpack.c.l.b16 %v3055
    %v3172 = vunpack.c.l.b16 %v3056
    %v3173 = vunpack.c.l.b16 %v3057
    %v3174 = vunpack.c.l.b16 %v3058
    %v3175 = vunpack.c.l.b16 %v3059
    %v3176 = vunpack.c.l.b16 %v3060
    %v3177 = vunpack.c.l.b16 %v3061
    %v3178 = vunpack.c.l.b16 %v3062
    %v3179 = vunpack.c.l.b16 %v3063
    %v3180 = vunpack.c.l.b16 %v3064
    %v3181 = vunpack.c.l.b16 %v3065
    %v3182 = vunpack.c.l.b16 %v3066
    %v3183 = vunpack.c.l.b16 %v3067
    %v3184 = vunpack.c.l.b16 %v3068
    %v3185 = vpack.c.b16 %v3170, %v3169
    %v3186 = vpack.c.b16 %v3172, %v3171
    %v3187 = vpack.c.b16 %v3174, %v3173
    %v3188 = vpack.c.b16 %v3176, %v3175
    %v3189 = vpack.c.b16 %v3178, %v3177
    %v3190 = vpack.c.b16 %v3180, %v3179
    %v3191 = vpack.c.b16 %v3182, %v3181
    %v3192 = vpack.c.b16 %v3184, %v3183
    %v3194 = vsel %vm292, %v3072, 0
    %v3197 = vsel %vm292, %v3185, 0
    %v3200 = vsel %vm292, %v3186, 0
    %v3203 = vsel %vm292, %v3187, 0
    %v3206 = vsel %vm292, %v3188, 0
    %v3209 = vsel %vm292, %v3189, 0
    %v3212 = vsel %vm292, %v3190, 0
    %v3215 = vsel %vm292, %v3191, 0
    %v3218 = vsel %vm292, %v3192, 0
    %3220 = vmatpush.bf16.xpose.msra.mxu0 %v3218
    %3221 = vmatpush.bf16.xpose.msra.mxu0 %v3215
    %3222 = vmatpush.bf16.xpose.msra.mxu0 %v3212
    %3223 = vmatpush.bf16.xpose.msra.mxu0 %v3209
    %3224 = vmatpush.bf16.xpose.msra.mxu0 %v3206
    %3225 = vmatpush.bf16.xpose.msra.mxu0 %v3203
    %3226 = vmatpush.bf16.xpose.msra.mxu0 %v3200
    %3227 = vmatpush.bf16.xpose.msra.mxu0 %v3197
    %3228 = vmatmul.bf16.gmra.mxu0 %v3194
    %v3229 = vpop.f32.mrf.mxu0
    %v3230 = vadd.f32 %v178, %v3229
    %v3231 = vpop.f32.mrf.mxu0
    %3232 = vdwg.mxu0
    %3233 = vmax.xlane.f32.xlu0 %v3150
    %v3234 = vpop.xlane.xlu0 %3233
    %3235 = vmax.xlane.f32.xlu0 %v3230
    %v3236 = vpop.xlane.xlu0 %3235
    %v3237 = vsub.f32 %v3150, %v3234
    %v3238 = vsub.f32 %v3230, %v3236
    %v3239 = vmul.f32 %v3237, 1.442695
    %v3240 = vpow.pop %v3239
    %v3241 = vmul.f32 %v3238, 1.442695
    %v3242 = vpow.pop %v3241
    %3243 = vadd.xlane.f32.xlu0 %v3240
    %v3244 = vpop.xlane.xlu0 %3243
    %3245 = vadd.xlane.f32.xlu0 %v3242
    %v3246 = vpop.xlane.xlu0 %3245
    %v3247 = vrcp.pop %v3244
    %v3248 = vrcp.pop %v3246
    %v3249 = vmul.f32 %v3240, %v3247
    %v3250 = vmul.f32 %v3242, %v3248
    %v3251 = vpack.c.bf16 %v3249, %v3249
    %v3252 = vpack.c.bf16 %v3250, %v3250
    %3253 = vrot.lane.b32.xlu0 %v3105, 96
    %v3254 = vpop.permute.xlu0 %3253
    %3255 = vrot.lane.b32.xlu0 %v3106, 96
    %v3256 = vpop.permute.xlu0 %3255
    %3257 = vrot.lane.b32.xlu0 %v3107, 96
    %v3258 = vpop.permute.xlu0 %3257
    %3259 = vrot.lane.b32.xlu0 %v3108, 96
    %v3260 = vpop.permute.xlu0 %3259
    %3261 = vrot.lane.b32.xlu0 %v3109, 96
    %v3262 = vpop.permute.xlu0 %3261
    %3263 = vrot.lane.b32.xlu0 %v3110, 96
    %v3264 = vpop.permute.xlu0 %3263
    %3265 = vrot.lane.b32.xlu0 %v3111, 96
    %v3266 = vpop.permute.xlu0 %3265
    %3267 = vrot.lane.b32.xlu0 %v3112, 96
    %v3268 = vpop.permute.xlu0 %3267
    %3277 = vmatpush.bf16.msra.mxu0 %v3268
    %3278 = vmatpush.bf16.msra.mxu0 %v3266
    %3279 = vmatpush.bf16.msra.mxu0 %v3264
    %3280 = vmatpush.bf16.msra.mxu0 %v3262
    %3281 = vmatpush.bf16.msra.mxu0 %v3260
    %3282 = vmatpush.bf16.msra.mxu0 %v3258
    %3283 = vmatpush.bf16.msra.mxu0 %v3256
    %3284 = vmatpush.bf16.msra.mxu0 %v3254
    %3285 = vmatmul.bf16.gmra.mxu0 %v3251
    %v3286 = vpop.f32.mrf.mxu0
    %v3287 = vadd.f32 0.0, %v3286
    %v3288 = vpop.f32.mrf.mxu0
    %3289 = vdwg.mxu0
    %3290 = vrot.lane.b32.xlu0 %v3185, 96
    %v3291 = vpop.permute.xlu0 %3290
    %3292 = vrot.lane.b32.xlu0 %v3186, 96
    %v3293 = vpop.permute.xlu0 %3292
    %3294 = vrot.lane.b32.xlu0 %v3187, 96
    %v3295 = vpop.permute.xlu0 %3294
    %3296 = vrot.lane.b32.xlu0 %v3188, 96
    %v3297 = vpop.permute.xlu0 %3296
    %3298 = vrot.lane.b32.xlu0 %v3189, 96
    %v3299 = vpop.permute.xlu0 %3298
    %3300 = vrot.lane.b32.xlu0 %v3190, 96
    %v3301 = vpop.permute.xlu0 %3300
    %3302 = vrot.lane.b32.xlu0 %v3191, 96
    %v3303 = vpop.permute.xlu0 %3302
    %3304 = vrot.lane.b32.xlu0 %v3192, 96
    %v3305 = vpop.permute.xlu0 %3304
    %3314 = vmatpush.bf16.msra.mxu0 %v3305
    %3315 = vmatpush.bf16.msra.mxu0 %v3303
    %3316 = vmatpush.bf16.msra.mxu0 %v3301
    %3317 = vmatpush.bf16.msra.mxu0 %v3299
    %3318 = vmatpush.bf16.msra.mxu0 %v3297
    %3319 = vmatpush.bf16.msra.mxu0 %v3295
    %3320 = vmatpush.bf16.msra.mxu0 %v3293
    %3321 = vmatpush.bf16.msra.mxu0 %v3291
    %3322 = vmatmul.bf16.gmra.mxu0 %v3252
    %v3323 = vpop.f32.mrf.mxu0
    %v3324 = vadd.f32 0.0, %v3323
    %v3325 = vpop.f32.mrf.mxu0
    %3326 = vdwg.mxu0
    %3327 = vst.msk [vmem:[#allocation2] sm:$0xff] %vm292, %v3287
    %3328 = vst.msk [vmem:[#allocation2 + $0x8] sm:$0xff] %vm292, %v3324
    %v3330 = vunpack.c.l.b16 %v3071
    %v3331 = vpack.c.b16 %v3330, %v3330
    %3332 = vrot.lane.b32.xlu0 %v3331, 120
    %v3333 = vpop.permute.xlu0 %3332
    %3334 = vrot.lane.b32.xlu0 %v3105, 120
    %v3335 = vpop.permute.xlu0 %3334
    %3336 = vrot.lane.b32.xlu0 %v3106, 120
    %v3337 = vpop.permute.xlu0 %3336
    %3338 = vrot.lane.b32.xlu0 %v3107, 120
    %v3339 = vpop.permute.xlu0 %3338
    %3340 = vrot.lane.b32.xlu0 %v3108, 120
    %v3341 = vpop.permute.xlu0 %3340
    %3342 = vrot.lane.b32.xlu0 %v3109, 120
    %v3343 = vpop.permute.xlu0 %3342
    %3344 = vrot.lane.b32.xlu0 %v3110, 120
    %v3345 = vpop.permute.xlu0 %3344
    %3346 = vrot.lane.b32.xlu0 %v3111, 120
    %v3347 = vpop.permute.xlu0 %3346
    %3348 = vrot.lane.b32.xlu0 %v3112, 120
    %v3349 = vpop.permute.xlu0 %3348
    %v3351 = vsel %vm292, %v3333, 0
    %v3354 = vsel %vm292, %v3335, 0
    %v3357 = vsel %vm292, %v3337, 0
    %v3360 = vsel %vm292, %v3339, 0
    %v3363 = vsel %vm292, %v3341, 0
    %v3366 = vsel %vm292, %v3343, 0
    %v3369 = vsel %vm292, %v3345, 0
    %v3372 = vsel %vm292, %v3347, 0
    %v3375 = vsel %vm292, %v3349, 0
    %3377 = vmatpush.bf16.xpose.msra.mxu0 %v3375
    %3378 = vmatpush.bf16.xpose.msra.mxu0 %v3372
    %3379 = vmatpush.bf16.xpose.msra.mxu0 %v3369
    %3380 = vmatpush.bf16.xpose.msra.mxu0 %v3366
    %3381 = vmatpush.bf16.xpose.msra.mxu0 %v3363
    %3382 = vmatpush.bf16.xpose.msra.mxu0 %v3360
    %3383 = vmatpush.bf16.xpose.msra.mxu0 %v3357
    %3384 = vmatpush.bf16.xpose.msra.mxu0 %v3354
    %3385 = vmatmul.bf16.gmra.mxu0 %v3351
    %v3386 = vpop.f32.mrf.mxu0
    %v3387 = vadd.f32 %v177, %v3386
    %v3388 = vpop.f32.mrf.mxu0
    %3389 = vdwg.mxu0
    %v3391 = vunpack.c.l.b16 %v3072
    %v3392 = vpack.c.b16 %v3391, %v3391
    %3393 = vrot.lane.b32.xlu0 %v3392, 120
    %v3394 = vpop.permute.xlu0 %3393
    %3395 = vrot.lane.b32.xlu0 %v3185, 120
    %v3396 = vpop.permute.xlu0 %3395
    %3397 = vrot.lane.b32.xlu0 %v3186, 120
    %v3398 = vpop.permute.xlu0 %3397
    %3399 = vrot.lane.b32.xlu0 %v3187, 120
    %v3400 = vpop.permute.xlu0 %3399
    %3401 = vrot.lane.b32.xlu0 %v3188, 120
    %v3402 = vpop.permute.xlu0 %3401
    %3403 = vrot.lane.b32.xlu0 %v3189, 120
    %v3404 = vpop.permute.xlu0 %3403
    %3405 = vrot.lane.b32.xlu0 %v3190, 120
    %v3406 = vpop.permute.xlu0 %3405
    %3407 = vrot.lane.b32.xlu0 %v3191, 120
    %v3408 = vpop.permute.xlu0 %3407
    %3409 = vrot.lane.b32.xlu0 %v3192, 120
    %v3410 = vpop.permute.xlu0 %3409
    %v3412 = vsel %vm292, %v3394, 0
    %v3415 = vsel %vm292, %v3396, 0
    %v3418 = vsel %vm292, %v3398, 0
    %v3421 = vsel %vm292, %v3400, 0
    %v3424 = vsel %vm292, %v3402, 0
    %v3427 = vsel %vm292, %v3404, 0
    %v3430 = vsel %vm292, %v3406, 0
    %v3433 = vsel %vm292, %v3408, 0
    %v3436 = vsel %vm292, %v3410, 0
    %3438 = vmatpush.bf16.xpose.msra.mxu0 %v3436
    %3439 = vmatpush.bf16.xpose.msra.mxu0 %v3433
    %3440 = vmatpush.bf16.xpose.msra.mxu0 %v3430
    %3441 = vmatpush.bf16.xpose.msra.mxu0 %v3427
    %3442 = vmatpush.bf16.xpose.msra.mxu0 %v3424
    %3443 = vmatpush.bf16.xpose.msra.mxu0 %v3421
    %3444 = vmatpush.bf16.xpose.msra.mxu0 %v3418
    %3445 = vmatpush.bf16.xpose.msra.mxu0 %v3415
    %3446 = vmatmul.bf16.gmra.mxu0 %v3412
    %v3447 = vpop.f32.mrf.mxu0
    %v3448 = vadd.f32 %v178, %v3447
    %v3449 = vpop.f32.mrf.mxu0
    %3450 = vdwg.mxu0
    %3451 = vmax.xlane.f32.xlu0 %v3387
    %v3452 = vpop.xlane.xlu0 %3451
    %3453 = vmax.xlane.f32.xlu0 %v3448
    %v3454 = vpop.xlane.xlu0 %3453
    %v3455 = vsub.f32 %v3387, %v3452
    %v3456 = vsub.f32 %v3448, %v3454
    %v3457 = vmul.f32 %v3455, 1.442695
    %v3458 = vpow.pop %v3457
    %v3459 = vmul.f32 %v3456, 1.442695
    %v3460 = vpow.pop %v3459
    %3461 = vadd.xlane.f32.xlu0 %v3458
    %v3462 = vpop.xlane.xlu0 %3461
    %3463 = vadd.xlane.f32.xlu0 %v3460
    %v3464 = vpop.xlane.xlu0 %3463
    %v3465 = vrcp.pop %v3462
    %v3466 = vrcp.pop %v3464
    %v3467 = vmul.f32 %v3458, %v3465
    %v3468 = vmul.f32 %v3460, %v3466
    %v3469 = vpack.c.bf16 %v3467, %v3467
    %v3470 = vpack.c.bf16 %v3468, %v3468
    %3471 = vrot.lane.b32.xlu0 %v3105, 88
    %v3472 = vpop.permute.xlu0 %3471
    %3473 = vrot.lane.b32.xlu0 %v3106, 88
    %v3474 = vpop.permute.xlu0 %3473
    %3475 = vrot.lane.b32.xlu0 %v3107, 88
    %v3476 = vpop.permute.xlu0 %3475
    %3477 = vrot.lane.b32.xlu0 %v3108, 88
    %v3478 = vpop.permute.xlu0 %3477
    %3479 = vrot.lane.b32.xlu0 %v3109, 88
    %v3480 = vpop.permute.xlu0 %3479
    %3481 = vrot.lane.b32.xlu0 %v3110, 88
    %v3482 = vpop.permute.xlu0 %3481
    %3483 = vrot.lane.b32.xlu0 %v3111, 88
    %v3484 = vpop.permute.xlu0 %3483
    %3485 = vrot.lane.b32.xlu0 %v3112, 88
    %v3486 = vpop.permute.xlu0 %3485
    %3495 = vmatpush.bf16.msra.mxu0 %v3486
    %3496 = vmatpush.bf16.msra.mxu0 %v3484
    %3497 = vmatpush.bf16.msra.mxu0 %v3482
    %3498 = vmatpush.bf16.msra.mxu0 %v3480
    %3499 = vmatpush.bf16.msra.mxu0 %v3478
    %3500 = vmatpush.bf16.msra.mxu0 %v3476
    %3501 = vmatpush.bf16.msra.mxu0 %v3474
    %3502 = vmatpush.bf16.msra.mxu0 %v3472
    %3503 = vmatmul.bf16.gmra.mxu0 %v3469
    %v3504 = vpop.f32.mrf.mxu0
    %v3505 = vadd.f32 0.0, %v3504
    %v3506 = vpop.f32.mrf.mxu0
    %3507 = vdwg.mxu0
    %3508 = vrot.lane.b32.xlu0 %v3185, 88
    %v3509 = vpop.permute.xlu0 %3508
    %3510 = vrot.lane.b32.xlu0 %v3186, 88
    %v3511 = vpop.permute.xlu0 %3510
    %3512 = vrot.lane.b32.xlu0 %v3187, 88
    %v3513 = vpop.permute.xlu0 %3512
    %3514 = vrot.lane.b32.xlu0 %v3188, 88
    %v3515 = vpop.permute.xlu0 %3514
    %3516 = vrot.lane.b32.xlu0 %v3189, 88
    %v3517 = vpop.permute.xlu0 %3516
    %3518 = vrot.lane.b32.xlu0 %v3190, 88
    %v3519 = vpop.permute.xlu0 %3518
    %3520 = vrot.lane.b32.xlu0 %v3191, 88
    %v3521 = vpop.permute.xlu0 %3520
    %3522 = vrot.lane.b32.xlu0 %v3192, 88
    %v3523 = vpop.permute.xlu0 %3522
    %3532 = vmatpush.bf16.msra.mxu0 %v3523
    %3533 = vmatpush.bf16.msra.mxu0 %v3521
    %3534 = vmatpush.bf16.msra.mxu0 %v3519
    %3535 = vmatpush.bf16.msra.mxu0 %v3517
    %3536 = vmatpush.bf16.msra.mxu0 %v3515
    %3537 = vmatpush.bf16.msra.mxu0 %v3513
    %3538 = vmatpush.bf16.msra.mxu0 %v3511
    %3539 = vmatpush.bf16.msra.mxu0 %v3509
    %3540 = vmatmul.bf16.gmra.mxu0 %v3470
    %v3541 = vpop.f32.mrf.mxu0
    %v3542 = vadd.f32 0.0, %v3541
    %v3543 = vpop.f32.mrf.mxu0
    %3544 = vdwg.mxu0
    %3547 = vrot.lane.b32.xlu0 %v3505, 8
    %v3548 = vpop.permute.xlu0 %3547
    %3549 = vrot.lane.b32.xlu0 %v3542, 8
    %v3550 = vpop.permute.xlu0 %3549
    %3553 = vst.msk [vmem:[#allocation2] sm:$0xff] %vm531, %v3548
    %3554 = vst.msk [vmem:[#allocation2 + $0x8] sm:$0xff] %vm531, %v3550
    %3555 = vrot.lane.b32.xlu0 %v3331, 112
    %v3556 = vpop.permute.xlu0 %3555
    %3557 = vrot.lane.b32.xlu0 %v3105, 112
    %v3558 = vpop.permute.xlu0 %3557
    %3559 = vrot.lane.b32.xlu0 %v3106, 112
    %v3560 = vpop.permute.xlu0 %3559
    %3561 = vrot.lane.b32.xlu0 %v3107, 112
    %v3562 = vpop.permute.xlu0 %3561
    %3563 = vrot.lane.b32.xlu0 %v3108, 112
    %v3564 = vpop.permute.xlu0 %3563
    %3565 = vrot.lane.b32.xlu0 %v3109, 112
    %v3566 = vpop.permute.xlu0 %3565
    %3567 = vrot.lane.b32.xlu0 %v3110, 112
    %v3568 = vpop.permute.xlu0 %3567
    %3569 = vrot.lane.b32.xlu0 %v3111, 112
    %v3570 = vpop.permute.xlu0 %3569
    %3571 = vrot.lane.b32.xlu0 %v3112, 112
    %v3572 = vpop.permute.xlu0 %3571
    %v3574 = vsel %vm292, %v3556, 0
    %v3577 = vsel %vm292, %v3558, 0
    %v3580 = vsel %vm292, %v3560, 0
    %v3583 = vsel %vm292, %v3562, 0
    %v3586 = vsel %vm292, %v3564, 0
    %v3589 = vsel %vm292, %v3566, 0
    %v3592 = vsel %vm292, %v3568, 0
    %v3595 = vsel %vm292, %v3570, 0
    %v3598 = vsel %vm292, %v3572, 0
    %3600 = vmatpush.bf16.xpose.msra.mxu0 %v3598
    %3601 = vmatpush.bf16.xpose.msra.mxu0 %v3595
    %3602 = vmatpush.bf16.xpose.msra.mxu0 %v3592
    %3603 = vmatpush.bf16.xpose.msra.mxu0 %v3589
    %3604 = vmatpush.bf16.xpose.msra.mxu0 %v3586
    %3605 = vmatpush.bf16.xpose.msra.mxu0 %v3583
    %3606 = vmatpush.bf16.xpose.msra.mxu0 %v3580
    %3607 = vmatpush.bf16.xpose.msra.mxu0 %v3577
    %3608 = vmatmul.bf16.gmra.mxu0 %v3574
    %v3609 = vpop.f32.mrf.mxu0
    %v3610 = vadd.f32 %v177, %v3609
    %v3611 = vpop.f32.mrf.mxu0
    %3612 = vdwg.mxu0
    %3613 = vrot.lane.b32.xlu0 %v3392, 112
    %v3614 = vpop.permute.xlu0 %3613
    %3615 = vrot.lane.b32.xlu0 %v3185, 112
    %v3616 = vpop.permute.xlu0 %3615
    %3617 = vrot.lane.b32.xlu0 %v3186, 112
    %v3618 = vpop.permute.xlu0 %3617
    %3619 = vrot.lane.b32.xlu0 %v3187, 112
    %v3620 = vpop.permute.xlu0 %3619
    %3621 = vrot.lane.b32.xlu0 %v3188, 112
    %v3622 = vpop.permute.xlu0 %3621
    %3623 = vrot.lane.b32.xlu0 %v3189, 112
    %v3624 = vpop.permute.xlu0 %3623
    %3625 = vrot.lane.b32.xlu0 %v3190, 112
    %v3626 = vpop.permute.xlu0 %3625
    %3627 = vrot.lane.b32.xlu0 %v3191, 112
    %v3628 = vpop.permute.xlu0 %3627
    %3629 = vrot.lane.b32.xlu0 %v3192, 112
    %v3630 = vpop.permute.xlu0 %3629
    %v3632 = vsel %vm292, %v3614, 0
    %v3635 = vsel %vm292, %v3616, 0
    %v3638 = vsel %vm292, %v3618, 0
    %v3641 = vsel %vm292, %v3620, 0
    %v3644 = vsel %vm292, %v3622, 0
    %v3647 = vsel %vm292, %v3624, 0
    %v3650 = vsel %vm292, %v3626, 0
    %v3653 = vsel %vm292, %v3628, 0
    %v3656 = vsel %vm292, %v3630, 0
    %3658 = vmatpush.bf16.xpose.msra.mxu0 %v3656
    %3659 = vmatpush.bf16.xpose.msra.mxu0 %v3653
    %3660 = vmatpush.bf16.xpose.msra.mxu0 %v3650
    %3661 = vmatpush.bf16.xpose.msra.mxu0 %v3647
    %3662 = vmatpush.bf16.xpose.msra.mxu0 %v3644
    %3663 = vmatpush.bf16.xpose.msra.mxu0 %v3641
    %3664 = vmatpush.bf16.xpose.msra.mxu0 %v3638
    %3665 = vmatpush.bf16.xpose.msra.mxu0 %v3635
    %3666 = vmatmul.bf16.gmra.mxu0 %v3632
    %v3667 = vpop.f32.mrf.mxu0
    %v3668 = vadd.f32 %v178, %v3667
    %v3669 = vpop.f32.mrf.mxu0
    %3670 = vdwg.mxu0
    %3671 = vmax.xlane.f32.xlu0 %v3610
    %v3672 = vpop.xlane.xlu0 %3671
    %3673 = vmax.xlane.f32.xlu0 %v3668
    %v3674 = vpop.xlane.xlu0 %3673
    %v3675 = vsub.f32 %v3610, %v3672
    %v3676 = vsub.f32 %v3668, %v3674
    %v3677 = vmul.f32 %v3675, 1.442695
    %v3678 = vpow.pop %v3677
    %v3679 = vmul.f32 %v3676, 1.442695
    %v3680 = vpow.pop %v3679
    %3681 = vadd.xlane.f32.xlu0 %v3678
    %v3682 = vpop.xlane.xlu0 %3681
    %3683 = vadd.xlane.f32.xlu0 %v3680
    %v3684 = vpop.xlane.xlu0 %3683
    %v3685 = vrcp.pop %v3682
    %v3686 = vrcp.pop %v3684
    %v3687 = vmul.f32 %v3678, %v3685
    %v3688 = vmul.f32 %v3680, %v3686
    %v3689 = vpack.c.bf16 %v3687, %v3687
    %v3690 = vpack.c.bf16 %v3688, %v3688
    %3691 = vrot.lane.b32.xlu0 %v3105, 80
    %v3692 = vpop.permute.xlu0 %3691
    %3693 = vrot.lane.b32.xlu0 %v3106, 80
    %v3694 = vpop.permute.xlu0 %3693
    %3695 = vrot.lane.b32.xlu0 %v3107, 80
    %v3696 = vpop.permute.xlu0 %3695
    %3697 = vrot.lane.b32.xlu0 %v3108, 80
    %v3698 = vpop.permute.xlu0 %3697
    %3699 = vrot.lane.b32.xlu0 %v3109, 80
    %v3700 = vpop.permute.xlu0 %3699
    %3701 = vrot.lane.b32.xlu0 %v3110, 80
    %v3702 = vpop.permute.xlu0 %3701
    %3703 = vrot.lane.b32.xlu0 %v3111, 80
    %v3704 = vpop.permute.xlu0 %3703
    %3705 = vrot.lane.b32.xlu0 %v3112, 80
    %v3706 = vpop.permute.xlu0 %3705
    %3715 = vmatpush.bf16.msra.mxu0 %v3706
    %3716 = vmatpush.bf16.msra.mxu0 %v3704
    %3717 = vmatpush.bf16.msra.mxu0 %v3702
    %3718 = vmatpush.bf16.msra.mxu0 %v3700
    %3719 = vmatpush.bf16.msra.mxu0 %v3698
    %3720 = vmatpush.bf16.msra.mxu0 %v3696
    %3721 = vmatpush.bf16.msra.mxu0 %v3694
    %3722 = vmatpush.bf16.msra.mxu0 %v3692
    %3723 = vmatmul.bf16.gmra.mxu0 %v3689
    %v3724 = vpop.f32.mrf.mxu0
    %v3725 = vadd.f32 0.0, %v3724
    %v3726 = vpop.f32.mrf.mxu0
    %3727 = vdwg.mxu0
    %3728 = vrot.lane.b32.xlu0 %v3185, 80
    %v3729 = vpop.permute.xlu0 %3728
    %3730 = vrot.lane.b32.xlu0 %v3186, 80
    %v3731 = vpop.permute.xlu0 %3730
    %3732 = vrot.lane.b32.xlu0 %v3187, 80
    %v3733 = vpop.permute.xlu0 %3732
    %3734 = vrot.lane.b32.xlu0 %v3188, 80
    %v3735 = vpop.permute.xlu0 %3734
    %3736 = vrot.lane.b32.xlu0 %v3189, 80
    %v3737 = vpop.permute.xlu0 %3736
    %3738 = vrot.lane.b32.xlu0 %v3190, 80
    %v3739 = vpop.permute.xlu0 %3738
    %3740 = vrot.lane.b32.xlu0 %v3191, 80
    %v3741 = vpop.permute.xlu0 %3740
    %3742 = vrot.lane.b32.xlu0 %v3192, 80
    %v3743 = vpop.permute.xlu0 %3742
    %3752 = vmatpush.bf16.msra.mxu0 %v3743
    %3753 = vmatpush.bf16.msra.mxu0 %v3741
    %3754 = vmatpush.bf16.msra.mxu0 %v3739
    %3755 = vmatpush.bf16.msra.mxu0 %v3737
    %3756 = vmatpush.bf16.msra.mxu0 %v3735
    %3757 = vmatpush.bf16.msra.mxu0 %v3733
    %3758 = vmatpush.bf16.msra.mxu0 %v3731
    %3759 = vmatpush.bf16.msra.mxu0 %v3729
    %3760 = vmatmul.bf16.gmra.mxu0 %v3690
    %v3761 = vpop.f32.mrf.mxu0
    %v3762 = vadd.f32 0.0, %v3761
    %v3763 = vpop.f32.mrf.mxu0
    %3764 = vdwg.mxu0
    %3767 = vrot.lane.b32.xlu0 %v3725, 16
    %v3768 = vpop.permute.xlu0 %3767
    %3769 = vrot.lane.b32.xlu0 %v3762, 16
    %v3770 = vpop.permute.xlu0 %3769
    %3773 = vst.msk [vmem:[#allocation2] sm:$0xff] %vm654, %v3768
    %3774 = vst.msk [vmem:[#allocation2 + $0x8] sm:$0xff] %vm654, %v3770
    %3775 = vrot.lane.b32.xlu0 %v3331, 104
    %v3776 = vpop.permute.xlu0 %3775
    %3777 = vrot.lane.b32.xlu0 %v3105, 104
    %v3778 = vpop.permute.xlu0 %3777
    %3779 = vrot.lane.b32.xlu0 %v3106, 104
    %v3780 = vpop.permute.xlu0 %3779
    %3781 = vrot.lane.b32.xlu0 %v3107, 104
    %v3782 = vpop.permute.xlu0 %3781
    %3783 = vrot.lane.b32.xlu0 %v3108, 104
    %v3784 = vpop.permute.xlu0 %3783
    %3785 = vrot.lane.b32.xlu0 %v3109, 104
    %v3786 = vpop.permute.xlu0 %3785
    %3787 = vrot.lane.b32.xlu0 %v3110, 104
    %v3788 = vpop.permute.xlu0 %3787
    %3789 = vrot.lane.b32.xlu0 %v3111, 104
    %v3790 = vpop.permute.xlu0 %3789
    %3791 = vrot.lane.b32.xlu0 %v3112, 104
    %v3792 = vpop.permute.xlu0 %3791
    %v3794 = vsel %vm292, %v3776, 0
    %v3797 = vsel %vm292, %v3778, 0
    %v3800 = vsel %vm292, %v3780, 0
    %v3803 = vsel %vm292, %v3782, 0
    %v3806 = vsel %vm292, %v3784, 0
    %v3809 = vsel %vm292, %v3786, 0
    %v3812 = vsel %vm292, %v3788, 0
    %v3815 = vsel %vm292, %v3790, 0
    %v3818 = vsel %vm292, %v3792, 0
    %3820 = vmatpush.bf16.xpose.msra.mxu0 %v3818
    %3821 = vmatpush.bf16.xpose.msra.mxu0 %v3815
    %3822 = vmatpush.bf16.xpose.msra.mxu0 %v3812
    %3823 = vmatpush.bf16.xpose.msra.mxu0 %v3809
    %3824 = vmatpush.bf16.xpose.msra.mxu0 %v3806
    %3825 = vmatpush.bf16.xpose.msra.mxu0 %v3803
    %3826 = vmatpush.bf16.xpose.msra.mxu0 %v3800
    %3827 = vmatpush.bf16.xpose.msra.mxu0 %v3797
    %3828 = vmatmul.bf16.gmra.mxu0 %v3794
    %v3829 = vpop.f32.mrf.mxu0
    %v3830 = vadd.f32 %v177, %v3829
    %v3831 = vpop.f32.mrf.mxu0
    %3832 = vdwg.mxu0
    %3833 = vrot.lane.b32.xlu0 %v3392, 104
    %v3834 = vpop.permute.xlu0 %3833
    %3835 = vrot.lane.b32.xlu0 %v3185, 104
    %v3836 = vpop.permute.xlu0 %3835
    %3837 = vrot.lane.b32.xlu0 %v3186, 104
    %v3838 = vpop.permute.xlu0 %3837
    %3839 = vrot.lane.b32.xlu0 %v3187, 104
    %v3840 = vpop.permute.xlu0 %3839
    %3841 = vrot.lane.b32.xlu0 %v3188, 104
    %v3842 = vpop.permute.xlu0 %3841
    %3843 = vrot.lane.b32.xlu0 %v3189, 104
    %v3844 = vpop.permute.xlu0 %3843
    %3845 = vrot.lane.b32.xlu0 %v3190, 104
    %v3846 = vpop.permute.xlu0 %3845
    %3847 = vrot.lane.b32.xlu0 %v3191, 104
    %v3848 = vpop.permute.xlu0 %3847
    %3849 = vrot.lane.b32.xlu0 %v3192, 104
    %v3850 = vpop.permute.xlu0 %3849
    %v3852 = vsel %vm292, %v3834, 0
    %v3855 = vsel %vm292, %v3836, 0
    %v3858 = vsel %vm292, %v3838, 0
    %v3861 = vsel %vm292, %v3840, 0
    %v3864 = vsel %vm292, %v3842, 0
    %v3867 = vsel %vm292, %v3844, 0
    %v3870 = vsel %vm292, %v3846, 0
    %v3873 = vsel %vm292, %v3848, 0
    %v3876 = vsel %vm292, %v3850, 0
    %3878 = vmatpush.bf16.xpose.msra.mxu0 %v3876
    %3879 = vmatpush.bf16.xpose.msra.mxu0 %v3873
    %3880 = vmatpush.bf16.xpose.msra.mxu0 %v3870
    %3881 = vmatpush.bf16.xpose.msra.mxu0 %v3867
    %3882 = vmatpush.bf16.xpose.msra.mxu0 %v3864
    %3883 = vmatpush.bf16.xpose.msra.mxu0 %v3861
    %3884 = vmatpush.bf16.xpose.msra.mxu0 %v3858
    %3885 = vmatpush.bf16.xpose.msra.mxu0 %v3855
    %3886 = vmatmul.bf16.gmra.mxu0 %v3852
    %v3887 = vpop.f32.mrf.mxu0
    %v3888 = vadd.f32 %v178, %v3887
    %v3889 = vpop.f32.mrf.mxu0
    %3890 = vdwg.mxu0
    %3891 = vmax.xlane.f32.xlu0 %v3830
    %v3892 = vpop.xlane.xlu0 %3891
    %3893 = vmax.xlane.f32.xlu0 %v3888
    %v3894 = vpop.xlane.xlu0 %3893
    %v3895 = vsub.f32 %v3830, %v3892
    %v3896 = vsub.f32 %v3888, %v3894
    %v3897 = vmul.f32 %v3895, 1.442695
    %v3898 = vpow.pop %v3897
    %v3899 = vmul.f32 %v3896, 1.442695
    %v3900 = vpow.pop %v3899
    %3901 = vadd.xlane.f32.xlu0 %v3898
    %v3902 = vpop.xlane.xlu0 %3901
    %3903 = vadd.xlane.f32.xlu0 %v3900
    %v3904 = vpop.xlane.xlu0 %3903
    %v3905 = vrcp.pop %v3902
    %v3906 = vrcp.pop %v3904
    %v3907 = vmul.f32 %v3898, %v3905
    %v3908 = vmul.f32 %v3900, %v3906
    %v3909 = vpack.c.bf16 %v3907, %v3907
    %v3910 = vpack.c.bf16 %v3908, %v3908
    %3911 = vrot.lane.b32.xlu0 %v3105, 72
    %v3912 = vpop.permute.xlu0 %3911
    %3913 = vrot.lane.b32.xlu0 %v3106, 72
    %v3914 = vpop.permute.xlu0 %3913
    %3915 = vrot.lane.b32.xlu0 %v3107, 72
    %v3916 = vpop.permute.xlu0 %3915
    %3917 = vrot.lane.b32.xlu0 %v3108, 72
    %v3918 = vpop.permute.xlu0 %3917
    %3919 = vrot.lane.b32.xlu0 %v3109, 72
    %v3920 = vpop.permute.xlu0 %3919
    %3921 = vrot.lane.b32.xlu0 %v3110, 72
    %v3922 = vpop.permute.xlu0 %3921
    %3923 = vrot.lane.b32.xlu0 %v3111, 72
    %v3924 = vpop.permute.xlu0 %3923
    %3925 = vrot.lane.b32.xlu0 %v3112, 72
    %v3926 = vpop.permute.xlu0 %3925
    %3935 = vmatpush.bf16.msra.mxu0 %v3926
    %3936 = vmatpush.bf16.msra.mxu0 %v3924
    %3937 = vmatpush.bf16.msra.mxu0 %v3922
    %3938 = vmatpush.bf16.msra.mxu0 %v3920
    %3939 = vmatpush.bf16.msra.mxu0 %v3918
    %3940 = vmatpush.bf16.msra.mxu0 %v3916
    %3941 = vmatpush.bf16.msra.mxu0 %v3914
    %3942 = vmatpush.bf16.msra.mxu0 %v3912
    %3943 = vmatmul.bf16.gmra.mxu0 %v3909
    %v3944 = vpop.f32.mrf.mxu0
    %v3945 = vadd.f32 0.0, %v3944
    %v3946 = vpop.f32.mrf.mxu0
    %3947 = vdwg.mxu0
    %3948 = vrot.lane.b32.xlu0 %v3185, 72
    %v3949 = vpop.permute.xlu0 %3948
    %3950 = vrot.lane.b32.xlu0 %v3186, 72
    %v3951 = vpop.permute.xlu0 %3950
    %3952 = vrot.lane.b32.xlu0 %v3187, 72
    %v3953 = vpop.permute.xlu0 %3952
    %3954 = vrot.lane.b32.xlu0 %v3188, 72
    %v3955 = vpop.permute.xlu0 %3954
    %3956 = vrot.lane.b32.xlu0 %v3189, 72
    %v3957 = vpop.permute.xlu0 %3956
    %3958 = vrot.lane.b32.xlu0 %v3190, 72
    %v3959 = vpop.permute.xlu0 %3958
    %3960 = vrot.lane.b32.xlu0 %v3191, 72
    %v3961 = vpop.permute.xlu0 %3960
    %3962 = vrot.lane.b32.xlu0 %v3192, 72
    %v3963 = vpop.permute.xlu0 %3962
    %3972 = vmatpush.bf16.msra.mxu0 %v3963
    %3973 = vmatpush.bf16.msra.mxu0 %v3961
    %3974 = vmatpush.bf16.msra.mxu0 %v3959
    %3975 = vmatpush.bf16.msra.mxu0 %v3957
    %3976 = vmatpush.bf16.msra.mxu0 %v3955
    %3977 = vmatpush.bf16.msra.mxu0 %v3953
    %3978 = vmatpush.bf16.msra.mxu0 %v3951
    %3979 = vmatpush.bf16.msra.mxu0 %v3949
    %3980 = vmatmul.bf16.gmra.mxu0 %v3910
    %v3981 = vpop.f32.mrf.mxu0
    %v3982 = vadd.f32 0.0, %v3981
    %v3983 = vpop.f32.mrf.mxu0
    %3984 = vdwg.mxu0
    %3987 = vrot.lane.b32.xlu0 %v3945, 24
    %v3988 = vpop.permute.xlu0 %3987
    %3989 = vrot.lane.b32.xlu0 %v3982, 24
    %v3990 = vpop.permute.xlu0 %3989
    %3993 = vst.msk [vmem:[#allocation2] sm:$0xff] %vm777, %v3988
    %3994 = vst.msk [vmem:[#allocation2 + $0x8] sm:$0xff] %vm777, %v3990
    %v3995 = vld [vmem:[#allocation2] sm:$0xff]
    %v3996 = vld [vmem:[#allocation2 + $0x8] sm:$0xff]
    %v3997 = vadd.f32 %v2826, %v3995
    %v3998 = vadd.f32 %v2827, %v3996
    %s3999 = scalar_lea.vmem %s14, 1
    %v4000 = vld [vmem:[%s3999] sm:$0x1]
    %s4001 = scalar_lea.vmem %s15, 1
    %v4002 = vld [vmem:[%s4001] sm:$0x1]
    %v4003 = vsel %vm181, %v3997, 0.0
    %4004 = vadd.xlane.f32.xlu0 %v4003
    %v4005 = vpop.xlane.xlu0 %4004
    %v4006 = vsel %vm181, %v3998, 0.0
    %4007 = vadd.xlane.f32.xlu0 %v4006
    %v4008 = vpop.xlane.xlu0 %4007
    %v4009 = vmul.f32 %v4005, %v194
    %v4010 = vmul.f32 %v4008, %v194
    %v4011 = vsub.f32 %v3997, %v4009
    %v4012 = vsub.f32 %v3998, %v4010
    %v4013 = vmul.f32 %v4011, %v4011
    %v4014 = vmul.f32 %v4012, %v4012
    %v4015 = vsel %vm181, %v4013, 0.0
    %4016 = vadd.xlane.f32.xlu0 %v4015
    %v4017 = vpop.xlane.xlu0 %4016
    %v4018 = vsel %vm181, %v4014, 0.0
    %4019 = vadd.xlane.f32.xlu0 %v4018
    %v4020 = vpop.xlane.xlu0 %4019
    %v4021 = vmul.f32 %v4017, %v194
    %v4022 = vmul.f32 %v4020, %v194
    %v4023 = vadd.f32 %v4021, 1e-05
    %v4024 = vadd.f32 %v4022, 1e-05
    %v4025 = vrsqrt.pop %v4023
    %v4026 = vmul.f32 %v4025, %v4023
    %v4027 = vmul.f32 %v4026, %v4025
    %v4028 = vmul.f32 0.5, %v4027
    %v4029 = vsub.f32 1.5, %v4028
    %v4030 = vmul.f32 %v4025, %v4029
    %vm4031 = vweird.f32 %v4023
    %vm4032 = vweird.f32 %v4025
    %vm4033 = vmor %vm4031, %vm4032
    %v4034 = vsel %vm4033, %v4025, %v4030
    %v4035 = vrsqrt.pop %v4024
    %v4036 = vmul.f32 %v4035, %v4024
    %v4037 = vmul.f32 %v4036, %v4035
    %v4038 = vmul.f32 0.5, %v4037
    %v4039 = vsub.f32 1.5, %v4038
    %v4040 = vmul.f32 %v4035, %v4039
    %vm4041 = vweird.f32 %v4024
    %vm4042 = vweird.f32 %v4035
    %vm4043 = vmor %vm4041, %vm4042
    %v4044 = vsel %vm4043, %v4035, %v4040
    %v4045 = vmul.f32 %v4011, %v4034
    %v4046 = vmul.f32 %v4012, %v4044
    %v4048 = vperm.slane %v4000, 0
    %v4050 = vmul.f32 %v4045, %v4048
    %v4051 = vmul.f32 %v4046, %v4048
    %v4053 = vperm.slane %v4002, 0
    %v4055 = vadd.f32 %v4050, %v4053
    %v4056 = vadd.f32 %v4051, %v4053
    %v4057 = vpack.c.bf16 %v4056, %v4055
    %s4058 = scalar_lea.vmem %s16, 16
    %v4059 = vld [vmem:[%s4058] sm:$0xf]
    %v4060 = vld [vmem:[%s4058 + $0x4] sm:$0xf]
    %v4061 = vld [vmem:[%s4058 + $0x8] sm:$0xf]
    %v4062 = vld [vmem:[%s4058 + $0xc] sm:$0xf]
    %s4063 = scalar_lea.vmem %s17, 1
    %v4064 = vld [vmem:[%s4063] sm:$0x1]
    %v4066 = vperm.slane %v4064, 0
    %v4072 = vunpack.c.l.b16 %v4059
    %v4073 = vunpack.c.l.b16 %v4060
    %v4074 = vunpack.c.l.b16 %v4061
    %v4075 = vunpack.c.l.b16 %v4062
    %v4076 = vpack.c.b16 %v4073, %v4072
    %v4077 = vpack.c.b16 %v4075, %v4074
    %v4081 = vsel %vm181, %v4057, 0
    %4083 = vmatpush.bf16.msra.mxu0 0
    %4084 = vmatpush.bf16.msra.mxu0 0
    %4085 = vmatpush.bf16.msra.mxu0 0
    %4086 = vmatpush.bf16.msra.mxu0 0
    %4087 = vmatpush.bf16.msra.mxu0 0
    %4088 = vmatpush.bf16.msra.mxu0 0
    %4089 = vmatpush.bf16.msra.mxu0 %v4077
    %4090 = vmatpush.bf16.msra.mxu0 %v4076
    %4091 = vmatmul.bf16.gmra.mxu0 %v4081
    %v4092 = vpop.f32.mrf.mxu0
    %v4093 = vadd.f32 %v4066, %v4092
    %v4094 = vpop.f32.mrf.mxu0
    %v4095 = vadd.f32 %v4066, %v4094
    %4096 = vdwg.mxu0
    %v4097 = vmax.f32 %v4093, 0.0
    %v4098 = vmax.f32 %v4095, 0.0
    %v4099 = vpack.c.bf16 %v4098, %v4097
    %s4100 = scalar_lea.vmem %s18, 32
    %v4101 = vld [vmem:[%s4100] sm:$0xf]
    %v4102 = vld [vmem:[%s4100 + $0x4] sm:$0xf]
    %v4103 = vld [vmem:[%s4100 + $0x8] sm:$0xf]
    %v4104 = vld [vmem:[%s4100 + $0xc] sm:$0xf]
    %v4105 = vld [vmem:[%s4100 + $0x10] sm:$0xf]
    %v4106 = vld [vmem:[%s4100 + $0x14] sm:$0xf]
    %v4107 = vld [vmem:[%s4100 + $0x18] sm:$0xf]
    %v4108 = vld [vmem:[%s4100 + $0x1c] sm:$0xf]
    %v4117 = vunpack.c.l.b16 %v4101
    %v4118 = vunpack.c.l.b16 %v4102
    %v4119 = vunpack.c.l.b16 %v4103
    %v4120 = vunpack.c.l.b16 %v4104
    %v4121 = vunpack.c.l.b16 %v4105
    %v4122 = vunpack.c.l.b16 %v4106
    %v4123 = vunpack.c.l.b16 %v4107
    %v4124 = vunpack.c.l.b16 %v4108
    %v4125 = vpack.c.b16 %v4118, %v4117
    %v4126 = vpack.c.b16 %v4120, %v4119
    %v4127 = vpack.c.b16 %v4122, %v4121
    %v4128 = vpack.c.b16 %v4124, %v4123
    %v4134 = vsel %vm2206, %v4099, 0
    %4136 = vmatpush.bf16.msra.mxu0 0
    %4137 = vmatpush.bf16.msra.mxu0 0
    %4138 = vmatpush.bf16.msra.mxu0 0
    %4139 = vmatpush.bf16.msra.mxu0 0
    %4140 = vmatpush.bf16.msra.mxu0 %v4128
    %4141 = vmatpush.bf16.msra.mxu0 %v4127
    %4142 = vmatpush.bf16.msra.mxu0 %v4126
    %4143 = vmatpush.bf16.msra.mxu0 %v4125
    %4144 = vmatmul.bf16.gmra.mxu0 %v4134
    %v4145 = vpop.f32.mrf.mxu0
    %v4146 = vadd.f32 0.0, %v4145
    %v4147 = vpop.f32.mrf.mxu0
    %v4148 = vadd.f32 0.0, %v4147
    %4149 = vdwg.mxu0
    %v4150 = vadd.f32 %v3997, %v4146
    %v4151 = vadd.f32 %v3998, %v4148
    %s4152 = scalar_lea.vmem %s19, 1
    %v4153 = vld [vmem:[%s4152] sm:$0x1]
    %v4155 = vperm.slane %v4153, 0
    %v4157 = vadd.f32 %v4150, %v4155
    %v4158 = vadd.f32 %v4151, %v4155
    %v4159 = vld [vmem:[%s20] sm:$0x1]
    %v4160 = vld [vmem:[%s21] sm:$0x1]
    %v4161 = vsel %vm181, %v4157, 0.0
    %4162 = vadd.xlane.f32.xlu0 %v4161
    %v4163 = vpop.xlane.xlu0 %4162
    %v4164 = vsel %vm181, %v4158, 0.0
    %4165 = vadd.xlane.f32.xlu0 %v4164
    %v4166 = vpop.xlane.xlu0 %4165
    %v4167 = vmul.f32 %v4163, %v194
    %v4168 = vmul.f32 %v4166, %v194
    %v4169 = vsub.f32 %v4157, %v4167
    %v4170 = vsub.f32 %v4158, %v4168
    %v4171 = vmul.f32 %v4169, %v4169
    %v4172 = vmul.f32 %v4170, %v4170
    %v4173 = vsel %vm181, %v4171, 0.0
    %4174 = vadd.xlane.f32.xlu0 %v4173
    %v4175 = vpop.xlane.xlu0 %4174
    %v4176 = vsel %vm181, %v4172, 0.0
    %4177 = vadd.xlane.f32.xlu0 %v4176
    %v4178 = vpop.xlane.xlu0 %4177
    %v4179 = vmul.f32 %v4175, %v194
    %v4180 = vmul.f32 %v4178, %v194
    %v4181 = vadd.f32 %v4179, 1e-05
    %v4182 = vadd.f32 %v4180, 1e-05
    %v4183 = vrsqrt.pop %v4181
    %v4184 = vmul.f32 %v4183, %v4181
    %v4185 = vmul.f32 %v4184, %v4183
    %v4186 = vmul.f32 0.5, %v4185
    %v4187 = vsub.f32 1.5, %v4186
    %v4188 = vmul.f32 %v4183, %v4187
    %vm4189 = vweird.f32 %v4181
    %vm4190 = vweird.f32 %v4183
    %vm4191 = vmor %vm4189, %vm4190
    %v4192 = vsel %vm4191, %v4183, %v4188
    %v4193 = vrsqrt.pop %v4182
    %v4194 = vmul.f32 %v4193, %v4182
    %v4195 = vmul.f32 %v4194, %v4193
    %v4196 = vmul.f32 0.5, %v4195
    %v4197 = vsub.f32 1.5, %v4196
    %v4198 = vmul.f32 %v4193, %v4197
    %vm4199 = vweird.f32 %v4182
    %vm4200 = vweird.f32 %v4193
    %vm4201 = vmor %vm4199, %vm4200
    %v4202 = vsel %vm4201, %v4193, %v4198
    %v4203 = vmul.f32 %v4169, %v4192
    %v4204 = vmul.f32 %v4170, %v4202
    %v4206 = vperm.slane %v4159, 0
    %v4208 = vmul.f32 %v4203, %v4206
    %v4209 = vmul.f32 %v4204, %v4206
    %v4211 = vperm.slane %v4160, 0
    %v4213 = vadd.f32 %v4208, %v4211
    %v4214 = vadd.f32 %v4209, %v4211
    %v4215 = vpack.c.bf16 %v4214, %v4213
    %v4216 = vld [vmem:[%s22] sm:$0xf]
    %v4217 = vld [vmem:[%s22 + $0x4] sm:$0xf]
    %v4218 = vld [vmem:[%s22 + $0x8] sm:$0xf]
    %v4219 = vld [vmem:[%s22 + $0xc] sm:$0xf]
    %v4224 = vunpack.c.l.b16 %v4216
    %v4225 = vunpack.c.l.b16 %v4217
    %v4226 = vunpack.c.l.b16 %v4218
    %v4227 = vunpack.c.l.b16 %v4219
    %v4228 = vpack.c.b16 %v4225, %v4224
    %v4229 = vpack.c.b16 %v4227, %v4226
    %v4233 = vsel %vm181, %v4215, 0
    %4235 = vmatpush.bf16.msra.mxu0 0
    %4236 = vmatpush.bf16.msra.mxu0 0
    %4237 = vmatpush.bf16.msra.mxu0 0
    %4238 = vmatpush.bf16.msra.mxu0 0
    %4239 = vmatpush.bf16.msra.mxu0 0
    %4240 = vmatpush.bf16.msra.mxu0 0
    %4241 = vmatpush.bf16.msra.mxu0 %v4229
    %4242 = vmatpush.bf16.msra.mxu0 %v4228
    %4243 = vmatmul.bf16.gmra.mxu0 %v4233
    %v4244 = vpop.f32.mrf.mxu0
    %v4245 = vadd.f32 0.0, %v4244
    %v4246 = vpop.f32.mrf.mxu0
    %v4247 = vadd.f32 0.0, %v4246
    %4248 = vdwg.mxu0
    %vm4249 = vcmp.ge.s32.totalorder %v149, 45
    %v4250 = vsel %vm4249, -1e+30, %v4245
    %v4251 = vsel %vm4249, -1e+30, %v4247
    %4252 = vmax.xlane.f32.xlu0 %v4250
    %v4253 = vpop.xlane.xlu0 %4252
    %4254 = vmax.xlane.f32.xlu0 %v4251
    %v4255 = vpop.xlane.xlu0 %4254
    %v4256 = vsub.f32 %v4250, %v4253
    %v4257 = vsub.f32 %v4251, %v4255
    %v4258 = vmul.f32 %v4256, 1.442695
    %v4259 = vpow.pop %v4258
    %v4260 = vmul.f32 %v4257, 1.442695
    %v4261 = vpow.pop %v4260
    %4262 = vadd.xlane.f32.xlu0 %v4259
    %v4263 = vpop.xlane.xlu0 %4262
    %4264 = vadd.xlane.f32.xlu0 %v4261
    %v4265 = vpop.xlane.xlu0 %4264
    %v4266 = vlog2.pop %v4263
    %v4267 = vmul.f32 %v4266, 0.6931472
    %v4268 = vlog2.pop %v4265
    %v4269 = vmul.f32 %v4268, 0.6931472
    %v4270 = vsub.f32 %v4256, %v4267
    %v4271 = vsub.f32 %v4257, %v4269
    %4272 = vst [vmem:[#allocation3] sm:$0xff] %v4270
    %4273 = vst [vmem:[#allocation3 + $0x8] sm:$0xff] %v4271
    // Predicated region
    $region94: #{tpu_custom_call.1} parent=1 // pred_check
      _
    $region95: #{tpu_custom_call.1} parent=1 // pred_check_branch
      %4275 = sbr.rel (0) target = $region97
    $region96: #{tpu_custom_call.1} parent=1 // pred_region
      %4277 = vsyncadd [#allocation4], 0
      %s4278 = sshll.u32 [#allocation3], 4
      %s4279 = int_to_ptr.vmem [resolvable:$true] %s4278
      %s4280 = sshll.u32 %s23, 4
      %s4281 = int_to_ptr.hbm [resolvable:$true] %s4280
      %4286 = dma.vmem_to_hbm [thread:$0]  %s4279, 256, %s4281, [#allocation4], 128, 128, 8
    $region97: #{tpu_custom_call.1} parent=1 // pred_fallthru
      _
    // Predicated region
    $region98: #{tpu_custom_call.1} parent=1 // pred_check
      _
    $region99: #{tpu_custom_call.1} parent=1 // pred_check_branch
      %4288 = sbr.rel (0) target = $region101
    $region100: #{tpu_custom_call.1} parent=1 // pred_region
      %4290 = dma.done [#allocation4], 256
    $region101: #{tpu_custom_call.1} parent=1 // pred_fallthru
      _
    %4291 = vsyncpa [#allocation4], 1

</llo_original>
